<compile_context>
chip_gen: v7x
topology: tpu7x:2x2x1
jax: 0.10.0
libtpu: 0.0.40
codegen_flags: <defaults>
</compile_context>

<pallas_src>
import functools

import jax
import jax.numpy as jnp
from jax.experimental import pallas as pl
from jax.experimental.pallas import tpu as pltpu

ATTN_NEG_SLOPE = 0.2          # GATConv leaky_relu on attention logits
ACT_NEG_SLOPE = 0.01 * 0.2    # GATConv activation (0.01) o GATModel leaky (0.2)
BN_EPS = 1e-5
MASK_VAL = -1e30              # keep masked logits in f32 (bf16 would saturate)


# ---------------------------------------------------------------------------
# 1. projection: fc, attention logits el/er, residual projection (node-tiled)
# ---------------------------------------------------------------------------
def _project_kernel(x_ref, wfc_ref, al_ref, ar_ref, wres_ref,
                    feat_ref, el_ref, er_ref, res_ref):
    xb = x_ref[...].astype(jnp.bfloat16)                                   # bf16 MXU inputs
    h = jnp.dot(xb, wfc_ref[...], preferred_element_type=jnp.float32)     # (TM, C) f32
    hb = h.astype(jnp.bfloat16)
    feat_ref[...] = hb                                                     # src feats (bf16)
    # el[n, h] = sum_d h[n, h*D+d] * attn_l[h, d]  ==  h @ Al  (Al block-diag)
    el_ref[...] = jnp.dot(hb, al_ref[...], preferred_element_type=jnp.float32)
    er_ref[...] = jnp.dot(hb, ar_ref[...], preferred_element_type=jnp.float32)
    # residual branch: res_fc(x)
    res_ref[...] = jnp.dot(xb, wres_ref[...], preferred_element_type=jnp.float32)


def fc_project(x, wfc_t, al_mat, ar_mat, wres_t, *, tile_m=128):
    N, F = x.shape
    C = wfc_t.shape[1]
    H = al_mat.shape[1]
    assert N % tile_m == 0
    return pl.pallas_call(
        _project_kernel,
        out_shape=(
            jax.ShapeDtypeStruct((N, C), jnp.bfloat16),   # projected source feats
            jax.ShapeDtypeStruct((N, H), jnp.float32),    # el
            jax.ShapeDtypeStruct((N, H), jnp.float32),    # er
            jax.ShapeDtypeStruct((N, C), jnp.float32),    # residual
        ),
        grid=(N // tile_m,),
        in_specs=[
            pl.BlockSpec((tile_m, F), lambda i: (i, 0)),
            pl.BlockSpec((F, C), lambda i: (0, 0)),
            pl.BlockSpec((C, H), lambda i: (0, 0)),
            pl.BlockSpec((C, H), lambda i: (0, 0)),
            pl.BlockSpec((F, C), lambda i: (0, 0)),
        ],
        out_specs=(
            pl.BlockSpec((tile_m, C), lambda i: (i, 0)),
            pl.BlockSpec((tile_m, H), lambda i: (i, 0)),
            pl.BlockSpec((tile_m, H), lambda i: (i, 0)),
            pl.BlockSpec((tile_m, C), lambda i: (i, 0)),
        ),
        compiler_params=pltpu.CompilerParams(dimension_semantics=("parallel",)),
    )(x, wfc_t, al_mat, ar_mat, wres_t)


# ---------------------------------------------------------------------------
# 2. flash-style tiled edge-softmax + neighbor aggregation (+ residual + bias)
# ---------------------------------------------------------------------------
def _attn_kernel(adj_ref, el_ref, er_ref, feat_ref, res_ref, bias_ref,
                 z_ref, m_sc, l_sc, acc_sc, *, num_heads, head_dim):
    u = pl.program_id(1)

    @pl.when(u == 0)
    def _():
        m_sc[...] = jnp.full(m_sc.shape, MASK_VAL, jnp.float32)
        l_sc[...] = jnp.zeros(l_sc.shape, jnp.float32)
        acc_sc[...] = jnp.zeros(acc_sc.shape, jnp.float32)

    mask = adj_ref[...] > 0          # (TV, TU): adj tile DMA'd once per grid step,
    feat = feat_ref[...]             # reused by every head in the unrolled loop below
    H, D = num_heads, head_dim

    for h in range(H):                                     # static unroll over heads
        el_row = el_ref[pl.ds(h, 1), :]                    # (1, TU)  source term
        er_col = er_ref[:, pl.ds(h, 1)]                    # (TV, 1)  destination term
        e = el_row + er_col                                # e[v, u] = el[u] + er[v]
        e = jnp.where(e > 0, e, ATTN_NEG_SLOPE * e)        # LeakyReLU(0.2)
        e = jnp.where(mask, e, MASK_VAL)                   # mask non-edges (f32)

        m_old = m_sc[:, pl.ds(h, 1)]                       # (TV, 1)
        m_new = jnp.maximum(m_old, jnp.max(e, axis=1, keepdims=True))
        alpha = jnp.exp(m_old - m_new)
        p = jnp.where(mask, jnp.exp(e - m_new), 0.0)

        l_sc[:, pl.ds(h, 1)] = alpha * l_sc[:, pl.ds(h, 1)] + jnp.sum(p, axis=1, keepdims=True)
        pv = jnp.dot(p.astype(jnp.bfloat16), feat[:, h * D:(h + 1) * D],
                     preferred_element_type=jnp.float32)   # (TV, D) bf16 MXU, f32 acc
        acc_sc[:, pl.ds(h * D, D)] = alpha * acc_sc[:, pl.ds(h * D, D)] + pv
        m_sc[:, pl.ds(h, 1)] = m_new

    @pl.when(u == pl.num_programs(1) - 1)
    def _():
        # Guard denom == 0 (zero in-degree): aggregated part -> 0, matching DGL's
        # empty message sum under allow_zero_in_degree=True.
        inv_l = pl.reciprocal(jnp.maximum(l_sc[...], 1e-20), approx=True)   # (TV, H)
        acc = acc_sc[...]
        out = jnp.concatenate(
            [acc[:, h * D:(h + 1) * D] * inv_l[:, h:h + 1] for h in range(H)], axis=1)
        # fused residual + bias; single lane-dense (TV, C) store
        z_ref[...] = out + res_ref[...] + bias_ref[...]


def gat_attention(adj, el_hn, er_nh, feat_src, res, bias_row, *,
                  num_heads, head_dim, tile_v=128, tile_u=128):
    N = adj.shape[0]
    C = num_heads * head_dim
    assert N % tile_v == 0 and N % tile_u == 0
    kernel = functools.partial(_attn_kernel, num_heads=num_heads, head_dim=head_dim)
    return pl.pallas_call(
        kernel,
        out_shape=jax.ShapeDtypeStruct((N, C), jnp.float32),
        grid=(N // tile_v, N // tile_u),                    # reduction (u) axis innermost
        in_specs=[
            pl.BlockSpec((tile_v, tile_u), lambda v, u: (v, u)),     # adj (bf16), streamed
            pl.BlockSpec((num_heads, tile_u), lambda v, u: (0, u)),  # el, head-major (H, N)
            pl.BlockSpec((tile_v, num_heads), lambda v, u: (v, 0)),  # er, node-major (N, H)
            pl.BlockSpec((tile_u, C), lambda v, u: (u, 0)),          # source feats (bf16)
            pl.BlockSpec((tile_v, C), lambda v, u: (v, 0)),          # residual (resident)
            pl.BlockSpec((1, C), lambda v, u: (0, 0)),               # bias
        ],
        out_specs=pl.BlockSpec((tile_v, C), lambda v, u: (v, 0)),    # lane-dense slab
        scratch_shapes=[
            pltpu.VMEM((tile_v, num_heads), jnp.float32),   # running max
            pltpu.VMEM((tile_v, num_heads), jnp.float32),   # running denominator
            pltpu.VMEM((tile_v, C), jnp.float32),           # running weighted sum
        ],
        compiler_params=pltpu.CompilerParams(
            dimension_semantics=("parallel", "arbitrary")),
    )(adj, el_hn, er_nh, feat_src, res, bias_row)


# ---------------------------------------------------------------------------
# 3. tile-safe BatchNorm statistics (sum, sum of squares over nodes)
# ---------------------------------------------------------------------------
def _stats_kernel(z_ref, sum_ref, ssq_ref):
    @pl.when(pl.program_id(0) == 0)
    def _():
        sum_ref[...] = jnp.zeros(sum_ref.shape, jnp.float32)
        ssq_ref[...] = jnp.zeros(ssq_ref.shape, jnp.float32)
    z = z_ref[...]
    sum_ref[...] += jnp.sum(z, axis=0, keepdims=True)
    ssq_ref[...] += jnp.sum(z * z, axis=0, keepdims=True)


def bn_stats(z, *, tile_m=128):
    N, C = z.shape
    assert N % tile_m == 0
    return pl.pallas_call(
        _stats_kernel,
        out_shape=(jax.ShapeDtypeStruct((1, C), jnp.float32),
                   jax.ShapeDtypeStruct((1, C), jnp.float32)),
        grid=(N // tile_m,),
        in_specs=[pl.BlockSpec((tile_m, C), lambda i: (i, 0))],
        out_specs=(pl.BlockSpec((1, C), lambda i: (0, 0)),
                   pl.BlockSpec((1, C), lambda i: (0, 0))),
        compiler_params=pltpu.CompilerParams(dimension_semantics=("arbitrary",)),
    )(z)


# ---------------------------------------------------------------------------
# 4. BatchNorm (training-mode stats, gamma=1, beta=0) + fused leaky relus
# ---------------------------------------------------------------------------
def _bn_act_kernel(z_ref, sum_ref, ssq_ref, y_ref, *, n_nodes):
    z = z_ref[...]
    inv_n = 1.0 / n_nodes
    mean = sum_ref[...] * inv_n
    var = jnp.maximum(ssq_ref[...] * inv_n - mean * mean, 0.0)   # biased variance
    y = (z - mean) * jax.lax.rsqrt(var + BN_EPS)
    # leaky_relu(0.01) from GATConv, then leaky_relu(0.2) from GATModel:
    # composition preserves sign -> single leaky relu with slope 0.002.
    y_ref[...] = jnp.where(y > 0, y, ACT_NEG_SLOPE * y)


def bn_act(z, s, ss, *, n_nodes, tile_m=128):
    N, C = z.shape
    assert N % tile_m == 0
    kernel = functools.partial(_bn_act_kernel, n_nodes=n_nodes)
    return pl.pallas_call(
        kernel,
        out_shape=jax.ShapeDtypeStruct((N, C), jnp.float32),
        grid=(N // tile_m,),
        in_specs=[pl.BlockSpec((tile_m, C), lambda i: (i, 0)),
                  pl.BlockSpec((1, C), lambda i: (0, 0)),
                  pl.BlockSpec((1, C), lambda i: (0, 0))],
        out_specs=pl.BlockSpec((tile_m, C), lambda i: (i, 0)),
        compiler_params=pltpu.CompilerParams(dimension_semantics=("parallel",)),
    )(z, s, ss)


# ---------------------------------------------------------------------------
# GATModel forward (num_layers=1, dropout=0, do_train=False)
# ---------------------------------------------------------------------------
def gat_model_forward(params, adj_bf16, feat, *, num_heads, out_per_head):
    N, _ = feat.shape
    H, D = num_heads, out_per_head
    C = H * D

    # Tiny parameter-side prep (weights only, negligible traffic):
    wfc_t = params["fc_weight"].T.astype(jnp.bfloat16)     # (F, C)
    wres_t = params["res_weight"].T.astype(jnp.bfloat16)   # (F, C)
    attn_l = params["attn_l"][0]                           # (H, D)
    attn_r = params["attn_r"][0]                           # (H, D)
    eye = jnp.eye(H, dtype=attn_l.dtype)
    # Block-diagonal (C, H) matrices so el/er become one small MXU matmul in-kernel.
    al_mat = (attn_l[:, :, None] * eye[:, None, :]).reshape(C, H).astype(jnp.bfloat16)
    ar_mat = (attn_r[:, :, None] * eye[:, None, :]).reshape(C, H).astype(jnp.bfloat16)

    # 1. projection + attention logits + residual projection  [Pallas]
    feat_src, el_nh, er_nh, res = fc_project(feat, wfc_t, al_mat, ar_mat, wres_t)
    el_hn = el_nh.T        # (H, N): tiny layout fix so el enters the attention
                           # kernel as lane-dense rows (only N*H*4 bytes)

    # 2. edge softmax + aggregation + residual + bias         [Pallas, flash-tiled]
    bias_row = params["bias"][None, :]                     # (1, C)
    z = gat_attention(adj_bf16, el_hn, er_nh, feat_src, res, bias_row,
                      num_heads=H, head_dim=D)             # (N, C)

    # 3/4. BatchNorm1d (training-mode batch stats) + leaky activations [Pallas]
    s, ss = bn_stats(z)
    y = bn_act(z, s, ss, n_nodes=N)                        # (N, C)
    return y


# ---------------------------------------------------------------------------
# Deterministic parameter init (xavier_normal, gain for 'relu' = sqrt(2))
# ---------------------------------------------------------------------------
def init_params(key, in_feats, out_per_head, num_heads):
    gain = jnp.sqrt(2.0)
    H, D, F = num_heads, out_per_head, in_feats
    C = H * D
    k_fc, k_al, k_ar, k_res = jax.random.split(key, 4)

    std_fc = gain * jnp.sqrt(2.0 / (F + C))
    fc_weight = std_fc * jax.random.normal(k_fc, (C, F), jnp.float32)
    res_weight = std_fc * jax.random.normal(k_res, (C, F), jnp.float32)

    # attn_l / attn_r: (1, H, D); torch fan_in = H*D, fan_out = D
    std_a = gain * jnp.sqrt(2.0 / (H * D + D))
    attn_l = std_a * jax.random.normal(k_al, (1, H, D), jnp.float32)
    attn_r = std_a * jax.random.normal(k_ar, (1, H, D), jnp.float32)

    bias = jnp.zeros((C,), jnp.float32)   # BatchNorm gamma=1, beta=0 implicit
    return {"fc_weight": fc_weight, "res_weight": res_weight,
            "attn_l": attn_l, "attn_r": attn_r, "bias": bias}


if __name__ == "__main__":
    key = jax.random.PRNGKey(0)
    k_param, k_feat, k_adj = jax.random.split(key, 3)

    N = 256            # nodes (multiple of the 128 node-tile)
    IN_FEATS = 64
    NUM_HEADS = 4
    OUT_FEATS = 128    # total channels; per-head D = 32 -> H*D = 128 lane-dense
    D = OUT_FEATS // NUM_HEADS

    params = init_params(k_param, IN_FEATS, D, NUM_HEADS)
    feat = jax.random.normal(k_feat, (N, IN_FEATS), jnp.float32)

    # Random directed graph with self-loops; adjacency shipped as bf16 mask.
    adj = jax.random.bernoulli(k_adj, 0.05, (N, N)).astype(jnp.float32)
    adj = jnp.maximum(adj, jnp.eye(N, dtype=jnp.float32))   # adj[v, u]: edge u -> v
    adj_bf16 = adj.astype(jnp.bfloat16)

    forward = jax.jit(functools.partial(
        gat_model_forward, num_heads=NUM_HEADS, out_per_head=D))
    out = forward(params, adj_bf16, feat)
    out = jax.block_until_ready(out)

    assert out.shape == (N, OUT_FEATS)
    assert bool(jnp.all(jnp.isfinite(out)))
    print("KERNEL_OK")
</pallas_src>

<mosaic_0001>
module attributes {stable_mosaic.version = 11 : i64} {
  func.func @_project_kernel(%arg0: i32, %arg1: memref<128x64xf32, #tpu.memory_space<vmem>>, %arg2: memref<64x128xbf16, #tpu.memory_space<vmem>>, %arg3: memref<128x4xbf16, #tpu.memory_space<vmem>>, %arg4: memref<128x4xbf16, #tpu.memory_space<vmem>>, %arg5: memref<64x128xbf16, #tpu.memory_space<vmem>>, %arg6: memref<128x128xbf16, #tpu.memory_space<vmem>>, %arg7: memref<128x4xf32, #tpu.memory_space<vmem>>, %arg8: memref<128x4xf32, #tpu.memory_space<vmem>>, %arg9: memref<128x128xf32, #tpu.memory_space<vmem>>) attributes {dimension_semantics = [#tpu.dimension_semantics<parallel>], iteration_bounds = array<i64: 2>, scalar_prefetch = 0 : i64, scratch_operands = 0 : i64, tpu.core_type = #tpu.core_type<tc>, window_params = [{transform_indices = @transform_0, window_bounds = array<i64: 128, 64>}, {pipeline_mode = #tpu.pipeline_mode<synchronous>, transform_indices = @transform_1, window_bounds = array<i64: 64, 128>}, {pipeline_mode = #tpu.pipeline_mode<synchronous>, transform_indices = @transform_2, window_bounds = array<i64: 128, 4>}, {pipeline_mode = #tpu.pipeline_mode<synchronous>, transform_indices = @transform_3, window_bounds = array<i64: 128, 4>}, {pipeline_mode = #tpu.pipeline_mode<synchronous>, transform_indices = @transform_4, window_bounds = array<i64: 64, 128>}, {transform_indices = @transform_5, window_bounds = array<i64: 128, 128>}, {transform_indices = @transform_6, window_bounds = array<i64: 128, 4>}, {transform_indices = @transform_7, window_bounds = array<i64: 128, 4>}, {transform_indices = @transform_8, window_bounds = array<i64: 128, 128>}]} {
    %c0 = arith.constant 0 : index
    %c0_0 = arith.constant 0 : index
    %0 = vector.load %arg1[%c0, %c0_0] : memref<128x64xf32, #tpu.memory_space<vmem>>, vector<128x64xf32>
    %1 = arith.truncf %0 : vector<128x64xf32> to vector<128x64xbf16>
    %c0_1 = arith.constant 0 : index
    %c0_2 = arith.constant 0 : index
    %2 = vector.load %arg2[%c0_1, %c0_2] : memref<64x128xbf16, #tpu.memory_space<vmem>>, vector<64x128xbf16>
    %cst = arith.constant dense<0.000000e+00> : vector<128x128xf32>
    %3 = tpu.matmul %1, %2, %cst {dimension_numbers = #tpu.dot_dimension_numbers<[1], [0], [0], [1], [0, 0, 1, 1], [], []>} : vector<128x64xbf16>, vector<64x128xbf16>, vector<128x128xf32> -> vector<128x128xf32>
    %4 = arith.truncf %3 : vector<128x128xf32> to vector<128x128xbf16>
    %c0_3 = arith.constant 0 : index
    %c0_4 = arith.constant 0 : index
    %5 = vector.load %arg6[%c0_3, %c0_4] : memref<128x128xbf16, #tpu.memory_space<vmem>>, vector<128x128xbf16>
    tpu.vector_store %arg6[%c0_3, %c0_4], %4 {strides = array<i32>} : memref<128x128xbf16, #tpu.memory_space<vmem>>, vector<128x128xbf16>,
    %c0_5 = arith.constant 0 : index
    %c0_6 = arith.constant 0 : index
    %6 = vector.load %arg3[%c0_5, %c0_6] : memref<128x4xbf16, #tpu.memory_space<vmem>>, vector<128x4xbf16>
    %cst_7 = arith.constant dense<0.000000e+00> : vector<128x4xf32>
    %7 = tpu.matmul %4, %6, %cst_7 {dimension_numbers = #tpu.dot_dimension_numbers<[1], [0], [0], [1], [0, 0, 1, 1], [], []>} : vector<128x128xbf16>, vector<128x4xbf16>, vector<128x4xf32> -> vector<128x4xf32>
    %c0_8 = arith.constant 0 : index
    %c0_9 = arith.constant 0 : index
    %8 = vector.load %arg7[%c0_8, %c0_9] : memref<128x4xf32, #tpu.memory_space<vmem>>, vector<128x4xf32>
    tpu.vector_store %arg7[%c0_8, %c0_9], %7 {strides = array<i32>} : memref<128x4xf32, #tpu.memory_space<vmem>>, vector<128x4xf32>,
    %c0_10 = arith.constant 0 : index
    %c0_11 = arith.constant 0 : index
    %9 = vector.load %arg4[%c0_10, %c0_11] : memref<128x4xbf16, #tpu.memory_space<vmem>>, vector<128x4xbf16>
    %cst_12 = arith.constant dense<0.000000e+00> : vector<128x4xf32>
    %10 = tpu.matmul %4, %9, %cst_12 {dimension_numbers = #tpu.dot_dimension_numbers<[1], [0], [0], [1], [0, 0, 1, 1], [], []>} : vector<128x128xbf16>, vector<128x4xbf16>, vector<128x4xf32> -> vector<128x4xf32>
    %c0_13 = arith.constant 0 : index
    %c0_14 = arith.constant 0 : index
    %11 = vector.load %arg8[%c0_13, %c0_14] : memref<128x4xf32, #tpu.memory_space<vmem>>, vector<128x4xf32>
    tpu.vector_store %arg8[%c0_13, %c0_14], %10 {strides = array<i32>} : memref<128x4xf32, #tpu.memory_space<vmem>>, vector<128x4xf32>,
    %c0_15 = arith.constant 0 : index
    %c0_16 = arith.constant 0 : index
    %12 = vector.load %arg5[%c0_15, %c0_16] : memref<64x128xbf16, #tpu.memory_space<vmem>>, vector<64x128xbf16>
    %cst_17 = arith.constant dense<0.000000e+00> : vector<128x128xf32>
    %13 = tpu.matmul %1, %12, %cst_17 {dimension_numbers = #tpu.dot_dimension_numbers<[1], [0], [0], [1], [0, 0, 1, 1], [], []>} : vector<128x64xbf16>, vector<64x128xbf16>, vector<128x128xf32> -> vector<128x128xf32>
    %c0_18 = arith.constant 0 : index
    %c0_19 = arith.constant 0 : index
    %14 = vector.load %arg9[%c0_18, %c0_19] : memref<128x128xf32, #tpu.memory_space<vmem>>, vector<128x128xf32>
    tpu.vector_store %arg9[%c0_18, %c0_19], %13 {strides = array<i32>} : memref<128x128xf32, #tpu.memory_space<vmem>>, vector<128x128xf32>,
    return
  }
  func.func @transform_0(%arg0: i32) -> (i32, i32) {
    %c0_i32 = arith.constant 0 : i32
    %c0_i32_0 = arith.constant 0 : i32
    return %arg0, %c0_i32 : i32, i32
  }
  func.func @transform_1(%arg0: i32) -> (i32, i32) {
    %c0_i32 = arith.constant 0 : i32
    %c0_i32_0 = arith.constant 0 : i32
    %c0_i32_1 = arith.constant 0 : i32
    return %c0_i32, %c0_i32_0 : i32, i32
  }
  func.func @transform_2(%arg0: i32) -> (i32, i32) {
    %c0_i32 = arith.constant 0 : i32
    %c0_i32_0 = arith.constant 0 : i32
    %c0_i32_1 = arith.constant 0 : i32
    return %c0_i32, %c0_i32_0 : i32, i32
  }
  func.func @transform_3(%arg0: i32) -> (i32, i32) {
    %c0_i32 = arith.constant 0 : i32
    %c0_i32_0 = arith.constant 0 : i32
    %c0_i32_1 = arith.constant 0 : i32
    return %c0_i32, %c0_i32_0 : i32, i32
  }
  func.func @transform_4(%arg0: i32) -> (i32, i32) {
    %c0_i32 = arith.constant 0 : i32
    %c0_i32_0 = arith.constant 0 : i32
    %c0_i32_1 = arith.constant 0 : i32
    return %c0_i32, %c0_i32_0 : i32, i32
  }
  func.func @transform_5(%arg0: i32) -> (i32, i32) {
    %c0_i32 = arith.constant 0 : i32
    %c0_i32_0 = arith.constant 0 : i32
    return %arg0, %c0_i32 : i32, i32
  }
  func.func @transform_6(%arg0: i32) -> (i32, i32) {
    %c0_i32 = arith.constant 0 : i32
    %c0_i32_0 = arith.constant 0 : i32
    return %arg0, %c0_i32 : i32, i32
  }
  func.func @transform_7(%arg0: i32) -> (i32, i32) {
    %c0_i32 = arith.constant 0 : i32
    %c0_i32_0 = arith.constant 0 : i32
    return %arg0, %c0_i32 : i32, i32
  }
  func.func @transform_8(%arg0: i32) -> (i32, i32) {
    %c0_i32 = arith.constant 0 : i32
    %c0_i32_0 = arith.constant 0 : i32
    return %arg0, %c0_i32 : i32, i32
  }
}

module attributes {stable_mosaic.version = 11 : i64} {
  func.func @_stats_kernel(%arg0: i32, %arg1: memref<128x128xf32, #tpu.memory_space<vmem>>, %arg2: memref<1x128xf32, #tpu.memory_space<vmem>>, %arg3: memref<1x128xf32, #tpu.memory_space<vmem>>) attributes {dimension_semantics = [#tpu.dimension_semantics<arbitrary>], iteration_bounds = array<i64: 2>, scalar_prefetch = 0 : i64, scratch_operands = 0 : i64, tpu.core_type = #tpu.core_type<tc>, window_params = [{transform_indices = @transform_0, window_bounds = array<i64: 128, 128>}, {pipeline_mode = #tpu.pipeline_mode<synchronous>, transform_indices = @transform_1, window_bounds = array<i64: 1, 128>}, {pipeline_mode = #tpu.pipeline_mode<synchronous>, transform_indices = @transform_2, window_bounds = array<i64: 1, 128>}]} {
    %c0_i32 = arith.constant 0 : i32
    %0 = arith.cmpi eq, %arg0, %c0_i32 : i32
    %1 = arith.extui %0 : i1 to i32
    %c0_i32_0 = arith.constant 0 : i32
    %2 = arith.cmpi ne, %1, %c0_i32_0 : i32
    scf.if %2 {
      %cst_11 = arith.constant 0.000000e+00 : f32
      %15 = vector.broadcast %cst_11 : f32 to vector<1x128xf32>
      %c0_12 = arith.constant 0 : index
      %c0_13 = arith.constant 0 : index
      %16 = vector.load %arg2[%c0_12, %c0_13] : memref<1x128xf32, #tpu.memory_space<vmem>>, vector<1x128xf32>
      tpu.vector_store %arg2[%c0_12, %c0_13], %15 {strides = array<i32>} : memref<1x128xf32, #tpu.memory_space<vmem>>, vector<1x128xf32>,
      %cst_14 = arith.constant 0.000000e+00 : f32
      %17 = vector.broadcast %cst_14 : f32 to vector<1x128xf32>
      %c0_15 = arith.constant 0 : index
      %c0_16 = arith.constant 0 : index
      %18 = vector.load %arg3[%c0_15, %c0_16] : memref<1x128xf32, #tpu.memory_space<vmem>>, vector<1x128xf32>
      tpu.vector_store %arg3[%c0_15, %c0_16], %17 {strides = array<i32>} : memref<1x128xf32, #tpu.memory_space<vmem>>, vector<1x128xf32>,
    } else {
    }
    %c0 = arith.constant 0 : index
    %c0_1 = arith.constant 0 : index
    %3 = vector.load %arg1[%c0, %c0_1] : memref<128x128xf32, #tpu.memory_space<vmem>>, vector<128x128xf32>
    %c0_2 = arith.constant 0 : index
    %c0_3 = arith.constant 0 : index
    %4 = vector.load %arg2[%c0_2, %c0_3] : memref<1x128xf32, #tpu.memory_space<vmem>>, vector<1x128xf32>
    %cst = arith.constant dense<0.000000e+00> : vector<128xf32>
    %5 = vector.multi_reduction <add>, %3, %cst [0] : vector<128x128xf32> to vector<128xf32>
    %6 = vector.shape_cast %5 : vector<128xf32> to vector<1x128xf32>
    %7 = arith.addf %4, %6 : vector<1x128xf32>
    %c0_4 = arith.constant 0 : index
    %c0_5 = arith.constant 0 : index
    %8 = vector.load %arg2[%c0_4, %c0_5] : memref<1x128xf32, #tpu.memory_space<vmem>>, vector<1x128xf32>
    tpu.vector_store %arg2[%c0_4, %c0_5], %7 {strides = array<i32>} : memref<1x128xf32, #tpu.memory_space<vmem>>, vector<1x128xf32>,
    %c0_6 = arith.constant 0 : index
    %c0_7 = arith.constant 0 : index
    %9 = vector.load %arg3[%c0_6, %c0_7] : memref<1x128xf32, #tpu.memory_space<vmem>>, vector<1x128xf32>
    %10 = arith.mulf %3, %3 : vector<128x128xf32>
    %cst_8 = arith.constant dense<0.000000e+00> : vector<128xf32>
    %11 = vector.multi_reduction <add>, %10, %cst_8 [0] : vector<128x128xf32> to vector<128xf32>
    %12 = vector.shape_cast %11 : vector<128xf32> to vector<1x128xf32>
    %13 = arith.addf %9, %12 : vector<1x128xf32>
    %c0_9 = arith.constant 0 : index
    %c0_10 = arith.constant 0 : index
    %14 = vector.load %arg3[%c0_9, %c0_10] : memref<1x128xf32, #tpu.memory_space<vmem>>, vector<1x128xf32>
    tpu.vector_store %arg3[%c0_9, %c0_10], %13 {strides = array<i32>} : memref<1x128xf32, #tpu.memory_space<vmem>>, vector<1x128xf32>,
    return
  }
  func.func @transform_0(%arg0: i32) -> (i32, i32) {
    %c0_i32 = arith.constant 0 : i32
    %c0_i32_0 = arith.constant 0 : i32
    return %arg0, %c0_i32 : i32, i32
  }
  func.func @transform_1(%arg0: i32) -> (i32, i32) {
    %c0_i32 = arith.constant 0 : i32
    %c0_i32_0 = arith.constant 0 : i32
    %c0_i32_1 = arith.constant 0 : i32
    return %c0_i32, %c0_i32_0 : i32, i32
  }
  func.func @transform_2(%arg0: i32) -> (i32, i32) {
    %c0_i32 = arith.constant 0 : i32
    %c0_i32_0 = arith.constant 0 : i32
    %c0_i32_1 = arith.constant 0 : i32
    return %c0_i32, %c0_i32_0 : i32, i32
  }
}

module attributes {stable_mosaic.version = 11 : i64} {
  func.func @_bn_act_kernel(%arg0: i32, %arg1: memref<128x128xf32, #tpu.memory_space<vmem>>, %arg2: memref<1x128xf32, #tpu.memory_space<vmem>>, %arg3: memref<1x128xf32, #tpu.memory_space<vmem>>, %arg4: memref<128x128xf32, #tpu.memory_space<vmem>>) attributes {dimension_semantics = [#tpu.dimension_semantics<parallel>], iteration_bounds = array<i64: 2>, scalar_prefetch = 0 : i64, scratch_operands = 0 : i64, tpu.core_type = #tpu.core_type<tc>, window_params = [{transform_indices = @transform_0, window_bounds = array<i64: 128, 128>}, {pipeline_mode = #tpu.pipeline_mode<synchronous>, transform_indices = @transform_1, window_bounds = array<i64: 1, 128>}, {pipeline_mode = #tpu.pipeline_mode<synchronous>, transform_indices = @transform_2, window_bounds = array<i64: 1, 128>}, {transform_indices = @transform_3, window_bounds = array<i64: 128, 128>}]} {
    %c0 = arith.constant 0 : index
    %c0_0 = arith.constant 0 : index
    %0 = vector.load %arg1[%c0, %c0_0] : memref<128x128xf32, #tpu.memory_space<vmem>>, vector<128x128xf32>
    %c0_1 = arith.constant 0 : index
    %c0_2 = arith.constant 0 : index
    %1 = vector.load %arg2[%c0_1, %c0_2] : memref<1x128xf32, #tpu.memory_space<vmem>>, vector<1x128xf32>
    %cst = arith.constant 3.906250e-03 : f32
    %2 = vector.broadcast %cst : f32 to vector<1x128xf32>
    %3 = arith.mulf %1, %2 : vector<1x128xf32>
    %c0_3 = arith.constant 0 : index
    %c0_4 = arith.constant 0 : index
    %4 = vector.load %arg3[%c0_3, %c0_4] : memref<1x128xf32, #tpu.memory_space<vmem>>, vector<1x128xf32>
    %cst_5 = arith.constant 3.906250e-03 : f32
    %5 = vector.broadcast %cst_5 : f32 to vector<1x128xf32>
    %6 = arith.mulf %4, %5 : vector<1x128xf32>
    %7 = arith.mulf %3, %3 : vector<1x128xf32>
    %8 = arith.subf %6, %7 : vector<1x128xf32>
    %cst_6 = arith.constant 0.000000e+00 : f32
    %9 = vector.broadcast %cst_6 : f32 to vector<1x128xf32>
    %10 = arith.maximumf %8, %9 : vector<1x128xf32>
    %11 = vector.broadcast %3 : vector<1x128xf32> to vector<128x128xf32>
    %12 = arith.subf %0, %11 : vector<128x128xf32>
    %cst_7 = arith.constant 9.99999974E-6 : f32
    %13 = vector.broadcast %cst_7 : f32 to vector<1x128xf32>
    %14 = arith.addf %10, %13 : vector<1x128xf32>
    %15 = math.rsqrt %14 : vector<1x128xf32>
    %16 = vector.broadcast %15 : vector<1x128xf32> to vector<128x128xf32>
    %17 = arith.mulf %12, %16 : vector<128x128xf32>
    %cst_8 = arith.constant 0.000000e+00 : f32
    %18 = vector.broadcast %cst_8 : f32 to vector<128x128xf32>
    %19 = arith.cmpf ogt, %17, %18 : vector<128x128xf32>
    %cst_9 = arith.constant 2.000000e-03 : f32
    %20 = vector.broadcast %cst_9 : f32 to vector<128x128xf32>
    %21 = arith.mulf %20, %17 : vector<128x128xf32>
    %22 = arith.select %19, %17, %21 : vector<128x128xi1>, vector<128x128xf32>
    %c0_10 = arith.constant 0 : index
    %c0_11 = arith.constant 0 : index
    %23 = vector.load %arg4[%c0_10, %c0_11] : memref<128x128xf32, #tpu.memory_space<vmem>>, vector<128x128xf32>
    tpu.vector_store %arg4[%c0_10, %c0_11], %22 {strides = array<i32>} : memref<128x128xf32, #tpu.memory_space<vmem>>, vector<128x128xf32>,
    return
  }
  func.func @transform_0(%arg0: i32) -> (i32, i32) {
    %c0_i32 = arith.constant 0 : i32
    %c0_i32_0 = arith.constant 0 : i32
    return %arg0, %c0_i32 : i32, i32
  }
  func.func @transform_1(%arg0: i32) -> (i32, i32) {
    %c0_i32 = arith.constant 0 : i32
    %c0_i32_0 = arith.constant 0 : i32
    %c0_i32_1 = arith.constant 0 : i32
    return %c0_i32, %c0_i32_0 : i32, i32
  }
  func.func @transform_2(%arg0: i32) -> (i32, i32) {
    %c0_i32 = arith.constant 0 : i32
    %c0_i32_0 = arith.constant 0 : i32
    %c0_i32_1 = arith.constant 0 : i32
    return %c0_i32, %c0_i32_0 : i32, i32
  }
  func.func @transform_3(%arg0: i32) -> (i32, i32) {
    %c0_i32 = arith.constant 0 : i32
    %c0_i32_0 = arith.constant 0 : i32
    return %arg0, %c0_i32 : i32, i32
  }
}

module attributes {stable_mosaic.version = 11 : i64} {
  func.func @_attn_kernel(%arg0: i32, %arg1: i32, %arg2: memref<128x128xbf16, #tpu.memory_space<vmem>>, %arg3: memref<4x128xf32, #tpu.memory_space<vmem>>, %arg4: memref<128x4xf32, #tpu.memory_space<vmem>>, %arg5: memref<128x128xbf16, #tpu.memory_space<vmem>>, %arg6: memref<128x128xf32, #tpu.memory_space<vmem>>, %arg7: memref<1x128xf32, #tpu.memory_space<vmem>>, %arg8: memref<128x128xf32, #tpu.memory_space<vmem>>, %arg9: memref<128x4xf32, #tpu.memory_space<vmem>>, %arg10: memref<128x4xf32, #tpu.memory_space<vmem>>, %arg11: memref<128x128xf32, #tpu.memory_space<vmem>>) attributes {dimension_semantics = [#tpu.dimension_semantics<parallel>, #tpu.dimension_semantics<arbitrary>], iteration_bounds = array<i64: 2, 2>, scalar_prefetch = 0 : i64, scratch_operands = 3 : i64, tpu.core_type = #tpu.core_type<tc>, window_params = [{transform_indices = @transform_0, window_bounds = array<i64: 128, 128>}, {transform_indices = @transform_1, window_bounds = array<i64: 4, 128>}, {transform_indices = @transform_2, window_bounds = array<i64: 128, 4>}, {transform_indices = @transform_3, window_bounds = array<i64: 128, 128>}, {transform_indices = @transform_4, window_bounds = array<i64: 128, 128>}, {pipeline_mode = #tpu.pipeline_mode<synchronous>, transform_indices = @transform_5, window_bounds = array<i64: 1, 128>}, {transform_indices = @transform_6, window_bounds = array<i64: 128, 128>}]} {
    %c0_i32 = arith.constant 0 : i32
    %0 = arith.cmpi eq, %arg1, %c0_i32 : i32
    %1 = arith.extui %0 : i1 to i32
    %c0_i32_0 = arith.constant 0 : i32
    %2 = arith.cmpi ne, %1, %c0_i32_0 : i32
    scf.if %2 {
      %cst_91 = arith.constant -1.000000e+30 : f32
      %162 = vector.broadcast %cst_91 : f32 to vector<128x4xf32>
      %c0_92 = arith.constant 0 : index
      %c0_93 = arith.constant 0 : index
      %163 = vector.load %arg9[%c0_92, %c0_93] : memref<128x4xf32, #tpu.memory_space<vmem>>, vector<128x4xf32>
      tpu.vector_store %arg9[%c0_92, %c0_93], %162 {strides = array<i32>} : memref<128x4xf32, #tpu.memory_space<vmem>>, vector<128x4xf32>,
      %cst_94 = arith.constant 0.000000e+00 : f32
      %164 = vector.broadcast %cst_94 : f32 to vector<128x4xf32>
      %c0_95 = arith.constant 0 : index
      %c0_96 = arith.constant 0 : index
      %165 = vector.load %arg10[%c0_95, %c0_96] : memref<128x4xf32, #tpu.memory_space<vmem>>, vector<128x4xf32>
      tpu.vector_store %arg10[%c0_95, %c0_96], %164 {strides = array<i32>} : memref<128x4xf32, #tpu.memory_space<vmem>>, vector<128x4xf32>,
      %cst_97 = arith.constant 0.000000e+00 : f32
      %166 = vector.broadcast %cst_97 : f32 to vector<128x128xf32>
      %c0_98 = arith.constant 0 : index
      %c0_99 = arith.constant 0 : index
      %167 = vector.load %arg11[%c0_98, %c0_99] : memref<128x128xf32, #tpu.memory_space<vmem>>, vector<128x128xf32>
      tpu.vector_store %arg11[%c0_98, %c0_99], %166 {strides = array<i32>} : memref<128x128xf32, #tpu.memory_space<vmem>>, vector<128x128xf32>,
    } else {
    }
    %c0 = arith.constant 0 : index
    %c0_1 = arith.constant 0 : index
    %3 = vector.load %arg2[%c0, %c0_1] : memref<128x128xbf16, #tpu.memory_space<vmem>>, vector<128x128xbf16>
    %cst = arith.constant 0.000000e+00 : bf16
    %4 = vector.broadcast %cst : bf16 to vector<128x128xbf16>
    %5 = arith.cmpf ogt, %3, %4 : vector<128x128xbf16>
    %c0_2 = arith.constant 0 : index
    %c0_3 = arith.constant 0 : index
    %6 = vector.load %arg5[%c0_2, %c0_3] : memref<128x128xbf16, #tpu.memory_space<vmem>>, vector<128x128xbf16>
    %c0_4 = arith.constant 0 : index
    %c0_5 = arith.constant 0 : index
    %7 = vector.load %arg3[%c0_4, %c0_5] : memref<4x128xf32, #tpu.memory_space<vmem>>, vector<1x128xf32>
    %c0_6 = arith.constant 0 : index
    %c0_7 = arith.constant 0 : index
    %8 = vector.load %arg4[%c0_6, %c0_7] : memref<128x4xf32, #tpu.memory_space<vmem>>, vector<128x1xf32>
    %9 = vector.broadcast %7 : vector<1x128xf32> to vector<128x128xf32>
    %10 = vector.broadcast %8 : vector<128x1xf32> to vector<128x128xf32>
    %11 = arith.addf %9, %10 : vector<128x128xf32>
    %cst_8 = arith.constant 0.000000e+00 : f32
    %12 = vector.broadcast %cst_8 : f32 to vector<128x128xf32>
    %13 = arith.cmpf ogt, %11, %12 : vector<128x128xf32>
    %cst_9 = arith.constant 2.000000e-01 : f32
    %14 = vector.broadcast %cst_9 : f32 to vector<128x128xf32>
    %15 = arith.mulf %14, %11 : vector<128x128xf32>
    %16 = arith.select %13, %11, %15 : vector<128x128xi1>, vector<128x128xf32>
    %cst_10 = arith.constant -1.000000e+30 : f32
    %17 = vector.broadcast %cst_10 : f32 to vector<128x128xf32>
    %18 = arith.select %5, %16, %17 : vector<128x128xi1>, vector<128x128xf32>
    %c0_11 = arith.constant 0 : index
    %c0_12 = arith.constant 0 : index
    %19 = vector.load %arg9[%c0_11, %c0_12] : memref<128x4xf32, #tpu.memory_space<vmem>>, vector<128x1xf32>
    %cst_13 = arith.constant dense<0xFF800000> : vector<128xf32>
    %20 = vector.multi_reduction <maximumf>, %18, %cst_13 [1] : vector<128x128xf32> to vector<128xf32>
    %21 = vector.shape_cast %20 : vector<128xf32> to vector<128x1xf32>
    %22 = arith.maximumf %19, %21 : vector<128x1xf32>
    %23 = arith.subf %19, %22 : vector<128x1xf32>
    %24 = math.exp %23 : vector<128x1xf32>
    %25 = vector.broadcast %22 : vector<128x1xf32> to vector<128x128xf32>
    %26 = arith.subf %18, %25 : vector<128x128xf32>
    %27 = math.exp %26 : vector<128x128xf32>
    %cst_14 = arith.constant 0.000000e+00 : f32
    %28 = vector.broadcast %cst_14 : f32 to vector<128x128xf32>
    %29 = arith.select %5, %27, %28 : vector<128x128xi1>, vector<128x128xf32>
    %c0_15 = arith.constant 0 : index
    %c0_16 = arith.constant 0 : index
    %30 = vector.load %arg10[%c0_15, %c0_16] : memref<128x4xf32, #tpu.memory_space<vmem>>, vector<128x1xf32>
    %31 = arith.mulf %24, %30 : vector<128x1xf32>
    %cst_17 = arith.constant dense<0.000000e+00> : vector<128xf32>
    %32 = vector.multi_reduction <add>, %29, %cst_17 [1] : vector<128x128xf32> to vector<128xf32>
    %33 = vector.shape_cast %32 : vector<128xf32> to vector<128x1xf32>
    %34 = arith.addf %31, %33 : vector<128x1xf32>
    %c0_18 = arith.constant 0 : index
    %c0_19 = arith.constant 0 : index
    %35 = vector.load %arg10[%c0_18, %c0_19] : memref<128x4xf32, #tpu.memory_space<vmem>>, vector<128x1xf32>
    tpu.vector_store %arg10[%c0_18, %c0_19], %34 {strides = array<i32>} : memref<128x4xf32, #tpu.memory_space<vmem>>, vector<128x1xf32>,
    %36 = arith.truncf %29 : vector<128x128xf32> to vector<128x128xbf16>
    %37 = vector.extract_strided_slice %6 {offsets = [0, 0], sizes = [128, 32], strides = [1, 1]} : vector<128x128xbf16> to vector<128x32xbf16>
    %cst_20 = arith.constant dense<0.000000e+00> : vector<128x32xf32>
    %38 = tpu.matmul %36, %37, %cst_20 {dimension_numbers = #tpu.dot_dimension_numbers<[1], [0], [0], [1], [0, 0, 1, 1], [], []>} : vector<128x128xbf16>, vector<128x32xbf16>, vector<128x32xf32> -> vector<128x32xf32>
    %c0_21 = arith.constant 0 : index
    %c0_22 = arith.constant 0 : index
    %39 = vector.load %arg11[%c0_21, %c0_22] : memref<128x128xf32, #tpu.memory_space<vmem>>, vector<128x32xf32>
    %40 = vector.broadcast %24 : vector<128x1xf32> to vector<128x32xf32>
    %41 = arith.mulf %40, %39 : vector<128x32xf32>
    %42 = arith.addf %41, %38 : vector<128x32xf32>
    %c0_23 = arith.constant 0 : index
    %c0_24 = arith.constant 0 : index
    %43 = vector.load %arg11[%c0_23, %c0_24] : memref<128x128xf32, #tpu.memory_space<vmem>>, vector<128x32xf32>
    tpu.vector_store %arg11[%c0_23, %c0_24], %42 {strides = array<i32>} : memref<128x128xf32, #tpu.memory_space<vmem>>, vector<128x32xf32>,
    %c0_25 = arith.constant 0 : index
    %c0_26 = arith.constant 0 : index
    %44 = vector.load %arg9[%c0_25, %c0_26] : memref<128x4xf32, #tpu.memory_space<vmem>>, vector<128x1xf32>
    tpu.vector_store %arg9[%c0_25, %c0_26], %22 {strides = array<i32>} : memref<128x4xf32, #tpu.memory_space<vmem>>, vector<128x1xf32>,
    %c1 = arith.constant 1 : index
    %c0_27 = arith.constant 0 : index
    %45 = vector.load %arg3[%c1, %c0_27] : memref<4x128xf32, #tpu.memory_space<vmem>>, vector<1x128xf32>
    %c0_28 = arith.constant 0 : index
    %c1_29 = arith.constant 1 : index
    %46 = vector.load %arg4[%c0_28, %c1_29] : memref<128x4xf32, #tpu.memory_space<vmem>>, vector<128x1xf32>
    %47 = vector.broadcast %45 : vector<1x128xf32> to vector<128x128xf32>
    %48 = vector.broadcast %46 : vector<128x1xf32> to vector<128x128xf32>
    %49 = arith.addf %47, %48 : vector<128x128xf32>
    %cst_30 = arith.constant 0.000000e+00 : f32
    %50 = vector.broadcast %cst_30 : f32 to vector<128x128xf32>
    %51 = arith.cmpf ogt, %49, %50 : vector<128x128xf32>
    %cst_31 = arith.constant 2.000000e-01 : f32
    %52 = vector.broadcast %cst_31 : f32 to vector<128x128xf32>
    %53 = arith.mulf %52, %49 : vector<128x128xf32>
    %54 = arith.select %51, %49, %53 : vector<128x128xi1>, vector<128x128xf32>
    %cst_32 = arith.constant -1.000000e+30 : f32
    %55 = vector.broadcast %cst_32 : f32 to vector<128x128xf32>
    %56 = arith.select %5, %54, %55 : vector<128x128xi1>, vector<128x128xf32>
    %c0_33 = arith.constant 0 : index
    %c1_34 = arith.constant 1 : index
    %57 = vector.load %arg9[%c0_33, %c1_34] : memref<128x4xf32, #tpu.memory_space<vmem>>, vector<128x1xf32>
    %cst_35 = arith.constant dense<0xFF800000> : vector<128xf32>
    %58 = vector.multi_reduction <maximumf>, %56, %cst_35 [1] : vector<128x128xf32> to vector<128xf32>
    %59 = vector.shape_cast %58 : vector<128xf32> to vector<128x1xf32>
    %60 = arith.maximumf %57, %59 : vector<128x1xf32>
    %61 = arith.subf %57, %60 : vector<128x1xf32>
    %62 = math.exp %61 : vector<128x1xf32>
    %63 = vector.broadcast %60 : vector<128x1xf32> to vector<128x128xf32>
    %64 = arith.subf %56, %63 : vector<128x128xf32>
    %65 = math.exp %64 : vector<128x128xf32>
    %cst_36 = arith.constant 0.000000e+00 : f32
    %66 = vector.broadcast %cst_36 : f32 to vector<128x128xf32>
    %67 = arith.select %5, %65, %66 : vector<128x128xi1>, vector<128x128xf32>
    %c0_37 = arith.constant 0 : index
    %c1_38 = arith.constant 1 : index
    %68 = vector.load %arg10[%c0_37, %c1_38] : memref<128x4xf32, #tpu.memory_space<vmem>>, vector<128x1xf32>
    %69 = arith.mulf %62, %68 : vector<128x1xf32>
    %cst_39 = arith.constant dense<0.000000e+00> : vector<128xf32>
    %70 = vector.multi_reduction <add>, %67, %cst_39 [1] : vector<128x128xf32> to vector<128xf32>
    %71 = vector.shape_cast %70 : vector<128xf32> to vector<128x1xf32>
    %72 = arith.addf %69, %71 : vector<128x1xf32>
    %c0_40 = arith.constant 0 : index
    %c1_41 = arith.constant 1 : index
    %73 = vector.load %arg10[%c0_40, %c1_41] : memref<128x4xf32, #tpu.memory_space<vmem>>, vector<128x1xf32>
    tpu.vector_store %arg10[%c0_40, %c1_41], %72 {strides = array<i32>} : memref<128x4xf32, #tpu.memory_space<vmem>>, vector<128x1xf32>,
    %74 = arith.truncf %67 : vector<128x128xf32> to vector<128x128xbf16>
    %75 = vector.extract_strided_slice %6 {offsets = [0, 32], sizes = [128, 32], strides = [1, 1]} : vector<128x128xbf16> to vector<128x32xbf16>
    %cst_42 = arith.constant dense<0.000000e+00> : vector<128x32xf32>
    %76 = tpu.matmul %74, %75, %cst_42 {dimension_numbers = #tpu.dot_dimension_numbers<[1], [0], [0], [1], [0, 0, 1, 1], [], []>} : vector<128x128xbf16>, vector<128x32xbf16>, vector<128x32xf32> -> vector<128x32xf32>
    %c0_43 = arith.constant 0 : index
    %c32 = arith.constant 32 : index
    %77 = vector.load %arg11[%c0_43, %c32] : memref<128x128xf32, #tpu.memory_space<vmem>>, vector<128x32xf32>
    %78 = vector.broadcast %62 : vector<128x1xf32> to vector<128x32xf32>
    %79 = arith.mulf %78, %77 : vector<128x32xf32>
    %80 = arith.addf %79, %76 : vector<128x32xf32>
    %c0_44 = arith.constant 0 : index
    %c32_45 = arith.constant 32 : index
    %81 = vector.load %arg11[%c0_44, %c32_45] : memref<128x128xf32, #tpu.memory_space<vmem>>, vector<128x32xf32>
    tpu.vector_store %arg11[%c0_44, %c32_45], %80 {strides = array<i32>} : memref<128x128xf32, #tpu.memory_space<vmem>>, vector<128x32xf32>,
    %c0_46 = arith.constant 0 : index
    %c1_47 = arith.constant 1 : index
    %82 = vector.load %arg9[%c0_46, %c1_47] : memref<128x4xf32, #tpu.memory_space<vmem>>, vector<128x1xf32>
    tpu.vector_store %arg9[%c0_46, %c1_47], %60 {strides = array<i32>} : memref<128x4xf32, #tpu.memory_space<vmem>>, vector<128x1xf32>,
    %c2 = arith.constant 2 : index
    %c0_48 = arith.constant 0 : index
    %83 = vector.load %arg3[%c2, %c0_48] : memref<4x128xf32, #tpu.memory_space<vmem>>, vector<1x128xf32>
    %c0_49 = arith.constant 0 : index
    %c2_50 = arith.constant 2 : index
    %84 = vector.load %arg4[%c0_49, %c2_50] : memref<128x4xf32, #tpu.memory_space<vmem>>, vector<128x1xf32>
    %85 = vector.broadcast %83 : vector<1x128xf32> to vector<128x128xf32>
    %86 = vector.broadcast %84 : vector<128x1xf32> to vector<128x128xf32>
    %87 = arith.addf %85, %86 : vector<128x128xf32>
    %cst_51 = arith.constant 0.000000e+00 : f32
    %88 = vector.broadcast %cst_51 : f32 to vector<128x128xf32>
    %89 = arith.cmpf ogt, %87, %88 : vector<128x128xf32>
    %cst_52 = arith.constant 2.000000e-01 : f32
    %90 = vector.broadcast %cst_52 : f32 to vector<128x128xf32>
    %91 = arith.mulf %90, %87 : vector<128x128xf32>
    %92 = arith.select %89, %87, %91 : vector<128x128xi1>, vector<128x128xf32>
    %cst_53 = arith.constant -1.000000e+30 : f32
    %93 = vector.broadcast %cst_53 : f32 to vector<128x128xf32>
    %94 = arith.select %5, %92, %93 : vector<128x128xi1>, vector<128x128xf32>
    %c0_54 = arith.constant 0 : index
    %c2_55 = arith.constant 2 : index
    %95 = vector.load %arg9[%c0_54, %c2_55] : memref<128x4xf32, #tpu.memory_space<vmem>>, vector<128x1xf32>
    %cst_56 = arith.constant dense<0xFF800000> : vector<128xf32>
    %96 = vector.multi_reduction <maximumf>, %94, %cst_56 [1] : vector<128x128xf32> to vector<128xf32>
    %97 = vector.shape_cast %96 : vector<128xf32> to vector<128x1xf32>
    %98 = arith.maximumf %95, %97 : vector<128x1xf32>
    %99 = arith.subf %95, %98 : vector<128x1xf32>
    %100 = math.exp %99 : vector<128x1xf32>
    %101 = vector.broadcast %98 : vector<128x1xf32> to vector<128x128xf32>
    %102 = arith.subf %94, %101 : vector<128x128xf32>
    %103 = math.exp %102 : vector<128x128xf32>
    %cst_57 = arith.constant 0.000000e+00 : f32
    %104 = vector.broadcast %cst_57 : f32 to vector<128x128xf32>
    %105 = arith.select %5, %103, %104 : vector<128x128xi1>, vector<128x128xf32>
    %c0_58 = arith.constant 0 : index
    %c2_59 = arith.constant 2 : index
    %106 = vector.load %arg10[%c0_58, %c2_59] : memref<128x4xf32, #tpu.memory_space<vmem>>, vector<128x1xf32>
    %107 = arith.mulf %100, %106 : vector<128x1xf32>
    %cst_60 = arith.constant dense<0.000000e+00> : vector<128xf32>
    %108 = vector.multi_reduction <add>, %105, %cst_60 [1] : vector<128x128xf32> to vector<128xf32>
    %109 = vector.shape_cast %108 : vector<128xf32> to vector<128x1xf32>
    %110 = arith.addf %107, %109 : vector<128x1xf32>
    %c0_61 = arith.constant 0 : index
    %c2_62 = arith.constant 2 : index
    %111 = vector.load %arg10[%c0_61, %c2_62] : memref<128x4xf32, #tpu.memory_space<vmem>>, vector<128x1xf32>
    tpu.vector_store %arg10[%c0_61, %c2_62], %110 {strides = array<i32>} : memref<128x4xf32, #tpu.memory_space<vmem>>, vector<128x1xf32>,
    %112 = arith.truncf %105 : vector<128x128xf32> to vector<128x128xbf16>
    %113 = vector.extract_strided_slice %6 {offsets = [0, 64], sizes = [128, 32], strides = [1, 1]} : vector<128x128xbf16> to vector<128x32xbf16>
    %cst_63 = arith.constant dense<0.000000e+00> : vector<128x32xf32>
    %114 = tpu.matmul %112, %113, %cst_63 {dimension_numbers = #tpu.dot_dimension_numbers<[1], [0], [0], [1], [0, 0, 1, 1], [], []>} : vector<128x128xbf16>, vector<128x32xbf16>, vector<128x32xf32> -> vector<128x32xf32>
    %c0_64 = arith.constant 0 : index
    %c64 = arith.constant 64 : index
    %115 = vector.load %arg11[%c0_64, %c64] : memref<128x128xf32, #tpu.memory_space<vmem>>, vector<128x32xf32>
    %116 = vector.broadcast %100 : vector<128x1xf32> to vector<128x32xf32>
    %117 = arith.mulf %116, %115 : vector<128x32xf32>
    %118 = arith.addf %117, %114 : vector<128x32xf32>
    %c0_65 = arith.constant 0 : index
    %c64_66 = arith.constant 64 : index
    %119 = vector.load %arg11[%c0_65, %c64_66] : memref<128x128xf32, #tpu.memory_space<vmem>>, vector<128x32xf32>
    tpu.vector_store %arg11[%c0_65, %c64_66], %118 {strides = array<i32>} : memref<128x128xf32, #tpu.memory_space<vmem>>, vector<128x32xf32>,
    %c0_67 = arith.constant 0 : index
    %c2_68 = arith.constant 2 : index
    %120 = vector.load %arg9[%c0_67, %c2_68] : memref<128x4xf32, #tpu.memory_space<vmem>>, vector<128x1xf32>
    tpu.vector_store %arg9[%c0_67, %c2_68], %98 {strides = array<i32>} : memref<128x4xf32, #tpu.memory_space<vmem>>, vector<128x1xf32>,
    %c3 = arith.constant 3 : index
    %c0_69 = arith.constant 0 : index
    %121 = vector.load %arg3[%c3, %c0_69] : memref<4x128xf32, #tpu.memory_space<vmem>>, vector<1x128xf32>
    %c0_70 = arith.constant 0 : index
    %c3_71 = arith.constant 3 : index
    %122 = vector.load %arg4[%c0_70, %c3_71] : memref<128x4xf32, #tpu.memory_space<vmem>>, vector<128x1xf32>
    %123 = vector.broadcast %121 : vector<1x128xf32> to vector<128x128xf32>
    %124 = vector.broadcast %122 : vector<128x1xf32> to vector<128x128xf32>
    %125 = arith.addf %123, %124 : vector<128x128xf32>
    %cst_72 = arith.constant 0.000000e+00 : f32
    %126 = vector.broadcast %cst_72 : f32 to vector<128x128xf32>
    %127 = arith.cmpf ogt, %125, %126 : vector<128x128xf32>
    %cst_73 = arith.constant 2.000000e-01 : f32
    %128 = vector.broadcast %cst_73 : f32 to vector<128x128xf32>
    %129 = arith.mulf %128, %125 : vector<128x128xf32>
    %130 = arith.select %127, %125, %129 : vector<128x128xi1>, vector<128x128xf32>
    %cst_74 = arith.constant -1.000000e+30 : f32
    %131 = vector.broadcast %cst_74 : f32 to vector<128x128xf32>
    %132 = arith.select %5, %130, %131 : vector<128x128xi1>, vector<128x128xf32>
    %c0_75 = arith.constant 0 : index
    %c3_76 = arith.constant 3 : index
    %133 = vector.load %arg9[%c0_75, %c3_76] : memref<128x4xf32, #tpu.memory_space<vmem>>, vector<128x1xf32>
    %cst_77 = arith.constant dense<0xFF800000> : vector<128xf32>
    %134 = vector.multi_reduction <maximumf>, %132, %cst_77 [1] : vector<128x128xf32> to vector<128xf32>
    %135 = vector.shape_cast %134 : vector<128xf32> to vector<128x1xf32>
    %136 = arith.maximumf %133, %135 : vector<128x1xf32>
    %137 = arith.subf %133, %136 : vector<128x1xf32>
    %138 = math.exp %137 : vector<128x1xf32>
    %139 = vector.broadcast %136 : vector<128x1xf32> to vector<128x128xf32>
    %140 = arith.subf %132, %139 : vector<128x128xf32>
    %141 = math.exp %140 : vector<128x128xf32>
    %cst_78 = arith.constant 0.000000e+00 : f32
    %142 = vector.broadcast %cst_78 : f32 to vector<128x128xf32>
    %143 = arith.select %5, %141, %142 : vector<128x128xi1>, vector<128x128xf32>
    %c0_79 = arith.constant 0 : index
    %c3_80 = arith.constant 3 : index
    %144 = vector.load %arg10[%c0_79, %c3_80] : memref<128x4xf32, #tpu.memory_space<vmem>>, vector<128x1xf32>
    %145 = arith.mulf %138, %144 : vector<128x1xf32>
    %cst_81 = arith.constant dense<0.000000e+00> : vector<128xf32>
    %146 = vector.multi_reduction <add>, %143, %cst_81 [1] : vector<128x128xf32> to vector<128xf32>
    %147 = vector.shape_cast %146 : vector<128xf32> to vector<128x1xf32>
    %148 = arith.addf %145, %147 : vector<128x1xf32>
    %c0_82 = arith.constant 0 : index
    %c3_83 = arith.constant 3 : index
    %149 = vector.load %arg10[%c0_82, %c3_83] : memref<128x4xf32, #tpu.memory_space<vmem>>, vector<128x1xf32>
    tpu.vector_store %arg10[%c0_82, %c3_83], %148 {strides = array<i32>} : memref<128x4xf32, #tpu.memory_space<vmem>>, vector<128x1xf32>,
    %150 = arith.truncf %143 : vector<128x128xf32> to vector<128x128xbf16>
    %151 = vector.extract_strided_slice %6 {offsets = [0, 96], sizes = [128, 32], strides = [1, 1]} : vector<128x128xbf16> to vector<128x32xbf16>
    %cst_84 = arith.constant dense<0.000000e+00> : vector<128x32xf32>
    %152 = tpu.matmul %150, %151, %cst_84 {dimension_numbers = #tpu.dot_dimension_numbers<[1], [0], [0], [1], [0, 0, 1, 1], [], []>} : vector<128x128xbf16>, vector<128x32xbf16>, vector<128x32xf32> -> vector<128x32xf32>
    %c0_85 = arith.constant 0 : index
    %c96 = arith.constant 96 : index
    %153 = vector.load %arg11[%c0_85, %c96] : memref<128x128xf32, #tpu.memory_space<vmem>>, vector<128x32xf32>
    %154 = vector.broadcast %138 : vector<128x1xf32> to vector<128x32xf32>
    %155 = arith.mulf %154, %153 : vector<128x32xf32>
    %156 = arith.addf %155, %152 : vector<128x32xf32>
    %c0_86 = arith.constant 0 : index
    %c96_87 = arith.constant 96 : index
    %157 = vector.load %arg11[%c0_86, %c96_87] : memref<128x128xf32, #tpu.memory_space<vmem>>, vector<128x32xf32>
    tpu.vector_store %arg11[%c0_86, %c96_87], %156 {strides = array<i32>} : memref<128x128xf32, #tpu.memory_space<vmem>>, vector<128x32xf32>,
    %c0_88 = arith.constant 0 : index
    %c3_89 = arith.constant 3 : index
    %158 = vector.load %arg9[%c0_88, %c3_89] : memref<128x4xf32, #tpu.memory_space<vmem>>, vector<128x1xf32>
    tpu.vector_store %arg9[%c0_88, %c3_89], %136 {strides = array<i32>} : memref<128x4xf32, #tpu.memory_space<vmem>>, vector<128x1xf32>,
    %c1_i32 = arith.constant 1 : i32
    %159 = arith.cmpi eq, %arg1, %c1_i32 : i32
    %160 = arith.extui %159 : i1 to i32
    %c0_i32_90 = arith.constant 0 : i32
    %161 = arith.cmpi ne, %160, %c0_i32_90 : i32
    scf.if %161 {
      %c0_91 = arith.constant 0 : index
      %c0_92 = arith.constant 0 : index
      %162 = vector.load %arg10[%c0_91, %c0_92] : memref<128x4xf32, #tpu.memory_space<vmem>>, vector<128x4xf32>
      %cst_93 = arith.constant 9.99999968E-21 : f32
      %163 = vector.broadcast %cst_93 : f32 to vector<128x4xf32>
      %164 = arith.maximumf %162, %163 : vector<128x4xf32>
      %165 = tpu.reciprocal %164 {approx = true} : vector<128x4xf32> -> vector<128x4xf32>
      %c0_94 = arith.constant 0 : index
      %c0_95 = arith.constant 0 : index
      %166 = vector.load %arg11[%c0_94, %c0_95] : memref<128x128xf32, #tpu.memory_space<vmem>>, vector<128x128xf32>
      %167 = vector.extract_strided_slice %166 {offsets = [0, 0], sizes = [128, 32], strides = [1, 1]} : vector<128x128xf32> to vector<128x32xf32>
      %168 = vector.extract_strided_slice %165 {offsets = [0, 0], sizes = [128, 1], strides = [1, 1]} : vector<128x4xf32> to vector<128x1xf32>
      %169 = vector.broadcast %168 : vector<128x1xf32> to vector<128x32xf32>
      %170 = arith.mulf %167, %169 : vector<128x32xf32>
      %171 = vector.extract_strided_slice %166 {offsets = [0, 32], sizes = [128, 32], strides = [1, 1]} : vector<128x128xf32> to vector<128x32xf32>
      %172 = vector.extract_strided_slice %165 {offsets = [0, 1], sizes = [128, 1], strides = [1, 1]} : vector<128x4xf32> to vector<128x1xf32>
      %173 = vector.broadcast %172 : vector<128x1xf32> to vector<128x32xf32>
      %174 = arith.mulf %171, %173 : vector<128x32xf32>
      %175 = vector.extract_strided_slice %166 {offsets = [0, 64], sizes = [128, 32], strides = [1, 1]} : vector<128x128xf32> to vector<128x32xf32>
      %176 = vector.extract_strided_slice %165 {offsets = [0, 2], sizes = [128, 1], strides = [1, 1]} : vector<128x4xf32> to vector<128x1xf32>
      %177 = vector.broadcast %176 : vector<128x1xf32> to vector<128x32xf32>
      %178 = arith.mulf %175, %177 : vector<128x32xf32>
      %179 = vector.extract_strided_slice %166 {offsets = [0, 96], sizes = [128, 32], strides = [1, 1]} : vector<128x128xf32> to vector<128x32xf32>
      %180 = vector.extract_strided_slice %165 {offsets = [0, 3], sizes = [128, 1], strides = [1, 1]} : vector<128x4xf32> to vector<128x1xf32>
      %181 = vector.broadcast %180 : vector<128x1xf32> to vector<128x32xf32>
      %182 = arith.mulf %179, %181 : vector<128x32xf32>
      %183 = tpu.concatenate %170, %174, %178, %182 in 1 : vector<128x32xf32>, vector<128x32xf32>, vector<128x32xf32>, vector<128x32xf32> -> vector<128x128xf32>
      %c0_96 = arith.constant 0 : index
      %c0_97 = arith.constant 0 : index
      %184 = vector.load %arg6[%c0_96, %c0_97] : memref<128x128xf32, #tpu.memory_space<vmem>>, vector<128x128xf32>
      %185 = arith.addf %183, %184 : vector<128x128xf32>
      %c0_98 = arith.constant 0 : index
      %c0_99 = arith.constant 0 : index
      %186 = vector.load %arg7[%c0_98, %c0_99] : memref<1x128xf32, #tpu.memory_space<vmem>>, vector<1x128xf32>
      %187 = vector.broadcast %186 : vector<1x128xf32> to vector<128x128xf32>
      %188 = arith.addf %185, %187 : vector<128x128xf32>
      %c0_100 = arith.constant 0 : index
      %c0_101 = arith.constant 0 : index
      %189 = vector.load %arg8[%c0_100, %c0_101] : memref<128x128xf32, #tpu.memory_space<vmem>>, vector<128x128xf32>
      tpu.vector_store %arg8[%c0_100, %c0_101], %188 {strides = array<i32>} : memref<128x128xf32, #tpu.memory_space<vmem>>, vector<128x128xf32>,
    } else {
    }
    return
  }
  func.func @transform_0(%arg0: i32, %arg1: i32) -> (i32, i32) {
    %c0_i32 = arith.constant 0 : i32
    return %arg0, %arg1 : i32, i32
  }
  func.func @transform_1(%arg0: i32, %arg1: i32) -> (i32, i32) {
    %c0_i32 = arith.constant 0 : i32
    %c0_i32_0 = arith.constant 0 : i32
    return %c0_i32, %arg1 : i32, i32
  }
  func.func @transform_2(%arg0: i32, %arg1: i32) -> (i32, i32) {
    %c0_i32 = arith.constant 0 : i32
    %c0_i32_0 = arith.constant 0 : i32
    return %arg0, %c0_i32 : i32, i32
  }
  func.func @transform_3(%arg0: i32, %arg1: i32) -> (i32, i32) {
    %c0_i32 = arith.constant 0 : i32
    %c0_i32_0 = arith.constant 0 : i32
    return %arg1, %c0_i32 : i32, i32
  }
  func.func @transform_4(%arg0: i32, %arg1: i32) -> (i32, i32) {
    %c0_i32 = arith.constant 0 : i32
    %c0_i32_0 = arith.constant 0 : i32
    return %arg0, %c0_i32 : i32, i32
  }
  func.func @transform_5(%arg0: i32, %arg1: i32) -> (i32, i32) {
    %c0_i32 = arith.constant 0 : i32
    %c0_i32_0 = arith.constant 0 : i32
    %c0_i32_1 = arith.constant 0 : i32
    return %c0_i32, %c0_i32_0 : i32, i32
  }
  func.func @transform_6(%arg0: i32, %arg1: i32) -> (i32, i32) {
    %c0_i32 = arith.constant 0 : i32
    %c0_i32_0 = arith.constant 0 : i32
    return %arg0, %c0_i32 : i32, i32
  }
}

</mosaic_0001>

<llo_original>
// kernel: gat_model_forward.7
$region0: #{gat_model_forward.7}
  #allocation0 [shape = 'u32[]', space=smem, size = 0x4, offset = 0x4, fixed_abs, tag = 'smem constant byte address 0x4 - core index']
  #allocation1 [shape = 'u32[144,128]{1,0:T(1,128)}', space=vmem, size = 0x12000, scoped, tag = 'internal scratch']
  %s0 = inlined_call_operand.vmem [shape: f32[256,128], index: 0, kind: input, shape index: {}]
  %s1 = inlined_call_operand.vmem [shape: f32[1,128], index: 1, kind: input, shape index: {}]
  %s2 = inlined_call_operand.vmem [shape: f32[1,128], index: 2, kind: input, shape index: {}]
  %s3 = inlined_call_operand.hbm [shape: f32[256,128], index: 3, kind: output, shape index: {}]
  %s4 = sld [smem:[#allocation0]]
  $region45: #{gat_model_forward.7} parent=0
    _
  %s6 = ssub.s32 1, %s4
  %s7 = scalar_select 0, %s6, %s4
  $region1: #{gat_model_forward.7} parent=0
    #allocation2 [shape = 'u8[131072]{0}', space=vmem, size = 0x20000, scoped, tag = 'output window, operand 0']
    #allocation3 [shape = 's32[2]{0}', space=sflag, size = 0x8, scoped, tag = 'scoped memory for gat_model_forward.7']
    %8 = vsyncpa [#allocation3], 0
    %s9 = scalar_lea.sflag [#allocation3], 1
    %10 = vsyncpa %s9, 0
    loop: start=0, step=1, limit=4
    $region2: #{gat_model_forward.7} parent=1 // loop_pre_header
      _
    $region3: #{gat_model_forward.7} parent=1 // loop_header
      %s12 = sphi 0, %s16
      %p13 = scmp.ge.s32.totalorder %s12, 4
      %s22 = sphi 0, %s24
      %s25 = sphi 0, %s22
      %s26 = sphi 0, %s25
      %s42 = sphi 0, %s26
      %s46 = sphi 0, %s46
      %s48 = sphi 0, %s46
      %s49 = sphi 0, %s48
      %s63 = sphi 0, %s49
      %s67 = sphi 0, %s67
      %s69 = sphi 0, %s67
      %s70 = sphi 0, %s69
      %s84 = sphi 0, %s70
      %s90 = sphi 0, %s92
      %s93 = sphi 0, %s90
      %s94 = sphi 0, %s93
      %s110 = sphi 0, %s94
    $region4: #{gat_model_forward.7} parent=1 // loop_header_branch
      %15 = sbr.rel (%p13) target = $region8
    $region5: #{gat_model_forward.7} parent=1 // loop_body
      %s17 = ssub.s32 %s12, 1
      %s18 = ssub.s32 %s12, 2
      %s19 = sadd.s32 %s12, 1
      %s20 = ssub.s32 %s12, %s19
      %p21 = scmp.eq.s32.totalorder %s20, 0
      %s23 = sadd.s32 %s22, 1
      %s24 = scalar_select %p21, %s22, %s23
      %p27 = pneg %p21
      %p28 = scmp.eq.s32.totalorder %s12, 1
      %p29 = por %p27, %p28
      %p30 = scmp.ne.s32.totalorder %s22, %s25
      %p31 = scmp.eq.s32.totalorder %s12, 0
      %p32 = por %p30, %p31
      %p33 = scmp.ne.s32.totalorder %s22, %s25
      %p34 = scmp.eq.s32.totalorder %s17, 1
      %p35 = por %p33, %p34
      %p36 = scmp.ne.s32.totalorder %s25, %s26
      %p37 = scmp.eq.s32.totalorder %s17, 0
      %p38 = por %p36, %p37
      %p39 = scmp.ne.s32.totalorder %s25, %s26
      %p40 = scmp.eq.s32.totalorder %s18, 1
      %p41 = por %p39, %p40
      %p43 = scmp.ne.s32.totalorder %s26, %s42
      %p44 = scmp.eq.s32.totalorder %s18, 0
      %p45 = por %p43, %p44
      %s47 = sadd.s32 %s46, 1
      %p50 = scmp.eq.s32.totalorder %s12, 1
      %p51 = scmp.ne.s32.totalorder %s46, %s48
      %p52 = scmp.eq.s32.totalorder %s12, 0
      %p53 = por %p51, %p52
      %p54 = scmp.ne.s32.totalorder %s46, %s48
      %p55 = scmp.eq.s32.totalorder %s17, 1
      %p56 = por %p54, %p55
      %p57 = scmp.ne.s32.totalorder %s48, %s49
      %p58 = scmp.eq.s32.totalorder %s17, 0
      %p59 = por %p57, %p58
      %p60 = scmp.ne.s32.totalorder %s48, %s49
      %p61 = scmp.eq.s32.totalorder %s18, 1
      %p62 = por %p60, %p61
      %p64 = scmp.ne.s32.totalorder %s49, %s63
      %p65 = scmp.eq.s32.totalorder %s18, 0
      %p66 = por %p64, %p65
      %s68 = sadd.s32 %s67, 1
      %p71 = scmp.eq.s32.totalorder %s12, 1
      %p72 = scmp.ne.s32.totalorder %s67, %s69
      %p73 = scmp.eq.s32.totalorder %s12, 0
      %p74 = por %p72, %p73
      %p75 = scmp.ne.s32.totalorder %s67, %s69
      %p76 = scmp.eq.s32.totalorder %s17, 1
      %p77 = por %p75, %p76
      %p78 = scmp.ne.s32.totalorder %s69, %s70
      %p79 = scmp.eq.s32.totalorder %s17, 0
      %p80 = por %p78, %p79
      %p81 = scmp.ne.s32.totalorder %s69, %s70
      %p82 = scmp.eq.s32.totalorder %s18, 1
      %p83 = por %p81, %p82
      %p85 = scmp.ne.s32.totalorder %s70, %s84
      %p86 = scmp.eq.s32.totalorder %s18, 0
      %p87 = por %p85, %p86
      %s88 = ssub.s32 %s12, %s19
      %p89 = scmp.eq.s32.totalorder %s88, 0
      %s91 = sadd.s32 %s90, 1
      %s92 = scalar_select %p89, %s90, %s91
      %p95 = pneg %p89
      %p96 = scmp.eq.s32.totalorder %s12, 1
      %p97 = por %p95, %p96
      %p98 = scmp.ne.s32.totalorder %s90, %s93
      %p99 = scmp.eq.s32.totalorder %s12, 0
      %p100 = por %p98, %p99
      %p101 = scmp.ne.s32.totalorder %s90, %s93
      %p102 = scmp.eq.s32.totalorder %s17, 1
      %p103 = por %p101, %p102
      %p104 = scmp.ne.s32.totalorder %s93, %s94
      %p105 = scmp.eq.s32.totalorder %s17, 0
      %p106 = por %p104, %p105
      %p107 = scmp.ne.s32.totalorder %s93, %s94
      %p108 = scmp.eq.s32.totalorder %s18, 1
      %p109 = por %p107, %p108
      %p111 = scmp.ne.s32.totalorder %s94, %s110
      %p112 = scmp.eq.s32.totalorder %s18, 0
      %p113 = por %p111, %p112
      %p114 = scmp.le.s32.totalorder 1, %s12
      %p115 = scmp.lt.s32.totalorder %s12, 3
      %p116 = pnand %p114, %p115
      %p117 = pneg %p116
      // Predicated region
      $region9: #{gat_model_forward.7} parent=5 // pred_check
        _
      $region10: #{gat_model_forward.7} parent=5 // pred_check_branch
        %119 = sbr.rel (%p116) target = $region12
      $region11: #{gat_model_forward.7} parent=5 // pred_region
        %s120 = ssub.s32 %s12, 1
        // Predicated region
        $region13: #{gat_model_forward.7} parent=11 // pred_check
          %p121 = pneg %p59
        $region14: #{gat_model_forward.7} parent=11 // pred_check_branch
          %123 = sbr.rel (%p121) target = $region16
        $region15: #{gat_model_forward.7} parent=11 // pred_region
          _
        $region16: #{gat_model_forward.7} parent=11 // pred_fallthru
          _
        // Predicated region
        $region17: #{gat_model_forward.7} parent=11 // pred_check
          %p124 = pneg %p80
        $region18: #{gat_model_forward.7} parent=11 // pred_check_branch
          %126 = sbr.rel (%p124) target = $region20
        $region19: #{gat_model_forward.7} parent=11 // pred_region
          _
        $region20: #{gat_model_forward.7} parent=11 // pred_fallthru
          _
      $region12: #{gat_model_forward.7} parent=5 // pred_fallthru
        _
      %p127 = scmp.lt.s32.totalorder %s12, 2
      // Predicated region
      $region21: #{gat_model_forward.7} parent=5 // pred_check
        %p128 = pneg %p127
      $region22: #{gat_model_forward.7} parent=5 // pred_check_branch
        %130 = sbr.rel (%p128) target = $region24
      $region23: #{gat_model_forward.7} parent=5 // pred_region
        // Predicated region
        $region25: #{gat_model_forward.7} parent=23 // pred_check
          %p131 = pneg %p32
        $region26: #{gat_model_forward.7} parent=23 // pred_check_branch
          %133 = sbr.rel (%p131) target = $region28
        $region27: #{gat_model_forward.7} parent=23 // pred_region
          %s134 = smul.u32 16, %s12
          %p135 = scmp.lt.s32.totalorder %s134, 31
          %s136 = scalar_select %p135, %s134, 31
          %s137 = smul.addr %s136, 8
          %s138 = scalar_lea.vmem %s0, %s137
          %s139 = smul.u32 16, %s12
        $region28: #{gat_model_forward.7} parent=23 // pred_fallthru
          _
      $region24: #{gat_model_forward.7} parent=5 // pred_fallthru
        _
      %p140 = scmp.le.s32.totalorder 1, %s12
      %p141 = scmp.lt.s32.totalorder %s12, 3
      %p142 = pnand %p140, %p141
      %p143 = pneg %p142
      // Predicated region
      $region29: #{gat_model_forward.7} parent=5 // pred_check
        _
      $region30: #{gat_model_forward.7} parent=5 // pred_check_branch
        %145 = sbr.rel (%p142) target = $region32
      $region31: #{gat_model_forward.7} parent=5 // pred_region
        %s146 = ssub.s32 %s12, 1
        %s147 = smul.u32 16, %s17
        %p148 = scmp.lt.s32.totalorder %s147, 31
        %s149 = scalar_select %p148, %s147, 31
        %s150 = smul.addr %s149, 8
        %s151 = scalar_lea.vmem %s0, %s150
        %p152 = pneg %p38
        %p153 = pneg %p35
        %p154 = pneg %p59
        %p155 = pneg %p56
        %p156 = pneg %p80
        %p157 = pneg %p77
        %p158 = pneg %p106
        %p159 = pneg %p103
        %s160 = sand.u32 %s93, 1
        %s161 = scalar_lea.sflag [#allocation3], %s160
        %s162 = sand.u32 %s93, 1
        %s163 = smul.addr %s162, 128
        %s164 = scalar_lea.vmem [#allocation2], %s163
        %s165 = smul.u32 16, %s17
        %p166 = scmp.lt.s32.totalorder %s165, 31
        %s167 = scalar_select %p166, %s165, 31
        %s168 = smul.addr %s167, 8
        %s169 = scalar_lea.vmem %s0, %s168
        %s170 = smul.u32 16, %s17
        %s171 = smul.u32 16, %s17
        %v172 = vld [vmem:[%s169] sm:$0xff]
        %v173 = vld [vmem:[%s169 + $0x8] sm:$0xff]
        %v174 = vld [vmem:[%s169 + $0x10] sm:$0xff]
        %v175 = vld [vmem:[%s169 + $0x18] sm:$0xff]
        %v176 = vld [vmem:[%s169 + $0x20] sm:$0xff]
        %v177 = vld [vmem:[%s169 + $0x28] sm:$0xff]
        %v178 = vld [vmem:[%s169 + $0x30] sm:$0xff]
        %v179 = vld [vmem:[%s169 + $0x38] sm:$0xff]
        %v180 = vld [vmem:[%s169 + $0x40] sm:$0xff]
        %v181 = vld [vmem:[%s169 + $0x48] sm:$0xff]
        %v182 = vld [vmem:[%s169 + $0x50] sm:$0xff]
        %v183 = vld [vmem:[%s169 + $0x58] sm:$0xff]
        %v184 = vld [vmem:[%s169 + $0x60] sm:$0xff]
        %v185 = vld [vmem:[%s169 + $0x68] sm:$0xff]
        %v186 = vld [vmem:[%s169 + $0x70] sm:$0xff]
        %v187 = vld [vmem:[%s169 + $0x78] sm:$0xff]
        %v188 = vld [vmem:[%s1] sm:$0x1]
        %v189 = vmul.f32 %v188, 0.00390625
        %v190 = vld [vmem:[%s2] sm:$0x1]
        %v191 = vmul.f32 %v190, 0.00390625
        %v192 = vmul.f32 %v189, %v189
        %v193 = vsub.f32 %v191, %v192
        %v194 = vmax.f32 %v193, 0.0
        %v196 = vlaneseq
        %v197 = vshrl.u32 %v196, 7
        %v198 = vsub.s32 0, %v197
        %v199 = vrot.slane %v189, %v198
        %v201 = vsub.f32 %v172, %v199
        %v202 = vsub.f32 %v173, %v199
        %v203 = vsub.f32 %v174, %v199
        %v204 = vsub.f32 %v175, %v199
        %v205 = vsub.f32 %v176, %v199
        %v206 = vsub.f32 %v177, %v199
        %v207 = vsub.f32 %v178, %v199
        %v208 = vsub.f32 %v179, %v199
        %v209 = vsub.f32 %v180, %v199
        %v210 = vsub.f32 %v181, %v199
        %v211 = vsub.f32 %v182, %v199
        %v212 = vsub.f32 %v183, %v199
        %v213 = vsub.f32 %v184, %v199
        %v214 = vsub.f32 %v185, %v199
        %v215 = vsub.f32 %v186, %v199
        %v216 = vsub.f32 %v187, %v199
        %v217 = vadd.f32 %v194, 1e-05
        %v218 = vrsqrt.pop %v217
        %v220 = vlaneseq
        %v221 = vshrl.u32 %v220, 7
        %v222 = vsub.s32 0, %v221
        %v223 = vrot.slane %v218, %v222
        %v225 = vmul.f32 %v201, %v223
        %v226 = vmul.f32 %v202, %v223
        %v227 = vmul.f32 %v203, %v223
        %v228 = vmul.f32 %v204, %v223
        %v229 = vmul.f32 %v205, %v223
        %v230 = vmul.f32 %v206, %v223
        %v231 = vmul.f32 %v207, %v223
        %v232 = vmul.f32 %v208, %v223
        %v233 = vmul.f32 %v209, %v223
        %v234 = vmul.f32 %v210, %v223
        %v235 = vmul.f32 %v211, %v223
        %v236 = vmul.f32 %v212, %v223
        %v237 = vmul.f32 %v213, %v223
        %v238 = vmul.f32 %v214, %v223
        %v239 = vmul.f32 %v215, %v223
        %v240 = vmul.f32 %v216, %v223
        %vm241 = vcmp.gt.f32.partialorder %v225, 0.0
        %vm242 = vcmp.gt.f32.partialorder %v226, 0.0
        %vm243 = vcmp.gt.f32.partialorder %v227, 0.0
        %vm244 = vcmp.gt.f32.partialorder %v228, 0.0
        %vm245 = vcmp.gt.f32.partialorder %v229, 0.0
        %vm246 = vcmp.gt.f32.partialorder %v230, 0.0
        %vm247 = vcmp.gt.f32.partialorder %v231, 0.0
        %vm248 = vcmp.gt.f32.partialorder %v232, 0.0
        %vm249 = vcmp.gt.f32.partialorder %v233, 0.0
        %vm250 = vcmp.gt.f32.partialorder %v234, 0.0
        %vm251 = vcmp.gt.f32.partialorder %v235, 0.0
        %vm252 = vcmp.gt.f32.partialorder %v236, 0.0
        %vm253 = vcmp.gt.f32.partialorder %v237, 0.0
        %vm254 = vcmp.gt.f32.partialorder %v238, 0.0
        %vm255 = vcmp.gt.f32.partialorder %v239, 0.0
        %vm256 = vcmp.gt.f32.partialorder %v240, 0.0
        %v257 = vmul.f32 %v225, 0.002
        %v258 = vmul.f32 %v226, 0.002
        %v259 = vmul.f32 %v227, 0.002
        %v260 = vmul.f32 %v228, 0.002
        %v261 = vmul.f32 %v229, 0.002
        %v262 = vmul.f32 %v230, 0.002
        %v263 = vmul.f32 %v231, 0.002
        %v264 = vmul.f32 %v232, 0.002
        %v265 = vmul.f32 %v233, 0.002
        %v266 = vmul.f32 %v234, 0.002
        %v267 = vmul.f32 %v235, 0.002
        %v268 = vmul.f32 %v236, 0.002
        %v269 = vmul.f32 %v237, 0.002
        %v270 = vmul.f32 %v238, 0.002
        %v271 = vmul.f32 %v239, 0.002
        %v272 = vmul.f32 %v240, 0.002
        %v273 = vsel %vm241, %v225, %v257
        %v274 = vsel %vm242, %v226, %v258
        %v275 = vsel %vm243, %v227, %v259
        %v276 = vsel %vm244, %v228, %v260
        %v277 = vsel %vm245, %v229, %v261
        %v278 = vsel %vm246, %v230, %v262
        %v279 = vsel %vm247, %v231, %v263
        %v280 = vsel %vm248, %v232, %v264
        %v281 = vsel %vm249, %v233, %v265
        %v282 = vsel %vm250, %v234, %v266
        %v283 = vsel %vm251, %v235, %v267
        %v284 = vsel %vm252, %v236, %v268
        %v285 = vsel %vm253, %v237, %v269
        %v286 = vsel %vm254, %v238, %v270
        %v287 = vsel %vm255, %v239, %v271
        %v288 = vsel %vm256, %v240, %v272
        %289 = vst [vmem:[%s164] sm:$0xff] %v273
        %290 = vst [vmem:[%s164 + $0x8] sm:$0xff] %v274
        %291 = vst [vmem:[%s164 + $0x10] sm:$0xff] %v275
        %292 = vst [vmem:[%s164 + $0x18] sm:$0xff] %v276
        %293 = vst [vmem:[%s164 + $0x20] sm:$0xff] %v277
        %294 = vst [vmem:[%s164 + $0x28] sm:$0xff] %v278
        %295 = vst [vmem:[%s164 + $0x30] sm:$0xff] %v279
        %296 = vst [vmem:[%s164 + $0x38] sm:$0xff] %v280
        %297 = vst [vmem:[%s164 + $0x40] sm:$0xff] %v281
        %298 = vst [vmem:[%s164 + $0x48] sm:$0xff] %v282
        %299 = vst [vmem:[%s164 + $0x50] sm:$0xff] %v283
        %300 = vst [vmem:[%s164 + $0x58] sm:$0xff] %v284
        %301 = vst [vmem:[%s164 + $0x60] sm:$0xff] %v285
        %302 = vst [vmem:[%s164 + $0x68] sm:$0xff] %v286
        %303 = vst [vmem:[%s164 + $0x70] sm:$0xff] %v287
        %304 = vst [vmem:[%s164 + $0x78] sm:$0xff] %v288
        %s305 = sand.u32 %s93, 1
        %s306 = scalar_lea.sflag [#allocation3], %s305
        %s307 = sand.u32 %s93, 1
        %s308 = smul.addr %s307, 128
        %s309 = scalar_lea.vmem [#allocation2], %s308
        // Predicated region
        $region33: #{gat_model_forward.7} parent=31 // pred_check
          %p310 = pneg %p103
        $region34: #{gat_model_forward.7} parent=31 // pred_check_branch
          %312 = sbr.rel (%p310) target = $region36
        $region35: #{gat_model_forward.7} parent=31 // pred_region
          %s313 = smul.u32 16, %s17
          %s315 = ssub.s32 2048, 2048
          %316 = vsyncadd %s306, %s315
          %s317 = smul.addr %s313, 128
          %s318 = scalar_lea.hbm %s3, %s317
          %s319 = sshll.u32 %s309, 4
          %s320 = int_to_ptr.vmem [resolvable:$true] %s319
          %325 = dma.vmem_to_hbm [thread:$0]  %s320, 2048, %s318, %s306, 128, 128, 8
        $region36: #{gat_model_forward.7} parent=31 // pred_fallthru
          _
      $region32: #{gat_model_forward.7} parent=5 // pred_fallthru
        _
      %p326 = scmp.le.s32.totalorder 2, %s12
      // Predicated region
      $region37: #{gat_model_forward.7} parent=5 // pred_check
        %p327 = pneg %p326
      $region38: #{gat_model_forward.7} parent=5 // pred_check_branch
        %329 = sbr.rel (%p327) target = $region40
      $region39: #{gat_model_forward.7} parent=5 // pred_region
        %s330 = ssub.s32 %s12, 2
        // Predicated region
        $region41: #{gat_model_forward.7} parent=39 // pred_check
          %p331 = pneg %p109
        $region42: #{gat_model_forward.7} parent=39 // pred_check_branch
          %333 = sbr.rel (%p331) target = $region44
        $region43: #{gat_model_forward.7} parent=39 // pred_region
          %s334 = sand.u32 %s94, 1
          %s335 = scalar_lea.sflag [#allocation3], %s334
          %s336 = sand.u32 %s94, 1
          %s337 = smul.addr %s336, 128
          %s338 = scalar_lea.vmem [#allocation2], %s337
          %339 = dma.done %s335, 2048
        $region44: #{gat_model_forward.7} parent=39 // pred_fallthru
          _
      $region40: #{gat_model_forward.7} parent=5 // pred_fallthru
        _
    $region6: #{gat_model_forward.7} parent=1 // loop_footer
      %s16 = sadd.s32 1, %s12
    $region7: #{gat_model_forward.7} parent=1 // loop_footer_branch
      %11 = sbr.rel target = $region3
    $region8: #{gat_model_forward.7} parent=1 // loop_exit
      _
    %340 = vsyncpa [#allocation3], 1
    %s341 = scalar_lea.sflag [#allocation3], 1
    %342 = vsyncpa %s341, 1

// kernel: gat_model_forward.6
$region0: #{gat_model_forward.6}
  #allocation0 [shape = 'u32[]', space=smem, size = 0x4, offset = 0x4, fixed_abs, tag = 'smem constant byte address 0x4 - core index']
  #allocation1 [shape = 'u32[144,128]{1,0:T(1,128)}', space=vmem, size = 0x12000, scoped, tag = 'internal scratch']
  %s0 = inlined_call_operand.vmem [shape: f32[256,128], index: 0, kind: input, shape index: {}]
  %s1 = inlined_call_operand.vmem [shape: f32[1,128], index: 1, kind: output, shape index: {0}]
  %s2 = inlined_call_operand.vmem [shape: f32[1,128], index: 2, kind: output, shape index: {1}]
  %3 = xla_tuple %s1, %s2
  %s4 = sld [smem:[#allocation0]]
  $region49: #{gat_model_forward.6} parent=0
    _
  %s6 = ssub.s32 1, %s4
  %s7 = scalar_select 0, %s6, %s4
  loop: start=0, step=1, limit=4
  $region2: #{gat_model_forward.6} parent=0 // loop_pre_header
    _
  $region3: #{gat_model_forward.6} parent=0 // loop_header
    %s9 = sphi 0, %s13
    %p10 = scmp.ge.s32.totalorder %s9, 4
    %s19 = sphi 0, %s21
    %s22 = sphi 0, %s19
    %s23 = sphi 0, %s22
    %s39 = sphi 0, %s23
    %s43 = sphi 0, %s43
    %s45 = sphi 0, %s43
    %s46 = sphi 0, %s45
    %s60 = sphi 0, %s46
    %s64 = sphi 0, %s64
    %s66 = sphi 0, %s64
    %s67 = sphi 0, %s66
    %s81 = sphi 0, %s67
  $region4: #{gat_model_forward.6} parent=0 // loop_header_branch
    %12 = sbr.rel (%p10) target = $region8
  $region5: #{gat_model_forward.6} parent=0 // loop_body
    %s14 = ssub.s32 %s9, 1
    %s15 = ssub.s32 %s9, 2
    %s16 = sadd.s32 %s9, 1
    %s17 = ssub.s32 %s9, %s16
    %p18 = scmp.eq.s32.totalorder %s17, 0
    %s20 = sadd.s32 %s19, 1
    %s21 = scalar_select %p18, %s19, %s20
    %p24 = pneg %p18
    %p25 = scmp.eq.s32.totalorder %s9, 1
    %p26 = por %p24, %p25
    %p27 = scmp.ne.s32.totalorder %s19, %s22
    %p28 = scmp.eq.s32.totalorder %s9, 0
    %p29 = por %p27, %p28
    %p30 = scmp.ne.s32.totalorder %s19, %s22
    %p31 = scmp.eq.s32.totalorder %s14, 1
    %p32 = por %p30, %p31
    %p33 = scmp.ne.s32.totalorder %s22, %s23
    %p34 = scmp.eq.s32.totalorder %s14, 0
    %p35 = por %p33, %p34
    %p36 = scmp.ne.s32.totalorder %s22, %s23
    %p37 = scmp.eq.s32.totalorder %s15, 1
    %p38 = por %p36, %p37
    %p40 = scmp.ne.s32.totalorder %s23, %s39
    %p41 = scmp.eq.s32.totalorder %s15, 0
    %p42 = por %p40, %p41
    %s44 = sadd.s32 %s43, 1
    %p47 = scmp.eq.s32.totalorder %s9, 1
    %p48 = scmp.ne.s32.totalorder %s43, %s45
    %p49 = scmp.eq.s32.totalorder %s9, 0
    %p50 = por %p48, %p49
    %p51 = scmp.ne.s32.totalorder %s43, %s45
    %p52 = scmp.eq.s32.totalorder %s14, 1
    %p53 = por %p51, %p52
    %p54 = scmp.ne.s32.totalorder %s45, %s46
    %p55 = scmp.eq.s32.totalorder %s14, 0
    %p56 = por %p54, %p55
    %p57 = scmp.ne.s32.totalorder %s45, %s46
    %p58 = scmp.eq.s32.totalorder %s15, 1
    %p59 = por %p57, %p58
    %p61 = scmp.ne.s32.totalorder %s46, %s60
    %p62 = scmp.eq.s32.totalorder %s15, 0
    %p63 = por %p61, %p62
    %s65 = sadd.s32 %s64, 1
    %p68 = scmp.eq.s32.totalorder %s9, 1
    %p69 = scmp.ne.s32.totalorder %s64, %s66
    %p70 = scmp.eq.s32.totalorder %s9, 0
    %p71 = por %p69, %p70
    %p72 = scmp.ne.s32.totalorder %s64, %s66
    %p73 = scmp.eq.s32.totalorder %s14, 1
    %p74 = por %p72, %p73
    %p75 = scmp.ne.s32.totalorder %s66, %s67
    %p76 = scmp.eq.s32.totalorder %s14, 0
    %p77 = por %p75, %p76
    %p78 = scmp.ne.s32.totalorder %s66, %s67
    %p79 = scmp.eq.s32.totalorder %s15, 1
    %p80 = por %p78, %p79
    %p82 = scmp.ne.s32.totalorder %s67, %s81
    %p83 = scmp.eq.s32.totalorder %s15, 0
    %p84 = por %p82, %p83
    %p85 = scmp.le.s32.totalorder 1, %s9
    %p86 = scmp.lt.s32.totalorder %s9, 3
    %p87 = pnand %p85, %p86
    %p88 = pneg %p87
    // Predicated region
    $region9: #{gat_model_forward.6} parent=5 // pred_check
      _
    $region10: #{gat_model_forward.6} parent=5 // pred_check_branch
      %90 = sbr.rel (%p87) target = $region12
    $region11: #{gat_model_forward.6} parent=5 // pred_region
      %s91 = ssub.s32 %s9, 1
    $region12: #{gat_model_forward.6} parent=5 // pred_fallthru
      _
    %p92 = scmp.lt.s32.totalorder %s9, 2
    // Predicated region
    $region13: #{gat_model_forward.6} parent=5 // pred_check
      %p93 = pneg %p92
    $region14: #{gat_model_forward.6} parent=5 // pred_check_branch
      %95 = sbr.rel (%p93) target = $region16
    $region15: #{gat_model_forward.6} parent=5 // pred_region
      // Predicated region
      $region17: #{gat_model_forward.6} parent=15 // pred_check
        %p96 = pneg %p29
      $region18: #{gat_model_forward.6} parent=15 // pred_check_branch
        %98 = sbr.rel (%p96) target = $region20
      $region19: #{gat_model_forward.6} parent=15 // pred_region
        %s99 = smul.u32 16, %s9
        %p100 = scmp.lt.s32.totalorder %s99, 31
        %s101 = scalar_select %p100, %s99, 31
        %s102 = smul.addr %s101, 8
        %s103 = scalar_lea.vmem %s0, %s102
        %s104 = smul.u32 16, %s9
      $region20: #{gat_model_forward.6} parent=15 // pred_fallthru
        _
    $region16: #{gat_model_forward.6} parent=5 // pred_fallthru
      _
    %p105 = scmp.le.s32.totalorder 1, %s9
    %p106 = scmp.lt.s32.totalorder %s9, 3
    %p107 = pnand %p105, %p106
    %p108 = pneg %p107
    // Predicated region
    $region21: #{gat_model_forward.6} parent=5 // pred_check
      _
    $region22: #{gat_model_forward.6} parent=5 // pred_check_branch
      %110 = sbr.rel (%p107) target = $region24
    $region23: #{gat_model_forward.6} parent=5 // pred_region
      %s111 = ssub.s32 %s9, 1
      %s112 = smul.u32 16, %s14
      %p113 = scmp.lt.s32.totalorder %s112, 31
      %s114 = scalar_select %p113, %s112, 31
      %s115 = smul.addr %s114, 8
      %s116 = scalar_lea.vmem %s0, %s115
      %p117 = pneg %p35
      %p118 = pneg %p32
      %p119 = pneg %p56
      %p120 = pneg %p53
      %p121 = pneg %p77
      %p122 = pneg %p74
      %s123 = smul.u32 16, %s14
      %p124 = scmp.lt.s32.totalorder %s123, 31
      %s125 = scalar_select %p124, %s123, 31
      %s126 = smul.addr %s125, 8
      %s127 = scalar_lea.vmem %s0, %s126
      %s128 = smul.u32 16, %s14
      %p129 = scmp.eq.s32.totalorder %s14, 0
      // Predicated region
      $region25: #{gat_model_forward.6} parent=23 // pred_check
        %p130 = pneg %p129
      $region26: #{gat_model_forward.6} parent=23 // pred_check_branch
        %132 = sbr.rel (%p130) target = $region28
      $region27: #{gat_model_forward.6} parent=23 // pred_region
        %133 = vst [vmem:[%s1] sm:$0x1] 0.0
        %134 = vst [vmem:[%s2] sm:$0x1] 0.0
      $region28: #{gat_model_forward.6} parent=23 // pred_fallthru
        _
      %v135 = vld [vmem:[%s127] sm:$0xff]
      %v136 = vld [vmem:[%s127 + $0x8] sm:$0xff]
      %v137 = vld [vmem:[%s127 + $0x10] sm:$0xff]
      %v138 = vld [vmem:[%s127 + $0x18] sm:$0xff]
      %v139 = vld [vmem:[%s127 + $0x20] sm:$0xff]
      %v140 = vld [vmem:[%s127 + $0x28] sm:$0xff]
      %v141 = vld [vmem:[%s127 + $0x30] sm:$0xff]
      %v142 = vld [vmem:[%s127 + $0x38] sm:$0xff]
      %v143 = vld [vmem:[%s127 + $0x40] sm:$0xff]
      %v144 = vld [vmem:[%s127 + $0x48] sm:$0xff]
      %v145 = vld [vmem:[%s127 + $0x50] sm:$0xff]
      %v146 = vld [vmem:[%s127 + $0x58] sm:$0xff]
      %v147 = vld [vmem:[%s127 + $0x60] sm:$0xff]
      %v148 = vld [vmem:[%s127 + $0x68] sm:$0xff]
      %v149 = vld [vmem:[%s127 + $0x70] sm:$0xff]
      %v150 = vld [vmem:[%s127 + $0x78] sm:$0xff]
      %v151 = vld [vmem:[%s1] sm:$0x1]
      %v152 = vadd.f32 %v135, %v136
      %v153 = vadd.f32 %v152, %v137
      %v154 = vadd.f32 %v153, %v138
      %v155 = vadd.f32 %v154, %v139
      %v156 = vadd.f32 %v155, %v140
      %v157 = vadd.f32 %v156, %v141
      %v158 = vadd.f32 %v157, %v142
      %v159 = vadd.f32 %v158, %v143
      %v160 = vadd.f32 %v159, %v144
      %v161 = vadd.f32 %v160, %v145
      %v162 = vadd.f32 %v161, %v146
      %v163 = vadd.f32 %v162, %v147
      %v164 = vadd.f32 %v163, %v148
      %v165 = vadd.f32 %v164, %v149
      %v166 = vadd.f32 %v165, %v150
      %v167 = vrot.slane %v166, 4
      %v168 = vadd.f32 %v166, %v167
      %v169 = vrot.slane %v168, 2
      %v170 = vadd.f32 %v168, %v169
      %v171 = vrot.slane %v170, 1
      %v172 = vadd.f32 %v170, %v171
      %v173 = vadd.f32 %v151, %v172
      %174 = vst [vmem:[%s1] sm:$0x1] %v173
      %v175 = vld [vmem:[%s2] sm:$0x1]
      %v176 = vmul.f32 %v135, %v135
      %v177 = vmul.f32 %v136, %v136
      %v178 = vmul.f32 %v137, %v137
      %v179 = vmul.f32 %v138, %v138
      %v180 = vmul.f32 %v139, %v139
      %v181 = vmul.f32 %v140, %v140
      %v182 = vmul.f32 %v141, %v141
      %v183 = vmul.f32 %v142, %v142
      %v184 = vmul.f32 %v143, %v143
      %v185 = vmul.f32 %v144, %v144
      %v186 = vmul.f32 %v145, %v145
      %v187 = vmul.f32 %v146, %v146
      %v188 = vmul.f32 %v147, %v147
      %v189 = vmul.f32 %v148, %v148
      %v190 = vmul.f32 %v149, %v149
      %v191 = vmul.f32 %v150, %v150
      %v192 = vadd.f32 %v176, %v177
      %v193 = vadd.f32 %v192, %v178
      %v194 = vadd.f32 %v193, %v179
      %v195 = vadd.f32 %v194, %v180
      %v196 = vadd.f32 %v195, %v181
      %v197 = vadd.f32 %v196, %v182
      %v198 = vadd.f32 %v197, %v183
      %v199 = vadd.f32 %v198, %v184
      %v200 = vadd.f32 %v199, %v185
      %v201 = vadd.f32 %v200, %v186
      %v202 = vadd.f32 %v201, %v187
      %v203 = vadd.f32 %v202, %v188
      %v204 = vadd.f32 %v203, %v189
      %v205 = vadd.f32 %v204, %v190
      %v206 = vadd.f32 %v205, %v191
      %v207 = vrot.slane %v206, 4
      %v208 = vadd.f32 %v206, %v207
      %v209 = vrot.slane %v208, 2
      %v210 = vadd.f32 %v208, %v209
      %v211 = vrot.slane %v210, 1
      %v212 = vadd.f32 %v210, %v211
      %v213 = vadd.f32 %v175, %v212
      %214 = vst [vmem:[%s2] sm:$0x1] %v213
      // Predicated region
      $region29: #{gat_model_forward.6} parent=23 // pred_check
        %p215 = pneg %p53
      $region30: #{gat_model_forward.6} parent=23 // pred_check_branch
        %217 = sbr.rel (%p215) target = $region32
      $region31: #{gat_model_forward.6} parent=23 // pred_region
        _
      $region32: #{gat_model_forward.6} parent=23 // pred_fallthru
        _
      // Predicated region
      $region33: #{gat_model_forward.6} parent=23 // pred_check
        %p218 = pneg %p74
      $region34: #{gat_model_forward.6} parent=23 // pred_check_branch
        %220 = sbr.rel (%p218) target = $region36
      $region35: #{gat_model_forward.6} parent=23 // pred_region
        _
      $region36: #{gat_model_forward.6} parent=23 // pred_fallthru
        _
      // Predicated region
      $region37: #{gat_model_forward.6} parent=23 // pred_check
        %p221 = pneg %p53
      $region38: #{gat_model_forward.6} parent=23 // pred_check_branch
        %223 = sbr.rel (%p221) target = $region40
      $region39: #{gat_model_forward.6} parent=23 // pred_region
        _
      $region40: #{gat_model_forward.6} parent=23 // pred_fallthru
        _
      // Predicated region
      $region41: #{gat_model_forward.6} parent=23 // pred_check
        %p224 = pneg %p74
      $region42: #{gat_model_forward.6} parent=23 // pred_check_branch
        %226 = sbr.rel (%p224) target = $region44
      $region43: #{gat_model_forward.6} parent=23 // pred_region
        _
      $region44: #{gat_model_forward.6} parent=23 // pred_fallthru
        _
    $region24: #{gat_model_forward.6} parent=5 // pred_fallthru
      _
    %p227 = scmp.le.s32.totalorder 2, %s9
    // Predicated region
    $region45: #{gat_model_forward.6} parent=5 // pred_check
      %p228 = pneg %p227
    $region46: #{gat_model_forward.6} parent=5 // pred_check_branch
      %230 = sbr.rel (%p228) target = $region48
    $region47: #{gat_model_forward.6} parent=5 // pred_region
      %s231 = ssub.s32 %s9, 2
    $region48: #{gat_model_forward.6} parent=5 // pred_fallthru
      _
  $region6: #{gat_model_forward.6} parent=0 // loop_footer
    %s13 = sadd.s32 1, %s9
  $region7: #{gat_model_forward.6} parent=0 // loop_footer_branch
    %8 = sbr.rel target = $region3
  $region8: #{gat_model_forward.6} parent=0 // loop_exit
    _

// kernel: gat_model_forward.4
$region0: #{gat_model_forward.4}
  #allocation0 [shape = 'u32[]', space=smem, size = 0x4, offset = 0x4, fixed_abs, tag = 'smem constant byte address 0x4 - core index']
  #allocation1 [shape = 'u32[144,128]{1,0:T(1,128)}', space=vmem, size = 0x12000, scoped, tag = 'internal scratch']
  %s0 = inlined_call_operand.vmem [shape: f32[256,64], index: 0, kind: input, shape index: {}]
  %s1 = inlined_call_operand.vmem [shape: bf16[64,128], index: 1, kind: input, shape index: {}]
  %s2 = inlined_call_operand.vmem [shape: bf16[128,4], index: 2, kind: input, shape index: {}]
  %s3 = inlined_call_operand.vmem [shape: bf16[128,4], index: 3, kind: input, shape index: {}]
  %s4 = inlined_call_operand.vmem [shape: bf16[64,128], index: 4, kind: input, shape index: {}]
  %s5 = inlined_call_operand.vmem [shape: bf16[256,128], index: 5, kind: output, shape index: {0}]
  %s6 = inlined_call_operand.vmem [shape: f32[256,4], index: 6, kind: output, shape index: {1}]
  %s7 = inlined_call_operand.vmem [shape: f32[256,4], index: 7, kind: output, shape index: {2}]
  %s8 = inlined_call_operand.vmem [shape: f32[256,128], index: 8, kind: output, shape index: {3}]
  %9 = xla_tuple %s5, %s6, %s7, %s8
  %s10 = sld [smem:[#allocation0]]
  $region77: #{gat_model_forward.4} parent=0
    _
  %s12 = ssub.s32 1, %s10
  %s13 = scalar_select 0, %s12, %s10
  loop: start=0, step=1, limit=4
  $region2: #{gat_model_forward.4} parent=0 // loop_pre_header
    _
  $region3: #{gat_model_forward.4} parent=0 // loop_header
    %s15 = sphi 0, %s19
    %p16 = scmp.ge.s32.totalorder %s15, 4
    %s25 = sphi 0, %s27
    %s28 = sphi 0, %s25
    %s29 = sphi 0, %s28
    %s45 = sphi 0, %s29
    %s49 = sphi 0, %s49
    %s51 = sphi 0, %s49
    %s52 = sphi 0, %s51
    %s66 = sphi 0, %s52
    %s70 = sphi 0, %s70
    %s72 = sphi 0, %s70
    %s73 = sphi 0, %s72
    %s87 = sphi 0, %s73
    %s91 = sphi 0, %s91
    %s93 = sphi 0, %s91
    %s94 = sphi 0, %s93
    %s108 = sphi 0, %s94
    %s112 = sphi 0, %s112
    %s114 = sphi 0, %s112
    %s115 = sphi 0, %s114
    %s129 = sphi 0, %s115
    %s135 = sphi 0, %s137
    %s138 = sphi 0, %s135
    %s139 = sphi 0, %s138
    %s155 = sphi 0, %s139
    %s161 = sphi 0, %s163
    %s164 = sphi 0, %s161
    %s165 = sphi 0, %s164
    %s181 = sphi 0, %s165
    %s187 = sphi 0, %s189
    %s190 = sphi 0, %s187
    %s191 = sphi 0, %s190
    %s207 = sphi 0, %s191
    %s213 = sphi 0, %s215
    %s216 = sphi 0, %s213
    %s217 = sphi 0, %s216
    %s233 = sphi 0, %s217
  $region4: #{gat_model_forward.4} parent=0 // loop_header_branch
    %18 = sbr.rel (%p16) target = $region8
  $region5: #{gat_model_forward.4} parent=0 // loop_body
    %s20 = ssub.s32 %s15, 1
    %s21 = ssub.s32 %s15, 2
    %s22 = sadd.s32 %s15, 1
    %s23 = ssub.s32 %s15, %s22
    %p24 = scmp.eq.s32.totalorder %s23, 0
    %s26 = sadd.s32 %s25, 1
    %s27 = scalar_select %p24, %s25, %s26
    %p30 = pneg %p24
    %p31 = scmp.eq.s32.totalorder %s15, 1
    %p32 = por %p30, %p31
    %p33 = scmp.ne.s32.totalorder %s25, %s28
    %p34 = scmp.eq.s32.totalorder %s15, 0
    %p35 = por %p33, %p34
    %p36 = scmp.ne.s32.totalorder %s25, %s28
    %p37 = scmp.eq.s32.totalorder %s20, 1
    %p38 = por %p36, %p37
    %p39 = scmp.ne.s32.totalorder %s28, %s29
    %p40 = scmp.eq.s32.totalorder %s20, 0
    %p41 = por %p39, %p40
    %p42 = scmp.ne.s32.totalorder %s28, %s29
    %p43 = scmp.eq.s32.totalorder %s21, 1
    %p44 = por %p42, %p43
    %p46 = scmp.ne.s32.totalorder %s29, %s45
    %p47 = scmp.eq.s32.totalorder %s21, 0
    %p48 = por %p46, %p47
    %s50 = sadd.s32 %s49, 1
    %p53 = scmp.eq.s32.totalorder %s15, 1
    %p54 = scmp.ne.s32.totalorder %s49, %s51
    %p55 = scmp.eq.s32.totalorder %s15, 0
    %p56 = por %p54, %p55
    %p57 = scmp.ne.s32.totalorder %s49, %s51
    %p58 = scmp.eq.s32.totalorder %s20, 1
    %p59 = por %p57, %p58
    %p60 = scmp.ne.s32.totalorder %s51, %s52
    %p61 = scmp.eq.s32.totalorder %s20, 0
    %p62 = por %p60, %p61
    %p63 = scmp.ne.s32.totalorder %s51, %s52
    %p64 = scmp.eq.s32.totalorder %s21, 1
    %p65 = por %p63, %p64
    %p67 = scmp.ne.s32.totalorder %s52, %s66
    %p68 = scmp.eq.s32.totalorder %s21, 0
    %p69 = por %p67, %p68
    %s71 = sadd.s32 %s70, 1
    %p74 = scmp.eq.s32.totalorder %s15, 1
    %p75 = scmp.ne.s32.totalorder %s70, %s72
    %p76 = scmp.eq.s32.totalorder %s15, 0
    %p77 = por %p75, %p76
    %p78 = scmp.ne.s32.totalorder %s70, %s72
    %p79 = scmp.eq.s32.totalorder %s20, 1
    %p80 = por %p78, %p79
    %p81 = scmp.ne.s32.totalorder %s72, %s73
    %p82 = scmp.eq.s32.totalorder %s20, 0
    %p83 = por %p81, %p82
    %p84 = scmp.ne.s32.totalorder %s72, %s73
    %p85 = scmp.eq.s32.totalorder %s21, 1
    %p86 = por %p84, %p85
    %p88 = scmp.ne.s32.totalorder %s73, %s87
    %p89 = scmp.eq.s32.totalorder %s21, 0
    %p90 = por %p88, %p89
    %s92 = sadd.s32 %s91, 1
    %p95 = scmp.eq.s32.totalorder %s15, 1
    %p96 = scmp.ne.s32.totalorder %s91, %s93
    %p97 = scmp.eq.s32.totalorder %s15, 0
    %p98 = por %p96, %p97
    %p99 = scmp.ne.s32.totalorder %s91, %s93
    %p100 = scmp.eq.s32.totalorder %s20, 1
    %p101 = por %p99, %p100
    %p102 = scmp.ne.s32.totalorder %s93, %s94
    %p103 = scmp.eq.s32.totalorder %s20, 0
    %p104 = por %p102, %p103
    %p105 = scmp.ne.s32.totalorder %s93, %s94
    %p106 = scmp.eq.s32.totalorder %s21, 1
    %p107 = por %p105, %p106
    %p109 = scmp.ne.s32.totalorder %s94, %s108
    %p110 = scmp.eq.s32.totalorder %s21, 0
    %p111 = por %p109, %p110
    %s113 = sadd.s32 %s112, 1
    %p116 = scmp.eq.s32.totalorder %s15, 1
    %p117 = scmp.ne.s32.totalorder %s112, %s114
    %p118 = scmp.eq.s32.totalorder %s15, 0
    %p119 = por %p117, %p118
    %p120 = scmp.ne.s32.totalorder %s112, %s114
    %p121 = scmp.eq.s32.totalorder %s20, 1
    %p122 = por %p120, %p121
    %p123 = scmp.ne.s32.totalorder %s114, %s115
    %p124 = scmp.eq.s32.totalorder %s20, 0
    %p125 = por %p123, %p124
    %p126 = scmp.ne.s32.totalorder %s114, %s115
    %p127 = scmp.eq.s32.totalorder %s21, 1
    %p128 = por %p126, %p127
    %p130 = scmp.ne.s32.totalorder %s115, %s129
    %p131 = scmp.eq.s32.totalorder %s21, 0
    %p132 = por %p130, %p131
    %s133 = ssub.s32 %s15, %s22
    %p134 = scmp.eq.s32.totalorder %s133, 0
    %s136 = sadd.s32 %s135, 1
    %s137 = scalar_select %p134, %s135, %s136
    %p140 = pneg %p134
    %p141 = scmp.eq.s32.totalorder %s15, 1
    %p142 = por %p140, %p141
    %p143 = scmp.ne.s32.totalorder %s135, %s138
    %p144 = scmp.eq.s32.totalorder %s15, 0
    %p145 = por %p143, %p144
    %p146 = scmp.ne.s32.totalorder %s135, %s138
    %p147 = scmp.eq.s32.totalorder %s20, 1
    %p148 = por %p146, %p147
    %p149 = scmp.ne.s32.totalorder %s138, %s139
    %p150 = scmp.eq.s32.totalorder %s20, 0
    %p151 = por %p149, %p150
    %p152 = scmp.ne.s32.totalorder %s138, %s139
    %p153 = scmp.eq.s32.totalorder %s21, 1
    %p154 = por %p152, %p153
    %p156 = scmp.ne.s32.totalorder %s139, %s155
    %p157 = scmp.eq.s32.totalorder %s21, 0
    %p158 = por %p156, %p157
    %s159 = ssub.s32 %s15, %s22
    %p160 = scmp.eq.s32.totalorder %s159, 0
    %s162 = sadd.s32 %s161, 1
    %s163 = scalar_select %p160, %s161, %s162
    %p166 = pneg %p160
    %p167 = scmp.eq.s32.totalorder %s15, 1
    %p168 = por %p166, %p167
    %p169 = scmp.ne.s32.totalorder %s161, %s164
    %p170 = scmp.eq.s32.totalorder %s15, 0
    %p171 = por %p169, %p170
    %p172 = scmp.ne.s32.totalorder %s161, %s164
    %p173 = scmp.eq.s32.totalorder %s20, 1
    %p174 = por %p172, %p173
    %p175 = scmp.ne.s32.totalorder %s164, %s165
    %p176 = scmp.eq.s32.totalorder %s20, 0
    %p177 = por %p175, %p176
    %p178 = scmp.ne.s32.totalorder %s164, %s165
    %p179 = scmp.eq.s32.totalorder %s21, 1
    %p180 = por %p178, %p179
    %p182 = scmp.ne.s32.totalorder %s165, %s181
    %p183 = scmp.eq.s32.totalorder %s21, 0
    %p184 = por %p182, %p183
    %s185 = ssub.s32 %s15, %s22
    %p186 = scmp.eq.s32.totalorder %s185, 0
    %s188 = sadd.s32 %s187, 1
    %s189 = scalar_select %p186, %s187, %s188
    %p192 = pneg %p186
    %p193 = scmp.eq.s32.totalorder %s15, 1
    %p194 = por %p192, %p193
    %p195 = scmp.ne.s32.totalorder %s187, %s190
    %p196 = scmp.eq.s32.totalorder %s15, 0
    %p197 = por %p195, %p196
    %p198 = scmp.ne.s32.totalorder %s187, %s190
    %p199 = scmp.eq.s32.totalorder %s20, 1
    %p200 = por %p198, %p199
    %p201 = scmp.ne.s32.totalorder %s190, %s191
    %p202 = scmp.eq.s32.totalorder %s20, 0
    %p203 = por %p201, %p202
    %p204 = scmp.ne.s32.totalorder %s190, %s191
    %p205 = scmp.eq.s32.totalorder %s21, 1
    %p206 = por %p204, %p205
    %p208 = scmp.ne.s32.totalorder %s191, %s207
    %p209 = scmp.eq.s32.totalorder %s21, 0
    %p210 = por %p208, %p209
    %s211 = ssub.s32 %s15, %s22
    %p212 = scmp.eq.s32.totalorder %s211, 0
    %s214 = sadd.s32 %s213, 1
    %s215 = scalar_select %p212, %s213, %s214
    %p218 = pneg %p212
    %p219 = scmp.eq.s32.totalorder %s15, 1
    %p220 = por %p218, %p219
    %p221 = scmp.ne.s32.totalorder %s213, %s216
    %p222 = scmp.eq.s32.totalorder %s15, 0
    %p223 = por %p221, %p222
    %p224 = scmp.ne.s32.totalorder %s213, %s216
    %p225 = scmp.eq.s32.totalorder %s20, 1
    %p226 = por %p224, %p225
    %p227 = scmp.ne.s32.totalorder %s216, %s217
    %p228 = scmp.eq.s32.totalorder %s20, 0
    %p229 = por %p227, %p228
    %p230 = scmp.ne.s32.totalorder %s216, %s217
    %p231 = scmp.eq.s32.totalorder %s21, 1
    %p232 = por %p230, %p231
    %p234 = scmp.ne.s32.totalorder %s217, %s233
    %p235 = scmp.eq.s32.totalorder %s21, 0
    %p236 = por %p234, %p235
    %p237 = scmp.le.s32.totalorder 1, %s15
    %p238 = scmp.lt.s32.totalorder %s15, 3
    %p239 = pnand %p237, %p238
    %p240 = pneg %p239
    // Predicated region
    $region9: #{gat_model_forward.4} parent=5 // pred_check
      _
    $region10: #{gat_model_forward.4} parent=5 // pred_check_branch
      %242 = sbr.rel (%p239) target = $region12
    $region11: #{gat_model_forward.4} parent=5 // pred_region
      %s243 = ssub.s32 %s15, 1
      // Predicated region
      $region13: #{gat_model_forward.4} parent=11 // pred_check
        %p244 = pneg %p62
      $region14: #{gat_model_forward.4} parent=11 // pred_check_branch
        %246 = sbr.rel (%p244) target = $region16
      $region15: #{gat_model_forward.4} parent=11 // pred_region
        _
      $region16: #{gat_model_forward.4} parent=11 // pred_fallthru
        _
      // Predicated region
      $region17: #{gat_model_forward.4} parent=11 // pred_check
        %p247 = pneg %p83
      $region18: #{gat_model_forward.4} parent=11 // pred_check_branch
        %249 = sbr.rel (%p247) target = $region20
      $region19: #{gat_model_forward.4} parent=11 // pred_region
        _
      $region20: #{gat_model_forward.4} parent=11 // pred_fallthru
        _
      // Predicated region
      $region21: #{gat_model_forward.4} parent=11 // pred_check
        %p250 = pneg %p104
      $region22: #{gat_model_forward.4} parent=11 // pred_check_branch
        %252 = sbr.rel (%p250) target = $region24
      $region23: #{gat_model_forward.4} parent=11 // pred_region
        _
      $region24: #{gat_model_forward.4} parent=11 // pred_fallthru
        _
      // Predicated region
      $region25: #{gat_model_forward.4} parent=11 // pred_check
        %p253 = pneg %p125
      $region26: #{gat_model_forward.4} parent=11 // pred_check_branch
        %255 = sbr.rel (%p253) target = $region28
      $region27: #{gat_model_forward.4} parent=11 // pred_region
        _
      $region28: #{gat_model_forward.4} parent=11 // pred_fallthru
        _
    $region12: #{gat_model_forward.4} parent=5 // pred_fallthru
      _
    %p256 = scmp.lt.s32.totalorder %s15, 2
    // Predicated region
    $region29: #{gat_model_forward.4} parent=5 // pred_check
      %p257 = pneg %p256
    $region30: #{gat_model_forward.4} parent=5 // pred_check_branch
      %259 = sbr.rel (%p257) target = $region32
    $region31: #{gat_model_forward.4} parent=5 // pred_region
      // Predicated region
      $region33: #{gat_model_forward.4} parent=31 // pred_check
        %p260 = pneg %p35
      $region34: #{gat_model_forward.4} parent=31 // pred_check_branch
        %262 = sbr.rel (%p260) target = $region36
      $region35: #{gat_model_forward.4} parent=31 // pred_region
        %s263 = smul.u32 16, %s15
        %p264 = scmp.lt.s32.totalorder %s263, 31
        %s265 = scalar_select %p264, %s263, 31
        %s266 = smul.addr %s265, 8
        %s267 = scalar_lea.vmem %s0, %s266
        %s268 = smul.u32 16, %s15
      $region36: #{gat_model_forward.4} parent=31 // pred_fallthru
        _
    $region32: #{gat_model_forward.4} parent=5 // pred_fallthru
      _
    %p269 = scmp.le.s32.totalorder 1, %s15
    %p270 = scmp.lt.s32.totalorder %s15, 3
    %p271 = pnand %p269, %p270
    %p272 = pneg %p271
    // Predicated region
    $region37: #{gat_model_forward.4} parent=5 // pred_check
      _
    $region38: #{gat_model_forward.4} parent=5 // pred_check_branch
      %274 = sbr.rel (%p271) target = $region40
    $region39: #{gat_model_forward.4} parent=5 // pred_region
      %s275 = ssub.s32 %s15, 1
      %s276 = smul.u32 16, %s20
      %p277 = scmp.lt.s32.totalorder %s276, 31
      %s278 = scalar_select %p277, %s276, 31
      %s279 = smul.addr %s278, 8
      %s280 = scalar_lea.vmem %s0, %s279
      %p281 = pneg %p41
      %p282 = pneg %p38
      %p283 = pneg %p62
      %p284 = pneg %p59
      %p285 = pneg %p83
      %p286 = pneg %p80
      %p287 = pneg %p104
      %p288 = pneg %p101
      %p289 = pneg %p125
      %p290 = pneg %p122
      %p291 = pneg %p151
      %p292 = pneg %p148
      %s293 = smul.u32 16, %s20
      %p294 = scmp.lt.s32.totalorder %s293, 31
      %s295 = scalar_select %p294, %s293, 31
      %s296 = smul.addr %s295, 4
      %s297 = scalar_lea.vmem %s5, %s296
      %p298 = pneg %p177
      %p299 = pneg %p174
      %s300 = smul.u32 16, %s20
      %p301 = scmp.lt.s32.totalorder %s300, 31
      %s302 = scalar_select %p301, %s300, 31
      %s303 = smul.addr %s302, 8
      %s304 = scalar_lea.vmem %s6, %s303
      %p305 = pneg %p203
      %p306 = pneg %p200
      %s307 = smul.u32 16, %s20
      %p308 = scmp.lt.s32.totalorder %s307, 31
      %s309 = scalar_select %p308, %s307, 31
      %s310 = smul.addr %s309, 8
      %s311 = scalar_lea.vmem %s7, %s310
      %p312 = pneg %p229
      %p313 = pneg %p226
      %s314 = smul.u32 16, %s20
      %p315 = scmp.lt.s32.totalorder %s314, 31
      %s316 = scalar_select %p315, %s314, 31
      %s317 = smul.addr %s316, 8
      %s318 = scalar_lea.vmem %s8, %s317
      %s319 = smul.u32 16, %s20
      %p320 = scmp.lt.s32.totalorder %s319, 31
      %s321 = scalar_select %p320, %s319, 31
      %s322 = smul.addr %s321, 8
      %s323 = scalar_lea.vmem %s0, %s322
      %s324 = smul.u32 16, %s20
      %s325 = smul.u32 16, %s20
      %p326 = scmp.lt.s32.totalorder %s325, 31
      %s327 = scalar_select %p326, %s325, 31
      %s328 = smul.addr %s327, 4
      %s329 = scalar_lea.vmem %s5, %s328
      %s330 = smul.u32 16, %s20
      %s331 = smul.u32 16, %s20
      %p332 = scmp.lt.s32.totalorder %s331, 31
      %s333 = scalar_select %p332, %s331, 31
      %s334 = smul.addr %s333, 8
      %s335 = scalar_lea.vmem %s6, %s334
      %s336 = smul.u32 16, %s20
      %s337 = smul.u32 16, %s20
      %p338 = scmp.lt.s32.totalorder %s337, 31
      %s339 = scalar_select %p338, %s337, 31
      %s340 = smul.addr %s339, 8
      %s341 = scalar_lea.vmem %s7, %s340
      %s342 = smul.u32 16, %s20
      %s343 = smul.u32 16, %s20
      %p344 = scmp.lt.s32.totalorder %s343, 31
      %s345 = scalar_select %p344, %s343, 31
      %s346 = smul.addr %s345, 8
      %s347 = scalar_lea.vmem %s8, %s346
      %s348 = smul.u32 16, %s20
      %v350 = vld [vmem:[%s323] sm:$0xff]
      %v351 = vld [vmem:[%s323 + $0x8] sm:$0xff]
      %v352 = vld [vmem:[%s323 + $0x10] sm:$0xff]
      %v353 = vld [vmem:[%s323 + $0x18] sm:$0xff]
      %v354 = vld [vmem:[%s323 + $0x20] sm:$0xff]
      %v355 = vld [vmem:[%s323 + $0x28] sm:$0xff]
      %v356 = vld [vmem:[%s323 + $0x30] sm:$0xff]
      %v357 = vld [vmem:[%s323 + $0x38] sm:$0xff]
      %v358 = vld [vmem:[%s323 + $0x40] sm:$0xff]
      %v359 = vld [vmem:[%s323 + $0x48] sm:$0xff]
      %v360 = vld [vmem:[%s323 + $0x50] sm:$0xff]
      %v361 = vld [vmem:[%s323 + $0x58] sm:$0xff]
      %v362 = vld [vmem:[%s323 + $0x60] sm:$0xff]
      %v363 = vld [vmem:[%s323 + $0x68] sm:$0xff]
      %v364 = vld [vmem:[%s323 + $0x70] sm:$0xff]
      %v365 = vld [vmem:[%s323 + $0x78] sm:$0xff]
      %v366 = vpack.c.bf16 %v351, %v350
      %v367 = vpack.c.bf16 %v353, %v352
      %v368 = vpack.c.bf16 %v355, %v354
      %v369 = vpack.c.bf16 %v357, %v356
      %v370 = vpack.c.bf16 %v359, %v358
      %v371 = vpack.c.bf16 %v361, %v360
      %v372 = vpack.c.bf16 %v363, %v362
      %v373 = vpack.c.bf16 %v365, %v364
      %v374 = vld [vmem:[%s1] sm:$0xf]
      %v375 = vld [vmem:[%s1 + $0x4] sm:$0xf]
      %v376 = vld [vmem:[%s1 + $0x8] sm:$0xf]
      %v377 = vld [vmem:[%s1 + $0xc] sm:$0xf]
      %v378 = vld [vmem:[%s1 + $0x10] sm:$0xf]
      %v379 = vld [vmem:[%s1 + $0x14] sm:$0xf]
      %v380 = vld [vmem:[%s1 + $0x18] sm:$0xf]
      %v381 = vld [vmem:[%s1 + $0x1c] sm:$0xf]
      %v390 = vunpack.c.l.b16 %v374
      %v391 = vunpack.c.l.b16 %v375
      %v392 = vunpack.c.l.b16 %v376
      %v393 = vunpack.c.l.b16 %v377
      %v394 = vunpack.c.l.b16 %v378
      %v395 = vunpack.c.l.b16 %v379
      %v396 = vunpack.c.l.b16 %v380
      %v397 = vunpack.c.l.b16 %v381
      %v398 = vpack.c.b16 %v391, %v390
      %v399 = vpack.c.b16 %v393, %v392
      %v400 = vpack.c.b16 %v395, %v394
      %v401 = vpack.c.b16 %v397, %v396
      %vm406 = vcmask 523264
      %v408 = vsel %vm406, %v366, 0
      %v411 = vsel %vm406, %v367, 0
      %v414 = vsel %vm406, %v368, 0
      %v417 = vsel %vm406, %v369, 0
      %v420 = vsel %vm406, %v370, 0
      %v423 = vsel %vm406, %v371, 0
      %v426 = vsel %vm406, %v372, 0
      %v429 = vsel %vm406, %v373, 0
      %431 = vmatprep.subr.bf16.mxu0 0
      %432 = vmatpush1.bf16.msra.mxu0 %v398
      %433 = vmatprep.subr.bf16.mxu0 0
      %434 = vmatpush1.bf16.msra.mxu0 %v399
      %435 = vmatprep.subr.bf16.mxu0 0
      %436 = vmatpush1.bf16.msra.mxu0 %v400
      %437 = vmatprep.subr.bf16.mxu0 0
      %438 = vmatpush1.bf16.msra.mxu0 %v401
      %439 = vmatprep.subr.bf16.mxu0 0
      %440 = vmatpush1.bf16.msra.mxu0 0
      %441 = vmatprep.subr.bf16.mxu0 0
      %442 = vmatpush1.bf16.msra.mxu0 0
      %443 = vmatprep.subr.bf16.mxu0 0
      %444 = vmatpush1.bf16.msra.mxu0 0
      %445 = vmatprep.subr.bf16.mxu0 0
      %446 = vmatpush1.bf16.msra.mxu0 0
      %447 = vmatprep.subr.bf16.mxu0 0
      %448 = vmatpush1.bf16.msra.mxu0 0
      %449 = vmatprep.subr.bf16.mxu0 0
      %450 = vmatpush1.bf16.msra.mxu0 0
      %451 = vmatprep.subr.bf16.mxu0 0
      %452 = vmatpush1.bf16.msra.mxu0 0
      %453 = vmatprep.subr.bf16.mxu0 0
      %454 = vmatpush1.bf16.msra.mxu0 0
      %455 = vmatprep.subr.bf16.mxu0 0
      %456 = vmatpush1.bf16.msra.mxu0 0
      %457 = vmatprep.subr.bf16.mxu0 0
      %458 = vmatpush1.bf16.msra.mxu0 0
      %459 = vmatprep.subr.bf16.mxu0 0
      %460 = vmatpush1.bf16.msra.mxu0 0
      %461 = vmatprep.subr.bf16.mxu0 0
      %462 = vmatpush1.bf16.msra.mxu0 0
      %463 = vmatprep.mubr.bf16.mxu0 0
      %464 = vmatmul.mubr.bf16.gmra.mrb[0].mxu0 %v408
      %v465 = vpop.f32.mrb[0].mxu0
      %v466 = vadd.f32 0.0, %v465
      %v467 = vpop.f32.mrb[0].mxu0
      %v468 = vpop.f32.mrb[0].mxu0
      %v469 = vadd.f32 0.0, %v468
      %v470 = vpop.f32.mrb[0].mxu0
      %471 = vmatprep.mubr.bf16.mxu0 0
      %472 = vmatmul.mubr.bf16.gmra.mrb[0].mxu0 %v411
      %v473 = vpop.f32.mrb[0].mxu0
      %v474 = vadd.f32 0.0, %v473
      %v475 = vpop.f32.mrb[0].mxu0
      %v476 = vpop.f32.mrb[0].mxu0
      %v477 = vadd.f32 0.0, %v476
      %v478 = vpop.f32.mrb[0].mxu0
      %479 = vmatprep.mubr.bf16.mxu0 0
      %480 = vmatmul.mubr.bf16.gmra.mrb[0].mxu0 %v414
      %v481 = vpop.f32.mrb[0].mxu0
      %v482 = vadd.f32 0.0, %v481
      %v483 = vpop.f32.mrb[0].mxu0
      %v484 = vpop.f32.mrb[0].mxu0
      %v485 = vadd.f32 0.0, %v484
      %v486 = vpop.f32.mrb[0].mxu0
      %487 = vmatprep.mubr.bf16.mxu0 0
      %488 = vmatmul.mubr.bf16.gmra.mrb[0].mxu0 %v417
      %v489 = vpop.f32.mrb[0].mxu0
      %v490 = vadd.f32 0.0, %v489
      %v491 = vpop.f32.mrb[0].mxu0
      %v492 = vpop.f32.mrb[0].mxu0
      %v493 = vadd.f32 0.0, %v492
      %v494 = vpop.f32.mrb[0].mxu0
      %495 = vmatprep.mubr.bf16.mxu0 0
      %496 = vmatmul.mubr.bf16.gmra.mrb[0].mxu0 %v420
      %v497 = vpop.f32.mrb[0].mxu0
      %v498 = vadd.f32 0.0, %v497
      %v499 = vpop.f32.mrb[0].mxu0
      %v500 = vpop.f32.mrb[0].mxu0
      %v501 = vadd.f32 0.0, %v500
      %v502 = vpop.f32.mrb[0].mxu0
      %503 = vmatprep.mubr.bf16.mxu0 0
      %504 = vmatmul.mubr.bf16.gmra.mrb[0].mxu0 %v423
      %v505 = vpop.f32.mrb[0].mxu0
      %v506 = vadd.f32 0.0, %v505
      %v507 = vpop.f32.mrb[0].mxu0
      %v508 = vpop.f32.mrb[0].mxu0
      %v509 = vadd.f32 0.0, %v508
      %v510 = vpop.f32.mrb[0].mxu0
      %511 = vmatprep.mubr.bf16.mxu0 0
      %512 = vmatmul.mubr.bf16.gmra.mrb[0].mxu0 %v426
      %v513 = vpop.f32.mrb[0].mxu0
      %v514 = vadd.f32 0.0, %v513
      %v515 = vpop.f32.mrb[0].mxu0
      %v516 = vpop.f32.mrb[0].mxu0
      %v517 = vadd.f32 0.0, %v516
      %v518 = vpop.f32.mrb[0].mxu0
      %519 = vmatprep.mubr.bf16.mxu0 0
      %520 = vmatmul.mubr.bf16.gmra.mrb[0].mxu0 %v429
      %v521 = vpop.f32.mrb[0].mxu0
      %v522 = vadd.f32 0.0, %v521
      %v523 = vpop.f32.mrb[0].mxu0
      %v524 = vpop.f32.mrb[0].mxu0
      %v525 = vadd.f32 0.0, %v524
      %v526 = vpop.f32.mrb[0].mxu0
      %527 = vdwg.mxu0
      %v528 = vpack.c.bf16 %v469, %v466
      %v529 = vpack.c.bf16 %v477, %v474
      %v530 = vpack.c.bf16 %v485, %v482
      %v531 = vpack.c.bf16 %v493, %v490
      %v532 = vpack.c.bf16 %v501, %v498
      %v533 = vpack.c.bf16 %v509, %v506
      %v534 = vpack.c.bf16 %v517, %v514
      %v535 = vpack.c.bf16 %v525, %v522
      %v544 = vunpack.c.l.b16 %v528
      %v545 = vunpack.c.h.b16 %v528
      %v546 = vunpack.c.l.b16 %v529
      %v547 = vunpack.c.h.b16 %v529
      %v548 = vunpack.c.l.b16 %v530
      %v549 = vunpack.c.h.b16 %v530
      %v550 = vunpack.c.l.b16 %v531
      %v551 = vunpack.c.h.b16 %v531
      %v552 = vunpack.c.l.b16 %v532
      %v553 = vunpack.c.h.b16 %v532
      %v554 = vunpack.c.l.b16 %v533
      %v555 = vunpack.c.h.b16 %v533
      %v556 = vunpack.c.l.b16 %v534
      %v557 = vunpack.c.h.b16 %v534
      %v558 = vunpack.c.l.b16 %v535
      %v559 = vunpack.c.h.b16 %v535
      %v560 = vpack.c.b16 %v544, %v544
      %v561 = vpack.c.b16 %v545, %v545
      %v562 = vpack.c.b16 %v546, %v546
      %v563 = vpack.c.b16 %v547, %v547
      %v564 = vpack.c.b16 %v548, %v548
      %v565 = vpack.c.b16 %v549, %v549
      %v566 = vpack.c.b16 %v550, %v550
      %v567 = vpack.c.b16 %v551, %v551
      %v568 = vpack.c.b16 %v552, %v552
      %v569 = vpack.c.b16 %v553, %v553
      %v570 = vpack.c.b16 %v554, %v554
      %v571 = vpack.c.b16 %v555, %v555
      %v572 = vpack.c.b16 %v556, %v556
      %v573 = vpack.c.b16 %v557, %v557
      %v574 = vpack.c.b16 %v558, %v558
      %v575 = vpack.c.b16 %v559, %v559
      %592 = vst [vmem:[%s329] sm:$0xf] %v560
      %593 = vst [vmem:[%s329 + $0x4] sm:$0xf] %v561
      %594 = vst [vmem:[%s329 + $0x8] sm:$0xf] %v562
      %595 = vst [vmem:[%s329 + $0xc] sm:$0xf] %v563
      %596 = vst [vmem:[%s329 + $0x10] sm:$0xf] %v564
      %597 = vst [vmem:[%s329 + $0x14] sm:$0xf] %v565
      %598 = vst [vmem:[%s329 + $0x18] sm:$0xf] %v566
      %599 = vst [vmem:[%s329 + $0x1c] sm:$0xf] %v567
      %600 = vst [vmem:[%s329 + $0x20] sm:$0xf] %v568
      %601 = vst [vmem:[%s329 + $0x24] sm:$0xf] %v569
      %602 = vst [vmem:[%s329 + $0x28] sm:$0xf] %v570
      %603 = vst [vmem:[%s329 + $0x2c] sm:$0xf] %v571
      %604 = vst [vmem:[%s329 + $0x30] sm:$0xf] %v572
      %605 = vst [vmem:[%s329 + $0x34] sm:$0xf] %v573
      %606 = vst [vmem:[%s329 + $0x38] sm:$0xf] %v574
      %607 = vst [vmem:[%s329 + $0x3c] sm:$0xf] %v575
      %v608 = vld [vmem:[%s2] sm:$0xf]
      %v609 = vld [vmem:[%s2 + $0x4] sm:$0xf]
      %v610 = vld [vmem:[%s2 + $0x8] sm:$0xf]
      %v611 = vld [vmem:[%s2 + $0xc] sm:$0xf]
      %v612 = vld [vmem:[%s2 + $0x10] sm:$0xf]
      %v613 = vld [vmem:[%s2 + $0x14] sm:$0xf]
      %v614 = vld [vmem:[%s2 + $0x18] sm:$0xf]
      %v615 = vld [vmem:[%s2 + $0x1c] sm:$0xf]
      %v616 = vld [vmem:[%s2 + $0x20] sm:$0xf]
      %v617 = vld [vmem:[%s2 + $0x24] sm:$0xf]
      %v618 = vld [vmem:[%s2 + $0x28] sm:$0xf]
      %v619 = vld [vmem:[%s2 + $0x2c] sm:$0xf]
      %v620 = vld [vmem:[%s2 + $0x30] sm:$0xf]
      %v621 = vld [vmem:[%s2 + $0x34] sm:$0xf]
      %v622 = vld [vmem:[%s2 + $0x38] sm:$0xf]
      %v623 = vld [vmem:[%s2 + $0x3c] sm:$0xf]
      %v640 = vunpack.c.l.b16 %v608
      %v641 = vunpack.c.l.b16 %v609
      %v642 = vunpack.c.l.b16 %v610
      %v643 = vunpack.c.l.b16 %v611
      %v644 = vunpack.c.l.b16 %v612
      %v645 = vunpack.c.l.b16 %v613
      %v646 = vunpack.c.l.b16 %v614
      %v647 = vunpack.c.l.b16 %v615
      %v648 = vunpack.c.l.b16 %v616
      %v649 = vunpack.c.l.b16 %v617
      %v650 = vunpack.c.l.b16 %v618
      %v651 = vunpack.c.l.b16 %v619
      %v652 = vunpack.c.l.b16 %v620
      %v653 = vunpack.c.l.b16 %v621
      %v654 = vunpack.c.l.b16 %v622
      %v655 = vunpack.c.l.b16 %v623
      %v656 = vpack.c.b16 %v641, %v640
      %v657 = vpack.c.b16 %v643, %v642
      %v658 = vpack.c.b16 %v645, %v644
      %v659 = vpack.c.b16 %v647, %v646
      %v660 = vpack.c.b16 %v649, %v648
      %v661 = vpack.c.b16 %v651, %v650
      %v662 = vpack.c.b16 %v653, %v652
      %v663 = vpack.c.b16 %v655, %v654
      %672 = vmatprep.subr.bf16.mxu0 0
      %673 = vmatpush1.bf16.msra.mxu0 %v656
      %674 = vmatprep.subr.bf16.mxu0 0
      %675 = vmatpush1.bf16.msra.mxu0 %v657
      %676 = vmatprep.subr.bf16.mxu0 0
      %677 = vmatpush1.bf16.msra.mxu0 %v658
      %678 = vmatprep.subr.bf16.mxu0 0
      %679 = vmatpush1.bf16.msra.mxu0 %v659
      %680 = vmatprep.subr.bf16.mxu0 0
      %681 = vmatpush1.bf16.msra.mxu0 %v660
      %682 = vmatprep.subr.bf16.mxu0 0
      %683 = vmatpush1.bf16.msra.mxu0 %v661
      %684 = vmatprep.subr.bf16.mxu0 0
      %685 = vmatpush1.bf16.msra.mxu0 %v662
      %686 = vmatprep.subr.bf16.mxu0 0
      %687 = vmatpush1.bf16.msra.mxu0 %v663
      %688 = vmatprep.subr.bf16.mxu0 0
      %689 = vmatpush1.bf16.msra.mxu0 0
      %690 = vmatprep.subr.bf16.mxu0 0
      %691 = vmatpush1.bf16.msra.mxu0 0
      %692 = vmatprep.subr.bf16.mxu0 0
      %693 = vmatpush1.bf16.msra.mxu0 0
      %694 = vmatprep.subr.bf16.mxu0 0
      %695 = vmatpush1.bf16.msra.mxu0 0
      %696 = vmatprep.subr.bf16.mxu0 0
      %697 = vmatpush1.bf16.msra.mxu0 0
      %698 = vmatprep.subr.bf16.mxu0 0
      %699 = vmatpush1.bf16.msra.mxu0 0
      %700 = vmatprep.subr.bf16.mxu0 0
      %701 = vmatpush1.bf16.msra.mxu0 0
      %702 = vmatprep.subr.bf16.mxu0 0
      %703 = vmatpush1.bf16.msra.mxu0 0
      %704 = vmatprep.mubr.bf16.mxu0 0
      %705 = vmatmul.mubr.bf16.gmra.mrb[0].mxu0 %v528
      %v706 = vpop.f32.mrb[0].mxu0
      %v707 = vadd.f32 0.0, %v706
      %v708 = vpop.f32.mrb[0].mxu0
      %v709 = vpop.f32.mrb[0].mxu0
      %v710 = vadd.f32 0.0, %v709
      %v711 = vpop.f32.mrb[0].mxu0
      %712 = vmatprep.mubr.bf16.mxu0 0
      %713 = vmatmul.mubr.bf16.gmra.mrb[0].mxu0 %v529
      %v714 = vpop.f32.mrb[0].mxu0
      %v715 = vadd.f32 0.0, %v714
      %v716 = vpop.f32.mrb[0].mxu0
      %v717 = vpop.f32.mrb[0].mxu0
      %v718 = vadd.f32 0.0, %v717
      %v719 = vpop.f32.mrb[0].mxu0
      %720 = vmatprep.mubr.bf16.mxu0 0
      %721 = vmatmul.mubr.bf16.gmra.mrb[0].mxu0 %v530
      %v722 = vpop.f32.mrb[0].mxu0
      %v723 = vadd.f32 0.0, %v722
      %v724 = vpop.f32.mrb[0].mxu0
      %v725 = vpop.f32.mrb[0].mxu0
      %v726 = vadd.f32 0.0, %v725
      %v727 = vpop.f32.mrb[0].mxu0
      %728 = vmatprep.mubr.bf16.mxu0 0
      %729 = vmatmul.mubr.bf16.gmra.mrb[0].mxu0 %v531
      %v730 = vpop.f32.mrb[0].mxu0
      %v731 = vadd.f32 0.0, %v730
      %v732 = vpop.f32.mrb[0].mxu0
      %v733 = vpop.f32.mrb[0].mxu0
      %v734 = vadd.f32 0.0, %v733
      %v735 = vpop.f32.mrb[0].mxu0
      %736 = vmatprep.mubr.bf16.mxu0 0
      %737 = vmatmul.mubr.bf16.gmra.mrb[0].mxu0 %v532
      %v738 = vpop.f32.mrb[0].mxu0
      %v739 = vadd.f32 0.0, %v738
      %v740 = vpop.f32.mrb[0].mxu0
      %v741 = vpop.f32.mrb[0].mxu0
      %v742 = vadd.f32 0.0, %v741
      %v743 = vpop.f32.mrb[0].mxu0
      %744 = vmatprep.mubr.bf16.mxu0 0
      %745 = vmatmul.mubr.bf16.gmra.mrb[0].mxu0 %v533
      %v746 = vpop.f32.mrb[0].mxu0
      %v747 = vadd.f32 0.0, %v746
      %v748 = vpop.f32.mrb[0].mxu0
      %v749 = vpop.f32.mrb[0].mxu0
      %v750 = vadd.f32 0.0, %v749
      %v751 = vpop.f32.mrb[0].mxu0
      %752 = vmatprep.mubr.bf16.mxu0 0
      %753 = vmatmul.mubr.bf16.gmra.mrb[0].mxu0 %v534
      %v754 = vpop.f32.mrb[0].mxu0
      %v755 = vadd.f32 0.0, %v754
      %v756 = vpop.f32.mrb[0].mxu0
      %v757 = vpop.f32.mrb[0].mxu0
      %v758 = vadd.f32 0.0, %v757
      %v759 = vpop.f32.mrb[0].mxu0
      %760 = vmatprep.mubr.bf16.mxu0 0
      %761 = vmatmul.mubr.bf16.gmra.mrb[0].mxu0 %v535
      %v762 = vpop.f32.mrb[0].mxu0
      %v763 = vadd.f32 0.0, %v762
      %v764 = vpop.f32.mrb[0].mxu0
      %v765 = vpop.f32.mrb[0].mxu0
      %v766 = vadd.f32 0.0, %v765
      %v767 = vpop.f32.mrb[0].mxu0
      %768 = vdwg.mxu0
      %vm769 = vcmask 31744
      %770 = vst.msk [vmem:[%s335] sm:$0xff] %vm769, %v707
      %771 = vst.msk [vmem:[%s335 + $0x8] sm:$0xff] %vm769, %v710
      %772 = vst.msk [vmem:[%s335 + $0x10] sm:$0xff] %vm769, %v715
      %773 = vst.msk [vmem:[%s335 + $0x18] sm:$0xff] %vm769, %v718
      %774 = vst.msk [vmem:[%s335 + $0x20] sm:$0xff] %vm769, %v723
      %775 = vst.msk [vmem:[%s335 + $0x28] sm:$0xff] %vm769, %v726
      %776 = vst.msk [vmem:[%s335 + $0x30] sm:$0xff] %vm769, %v731
      %777 = vst.msk [vmem:[%s335 + $0x38] sm:$0xff] %vm769, %v734
      %778 = vst.msk [vmem:[%s335 + $0x40] sm:$0xff] %vm769, %v739
      %779 = vst.msk [vmem:[%s335 + $0x48] sm:$0xff] %vm769, %v742
      %780 = vst.msk [vmem:[%s335 + $0x50] sm:$0xff] %vm769, %v747
      %781 = vst.msk [vmem:[%s335 + $0x58] sm:$0xff] %vm769, %v750
      %782 = vst.msk [vmem:[%s335 + $0x60] sm:$0xff] %vm769, %v755
      %783 = vst.msk [vmem:[%s335 + $0x68] sm:$0xff] %vm769, %v758
      %784 = vst.msk [vmem:[%s335 + $0x70] sm:$0xff] %vm769, %v763
      %785 = vst.msk [vmem:[%s335 + $0x78] sm:$0xff] %vm769, %v766
      %v786 = vld [vmem:[%s3] sm:$0xf]
      %v787 = vld [vmem:[%s3 + $0x4] sm:$0xf]
      %v788 = vld [vmem:[%s3 + $0x8] sm:$0xf]
      %v789 = vld [vmem:[%s3 + $0xc] sm:$0xf]
      %v790 = vld [vmem:[%s3 + $0x10] sm:$0xf]
      %v791 = vld [vmem:[%s3 + $0x14] sm:$0xf]
      %v792 = vld [vmem:[%s3 + $0x18] sm:$0xf]
      %v793 = vld [vmem:[%s3 + $0x1c] sm:$0xf]
      %v794 = vld [vmem:[%s3 + $0x20] sm:$0xf]
      %v795 = vld [vmem:[%s3 + $0x24] sm:$0xf]
      %v796 = vld [vmem:[%s3 + $0x28] sm:$0xf]
      %v797 = vld [vmem:[%s3 + $0x2c] sm:$0xf]
      %v798 = vld [vmem:[%s3 + $0x30] sm:$0xf]
      %v799 = vld [vmem:[%s3 + $0x34] sm:$0xf]
      %v800 = vld [vmem:[%s3 + $0x38] sm:$0xf]
      %v801 = vld [vmem:[%s3 + $0x3c] sm:$0xf]
      %v818 = vunpack.c.l.b16 %v786
      %v819 = vunpack.c.l.b16 %v787
      %v820 = vunpack.c.l.b16 %v788
      %v821 = vunpack.c.l.b16 %v789
      %v822 = vunpack.c.l.b16 %v790
      %v823 = vunpack.c.l.b16 %v791
      %v824 = vunpack.c.l.b16 %v792
      %v825 = vunpack.c.l.b16 %v793
      %v826 = vunpack.c.l.b16 %v794
      %v827 = vunpack.c.l.b16 %v795
      %v828 = vunpack.c.l.b16 %v796
      %v829 = vunpack.c.l.b16 %v797
      %v830 = vunpack.c.l.b16 %v798
      %v831 = vunpack.c.l.b16 %v799
      %v832 = vunpack.c.l.b16 %v800
      %v833 = vunpack.c.l.b16 %v801
      %v834 = vpack.c.b16 %v819, %v818
      %v835 = vpack.c.b16 %v821, %v820
      %v836 = vpack.c.b16 %v823, %v822
      %v837 = vpack.c.b16 %v825, %v824
      %v838 = vpack.c.b16 %v827, %v826
      %v839 = vpack.c.b16 %v829, %v828
      %v840 = vpack.c.b16 %v831, %v830
      %v841 = vpack.c.b16 %v833, %v832
      %850 = vmatprep.subr.bf16.mxu0 0
      %851 = vmatpush1.bf16.msra.mxu0 %v834
      %852 = vmatprep.subr.bf16.mxu0 0
      %853 = vmatpush1.bf16.msra.mxu0 %v835
      %854 = vmatprep.subr.bf16.mxu0 0
      %855 = vmatpush1.bf16.msra.mxu0 %v836
      %856 = vmatprep.subr.bf16.mxu0 0
      %857 = vmatpush1.bf16.msra.mxu0 %v837
      %858 = vmatprep.subr.bf16.mxu0 0
      %859 = vmatpush1.bf16.msra.mxu0 %v838
      %860 = vmatprep.subr.bf16.mxu0 0
      %861 = vmatpush1.bf16.msra.mxu0 %v839
      %862 = vmatprep.subr.bf16.mxu0 0
      %863 = vmatpush1.bf16.msra.mxu0 %v840
      %864 = vmatprep.subr.bf16.mxu0 0
      %865 = vmatpush1.bf16.msra.mxu0 %v841
      %866 = vmatprep.subr.bf16.mxu0 0
      %867 = vmatpush1.bf16.msra.mxu0 0
      %868 = vmatprep.subr.bf16.mxu0 0
      %869 = vmatpush1.bf16.msra.mxu0 0
      %870 = vmatprep.subr.bf16.mxu0 0
      %871 = vmatpush1.bf16.msra.mxu0 0
      %872 = vmatprep.subr.bf16.mxu0 0
      %873 = vmatpush1.bf16.msra.mxu0 0
      %874 = vmatprep.subr.bf16.mxu0 0
      %875 = vmatpush1.bf16.msra.mxu0 0
      %876 = vmatprep.subr.bf16.mxu0 0
      %877 = vmatpush1.bf16.msra.mxu0 0
      %878 = vmatprep.subr.bf16.mxu0 0
      %879 = vmatpush1.bf16.msra.mxu0 0
      %880 = vmatprep.subr.bf16.mxu0 0
      %881 = vmatpush1.bf16.msra.mxu0 0
      %882 = vmatprep.mubr.bf16.mxu0 0
      %883 = vmatmul.mubr.bf16.gmra.mrb[0].mxu0 %v528
      %v884 = vpop.f32.mrb[0].mxu0
      %v885 = vadd.f32 0.0, %v884
      %v886 = vpop.f32.mrb[0].mxu0
      %v887 = vpop.f32.mrb[0].mxu0
      %v888 = vadd.f32 0.0, %v887
      %v889 = vpop.f32.mrb[0].mxu0
      %890 = vmatprep.mubr.bf16.mxu0 0
      %891 = vmatmul.mubr.bf16.gmra.mrb[0].mxu0 %v529
      %v892 = vpop.f32.mrb[0].mxu0
      %v893 = vadd.f32 0.0, %v892
      %v894 = vpop.f32.mrb[0].mxu0
      %v895 = vpop.f32.mrb[0].mxu0
      %v896 = vadd.f32 0.0, %v895
      %v897 = vpop.f32.mrb[0].mxu0
      %898 = vmatprep.mubr.bf16.mxu0 0
      %899 = vmatmul.mubr.bf16.gmra.mrb[0].mxu0 %v530
      %v900 = vpop.f32.mrb[0].mxu0
      %v901 = vadd.f32 0.0, %v900
      %v902 = vpop.f32.mrb[0].mxu0
      %v903 = vpop.f32.mrb[0].mxu0
      %v904 = vadd.f32 0.0, %v903
      %v905 = vpop.f32.mrb[0].mxu0
      %906 = vmatprep.mubr.bf16.mxu0 0
      %907 = vmatmul.mubr.bf16.gmra.mrb[0].mxu0 %v531
      %v908 = vpop.f32.mrb[0].mxu0
      %v909 = vadd.f32 0.0, %v908
      %v910 = vpop.f32.mrb[0].mxu0
      %v911 = vpop.f32.mrb[0].mxu0
      %v912 = vadd.f32 0.0, %v911
      %v913 = vpop.f32.mrb[0].mxu0
      %914 = vmatprep.mubr.bf16.mxu0 0
      %915 = vmatmul.mubr.bf16.gmra.mrb[0].mxu0 %v532
      %v916 = vpop.f32.mrb[0].mxu0
      %v917 = vadd.f32 0.0, %v916
      %v918 = vpop.f32.mrb[0].mxu0
      %v919 = vpop.f32.mrb[0].mxu0
      %v920 = vadd.f32 0.0, %v919
      %v921 = vpop.f32.mrb[0].mxu0
      %922 = vmatprep.mubr.bf16.mxu0 0
      %923 = vmatmul.mubr.bf16.gmra.mrb[0].mxu0 %v533
      %v924 = vpop.f32.mrb[0].mxu0
      %v925 = vadd.f32 0.0, %v924
      %v926 = vpop.f32.mrb[0].mxu0
      %v927 = vpop.f32.mrb[0].mxu0
      %v928 = vadd.f32 0.0, %v927
      %v929 = vpop.f32.mrb[0].mxu0
      %930 = vmatprep.mubr.bf16.mxu0 0
      %931 = vmatmul.mubr.bf16.gmra.mrb[0].mxu0 %v534
      %v932 = vpop.f32.mrb[0].mxu0
      %v933 = vadd.f32 0.0, %v932
      %v934 = vpop.f32.mrb[0].mxu0
      %v935 = vpop.f32.mrb[0].mxu0
      %v936 = vadd.f32 0.0, %v935
      %v937 = vpop.f32.mrb[0].mxu0
      %938 = vmatprep.mubr.bf16.mxu0 0
      %939 = vmatmul.mubr.bf16.gmra.mrb[0].mxu0 %v535
      %v940 = vpop.f32.mrb[0].mxu0
      %v941 = vadd.f32 0.0, %v940
      %v942 = vpop.f32.mrb[0].mxu0
      %v943 = vpop.f32.mrb[0].mxu0
      %v944 = vadd.f32 0.0, %v943
      %v945 = vpop.f32.mrb[0].mxu0
      %946 = vdwg.mxu0
      %947 = vst.msk [vmem:[%s341] sm:$0xff] %vm769, %v885
      %948 = vst.msk [vmem:[%s341 + $0x8] sm:$0xff] %vm769, %v888
      %949 = vst.msk [vmem:[%s341 + $0x10] sm:$0xff] %vm769, %v893
      %950 = vst.msk [vmem:[%s341 + $0x18] sm:$0xff] %vm769, %v896
      %951 = vst.msk [vmem:[%s341 + $0x20] sm:$0xff] %vm769, %v901
      %952 = vst.msk [vmem:[%s341 + $0x28] sm:$0xff] %vm769, %v904
      %953 = vst.msk [vmem:[%s341 + $0x30] sm:$0xff] %vm769, %v909
      %954 = vst.msk [vmem:[%s341 + $0x38] sm:$0xff] %vm769, %v912
      %955 = vst.msk [vmem:[%s341 + $0x40] sm:$0xff] %vm769, %v917
      %956 = vst.msk [vmem:[%s341 + $0x48] sm:$0xff] %vm769, %v920
      %957 = vst.msk [vmem:[%s341 + $0x50] sm:$0xff] %vm769, %v925
      %958 = vst.msk [vmem:[%s341 + $0x58] sm:$0xff] %vm769, %v928
      %959 = vst.msk [vmem:[%s341 + $0x60] sm:$0xff] %vm769, %v933
      %960 = vst.msk [vmem:[%s341 + $0x68] sm:$0xff] %vm769, %v936
      %961 = vst.msk [vmem:[%s341 + $0x70] sm:$0xff] %vm769, %v941
      %962 = vst.msk [vmem:[%s341 + $0x78] sm:$0xff] %vm769, %v944
      %v963 = vld [vmem:[%s4] sm:$0xf]
      %v964 = vld [vmem:[%s4 + $0x4] sm:$0xf]
      %v965 = vld [vmem:[%s4 + $0x8] sm:$0xf]
      %v966 = vld [vmem:[%s4 + $0xc] sm:$0xf]
      %v967 = vld [vmem:[%s4 + $0x10] sm:$0xf]
      %v968 = vld [vmem:[%s4 + $0x14] sm:$0xf]
      %v969 = vld [vmem:[%s4 + $0x18] sm:$0xf]
      %v970 = vld [vmem:[%s4 + $0x1c] sm:$0xf]
      %v979 = vunpack.c.l.b16 %v963
      %v980 = vunpack.c.l.b16 %v964
      %v981 = vunpack.c.l.b16 %v965
      %v982 = vunpack.c.l.b16 %v966
      %v983 = vunpack.c.l.b16 %v967
      %v984 = vunpack.c.l.b16 %v968
      %v985 = vunpack.c.l.b16 %v969
      %v986 = vunpack.c.l.b16 %v970
      %v987 = vpack.c.b16 %v980, %v979
      %v988 = vpack.c.b16 %v982, %v981
      %v989 = vpack.c.b16 %v984, %v983
      %v990 = vpack.c.b16 %v986, %v985
      %995 = vmatprep.subr.bf16.mxu0 0
      %996 = vmatpush1.bf16.msra.mxu0 %v987
      %997 = vmatprep.subr.bf16.mxu0 0
      %998 = vmatpush1.bf16.msra.mxu0 %v988
      %999 = vmatprep.subr.bf16.mxu0 0
      %1000 = vmatpush1.bf16.msra.mxu0 %v989
      %1001 = vmatprep.subr.bf16.mxu0 0
      %1002 = vmatpush1.bf16.msra.mxu0 %v990
      %1003 = vmatprep.subr.bf16.mxu0 0
      %1004 = vmatpush1.bf16.msra.mxu0 0
      %1005 = vmatprep.subr.bf16.mxu0 0
      %1006 = vmatpush1.bf16.msra.mxu0 0
      %1007 = vmatprep.subr.bf16.mxu0 0
      %1008 = vmatpush1.bf16.msra.mxu0 0
      %1009 = vmatprep.subr.bf16.mxu0 0
      %1010 = vmatpush1.bf16.msra.mxu0 0
      %1011 = vmatprep.subr.bf16.mxu0 0
      %1012 = vmatpush1.bf16.msra.mxu0 0
      %1013 = vmatprep.subr.bf16.mxu0 0
      %1014 = vmatpush1.bf16.msra.mxu0 0
      %1015 = vmatprep.subr.bf16.mxu0 0
      %1016 = vmatpush1.bf16.msra.mxu0 0
      %1017 = vmatprep.subr.bf16.mxu0 0
      %1018 = vmatpush1.bf16.msra.mxu0 0
      %1019 = vmatprep.subr.bf16.mxu0 0
      %1020 = vmatpush1.bf16.msra.mxu0 0
      %1021 = vmatprep.subr.bf16.mxu0 0
      %1022 = vmatpush1.bf16.msra.mxu0 0
      %1023 = vmatprep.subr.bf16.mxu0 0
      %1024 = vmatpush1.bf16.msra.mxu0 0
      %1025 = vmatprep.subr.bf16.mxu0 0
      %1026 = vmatpush1.bf16.msra.mxu0 0
      %1027 = vmatprep.mubr.bf16.mxu0 0
      %1028 = vmatmul.mubr.bf16.gmra.mrb[0].mxu0 %v408
      %v1029 = vpop.f32.mrb[0].mxu0
      %v1030 = vadd.f32 0.0, %v1029
      %v1031 = vpop.f32.mrb[0].mxu0
      %v1032 = vpop.f32.mrb[0].mxu0
      %v1033 = vadd.f32 0.0, %v1032
      %v1034 = vpop.f32.mrb[0].mxu0
      %1035 = vmatprep.mubr.bf16.mxu0 0
      %1036 = vmatmul.mubr.bf16.gmra.mrb[0].mxu0 %v411
      %v1037 = vpop.f32.mrb[0].mxu0
      %v1038 = vadd.f32 0.0, %v1037
      %v1039 = vpop.f32.mrb[0].mxu0
      %v1040 = vpop.f32.mrb[0].mxu0
      %v1041 = vadd.f32 0.0, %v1040
      %v1042 = vpop.f32.mrb[0].mxu0
      %1043 = vmatprep.mubr.bf16.mxu0 0
      %1044 = vmatmul.mubr.bf16.gmra.mrb[0].mxu0 %v414
      %v1045 = vpop.f32.mrb[0].mxu0
      %v1046 = vadd.f32 0.0, %v1045
      %v1047 = vpop.f32.mrb[0].mxu0
      %v1048 = vpop.f32.mrb[0].mxu0
      %v1049 = vadd.f32 0.0, %v1048
      %v1050 = vpop.f32.mrb[0].mxu0
      %1051 = vmatprep.mubr.bf16.mxu0 0
      %1052 = vmatmul.mubr.bf16.gmra.mrb[0].mxu0 %v417
      %v1053 = vpop.f32.mrb[0].mxu0
      %v1054 = vadd.f32 0.0, %v1053
      %v1055 = vpop.f32.mrb[0].mxu0
      %v1056 = vpop.f32.mrb[0].mxu0
      %v1057 = vadd.f32 0.0, %v1056
      %v1058 = vpop.f32.mrb[0].mxu0
      %1059 = vmatprep.mubr.bf16.mxu0 0
      %1060 = vmatmul.mubr.bf16.gmra.mrb[0].mxu0 %v420
      %v1061 = vpop.f32.mrb[0].mxu0
      %v1062 = vadd.f32 0.0, %v1061
      %v1063 = vpop.f32.mrb[0].mxu0
      %v1064 = vpop.f32.mrb[0].mxu0
      %v1065 = vadd.f32 0.0, %v1064
      %v1066 = vpop.f32.mrb[0].mxu0
      %1067 = vmatprep.mubr.bf16.mxu0 0
      %1068 = vmatmul.mubr.bf16.gmra.mrb[0].mxu0 %v423
      %v1069 = vpop.f32.mrb[0].mxu0
      %v1070 = vadd.f32 0.0, %v1069
      %v1071 = vpop.f32.mrb[0].mxu0
      %v1072 = vpop.f32.mrb[0].mxu0
      %v1073 = vadd.f32 0.0, %v1072
      %v1074 = vpop.f32.mrb[0].mxu0
      %1075 = vmatprep.mubr.bf16.mxu0 0
      %1076 = vmatmul.mubr.bf16.gmra.mrb[0].mxu0 %v426
      %v1077 = vpop.f32.mrb[0].mxu0
      %v1078 = vadd.f32 0.0, %v1077
      %v1079 = vpop.f32.mrb[0].mxu0
      %v1080 = vpop.f32.mrb[0].mxu0
      %v1081 = vadd.f32 0.0, %v1080
      %v1082 = vpop.f32.mrb[0].mxu0
      %1083 = vmatprep.mubr.bf16.mxu0 0
      %1084 = vmatmul.mubr.bf16.gmra.mrb[0].mxu0 %v429
      %v1085 = vpop.f32.mrb[0].mxu0
      %v1086 = vadd.f32 0.0, %v1085
      %v1087 = vpop.f32.mrb[0].mxu0
      %v1088 = vpop.f32.mrb[0].mxu0
      %v1089 = vadd.f32 0.0, %v1088
      %v1090 = vpop.f32.mrb[0].mxu0
      %1091 = vdwg.mxu0
      %1092 = vst [vmem:[%s347] sm:$0xff] %v1030
      %1093 = vst [vmem:[%s347 + $0x8] sm:$0xff] %v1033
      %1094 = vst [vmem:[%s347 + $0x10] sm:$0xff] %v1038
      %1095 = vst [vmem:[%s347 + $0x18] sm:$0xff] %v1041
      %1096 = vst [vmem:[%s347 + $0x20] sm:$0xff] %v1046
      %1097 = vst [vmem:[%s347 + $0x28] sm:$0xff] %v1049
      %1098 = vst [vmem:[%s347 + $0x30] sm:$0xff] %v1054
      %1099 = vst [vmem:[%s347 + $0x38] sm:$0xff] %v1057
      %1100 = vst [vmem:[%s347 + $0x40] sm:$0xff] %v1062
      %1101 = vst [vmem:[%s347 + $0x48] sm:$0xff] %v1065
      %1102 = vst [vmem:[%s347 + $0x50] sm:$0xff] %v1070
      %1103 = vst [vmem:[%s347 + $0x58] sm:$0xff] %v1073
      %1104 = vst [vmem:[%s347 + $0x60] sm:$0xff] %v1078
      %1105 = vst [vmem:[%s347 + $0x68] sm:$0xff] %v1081
      %1106 = vst [vmem:[%s347 + $0x70] sm:$0xff] %v1086
      %1107 = vst [vmem:[%s347 + $0x78] sm:$0xff] %v1089
      %s1108 = smul.u32 16, %s20
      %p1109 = scmp.lt.s32.totalorder %s1108, 31
      %s1110 = scalar_select %p1109, %s1108, 31
      %s1111 = smul.addr %s1110, 4
      %s1112 = scalar_lea.vmem %s5, %s1111
      %s1113 = smul.u32 16, %s20
      %p1114 = scmp.lt.s32.totalorder %s1113, 31
      %s1115 = scalar_select %p1114, %s1113, 31
      %s1116 = smul.addr %s1115, 8
      %s1117 = scalar_lea.vmem %s6, %s1116
      %s1118 = smul.u32 16, %s20
      %p1119 = scmp.lt.s32.totalorder %s1118, 31
      %s1120 = scalar_select %p1119, %s1118, 31
      %s1121 = smul.addr %s1120, 8
      %s1122 = scalar_lea.vmem %s7, %s1121
      %s1123 = smul.u32 16, %s20
      %p1124 = scmp.lt.s32.totalorder %s1123, 31
      %s1125 = scalar_select %p1124, %s1123, 31
      %s1126 = smul.addr %s1125, 8
      %s1127 = scalar_lea.vmem %s8, %s1126
      // Predicated region
      $region41: #{gat_model_forward.4} parent=39 // pred_check
        %p1128 = pneg %p148
      $region42: #{gat_model_forward.4} parent=39 // pred_check_branch
        %1130 = sbr.rel (%p1128) target = $region44
      $region43: #{gat_model_forward.4} parent=39 // pred_region
        %s1131 = smul.u32 16, %s20
      $region44: #{gat_model_forward.4} parent=39 // pred_fallthru
        _
      // Predicated region
      $region45: #{gat_model_forward.4} parent=39 // pred_check
        %p1132 = pneg %p174
      $region46: #{gat_model_forward.4} parent=39 // pred_check_branch
        %1134 = sbr.rel (%p1132) target = $region48
      $region47: #{gat_model_forward.4} parent=39 // pred_region
        %s1135 = smul.u32 16, %s20
      $region48: #{gat_model_forward.4} parent=39 // pred_fallthru
        _
      // Predicated region
      $region49: #{gat_model_forward.4} parent=39 // pred_check
        %p1136 = pneg %p200
      $region50: #{gat_model_forward.4} parent=39 // pred_check_branch
        %1138 = sbr.rel (%p1136) target = $region52
      $region51: #{gat_model_forward.4} parent=39 // pred_region
        %s1139 = smul.u32 16, %s20
      $region52: #{gat_model_forward.4} parent=39 // pred_fallthru
        _
      // Predicated region
      $region53: #{gat_model_forward.4} parent=39 // pred_check
        %p1140 = pneg %p226
      $region54: #{gat_model_forward.4} parent=39 // pred_check_branch
        %1142 = sbr.rel (%p1140) target = $region56
      $region55: #{gat_model_forward.4} parent=39 // pred_region
        %s1143 = smul.u32 16, %s20
      $region56: #{gat_model_forward.4} parent=39 // pred_fallthru
        _
    $region40: #{gat_model_forward.4} parent=5 // pred_fallthru
      _
    %p1144 = scmp.le.s32.totalorder 2, %s15
    // Predicated region
    $region57: #{gat_model_forward.4} parent=5 // pred_check
      %p1145 = pneg %p1144
    $region58: #{gat_model_forward.4} parent=5 // pred_check_branch
      %1147 = sbr.rel (%p1145) target = $region60
    $region59: #{gat_model_forward.4} parent=5 // pred_region
      %s1148 = ssub.s32 %s15, 2
      // Predicated region
      $region61: #{gat_model_forward.4} parent=59 // pred_check
        %p1149 = pneg %p154
      $region62: #{gat_model_forward.4} parent=59 // pred_check_branch
        %1151 = sbr.rel (%p1149) target = $region64
      $region63: #{gat_model_forward.4} parent=59 // pred_region
        %s1152 = smul.u32 16, %s21
        %p1153 = scmp.lt.s32.totalorder %s1152, 31
        %s1154 = scalar_select %p1153, %s1152, 31
        %s1155 = smul.addr %s1154, 4
        %s1156 = scalar_lea.vmem %s5, %s1155
      $region64: #{gat_model_forward.4} parent=59 // pred_fallthru
        _
      // Predicated region
      $region65: #{gat_model_forward.4} parent=59 // pred_check
        %p1157 = pneg %p180
      $region66: #{gat_model_forward.4} parent=59 // pred_check_branch
        %1159 = sbr.rel (%p1157) target = $region68
      $region67: #{gat_model_forward.4} parent=59 // pred_region
        %s1160 = smul.u32 16, %s21
        %p1161 = scmp.lt.s32.totalorder %s1160, 31
        %s1162 = scalar_select %p1161, %s1160, 31
        %s1163 = smul.addr %s1162, 8
        %s1164 = scalar_lea.vmem %s6, %s1163
      $region68: #{gat_model_forward.4} parent=59 // pred_fallthru
        _
      // Predicated region
      $region69: #{gat_model_forward.4} parent=59 // pred_check
        %p1165 = pneg %p206
      $region70: #{gat_model_forward.4} parent=59 // pred_check_branch
        %1167 = sbr.rel (%p1165) target = $region72
      $region71: #{gat_model_forward.4} parent=59 // pred_region
        %s1168 = smul.u32 16, %s21
        %p1169 = scmp.lt.s32.totalorder %s1168, 31
        %s1170 = scalar_select %p1169, %s1168, 31
        %s1171 = smul.addr %s1170, 8
        %s1172 = scalar_lea.vmem %s7, %s1171
      $region72: #{gat_model_forward.4} parent=59 // pred_fallthru
        _
      // Predicated region
      $region73: #{gat_model_forward.4} parent=59 // pred_check
        %p1173 = pneg %p232
      $region74: #{gat_model_forward.4} parent=59 // pred_check_branch
        %1175 = sbr.rel (%p1173) target = $region76
      $region75: #{gat_model_forward.4} parent=59 // pred_region
        %s1176 = smul.u32 16, %s21
        %p1177 = scmp.lt.s32.totalorder %s1176, 31
        %s1178 = scalar_select %p1177, %s1176, 31
        %s1179 = smul.addr %s1178, 8
        %s1180 = scalar_lea.vmem %s8, %s1179
      $region76: #{gat_model_forward.4} parent=59 // pred_fallthru
        _
    $region60: #{gat_model_forward.4} parent=5 // pred_fallthru
      _
  $region6: #{gat_model_forward.4} parent=0 // loop_footer
    %s19 = sadd.s32 1, %s15
  $region7: #{gat_model_forward.4} parent=0 // loop_footer_branch
    %14 = sbr.rel target = $region3
  $region8: #{gat_model_forward.4} parent=0 // loop_exit
    _

// kernel: gat_model_forward.5
$region0: #{gat_model_forward.5}
  #allocation0 [shape = 'u32[]', space=smem, size = 0x4, offset = 0x4, fixed_abs, tag = 'smem constant byte address 0x4 - core index']
  #allocation1 [shape = 'u32[144,128]{1,0:T(1,128)}', space=vmem, size = 0x12000, scoped, tag = 'internal scratch']
  #allocation2 [shape = 'f32[128,4]{1,0:T(8,128)}', space=vmem, size = 0x10000, scoped, tag = 'scratch operand']
  #allocation3 [shape = 'f32[128,4]{1,0:T(8,128)}', space=vmem, size = 0x10000, scoped, tag = 'scratch operand']
  #allocation4 [shape = 'f32[128,128]{1,0:T(8,128)}', space=vmem, size = 0x10000, scoped, tag = 'scratch operand']
  %s0 = inlined_call_operand.vmem [shape: bf16[256,256], index: 0, kind: input, shape index: {}]
  %s1 = inlined_call_operand.vmem [shape: f32[4,256], index: 1, kind: input, shape index: {}]
  %s2 = inlined_call_operand.vmem [shape: f32[256,4], index: 2, kind: input, shape index: {}]
  %s3 = inlined_call_operand.vmem [shape: bf16[256,128], index: 3, kind: input, shape index: {}]
  %s4 = inlined_call_operand.vmem [shape: f32[256,128], index: 4, kind: input, shape index: {}]
  %s5 = inlined_call_operand.vmem [shape: f32[1,128], index: 5, kind: input, shape index: {}]
  %s6 = inlined_call_operand.vmem [shape: f32[256,128], index: 6, kind: output, shape index: {}]
  %s7 = sld [smem:[#allocation0]]
  $region106: #{gat_model_forward.5} parent=0
    _
  %s9 = ssub.s32 1, %s7
  %s10 = scalar_select 0, %s9, %s7
  $region1: #{gat_model_forward.5} parent=0
    #allocation5 [shape = 'u8[65536]{0}', space=vmem, size = 0x10000, scoped, tag = 'input window, operand 0']
    loop: start=0, step=1, limit=6
    $region2: #{gat_model_forward.5} parent=1 // loop_pre_header
      _
    $region3: #{gat_model_forward.5} parent=1 // loop_header
      %s12 = sphi 0, %s16
      %p13 = scmp.ge.s32.totalorder %s12, 6
      %s19 = sphi 0, %s31
      %s20 = sphi 0, %s27
      %s21 = sphi 0, %s19
      %s22 = sphi 0, %s20
      %s23 = sphi 0, %s21
      %s24 = sphi 0, %s22
      %s36 = sphi 0, %s38
      %s39 = sphi 0, %s36
      %s40 = sphi 0, %s39
      %s56 = sphi 0, %s40
      %s62 = sphi 0, %s64
      %s65 = sphi 0, %s62
      %s66 = sphi 0, %s65
      %s82 = sphi 0, %s66
      %s88 = sphi 0, %s90
      %s91 = sphi 0, %s88
      %s92 = sphi 0, %s91
      %s108 = sphi 0, %s92
      %s114 = sphi 0, %s116
      %s117 = sphi 0, %s114
      %s118 = sphi 0, %s117
      %s134 = sphi 0, %s118
      %s140 = sphi 0, %s142
      %s143 = sphi 0, %s140
      %s144 = sphi 0, %s143
      %s160 = sphi 0, %s144
      %s164 = sphi 0, %s164
      %s166 = sphi 0, %s164
      %s167 = sphi 0, %s166
      %s181 = sphi 0, %s167
      %s187 = sphi 0, %s189
      %s190 = sphi 0, %s187
      %s191 = sphi 0, %s190
      %s207 = sphi 0, %s191
    $region4: #{gat_model_forward.5} parent=1 // loop_header_branch
      %15 = sbr.rel (%p13) target = $region8
    $region5: #{gat_model_forward.5} parent=1 // loop_body
      %s17 = ssub.s32 %s12, 1
      %s18 = ssub.s32 %s12, 2
      %s25 = sadd.s32 1, %s20
      %p26 = scmp.ge.s32.totalorder %s25, 2
      %s27 = scalar_select %p26, 0, %s25
      %s28 = sadd.s32 1, %s19
      %s29 = scalar_select %p26, %s28, %s19
      %p30 = scmp.ge.s32.totalorder %s29, 2
      %s31 = scalar_select %p30, 0, %s29
      %s32 = ssub.s32 %s19, %s31
      %s33 = ssub.s32 %s20, %s27
      %s34 = sor.u32 %s32, %s33
      %p35 = scmp.eq.s32.totalorder %s34, 0
      %s37 = sadd.s32 %s36, 1
      %s38 = scalar_select %p35, %s36, %s37
      %p41 = pneg %p35
      %p42 = scmp.eq.s32.totalorder %s12, 3
      %p43 = por %p41, %p42
      %p44 = scmp.ne.s32.totalorder %s36, %s39
      %p45 = scmp.eq.s32.totalorder %s12, 0
      %p46 = por %p44, %p45
      %p47 = scmp.ne.s32.totalorder %s36, %s39
      %p48 = scmp.eq.s32.totalorder %s17, 3
      %p49 = por %p47, %p48
      %p50 = scmp.ne.s32.totalorder %s39, %s40
      %p51 = scmp.eq.s32.totalorder %s17, 0
      %p52 = por %p50, %p51
      %p53 = scmp.ne.s32.totalorder %s39, %s40
      %p54 = scmp.eq.s32.totalorder %s18, 3
      %p55 = por %p53, %p54
      %p57 = scmp.ne.s32.totalorder %s40, %s56
      %p58 = scmp.eq.s32.totalorder %s18, 0
      %p59 = por %p57, %p58
      %s60 = ssub.s32 %s20, %s27
      %p61 = scmp.eq.s32.totalorder %s60, 0
      %s63 = sadd.s32 %s62, 1
      %s64 = scalar_select %p61, %s62, %s63
      %p67 = pneg %p61
      %p68 = scmp.eq.s32.totalorder %s12, 3
      %p69 = por %p67, %p68
      %p70 = scmp.ne.s32.totalorder %s62, %s65
      %p71 = scmp.eq.s32.totalorder %s12, 0
      %p72 = por %p70, %p71
      %p73 = scmp.ne.s32.totalorder %s62, %s65
      %p74 = scmp.eq.s32.totalorder %s17, 3
      %p75 = por %p73, %p74
      %p76 = scmp.ne.s32.totalorder %s65, %s66
      %p77 = scmp.eq.s32.totalorder %s17, 0
      %p78 = por %p76, %p77
      %p79 = scmp.ne.s32.totalorder %s65, %s66
      %p80 = scmp.eq.s32.totalorder %s18, 3
      %p81 = por %p79, %p80
      %p83 = scmp.ne.s32.totalorder %s66, %s82
      %p84 = scmp.eq.s32.totalorder %s18, 0
      %p85 = por %p83, %p84
      %s86 = ssub.s32 %s19, %s31
      %p87 = scmp.eq.s32.totalorder %s86, 0
      %s89 = sadd.s32 %s88, 1
      %s90 = scalar_select %p87, %s88, %s89
      %p93 = pneg %p87
      %p94 = scmp.eq.s32.totalorder %s12, 3
      %p95 = por %p93, %p94
      %p96 = scmp.ne.s32.totalorder %s88, %s91
      %p97 = scmp.eq.s32.totalorder %s12, 0
      %p98 = por %p96, %p97
      %p99 = scmp.ne.s32.totalorder %s88, %s91
      %p100 = scmp.eq.s32.totalorder %s17, 3
      %p101 = por %p99, %p100
      %p102 = scmp.ne.s32.totalorder %s91, %s92
      %p103 = scmp.eq.s32.totalorder %s17, 0
      %p104 = por %p102, %p103
      %p105 = scmp.ne.s32.totalorder %s91, %s92
      %p106 = scmp.eq.s32.totalorder %s18, 3
      %p107 = por %p105, %p106
      %p109 = scmp.ne.s32.totalorder %s92, %s108
      %p110 = scmp.eq.s32.totalorder %s18, 0
      %p111 = por %p109, %p110
      %s112 = ssub.s32 %s20, %s27
      %p113 = scmp.eq.s32.totalorder %s112, 0
      %s115 = sadd.s32 %s114, 1
      %s116 = scalar_select %p113, %s114, %s115
      %p119 = pneg %p113
      %p120 = scmp.eq.s32.totalorder %s12, 3
      %p121 = por %p119, %p120
      %p122 = scmp.ne.s32.totalorder %s114, %s117
      %p123 = scmp.eq.s32.totalorder %s12, 0
      %p124 = por %p122, %p123
      %p125 = scmp.ne.s32.totalorder %s114, %s117
      %p126 = scmp.eq.s32.totalorder %s17, 3
      %p127 = por %p125, %p126
      %p128 = scmp.ne.s32.totalorder %s117, %s118
      %p129 = scmp.eq.s32.totalorder %s17, 0
      %p130 = por %p128, %p129
      %p131 = scmp.ne.s32.totalorder %s117, %s118
      %p132 = scmp.eq.s32.totalorder %s18, 3
      %p133 = por %p131, %p132
      %p135 = scmp.ne.s32.totalorder %s118, %s134
      %p136 = scmp.eq.s32.totalorder %s18, 0
      %p137 = por %p135, %p136
      %s138 = ssub.s32 %s19, %s31
      %p139 = scmp.eq.s32.totalorder %s138, 0
      %s141 = sadd.s32 %s140, 1
      %s142 = scalar_select %p139, %s140, %s141
      %p145 = pneg %p139
      %p146 = scmp.eq.s32.totalorder %s12, 3
      %p147 = por %p145, %p146
      %p148 = scmp.ne.s32.totalorder %s140, %s143
      %p149 = scmp.eq.s32.totalorder %s12, 0
      %p150 = por %p148, %p149
      %p151 = scmp.ne.s32.totalorder %s140, %s143
      %p152 = scmp.eq.s32.totalorder %s17, 3
      %p153 = por %p151, %p152
      %p154 = scmp.ne.s32.totalorder %s143, %s144
      %p155 = scmp.eq.s32.totalorder %s17, 0
      %p156 = por %p154, %p155
      %p157 = scmp.ne.s32.totalorder %s143, %s144
      %p158 = scmp.eq.s32.totalorder %s18, 3
      %p159 = por %p157, %p158
      %p161 = scmp.ne.s32.totalorder %s144, %s160
      %p162 = scmp.eq.s32.totalorder %s18, 0
      %p163 = por %p161, %p162
      %s165 = sadd.s32 %s164, 1
      %p168 = scmp.eq.s32.totalorder %s12, 3
      %p169 = scmp.ne.s32.totalorder %s164, %s166
      %p170 = scmp.eq.s32.totalorder %s12, 0
      %p171 = por %p169, %p170
      %p172 = scmp.ne.s32.totalorder %s164, %s166
      %p173 = scmp.eq.s32.totalorder %s17, 3
      %p174 = por %p172, %p173
      %p175 = scmp.ne.s32.totalorder %s166, %s167
      %p176 = scmp.eq.s32.totalorder %s17, 0
      %p177 = por %p175, %p176
      %p178 = scmp.ne.s32.totalorder %s166, %s167
      %p179 = scmp.eq.s32.totalorder %s18, 3
      %p180 = por %p178, %p179
      %p182 = scmp.ne.s32.totalorder %s167, %s181
      %p183 = scmp.eq.s32.totalorder %s18, 0
      %p184 = por %p182, %p183
      %s185 = ssub.s32 %s19, %s31
      %p186 = scmp.eq.s32.totalorder %s185, 0
      %s188 = sadd.s32 %s187, 1
      %s189 = scalar_select %p186, %s187, %s188
      %p192 = pneg %p186
      %p193 = scmp.eq.s32.totalorder %s12, 3
      %p194 = por %p192, %p193
      %p195 = scmp.ne.s32.totalorder %s187, %s190
      %p196 = scmp.eq.s32.totalorder %s12, 0
      %p197 = por %p195, %p196
      %p198 = scmp.ne.s32.totalorder %s187, %s190
      %p199 = scmp.eq.s32.totalorder %s17, 3
      %p200 = por %p198, %p199
      %p201 = scmp.ne.s32.totalorder %s190, %s191
      %p202 = scmp.eq.s32.totalorder %s17, 0
      %p203 = por %p201, %p202
      %p204 = scmp.ne.s32.totalorder %s190, %s191
      %p205 = scmp.eq.s32.totalorder %s18, 3
      %p206 = por %p204, %p205
      %p208 = scmp.ne.s32.totalorder %s191, %s207
      %p209 = scmp.eq.s32.totalorder %s18, 0
      %p210 = por %p208, %p209
      %p211 = scmp.le.s32.totalorder 1, %s12
      %p212 = scmp.lt.s32.totalorder %s12, 5
      %p213 = pnand %p211, %p212
      %p214 = pneg %p213
      // Predicated region
      $region9: #{gat_model_forward.5} parent=5 // pred_check
        _
      $region10: #{gat_model_forward.5} parent=5 // pred_check_branch
        %216 = sbr.rel (%p213) target = $region12
      $region11: #{gat_model_forward.5} parent=5 // pred_region
        %s217 = ssub.s32 %s12, 1
        // Predicated region
        $region13: #{gat_model_forward.5} parent=11 // pred_check
          %p218 = pneg %p177
        $region14: #{gat_model_forward.5} parent=11 // pred_check_branch
          %220 = sbr.rel (%p218) target = $region16
        $region15: #{gat_model_forward.5} parent=11 // pred_region
          _
        $region16: #{gat_model_forward.5} parent=11 // pred_fallthru
          _
      $region12: #{gat_model_forward.5} parent=5 // pred_fallthru
        _
      %p221 = scmp.lt.s32.totalorder %s12, 4
      // Predicated region
      $region17: #{gat_model_forward.5} parent=5 // pred_check
        %p222 = pneg %p221
      $region18: #{gat_model_forward.5} parent=5 // pred_check_branch
        %224 = sbr.rel (%p222) target = $region20
      $region19: #{gat_model_forward.5} parent=5 // pred_region
        // Predicated region
        $region21: #{gat_model_forward.5} parent=19 // pred_check
          %p225 = pneg %p46
        $region22: #{gat_model_forward.5} parent=19 // pred_check_branch
          %227 = sbr.rel (%p225) target = $region24
        $region23: #{gat_model_forward.5} parent=19 // pred_region
          %s228 = sand.u32 %s36, 1
          %s229 = sand.u32 %s36, 1
          %s230 = smul.addr %s229, 64
          %s231 = scalar_lea.vmem [#allocation5], %s230
          %s232 = smul.u32 16, %s19
          %s233 = smul.addr %s232, 2
          %s234 = sadd.s32 %s20, %s233
          %s235 = smul.addr %s234, 4
          %s236 = scalar_lea.vmem %s0, %s235
          // Predicated region
          $region25: #{gat_model_forward.5} parent=23 // pred_check
            _
          $region26: #{gat_model_forward.5} parent=23 // pred_check_branch
            %238 = sbr.rel (0) target = $region28
          $region27: #{gat_model_forward.5} parent=23 // pred_region
            // Predicated region
            $region29: #{gat_model_forward.5} parent=27 // pred_check
              _
            $region30: #{gat_model_forward.5} parent=27 // pred_check_branch
              %240 = sbr.rel target = $region32
            $region31: #{gat_model_forward.5} parent=27 // pred_region
              // Predicated region
              $region44: #{gat_model_forward.5} parent=31 // pred_check
                _
              $region45: #{gat_model_forward.5} parent=31 // pred_check_branch
                %285 = sbr.rel (0) target = $region47
              $region46: #{gat_model_forward.5} parent=31 // pred_region
                loop: start=0, step=1, limit=1
                $region48: #{gat_model_forward.5} parent=46 // loop_pre_header
                  _
                $region49: #{gat_model_forward.5} parent=46 // loop_header
                  %s287 = sphi 0, %s291
                  %p288 = scmp.ge.s32.totalorder %s287, 1
                  %s292 = sphi %s236, %s236
                  %s293 = sphi %s231, %s231
                $region50: #{gat_model_forward.5} parent=46 // loop_header_branch
                  %290 = sbr.rel (%p288) target = $region54
                $region51: #{gat_model_forward.5} parent=46 // loop_body
                  _
                $region52: #{gat_model_forward.5} parent=46 // loop_footer
                  %s291 = sadd.s32 1, %s287
                $region53: #{gat_model_forward.5} parent=46 // loop_footer_branch
                  %286 = sbr.rel target = $region49
                $region54: #{gat_model_forward.5} parent=46 // loop_exit
                  _
                loop: start=0, step=1, limit=1
                $region55: #{gat_model_forward.5} parent=46 // loop_pre_header
                  _
                $region56: #{gat_model_forward.5} parent=46 // loop_header
                  %s296 = sphi 0, %s300
                  %p297 = scmp.ge.s32.totalorder %s296, 1
                  %s301 = sphi %s236, %s236
                  %s302 = sphi %s231, %s231
                $region57: #{gat_model_forward.5} parent=46 // loop_header_branch
                  %299 = sbr.rel (%p297) target = $region61
                $region58: #{gat_model_forward.5} parent=46 // loop_body
                  %v303 = vld [vmem:[%s301] sm:$0xf]
                  %304 = vst [vmem:[%s302] sm:$0xf] %v303
                  %v305 = vld [vmem:[%s301 + $0x8] sm:$0xf]
                  %306 = vst [vmem:[%s302 + $0x4] sm:$0xf] %v305
                  %v307 = vld [vmem:[%s301 + $0x10] sm:$0xf]
                  %308 = vst [vmem:[%s302 + $0x8] sm:$0xf] %v307
                  %v309 = vld [vmem:[%s301 + $0x18] sm:$0xf]
                  %310 = vst [vmem:[%s302 + $0xc] sm:$0xf] %v309
                  %v311 = vld [vmem:[%s301 + $0x20] sm:$0xf]
                  %312 = vst [vmem:[%s302 + $0x10] sm:$0xf] %v311
                  %v313 = vld [vmem:[%s301 + $0x28] sm:$0xf]
                  %314 = vst [vmem:[%s302 + $0x14] sm:$0xf] %v313
                  %v315 = vld [vmem:[%s301 + $0x30] sm:$0xf]
                  %316 = vst [vmem:[%s302 + $0x18] sm:$0xf] %v315
                  %v317 = vld [vmem:[%s301 + $0x38] sm:$0xf]
                  %318 = vst [vmem:[%s302 + $0x1c] sm:$0xf] %v317
                  %v319 = vld [vmem:[%s301 + $0x40] sm:$0xf]
                  %320 = vst [vmem:[%s302 + $0x20] sm:$0xf] %v319
                  %v321 = vld [vmem:[%s301 + $0x48] sm:$0xf]
                  %322 = vst [vmem:[%s302 + $0x24] sm:$0xf] %v321
                  %v323 = vld [vmem:[%s301 + $0x50] sm:$0xf]
                  %324 = vst [vmem:[%s302 + $0x28] sm:$0xf] %v323
                  %v325 = vld [vmem:[%s301 + $0x58] sm:$0xf]
                  %326 = vst [vmem:[%s302 + $0x2c] sm:$0xf] %v325
                  %v327 = vld [vmem:[%s301 + $0x60] sm:$0xf]
                  %328 = vst [vmem:[%s302 + $0x30] sm:$0xf] %v327
                  %v329 = vld [vmem:[%s301 + $0x68] sm:$0xf]
                  %330 = vst [vmem:[%s302 + $0x34] sm:$0xf] %v329
                  %v331 = vld [vmem:[%s301 + $0x70] sm:$0xf]
                  %332 = vst [vmem:[%s302 + $0x38] sm:$0xf] %v331
                  %v333 = vld [vmem:[%s301 + $0x78] sm:$0xf]
                  %334 = vst [vmem:[%s302 + $0x3c] sm:$0xf] %v333
                $region59: #{gat_model_forward.5} parent=46 // loop_footer
                  %s300 = sadd.s32 1, %s296
                $region60: #{gat_model_forward.5} parent=46 // loop_footer_branch
                  %295 = sbr.rel target = $region56
                $region61: #{gat_model_forward.5} parent=46 // loop_exit
                  _
              $region47: #{gat_model_forward.5} parent=31 // pred_fallthru
                _
            $region32: #{gat_model_forward.5} parent=27 // pred_fallthru
              _
            // Predicated region
            $region33: #{gat_model_forward.5} parent=27 // pred_check
              _
            $region34: #{gat_model_forward.5} parent=27 // pred_check_branch
              %242 = sbr.rel (0) target = $region36
            $region35: #{gat_model_forward.5} parent=27 // pred_region
              loop: start=0, step=1, limit=1
              $region37: #{gat_model_forward.5} parent=35 // loop_pre_header
                _
              $region38: #{gat_model_forward.5} parent=35 // loop_header
                %s245 = sphi 0, %s249
                %p246 = scmp.ge.s32.totalorder %s245, 1
                %s250 = sphi %s236, %s236
                %s251 = sphi %s231, %s231
              $region39: #{gat_model_forward.5} parent=35 // loop_header_branch
                %248 = sbr.rel (%p246) target = $region43
              $region40: #{gat_model_forward.5} parent=35 // loop_body
                %v252 = vld [vmem:[%s250] sm:$0xf]
                %253 = vst [vmem:[%s251] sm:$0xf] %v252
                %v254 = vld [vmem:[%s250 + $0x8] sm:$0xf]
                %255 = vst [vmem:[%s251 + $0x4] sm:$0xf] %v254
                %v256 = vld [vmem:[%s250 + $0x10] sm:$0xf]
                %257 = vst [vmem:[%s251 + $0x8] sm:$0xf] %v256
                %v258 = vld [vmem:[%s250 + $0x18] sm:$0xf]
                %259 = vst [vmem:[%s251 + $0xc] sm:$0xf] %v258
                %v260 = vld [vmem:[%s250 + $0x20] sm:$0xf]
                %261 = vst [vmem:[%s251 + $0x10] sm:$0xf] %v260
                %v262 = vld [vmem:[%s250 + $0x28] sm:$0xf]
                %263 = vst [vmem:[%s251 + $0x14] sm:$0xf] %v262
                %v264 = vld [vmem:[%s250 + $0x30] sm:$0xf]
                %265 = vst [vmem:[%s251 + $0x18] sm:$0xf] %v264
                %v266 = vld [vmem:[%s250 + $0x38] sm:$0xf]
                %267 = vst [vmem:[%s251 + $0x1c] sm:$0xf] %v266
                %v268 = vld [vmem:[%s250 + $0x40] sm:$0xf]
                %269 = vst [vmem:[%s251 + $0x20] sm:$0xf] %v268
                %v270 = vld [vmem:[%s250 + $0x48] sm:$0xf]
                %271 = vst [vmem:[%s251 + $0x24] sm:$0xf] %v270
                %v272 = vld [vmem:[%s250 + $0x50] sm:$0xf]
                %273 = vst [vmem:[%s251 + $0x28] sm:$0xf] %v272
                %v274 = vld [vmem:[%s250 + $0x58] sm:$0xf]
                %275 = vst [vmem:[%s251 + $0x2c] sm:$0xf] %v274
                %v276 = vld [vmem:[%s250 + $0x60] sm:$0xf]
                %277 = vst [vmem:[%s251 + $0x30] sm:$0xf] %v276
                %v278 = vld [vmem:[%s250 + $0x68] sm:$0xf]
                %279 = vst [vmem:[%s251 + $0x34] sm:$0xf] %v278
                %v280 = vld [vmem:[%s250 + $0x70] sm:$0xf]
                %281 = vst [vmem:[%s251 + $0x38] sm:$0xf] %v280
                %v282 = vld [vmem:[%s250 + $0x78] sm:$0xf]
                %283 = vst [vmem:[%s251 + $0x3c] sm:$0xf] %v282
              $region41: #{gat_model_forward.5} parent=35 // loop_footer
                %s249 = sadd.s32 1, %s245
              $region42: #{gat_model_forward.5} parent=35 // loop_footer_branch
                %244 = sbr.rel target = $region38
              $region43: #{gat_model_forward.5} parent=35 // loop_exit
                _
            $region36: #{gat_model_forward.5} parent=27 // pred_fallthru
              _
          $region28: #{gat_model_forward.5} parent=23 // pred_fallthru
            _
          %335 = vnop
        $region24: #{gat_model_forward.5} parent=19 // pred_fallthru
          _
        // Predicated region
        $region62: #{gat_model_forward.5} parent=19 // pred_check
          %p336 = pneg %p72
        $region63: #{gat_model_forward.5} parent=19 // pred_check_branch
          %338 = sbr.rel (%p336) target = $region65
        $region64: #{gat_model_forward.5} parent=19 // pred_region
          %p339 = scmp.lt.s32.totalorder %s20, 1
          %s340 = scalar_select %p339, %s20, 1
          %s341 = smul.addr %s340, 4
          %s342 = scalar_lea.vmem %s1, %s341
        $region65: #{gat_model_forward.5} parent=19 // pred_fallthru
          _
        // Predicated region
        $region66: #{gat_model_forward.5} parent=19 // pred_check
          %p343 = pneg %p98
        $region67: #{gat_model_forward.5} parent=19 // pred_check_branch
          %345 = sbr.rel (%p343) target = $region69
        $region68: #{gat_model_forward.5} parent=19 // pred_region
          %s346 = smul.u32 16, %s19
          %p347 = scmp.lt.s32.totalorder %s346, 31
          %s348 = scalar_select %p347, %s346, 31
          %s349 = smul.addr %s348, 8
          %s350 = scalar_lea.vmem %s2, %s349
          %s351 = smul.u32 16, %s19
        $region69: #{gat_model_forward.5} parent=19 // pred_fallthru
          _
        // Predicated region
        $region70: #{gat_model_forward.5} parent=19 // pred_check
          %p352 = pneg %p124
        $region71: #{gat_model_forward.5} parent=19 // pred_check_branch
          %354 = sbr.rel (%p352) target = $region73
        $region72: #{gat_model_forward.5} parent=19 // pred_region
          %s355 = smul.u32 16, %s20
          %p356 = scmp.lt.s32.totalorder %s355, 31
          %s357 = scalar_select %p356, %s355, 31
          %s358 = smul.addr %s357, 4
          %s359 = scalar_lea.vmem %s3, %s358
          %s360 = smul.u32 16, %s20
        $region73: #{gat_model_forward.5} parent=19 // pred_fallthru
          _
        // Predicated region
        $region74: #{gat_model_forward.5} parent=19 // pred_check
          %p361 = pneg %p150
        $region75: #{gat_model_forward.5} parent=19 // pred_check_branch
          %363 = sbr.rel (%p361) target = $region77
        $region76: #{gat_model_forward.5} parent=19 // pred_region
          %s364 = smul.u32 16, %s19
          %p365 = scmp.lt.s32.totalorder %s364, 31
          %s366 = scalar_select %p365, %s364, 31
          %s367 = smul.addr %s366, 8
          %s368 = scalar_lea.vmem %s4, %s367
          %s369 = smul.u32 16, %s19
        $region77: #{gat_model_forward.5} parent=19 // pred_fallthru
          _
      $region20: #{gat_model_forward.5} parent=5 // pred_fallthru
        _
      %p370 = scmp.le.s32.totalorder 1, %s12
      %p371 = scmp.lt.s32.totalorder %s12, 5
      %p372 = pnand %p370, %p371
      %p373 = pneg %p372
      // Predicated region
      $region78: #{gat_model_forward.5} parent=5 // pred_check
        _
      $region79: #{gat_model_forward.5} parent=5 // pred_check_branch
        %375 = sbr.rel (%p372) target = $region81
      $region80: #{gat_model_forward.5} parent=5 // pred_region
        %s376 = ssub.s32 %s12, 1
        %s377 = sand.u32 %s39, 1
        %s378 = sand.u32 %s39, 1
        %s379 = smul.addr %s378, 64
        %s380 = scalar_lea.vmem [#allocation5], %s379
        // Predicated region
        $region82: #{gat_model_forward.5} parent=80 // pred_check
          %p381 = pneg %p52
        $region83: #{gat_model_forward.5} parent=80 // pred_check_branch
          %383 = sbr.rel (%p381) target = $region85
        $region84: #{gat_model_forward.5} parent=80 // pred_region
          _
        $region85: #{gat_model_forward.5} parent=80 // pred_fallthru
          _
        %s384 = sand.u32 %s39, 1
        %s385 = sand.u32 %s39, 1
        %s386 = smul.addr %s385, 64
        %s387 = scalar_lea.vmem [#allocation5], %s386
        %p388 = pneg %p52
        %p389 = pneg %p49
        %p390 = scmp.lt.s32.totalorder %s22, 1
        %s391 = scalar_select %p390, %s22, 1
        %s392 = smul.addr %s391, 4
        %s393 = scalar_lea.vmem %s1, %s392
        %p394 = pneg %p78
        %p395 = pneg %p75
        %s396 = smul.u32 16, %s21
        %p397 = scmp.lt.s32.totalorder %s396, 31
        %s398 = scalar_select %p397, %s396, 31
        %s399 = smul.addr %s398, 8
        %s400 = scalar_lea.vmem %s2, %s399
        %p401 = pneg %p104
        %p402 = pneg %p101
        %s403 = smul.u32 16, %s22
        %p404 = scmp.lt.s32.totalorder %s403, 31
        %s405 = scalar_select %p404, %s403, 31
        %s406 = smul.addr %s405, 4
        %s407 = scalar_lea.vmem %s3, %s406
        %p408 = pneg %p130
        %p409 = pneg %p127
        %s410 = smul.u32 16, %s21
        %p411 = scmp.lt.s32.totalorder %s410, 31
        %s412 = scalar_select %p411, %s410, 31
        %s413 = smul.addr %s412, 8
        %s414 = scalar_lea.vmem %s4, %s413
        %p415 = pneg %p156
        %p416 = pneg %p153
        %p417 = pneg %p177
        %p418 = pneg %p174
        %p419 = pneg %p203
        %p420 = pneg %p200
        %s421 = smul.u32 16, %s21
        %p422 = scmp.lt.s32.totalorder %s421, 31
        %s423 = scalar_select %p422, %s421, 31
        %s424 = smul.addr %s423, 8
        %s425 = scalar_lea.vmem %s6, %s424
        %s426 = smul.u32 16, %s21
        %p427 = scmp.lt.s32.totalorder %s22, 1
        %s428 = scalar_select %p427, %s22, 1
        %s429 = smul.addr %s428, 4
        %s430 = scalar_lea.vmem %s1, %s429
        %s431 = smul.u32 16, %s21
        %p432 = scmp.lt.s32.totalorder %s431, 31
        %s433 = scalar_select %p432, %s431, 31
        %s434 = smul.addr %s433, 8
        %s435 = scalar_lea.vmem %s2, %s434
        %s436 = smul.u32 16, %s21
        %s437 = smul.u32 16, %s22
        %p438 = scmp.lt.s32.totalorder %s437, 31
        %s439 = scalar_select %p438, %s437, 31
        %s440 = smul.addr %s439, 4
        %s441 = scalar_lea.vmem %s3, %s440
        %s442 = smul.u32 16, %s22
        %s443 = smul.u32 16, %s21
        %p444 = scmp.lt.s32.totalorder %s443, 31
        %s445 = scalar_select %p444, %s443, 31
        %s446 = smul.addr %s445, 8
        %s447 = scalar_lea.vmem %s4, %s446
        %s448 = smul.u32 16, %s21
        %s449 = smul.u32 16, %s21
        %p450 = scmp.lt.s32.totalorder %s449, 31
        %s451 = scalar_select %p450, %s449, 31
        %s452 = smul.addr %s451, 8
        %s453 = scalar_lea.vmem %s6, %s452
        %s454 = smul.u32 16, %s21
        %p458 = scmp.eq.s32.totalorder %s22, 0
        // Predicated region
        $region86: #{gat_model_forward.5} parent=80 // pred_check
          %p459 = pneg %p458
        $region87: #{gat_model_forward.5} parent=80 // pred_check_branch
          %461 = sbr.rel (%p459) target = $region89
        $region88: #{gat_model_forward.5} parent=80 // pred_region
          %vm462 = vcmask 31744
          %463 = vst.msk [vmem:[#allocation2] sm:$0xff] %vm462, -1e+30
          %464 = vst.msk [vmem:[#allocation2 + $0x8] sm:$0xff] %vm462, -1e+30
          %465 = vst.msk [vmem:[#allocation2 + $0x10] sm:$0xff] %vm462, -1e+30
          %466 = vst.msk [vmem:[#allocation2 + $0x18] sm:$0xff] %vm462, -1e+30
          %467 = vst.msk [vmem:[#allocation2 + $0x20] sm:$0xff] %vm462, -1e+30
          %468 = vst.msk [vmem:[#allocation2 + $0x28] sm:$0xff] %vm462, -1e+30
          %469 = vst.msk [vmem:[#allocation2 + $0x30] sm:$0xff] %vm462, -1e+30
          %470 = vst.msk [vmem:[#allocation2 + $0x38] sm:$0xff] %vm462, -1e+30
          %471 = vst.msk [vmem:[#allocation2 + $0x40] sm:$0xff] %vm462, -1e+30
          %472 = vst.msk [vmem:[#allocation2 + $0x48] sm:$0xff] %vm462, -1e+30
          %473 = vst.msk [vmem:[#allocation2 + $0x50] sm:$0xff] %vm462, -1e+30
          %474 = vst.msk [vmem:[#allocation2 + $0x58] sm:$0xff] %vm462, -1e+30
          %475 = vst.msk [vmem:[#allocation2 + $0x60] sm:$0xff] %vm462, -1e+30
          %476 = vst.msk [vmem:[#allocation2 + $0x68] sm:$0xff] %vm462, -1e+30
          %477 = vst.msk [vmem:[#allocation2 + $0x70] sm:$0xff] %vm462, -1e+30
          %478 = vst.msk [vmem:[#allocation2 + $0x78] sm:$0xff] %vm462, -1e+30
          %479 = vst.msk [vmem:[#allocation3] sm:$0xff] %vm462, 0.0
          %480 = vst.msk [vmem:[#allocation3 + $0x8] sm:$0xff] %vm462, 0.0
          %481 = vst.msk [vmem:[#allocation3 + $0x10] sm:$0xff] %vm462, 0.0
          %482 = vst.msk [vmem:[#allocation3 + $0x18] sm:$0xff] %vm462, 0.0
          %483 = vst.msk [vmem:[#allocation3 + $0x20] sm:$0xff] %vm462, 0.0
          %484 = vst.msk [vmem:[#allocation3 + $0x28] sm:$0xff] %vm462, 0.0
          %485 = vst.msk [vmem:[#allocation3 + $0x30] sm:$0xff] %vm462, 0.0
          %486 = vst.msk [vmem:[#allocation3 + $0x38] sm:$0xff] %vm462, 0.0
          %487 = vst.msk [vmem:[#allocation3 + $0x40] sm:$0xff] %vm462, 0.0
          %488 = vst.msk [vmem:[#allocation3 + $0x48] sm:$0xff] %vm462, 0.0
          %489 = vst.msk [vmem:[#allocation3 + $0x50] sm:$0xff] %vm462, 0.0
          %490 = vst.msk [vmem:[#allocation3 + $0x58] sm:$0xff] %vm462, 0.0
          %491 = vst.msk [vmem:[#allocation3 + $0x60] sm:$0xff] %vm462, 0.0
          %492 = vst.msk [vmem:[#allocation3 + $0x68] sm:$0xff] %vm462, 0.0
          %493 = vst.msk [vmem:[#allocation3 + $0x70] sm:$0xff] %vm462, 0.0
          %494 = vst.msk [vmem:[#allocation3 + $0x78] sm:$0xff] %vm462, 0.0
          %495 = vst [vmem:[#allocation4] sm:$0xff] 0.0
          %496 = vst [vmem:[#allocation4 + $0x8] sm:$0xff] 0.0
          %497 = vst [vmem:[#allocation4 + $0x10] sm:$0xff] 0.0
          %498 = vst [vmem:[#allocation4 + $0x18] sm:$0xff] 0.0
          %499 = vst [vmem:[#allocation4 + $0x20] sm:$0xff] 0.0
          %500 = vst [vmem:[#allocation4 + $0x28] sm:$0xff] 0.0
          %501 = vst [vmem:[#allocation4 + $0x30] sm:$0xff] 0.0
          %502 = vst [vmem:[#allocation4 + $0x38] sm:$0xff] 0.0
          %503 = vst [vmem:[#allocation4 + $0x40] sm:$0xff] 0.0
          %504 = vst [vmem:[#allocation4 + $0x48] sm:$0xff] 0.0
          %505 = vst [vmem:[#allocation4 + $0x50] sm:$0xff] 0.0
          %506 = vst [vmem:[#allocation4 + $0x58] sm:$0xff] 0.0
          %507 = vst [vmem:[#allocation4 + $0x60] sm:$0xff] 0.0
          %508 = vst [vmem:[#allocation4 + $0x68] sm:$0xff] 0.0
          %509 = vst [vmem:[#allocation4 + $0x70] sm:$0xff] 0.0
          %510 = vst [vmem:[#allocation4 + $0x78] sm:$0xff] 0.0
        $region89: #{gat_model_forward.5} parent=80 // pred_fallthru
          _
        %v511 = vld [vmem:[%s380] sm:$0xf]
        %v512 = vld [vmem:[%s380 + $0x4] sm:$0xf]
        %v513 = vld [vmem:[%s380 + $0x8] sm:$0xf]
        %v514 = vld [vmem:[%s380 + $0xc] sm:$0xf]
        %v515 = vld [vmem:[%s380 + $0x10] sm:$0xf]
        %v516 = vld [vmem:[%s380 + $0x14] sm:$0xf]
        %v517 = vld [vmem:[%s380 + $0x18] sm:$0xf]
        %v518 = vld [vmem:[%s380 + $0x1c] sm:$0xf]
        %v519 = vld [vmem:[%s380 + $0x20] sm:$0xf]
        %v520 = vld [vmem:[%s380 + $0x24] sm:$0xf]
        %v521 = vld [vmem:[%s380 + $0x28] sm:$0xf]
        %v522 = vld [vmem:[%s380 + $0x2c] sm:$0xf]
        %v523 = vld [vmem:[%s380 + $0x30] sm:$0xf]
        %v524 = vld [vmem:[%s380 + $0x34] sm:$0xf]
        %v525 = vld [vmem:[%s380 + $0x38] sm:$0xf]
        %v526 = vld [vmem:[%s380 + $0x3c] sm:$0xf]
        %vm527 = vcmp.gt.bf16.partialorder %v511, 0
        %vm528 = vcmp.gt.bf16.partialorder %v512, 0
        %vm529 = vcmp.gt.bf16.partialorder %v513, 0
        %vm530 = vcmp.gt.bf16.partialorder %v514, 0
        %vm531 = vcmp.gt.bf16.partialorder %v515, 0
        %vm532 = vcmp.gt.bf16.partialorder %v516, 0
        %vm533 = vcmp.gt.bf16.partialorder %v517, 0
        %vm534 = vcmp.gt.bf16.partialorder %v518, 0
        %vm535 = vcmp.gt.bf16.partialorder %v519, 0
        %vm536 = vcmp.gt.bf16.partialorder %v520, 0
        %vm537 = vcmp.gt.bf16.partialorder %v521, 0
        %vm538 = vcmp.gt.bf16.partialorder %v522, 0
        %vm539 = vcmp.gt.bf16.partialorder %v523, 0
        %vm540 = vcmp.gt.bf16.partialorder %v524, 0
        %vm541 = vcmp.gt.bf16.partialorder %v525, 0
        %vm542 = vcmp.gt.bf16.partialorder %v526, 0
        %v543 = vld [vmem:[%s441] sm:$0xf]
        %v544 = vld [vmem:[%s441 + $0x4] sm:$0xf]
        %v545 = vld [vmem:[%s441 + $0x8] sm:$0xf]
        %v546 = vld [vmem:[%s441 + $0xc] sm:$0xf]
        %v547 = vld [vmem:[%s441 + $0x10] sm:$0xf]
        %v548 = vld [vmem:[%s441 + $0x14] sm:$0xf]
        %v549 = vld [vmem:[%s441 + $0x18] sm:$0xf]
        %v550 = vld [vmem:[%s441 + $0x1c] sm:$0xf]
        %v551 = vld [vmem:[%s441 + $0x20] sm:$0xf]
        %v552 = vld [vmem:[%s441 + $0x24] sm:$0xf]
        %v553 = vld [vmem:[%s441 + $0x28] sm:$0xf]
        %v554 = vld [vmem:[%s441 + $0x2c] sm:$0xf]
        %v555 = vld [vmem:[%s441 + $0x30] sm:$0xf]
        %v556 = vld [vmem:[%s441 + $0x34] sm:$0xf]
        %v557 = vld [vmem:[%s441 + $0x38] sm:$0xf]
        %v558 = vld [vmem:[%s441 + $0x3c] sm:$0xf]
        %v559 = vld [vmem:[%s430] sm:$0x1]
        %v560 = vld [vmem:[%s435] sm:$0xff]
        %v561 = vld [vmem:[%s435 + $0x8] sm:$0xff]
        %v562 = vld [vmem:[%s435 + $0x10] sm:$0xff]
        %v563 = vld [vmem:[%s435 + $0x18] sm:$0xff]
        %v564 = vld [vmem:[%s435 + $0x20] sm:$0xff]
        %v565 = vld [vmem:[%s435 + $0x28] sm:$0xff]
        %v566 = vld [vmem:[%s435 + $0x30] sm:$0xff]
        %v567 = vld [vmem:[%s435 + $0x38] sm:$0xff]
        %v568 = vld [vmem:[%s435 + $0x40] sm:$0xff]
        %v569 = vld [vmem:[%s435 + $0x48] sm:$0xff]
        %v570 = vld [vmem:[%s435 + $0x50] sm:$0xff]
        %v571 = vld [vmem:[%s435 + $0x58] sm:$0xff]
        %v572 = vld [vmem:[%s435 + $0x60] sm:$0xff]
        %v573 = vld [vmem:[%s435 + $0x68] sm:$0xff]
        %v574 = vld [vmem:[%s435 + $0x70] sm:$0xff]
        %v575 = vld [vmem:[%s435 + $0x78] sm:$0xff]
        %v576 = vlaneseq
        %v577 = vshrl.u32 %v576, 7
        %v578 = vsub.s32 0, %v577
        %v579 = vrot.slane %v559, %v578
        %581 = vset.pattern.permute.xlu0 0
        %582 = vperm.xlu0 %581, %v560
        %v583 = vpop.permute.xlu0 %582
        %586 = vset.pattern.permute.xlu0 0
        %587 = vperm.xlu0 %586, %v561
        %v588 = vpop.permute.xlu0 %587
        %591 = vset.pattern.permute.xlu0 0
        %592 = vperm.xlu0 %591, %v562
        %v593 = vpop.permute.xlu0 %592
        %596 = vset.pattern.permute.xlu0 0
        %597 = vperm.xlu0 %596, %v563
        %v598 = vpop.permute.xlu0 %597
        %601 = vset.pattern.permute.xlu0 0
        %602 = vperm.xlu0 %601, %v564
        %v603 = vpop.permute.xlu0 %602
        %606 = vset.pattern.permute.xlu0 0
        %607 = vperm.xlu0 %606, %v565
        %v608 = vpop.permute.xlu0 %607
        %611 = vset.pattern.permute.xlu0 0
        %612 = vperm.xlu0 %611, %v566
        %v613 = vpop.permute.xlu0 %612
        %616 = vset.pattern.permute.xlu0 0
        %617 = vperm.xlu0 %616, %v567
        %v618 = vpop.permute.xlu0 %617
        %621 = vset.pattern.permute.xlu0 0
        %622 = vperm.xlu0 %621, %v568
        %v623 = vpop.permute.xlu0 %622
        %626 = vset.pattern.permute.xlu0 0
        %627 = vperm.xlu0 %626, %v569
        %v628 = vpop.permute.xlu0 %627
        %631 = vset.pattern.permute.xlu0 0
        %632 = vperm.xlu0 %631, %v570
        %v633 = vpop.permute.xlu0 %632
        %636 = vset.pattern.permute.xlu0 0
        %637 = vperm.xlu0 %636, %v571
        %v638 = vpop.permute.xlu0 %637
        %641 = vset.pattern.permute.xlu0 0
        %642 = vperm.xlu0 %641, %v572
        %v643 = vpop.permute.xlu0 %642
        %646 = vset.pattern.permute.xlu0 0
        %647 = vperm.xlu0 %646, %v573
        %v648 = vpop.permute.xlu0 %647
        %651 = vset.pattern.permute.xlu0 0
        %652 = vperm.xlu0 %651, %v574
        %v653 = vpop.permute.xlu0 %652
        %656 = vset.pattern.permute.xlu0 0
        %657 = vperm.xlu0 %656, %v575
        %v658 = vpop.permute.xlu0 %657
        %v660 = vadd.f32 %v579, %v583
        %v661 = vadd.f32 %v579, %v588
        %v662 = vadd.f32 %v579, %v593
        %v663 = vadd.f32 %v579, %v598
        %v664 = vadd.f32 %v579, %v603
        %v665 = vadd.f32 %v579, %v608
        %v666 = vadd.f32 %v579, %v613
        %v667 = vadd.f32 %v579, %v618
        %v668 = vadd.f32 %v579, %v623
        %v669 = vadd.f32 %v579, %v628
        %v670 = vadd.f32 %v579, %v633
        %v671 = vadd.f32 %v579, %v638
        %v672 = vadd.f32 %v579, %v643
        %v673 = vadd.f32 %v579, %v648
        %v674 = vadd.f32 %v579, %v653
        %v675 = vadd.f32 %v579, %v658
        %vm676 = vcmp.gt.f32.partialorder %v660, 0.0
        %vm677 = vcmp.gt.f32.partialorder %v661, 0.0
        %vm678 = vcmp.gt.f32.partialorder %v662, 0.0
        %vm679 = vcmp.gt.f32.partialorder %v663, 0.0
        %vm680 = vcmp.gt.f32.partialorder %v664, 0.0
        %vm681 = vcmp.gt.f32.partialorder %v665, 0.0
        %vm682 = vcmp.gt.f32.partialorder %v666, 0.0
        %vm683 = vcmp.gt.f32.partialorder %v667, 0.0
        %vm684 = vcmp.gt.f32.partialorder %v668, 0.0
        %vm685 = vcmp.gt.f32.partialorder %v669, 0.0
        %vm686 = vcmp.gt.f32.partialorder %v670, 0.0
        %vm687 = vcmp.gt.f32.partialorder %v671, 0.0
        %vm688 = vcmp.gt.f32.partialorder %v672, 0.0
        %vm689 = vcmp.gt.f32.partialorder %v673, 0.0
        %vm690 = vcmp.gt.f32.partialorder %v674, 0.0
        %vm691 = vcmp.gt.f32.partialorder %v675, 0.0
        %v692 = vmul.f32 %v660, 0.2
        %v693 = vmul.f32 %v661, 0.2
        %v694 = vmul.f32 %v662, 0.2
        %v695 = vmul.f32 %v663, 0.2
        %v696 = vmul.f32 %v664, 0.2
        %v697 = vmul.f32 %v665, 0.2
        %v698 = vmul.f32 %v666, 0.2
        %v699 = vmul.f32 %v667, 0.2
        %v700 = vmul.f32 %v668, 0.2
        %v701 = vmul.f32 %v669, 0.2
        %v702 = vmul.f32 %v670, 0.2
        %v703 = vmul.f32 %v671, 0.2
        %v704 = vmul.f32 %v672, 0.2
        %v705 = vmul.f32 %v673, 0.2
        %v706 = vmul.f32 %v674, 0.2
        %v707 = vmul.f32 %v675, 0.2
        %v708 = vsel %vm676, %v660, %v692
        %v709 = vsel %vm677, %v661, %v693
        %v710 = vsel %vm678, %v662, %v694
        %v711 = vsel %vm679, %v663, %v695
        %v712 = vsel %vm680, %v664, %v696
        %v713 = vsel %vm681, %v665, %v697
        %v714 = vsel %vm682, %v666, %v698
        %v715 = vsel %vm683, %v667, %v699
        %v716 = vsel %vm684, %v668, %v700
        %v717 = vsel %vm685, %v669, %v701
        %v718 = vsel %vm686, %v670, %v702
        %v719 = vsel %vm687, %v671, %v703
        %v720 = vsel %vm688, %v672, %v704
        %v721 = vsel %vm689, %v673, %v705
        %v722 = vsel %vm690, %v674, %v706
        %v723 = vsel %vm691, %v675, %v707
        %v724 = vsel %vm527, 65537, 0
        %v725 = vsel %vm528, 65537, 0
        %v726 = vsel %vm529, 65537, 0
        %v727 = vsel %vm530, 65537, 0
        %v728 = vsel %vm531, 65537, 0
        %v729 = vsel %vm532, 65537, 0
        %v730 = vsel %vm533, 65537, 0
        %v731 = vsel %vm534, 65537, 0
        %v732 = vsel %vm535, 65537, 0
        %v733 = vsel %vm536, 65537, 0
        %v734 = vsel %vm537, 65537, 0
        %v735 = vsel %vm538, 65537, 0
        %v736 = vsel %vm539, 65537, 0
        %v737 = vsel %vm540, 65537, 0
        %v738 = vsel %vm541, 65537, 0
        %v739 = vsel %vm542, 65537, 0
        %v740 = vunpack.c.l.b16 %v724
        %v741 = vunpack.c.l.b16 %v725
        %v742 = vunpack.c.l.b16 %v726
        %v743 = vunpack.c.l.b16 %v727
        %v744 = vunpack.c.l.b16 %v728
        %v745 = vunpack.c.l.b16 %v729
        %v746 = vunpack.c.l.b16 %v730
        %v747 = vunpack.c.l.b16 %v731
        %v748 = vunpack.c.l.b16 %v732
        %v749 = vunpack.c.l.b16 %v733
        %v750 = vunpack.c.l.b16 %v734
        %v751 = vunpack.c.l.b16 %v735
        %v752 = vunpack.c.l.b16 %v736
        %v753 = vunpack.c.l.b16 %v737
        %v754 = vunpack.c.l.b16 %v738
        %v755 = vunpack.c.l.b16 %v739
        %vm756 = vcmp.ne.s32.totalorder %v740, 0
        %vm757 = vcmp.ne.s32.totalorder %v741, 0
        %vm758 = vcmp.ne.s32.totalorder %v742, 0
        %vm759 = vcmp.ne.s32.totalorder %v743, 0
        %vm760 = vcmp.ne.s32.totalorder %v744, 0
        %vm761 = vcmp.ne.s32.totalorder %v745, 0
        %vm762 = vcmp.ne.s32.totalorder %v746, 0
        %vm763 = vcmp.ne.s32.totalorder %v747, 0
        %vm764 = vcmp.ne.s32.totalorder %v748, 0
        %vm765 = vcmp.ne.s32.totalorder %v749, 0
        %vm766 = vcmp.ne.s32.totalorder %v750, 0
        %vm767 = vcmp.ne.s32.totalorder %v751, 0
        %vm768 = vcmp.ne.s32.totalorder %v752, 0
        %vm769 = vcmp.ne.s32.totalorder %v753, 0
        %vm770 = vcmp.ne.s32.totalorder %v754, 0
        %vm771 = vcmp.ne.s32.totalorder %v755, 0
        %v772 = vsel %vm756, %v708, -1e+30
        %v773 = vsel %vm757, %v709, -1e+30
        %v774 = vsel %vm758, %v710, -1e+30
        %v775 = vsel %vm759, %v711, -1e+30
        %v776 = vsel %vm760, %v712, -1e+30
        %v777 = vsel %vm761, %v713, -1e+30
        %v778 = vsel %vm762, %v714, -1e+30
        %v779 = vsel %vm763, %v715, -1e+30
        %v780 = vsel %vm764, %v716, -1e+30
        %v781 = vsel %vm765, %v717, -1e+30
        %v782 = vsel %vm766, %v718, -1e+30
        %v783 = vsel %vm767, %v719, -1e+30
        %v784 = vsel %vm768, %v720, -1e+30
        %v785 = vsel %vm769, %v721, -1e+30
        %v786 = vsel %vm770, %v722, -1e+30
        %v787 = vsel %vm771, %v723, -1e+30
        %v788 = vld [vmem:[#allocation2] sm:$0xff]
        %v789 = vld [vmem:[#allocation2 + $0x8] sm:$0xff]
        %v790 = vld [vmem:[#allocation2 + $0x10] sm:$0xff]
        %v791 = vld [vmem:[#allocation2 + $0x18] sm:$0xff]
        %v792 = vld [vmem:[#allocation2 + $0x20] sm:$0xff]
        %v793 = vld [vmem:[#allocation2 + $0x28] sm:$0xff]
        %v794 = vld [vmem:[#allocation2 + $0x30] sm:$0xff]
        %v795 = vld [vmem:[#allocation2 + $0x38] sm:$0xff]
        %v796 = vld [vmem:[#allocation2 + $0x40] sm:$0xff]
        %v797 = vld [vmem:[#allocation2 + $0x48] sm:$0xff]
        %v798 = vld [vmem:[#allocation2 + $0x50] sm:$0xff]
        %v799 = vld [vmem:[#allocation2 + $0x58] sm:$0xff]
        %v800 = vld [vmem:[#allocation2 + $0x60] sm:$0xff]
        %v801 = vld [vmem:[#allocation2 + $0x68] sm:$0xff]
        %v802 = vld [vmem:[#allocation2 + $0x70] sm:$0xff]
        %v803 = vld [vmem:[#allocation2 + $0x78] sm:$0xff]
        %804 = vmax.xlane.f32.xlu0 %v772
        %v805 = vpop.xlane.xlu0 %804
        %806 = vmax.xlane.f32.xlu0 %v773
        %v807 = vpop.xlane.xlu0 %806
        %808 = vmax.xlane.f32.xlu0 %v774
        %v809 = vpop.xlane.xlu0 %808
        %810 = vmax.xlane.f32.xlu0 %v775
        %v811 = vpop.xlane.xlu0 %810
        %812 = vmax.xlane.f32.xlu0 %v776
        %v813 = vpop.xlane.xlu0 %812
        %814 = vmax.xlane.f32.xlu0 %v777
        %v815 = vpop.xlane.xlu0 %814
        %816 = vmax.xlane.f32.xlu0 %v778
        %v817 = vpop.xlane.xlu0 %816
        %818 = vmax.xlane.f32.xlu0 %v779
        %v819 = vpop.xlane.xlu0 %818
        %820 = vmax.xlane.f32.xlu0 %v780
        %v821 = vpop.xlane.xlu0 %820
        %822 = vmax.xlane.f32.xlu0 %v781
        %v823 = vpop.xlane.xlu0 %822
        %824 = vmax.xlane.f32.xlu0 %v782
        %v825 = vpop.xlane.xlu0 %824
        %826 = vmax.xlane.f32.xlu0 %v783
        %v827 = vpop.xlane.xlu0 %826
        %828 = vmax.xlane.f32.xlu0 %v784
        %v829 = vpop.xlane.xlu0 %828
        %830 = vmax.xlane.f32.xlu0 %v785
        %v831 = vpop.xlane.xlu0 %830
        %832 = vmax.xlane.f32.xlu0 %v786
        %v833 = vpop.xlane.xlu0 %832
        %834 = vmax.xlane.f32.xlu0 %v787
        %v835 = vpop.xlane.xlu0 %834
        %v836 = vmax.f32 %v788, %v805
        %v837 = vmax.f32 %v789, %v807
        %v838 = vmax.f32 %v790, %v809
        %v839 = vmax.f32 %v791, %v811
        %v840 = vmax.f32 %v792, %v813
        %v841 = vmax.f32 %v793, %v815
        %v842 = vmax.f32 %v794, %v817
        %v843 = vmax.f32 %v795, %v819
        %v844 = vmax.f32 %v796, %v821
        %v845 = vmax.f32 %v797, %v823
        %v846 = vmax.f32 %v798, %v825
        %v847 = vmax.f32 %v799, %v827
        %v848 = vmax.f32 %v800, %v829
        %v849 = vmax.f32 %v801, %v831
        %v850 = vmax.f32 %v802, %v833
        %v851 = vmax.f32 %v803, %v835
        %v852 = vsub.f32 %v788, %v836
        %v853 = vsub.f32 %v789, %v837
        %v854 = vsub.f32 %v790, %v838
        %v855 = vsub.f32 %v791, %v839
        %v856 = vsub.f32 %v792, %v840
        %v857 = vsub.f32 %v793, %v841
        %v858 = vsub.f32 %v794, %v842
        %v859 = vsub.f32 %v795, %v843
        %v860 = vsub.f32 %v796, %v844
        %v861 = vsub.f32 %v797, %v845
        %v862 = vsub.f32 %v798, %v846
        %v863 = vsub.f32 %v799, %v847
        %v864 = vsub.f32 %v800, %v848
        %v865 = vsub.f32 %v801, %v849
        %v866 = vsub.f32 %v802, %v850
        %v867 = vsub.f32 %v803, %v851
        %v868 = vmul.f32 %v852, 1.442695
        %v869 = vpow.pop %v868
        %v870 = vmul.f32 %v853, 1.442695
        %v871 = vpow.pop %v870
        %v872 = vmul.f32 %v854, 1.442695
        %v873 = vpow.pop %v872
        %v874 = vmul.f32 %v855, 1.442695
        %v875 = vpow.pop %v874
        %v876 = vmul.f32 %v856, 1.442695
        %v877 = vpow.pop %v876
        %v878 = vmul.f32 %v857, 1.442695
        %v879 = vpow.pop %v878
        %v880 = vmul.f32 %v858, 1.442695
        %v881 = vpow.pop %v880
        %v882 = vmul.f32 %v859, 1.442695
        %v883 = vpow.pop %v882
        %v884 = vmul.f32 %v860, 1.442695
        %v885 = vpow.pop %v884
        %v886 = vmul.f32 %v861, 1.442695
        %v887 = vpow.pop %v886
        %v888 = vmul.f32 %v862, 1.442695
        %v889 = vpow.pop %v888
        %v890 = vmul.f32 %v863, 1.442695
        %v891 = vpow.pop %v890
        %v892 = vmul.f32 %v864, 1.442695
        %v893 = vpow.pop %v892
        %v894 = vmul.f32 %v865, 1.442695
        %v895 = vpow.pop %v894
        %v896 = vmul.f32 %v866, 1.442695
        %v897 = vpow.pop %v896
        %v898 = vmul.f32 %v867, 1.442695
        %v899 = vpow.pop %v898
        %901 = vset.pattern.permute.xlu0 0
        %902 = vperm.xlu0 %901, %v836
        %v903 = vpop.permute.xlu0 %902
        %906 = vset.pattern.permute.xlu0 0
        %907 = vperm.xlu0 %906, %v837
        %v908 = vpop.permute.xlu0 %907
        %911 = vset.pattern.permute.xlu0 0
        %912 = vperm.xlu0 %911, %v838
        %v913 = vpop.permute.xlu0 %912
        %916 = vset.pattern.permute.xlu0 0
        %917 = vperm.xlu0 %916, %v839
        %v918 = vpop.permute.xlu0 %917
        %921 = vset.pattern.permute.xlu0 0
        %922 = vperm.xlu0 %921, %v840
        %v923 = vpop.permute.xlu0 %922
        %926 = vset.pattern.permute.xlu0 0
        %927 = vperm.xlu0 %926, %v841
        %v928 = vpop.permute.xlu0 %927
        %931 = vset.pattern.permute.xlu0 0
        %932 = vperm.xlu0 %931, %v842
        %v933 = vpop.permute.xlu0 %932
        %936 = vset.pattern.permute.xlu0 0
        %937 = vperm.xlu0 %936, %v843
        %v938 = vpop.permute.xlu0 %937
        %941 = vset.pattern.permute.xlu0 0
        %942 = vperm.xlu0 %941, %v844
        %v943 = vpop.permute.xlu0 %942
        %946 = vset.pattern.permute.xlu0 0
        %947 = vperm.xlu0 %946, %v845
        %v948 = vpop.permute.xlu0 %947
        %951 = vset.pattern.permute.xlu0 0
        %952 = vperm.xlu0 %951, %v846
        %v953 = vpop.permute.xlu0 %952
        %956 = vset.pattern.permute.xlu0 0
        %957 = vperm.xlu0 %956, %v847
        %v958 = vpop.permute.xlu0 %957
        %961 = vset.pattern.permute.xlu0 0
        %962 = vperm.xlu0 %961, %v848
        %v963 = vpop.permute.xlu0 %962
        %966 = vset.pattern.permute.xlu0 0
        %967 = vperm.xlu0 %966, %v849
        %v968 = vpop.permute.xlu0 %967
        %971 = vset.pattern.permute.xlu0 0
        %972 = vperm.xlu0 %971, %v850
        %v973 = vpop.permute.xlu0 %972
        %976 = vset.pattern.permute.xlu0 0
        %977 = vperm.xlu0 %976, %v851
        %v978 = vpop.permute.xlu0 %977
        %v980 = vsub.f32 %v772, %v903
        %v981 = vsub.f32 %v773, %v908
        %v982 = vsub.f32 %v774, %v913
        %v983 = vsub.f32 %v775, %v918
        %v984 = vsub.f32 %v776, %v923
        %v985 = vsub.f32 %v777, %v928
        %v986 = vsub.f32 %v778, %v933
        %v987 = vsub.f32 %v779, %v938
        %v988 = vsub.f32 %v780, %v943
        %v989 = vsub.f32 %v781, %v948
        %v990 = vsub.f32 %v782, %v953
        %v991 = vsub.f32 %v783, %v958
        %v992 = vsub.f32 %v784, %v963
        %v993 = vsub.f32 %v785, %v968
        %v994 = vsub.f32 %v786, %v973
        %v995 = vsub.f32 %v787, %v978
        %v996 = vmul.f32 %v980, 1.442695
        %v997 = vpow.pop %v996
        %v998 = vmul.f32 %v981, 1.442695
        %v999 = vpow.pop %v998
        %v1000 = vmul.f32 %v982, 1.442695
        %v1001 = vpow.pop %v1000
        %v1002 = vmul.f32 %v983, 1.442695
        %v1003 = vpow.pop %v1002
        %v1004 = vmul.f32 %v984, 1.442695
        %v1005 = vpow.pop %v1004
        %v1006 = vmul.f32 %v985, 1.442695
        %v1007 = vpow.pop %v1006
        %v1008 = vmul.f32 %v986, 1.442695
        %v1009 = vpow.pop %v1008
        %v1010 = vmul.f32 %v987, 1.442695
        %v1011 = vpow.pop %v1010
        %v1012 = vmul.f32 %v988, 1.442695
        %v1013 = vpow.pop %v1012
        %v1014 = vmul.f32 %v989, 1.442695
        %v1015 = vpow.pop %v1014
        %v1016 = vmul.f32 %v990, 1.442695
        %v1017 = vpow.pop %v1016
        %v1018 = vmul.f32 %v991, 1.442695
        %v1019 = vpow.pop %v1018
        %v1020 = vmul.f32 %v992, 1.442695
        %v1021 = vpow.pop %v1020
        %v1022 = vmul.f32 %v993, 1.442695
        %v1023 = vpow.pop %v1022
        %v1024 = vmul.f32 %v994, 1.442695
        %v1025 = vpow.pop %v1024
        %v1026 = vmul.f32 %v995, 1.442695
        %v1027 = vpow.pop %v1026
        %v1028 = vsel %vm756, %v997, 0.0
        %v1029 = vsel %vm757, %v999, 0.0
        %v1030 = vsel %vm758, %v1001, 0.0
        %v1031 = vsel %vm759, %v1003, 0.0
        %v1032 = vsel %vm760, %v1005, 0.0
        %v1033 = vsel %vm761, %v1007, 0.0
        %v1034 = vsel %vm762, %v1009, 0.0
        %v1035 = vsel %vm763, %v1011, 0.0
        %v1036 = vsel %vm764, %v1013, 0.0
        %v1037 = vsel %vm765, %v1015, 0.0
        %v1038 = vsel %vm766, %v1017, 0.0
        %v1039 = vsel %vm767, %v1019, 0.0
        %v1040 = vsel %vm768, %v1021, 0.0
        %v1041 = vsel %vm769, %v1023, 0.0
        %v1042 = vsel %vm770, %v1025, 0.0
        %v1043 = vsel %vm771, %v1027, 0.0
        %v1044 = vld [vmem:[#allocation3] sm:$0xff]
        %v1045 = vld [vmem:[#allocation3 + $0x8] sm:$0xff]
        %v1046 = vld [vmem:[#allocation3 + $0x10] sm:$0xff]
        %v1047 = vld [vmem:[#allocation3 + $0x18] sm:$0xff]
        %v1048 = vld [vmem:[#allocation3 + $0x20] sm:$0xff]
        %v1049 = vld [vmem:[#allocation3 + $0x28] sm:$0xff]
        %v1050 = vld [vmem:[#allocation3 + $0x30] sm:$0xff]
        %v1051 = vld [vmem:[#allocation3 + $0x38] sm:$0xff]
        %v1052 = vld [vmem:[#allocation3 + $0x40] sm:$0xff]
        %v1053 = vld [vmem:[#allocation3 + $0x48] sm:$0xff]
        %v1054 = vld [vmem:[#allocation3 + $0x50] sm:$0xff]
        %v1055 = vld [vmem:[#allocation3 + $0x58] sm:$0xff]
        %v1056 = vld [vmem:[#allocation3 + $0x60] sm:$0xff]
        %v1057 = vld [vmem:[#allocation3 + $0x68] sm:$0xff]
        %v1058 = vld [vmem:[#allocation3 + $0x70] sm:$0xff]
        %v1059 = vld [vmem:[#allocation3 + $0x78] sm:$0xff]
        %v1060 = vmul.f32 %v869, %v1044
        %v1061 = vmul.f32 %v871, %v1045
        %v1062 = vmul.f32 %v873, %v1046
        %v1063 = vmul.f32 %v875, %v1047
        %v1064 = vmul.f32 %v877, %v1048
        %v1065 = vmul.f32 %v879, %v1049
        %v1066 = vmul.f32 %v881, %v1050
        %v1067 = vmul.f32 %v883, %v1051
        %v1068 = vmul.f32 %v885, %v1052
        %v1069 = vmul.f32 %v887, %v1053
        %v1070 = vmul.f32 %v889, %v1054
        %v1071 = vmul.f32 %v891, %v1055
        %v1072 = vmul.f32 %v893, %v1056
        %v1073 = vmul.f32 %v895, %v1057
        %v1074 = vmul.f32 %v897, %v1058
        %v1075 = vmul.f32 %v899, %v1059
        %1076 = vadd.xlane.f32.xlu0 %v1028
        %v1077 = vpop.xlane.xlu0 %1076
        %1078 = vadd.xlane.f32.xlu0 %v1029
        %v1079 = vpop.xlane.xlu0 %1078
        %1080 = vadd.xlane.f32.xlu0 %v1030
        %v1081 = vpop.xlane.xlu0 %1080
        %1082 = vadd.xlane.f32.xlu0 %v1031
        %v1083 = vpop.xlane.xlu0 %1082
        %1084 = vadd.xlane.f32.xlu0 %v1032
        %v1085 = vpop.xlane.xlu0 %1084
        %1086 = vadd.xlane.f32.xlu0 %v1033
        %v1087 = vpop.xlane.xlu0 %1086
        %1088 = vadd.xlane.f32.xlu0 %v1034
        %v1089 = vpop.xlane.xlu0 %1088
        %1090 = vadd.xlane.f32.xlu0 %v1035
        %v1091 = vpop.xlane.xlu0 %1090
        %1092 = vadd.xlane.f32.xlu0 %v1036
        %v1093 = vpop.xlane.xlu0 %1092
        %1094 = vadd.xlane.f32.xlu0 %v1037
        %v1095 = vpop.xlane.xlu0 %1094
        %1096 = vadd.xlane.f32.xlu0 %v1038
        %v1097 = vpop.xlane.xlu0 %1096
        %1098 = vadd.xlane.f32.xlu0 %v1039
        %v1099 = vpop.xlane.xlu0 %1098
        %1100 = vadd.xlane.f32.xlu0 %v1040
        %v1101 = vpop.xlane.xlu0 %1100
        %1102 = vadd.xlane.f32.xlu0 %v1041
        %v1103 = vpop.xlane.xlu0 %1102
        %1104 = vadd.xlane.f32.xlu0 %v1042
        %v1105 = vpop.xlane.xlu0 %1104
        %1106 = vadd.xlane.f32.xlu0 %v1043
        %v1107 = vpop.xlane.xlu0 %1106
        %v1108 = vadd.f32 %v1060, %v1077
        %v1109 = vadd.f32 %v1061, %v1079
        %v1110 = vadd.f32 %v1062, %v1081
        %v1111 = vadd.f32 %v1063, %v1083
        %v1112 = vadd.f32 %v1064, %v1085
        %v1113 = vadd.f32 %v1065, %v1087
        %v1114 = vadd.f32 %v1066, %v1089
        %v1115 = vadd.f32 %v1067, %v1091
        %v1116 = vadd.f32 %v1068, %v1093
        %v1117 = vadd.f32 %v1069, %v1095
        %v1118 = vadd.f32 %v1070, %v1097
        %v1119 = vadd.f32 %v1071, %v1099
        %v1120 = vadd.f32 %v1072, %v1101
        %v1121 = vadd.f32 %v1073, %v1103
        %v1122 = vadd.f32 %v1074, %v1105
        %v1123 = vadd.f32 %v1075, %v1107
        %vm1124 = vcmask 7168
        %1125 = vst.msk [vmem:[#allocation3] sm:$0xff] %vm1124, %v1108
        %1126 = vst.msk [vmem:[#allocation3 + $0x8] sm:$0xff] %vm1124, %v1109
        %1127 = vst.msk [vmem:[#allocation3 + $0x10] sm:$0xff] %vm1124, %v1110
        %1128 = vst.msk [vmem:[#allocation3 + $0x18] sm:$0xff] %vm1124, %v1111
        %1129 = vst.msk [vmem:[#allocation3 + $0x20] sm:$0xff] %vm1124, %v1112
        %1130 = vst.msk [vmem:[#allocation3 + $0x28] sm:$0xff] %vm1124, %v1113
        %1131 = vst.msk [vmem:[#allocation3 + $0x30] sm:$0xff] %vm1124, %v1114
        %1132 = vst.msk [vmem:[#allocation3 + $0x38] sm:$0xff] %vm1124, %v1115
        %1133 = vst.msk [vmem:[#allocation3 + $0x40] sm:$0xff] %vm1124, %v1116
        %1134 = vst.msk [vmem:[#allocation3 + $0x48] sm:$0xff] %vm1124, %v1117
        %1135 = vst.msk [vmem:[#allocation3 + $0x50] sm:$0xff] %vm1124, %v1118
        %1136 = vst.msk [vmem:[#allocation3 + $0x58] sm:$0xff] %vm1124, %v1119
        %1137 = vst.msk [vmem:[#allocation3 + $0x60] sm:$0xff] %vm1124, %v1120
        %1138 = vst.msk [vmem:[#allocation3 + $0x68] sm:$0xff] %vm1124, %v1121
        %1139 = vst.msk [vmem:[#allocation3 + $0x70] sm:$0xff] %vm1124, %v1122
        %1140 = vst.msk [vmem:[#allocation3 + $0x78] sm:$0xff] %vm1124, %v1123
        %v1141 = vpack.c.bf16 %v1029, %v1028
        %v1142 = vpack.c.bf16 %v1031, %v1030
        %v1143 = vpack.c.bf16 %v1033, %v1032
        %v1144 = vpack.c.bf16 %v1035, %v1034
        %v1145 = vpack.c.bf16 %v1037, %v1036
        %v1146 = vpack.c.bf16 %v1039, %v1038
        %v1147 = vpack.c.bf16 %v1041, %v1040
        %v1148 = vpack.c.bf16 %v1043, %v1042
        %v1165 = vunpack.c.l.b16 %v543
        %v1166 = vunpack.c.l.b16 %v544
        %v1167 = vunpack.c.l.b16 %v545
        %v1168 = vunpack.c.l.b16 %v546
        %v1169 = vunpack.c.l.b16 %v547
        %v1170 = vunpack.c.l.b16 %v548
        %v1171 = vunpack.c.l.b16 %v549
        %v1172 = vunpack.c.l.b16 %v550
        %v1173 = vunpack.c.l.b16 %v551
        %v1174 = vunpack.c.l.b16 %v552
        %v1175 = vunpack.c.l.b16 %v553
        %v1176 = vunpack.c.l.b16 %v554
        %v1177 = vunpack.c.l.b16 %v555
        %v1178 = vunpack.c.l.b16 %v556
        %v1179 = vunpack.c.l.b16 %v557
        %v1180 = vunpack.c.l.b16 %v558
        %v1181 = vpack.c.b16 %v1166, %v1165
        %v1182 = vpack.c.b16 %v1168, %v1167
        %v1183 = vpack.c.b16 %v1170, %v1169
        %v1184 = vpack.c.b16 %v1172, %v1171
        %v1185 = vpack.c.b16 %v1174, %v1173
        %v1186 = vpack.c.b16 %v1176, %v1175
        %v1187 = vpack.c.b16 %v1178, %v1177
        %v1188 = vpack.c.b16 %v1180, %v1179
        %1197 = vmatprep.subr.bf16.mxu0 0
        %1198 = vmatpush1.bf16.msra.mxu0 %v1181
        %1199 = vmatprep.subr.bf16.mxu0 0
        %1200 = vmatpush1.bf16.msra.mxu0 %v1182
        %1201 = vmatprep.subr.bf16.mxu0 0
        %1202 = vmatpush1.bf16.msra.mxu0 %v1183
        %1203 = vmatprep.subr.bf16.mxu0 0
        %1204 = vmatpush1.bf16.msra.mxu0 %v1184
        %1205 = vmatprep.subr.bf16.mxu0 0
        %1206 = vmatpush1.bf16.msra.mxu0 %v1185
        %1207 = vmatprep.subr.bf16.mxu0 0
        %1208 = vmatpush1.bf16.msra.mxu0 %v1186
        %1209 = vmatprep.subr.bf16.mxu0 0
        %1210 = vmatpush1.bf16.msra.mxu0 %v1187
        %1211 = vmatprep.subr.bf16.mxu0 0
        %1212 = vmatpush1.bf16.msra.mxu0 %v1188
        %1213 = vmatprep.subr.bf16.mxu0 0
        %1214 = vmatpush1.bf16.msra.mxu0 0
        %1215 = vmatprep.subr.bf16.mxu0 0
        %1216 = vmatpush1.bf16.msra.mxu0 0
        %1217 = vmatprep.subr.bf16.mxu0 0
        %1218 = vmatpush1.bf16.msra.mxu0 0
        %1219 = vmatprep.subr.bf16.mxu0 0
        %1220 = vmatpush1.bf16.msra.mxu0 0
        %1221 = vmatprep.subr.bf16.mxu0 0
        %1222 = vmatpush1.bf16.msra.mxu0 0
        %1223 = vmatprep.subr.bf16.mxu0 0
        %1224 = vmatpush1.bf16.msra.mxu0 0
        %1225 = vmatprep.subr.bf16.mxu0 0
        %1226 = vmatpush1.bf16.msra.mxu0 0
        %1227 = vmatprep.subr.bf16.mxu0 0
        %1228 = vmatpush1.bf16.msra.mxu0 0
        %1229 = vmatprep.mubr.bf16.mxu0 0
        %1230 = vmatmul.mubr.bf16.gmra.mrb[0].mxu0 %v1141
        %v1231 = vpop.f32.mrb[0].mxu0
        %v1232 = vadd.f32 0.0, %v1231
        %v1233 = vpop.f32.mrb[0].mxu0
        %v1234 = vpop.f32.mrb[0].mxu0
        %v1235 = vadd.f32 0.0, %v1234
        %v1236 = vpop.f32.mrb[0].mxu0
        %1237 = vmatprep.mubr.bf16.mxu0 0
        %1238 = vmatmul.mubr.bf16.gmra.mrb[0].mxu0 %v1142
        %v1239 = vpop.f32.mrb[0].mxu0
        %v1240 = vadd.f32 0.0, %v1239
        %v1241 = vpop.f32.mrb[0].mxu0
        %v1242 = vpop.f32.mrb[0].mxu0
        %v1243 = vadd.f32 0.0, %v1242
        %v1244 = vpop.f32.mrb[0].mxu0
        %1245 = vmatprep.mubr.bf16.mxu0 0
        %1246 = vmatmul.mubr.bf16.gmra.mrb[0].mxu0 %v1143
        %v1247 = vpop.f32.mrb[0].mxu0
        %v1248 = vadd.f32 0.0, %v1247
        %v1249 = vpop.f32.mrb[0].mxu0
        %v1250 = vpop.f32.mrb[0].mxu0
        %v1251 = vadd.f32 0.0, %v1250
        %v1252 = vpop.f32.mrb[0].mxu0
        %1253 = vmatprep.mubr.bf16.mxu0 0
        %1254 = vmatmul.mubr.bf16.gmra.mrb[0].mxu0 %v1144
        %v1255 = vpop.f32.mrb[0].mxu0
        %v1256 = vadd.f32 0.0, %v1255
        %v1257 = vpop.f32.mrb[0].mxu0
        %v1258 = vpop.f32.mrb[0].mxu0
        %v1259 = vadd.f32 0.0, %v1258
        %v1260 = vpop.f32.mrb[0].mxu0
        %1261 = vmatprep.mubr.bf16.mxu0 0
        %1262 = vmatmul.mubr.bf16.gmra.mrb[0].mxu0 %v1145
        %v1263 = vpop.f32.mrb[0].mxu0
        %v1264 = vadd.f32 0.0, %v1263
        %v1265 = vpop.f32.mrb[0].mxu0
        %v1266 = vpop.f32.mrb[0].mxu0
        %v1267 = vadd.f32 0.0, %v1266
        %v1268 = vpop.f32.mrb[0].mxu0
        %1269 = vmatprep.mubr.bf16.mxu0 0
        %1270 = vmatmul.mubr.bf16.gmra.mrb[0].mxu0 %v1146
        %v1271 = vpop.f32.mrb[0].mxu0
        %v1272 = vadd.f32 0.0, %v1271
        %v1273 = vpop.f32.mrb[0].mxu0
        %v1274 = vpop.f32.mrb[0].mxu0
        %v1275 = vadd.f32 0.0, %v1274
        %v1276 = vpop.f32.mrb[0].mxu0
        %1277 = vmatprep.mubr.bf16.mxu0 0
        %1278 = vmatmul.mubr.bf16.gmra.mrb[0].mxu0 %v1147
        %v1279 = vpop.f32.mrb[0].mxu0
        %v1280 = vadd.f32 0.0, %v1279
        %v1281 = vpop.f32.mrb[0].mxu0
        %v1282 = vpop.f32.mrb[0].mxu0
        %v1283 = vadd.f32 0.0, %v1282
        %v1284 = vpop.f32.mrb[0].mxu0
        %1285 = vmatprep.mubr.bf16.mxu0 0
        %1286 = vmatmul.mubr.bf16.gmra.mrb[0].mxu0 %v1148
        %v1287 = vpop.f32.mrb[0].mxu0
        %v1288 = vadd.f32 0.0, %v1287
        %v1289 = vpop.f32.mrb[0].mxu0
        %v1290 = vpop.f32.mrb[0].mxu0
        %v1291 = vadd.f32 0.0, %v1290
        %v1292 = vpop.f32.mrb[0].mxu0
        %1293 = vdwg.mxu0
        %v1294 = vld [vmem:[#allocation4] sm:$0xff]
        %v1295 = vld [vmem:[#allocation4 + $0x8] sm:$0xff]
        %v1296 = vld [vmem:[#allocation4 + $0x10] sm:$0xff]
        %v1297 = vld [vmem:[#allocation4 + $0x18] sm:$0xff]
        %v1298 = vld [vmem:[#allocation4 + $0x20] sm:$0xff]
        %v1299 = vld [vmem:[#allocation4 + $0x28] sm:$0xff]
        %v1300 = vld [vmem:[#allocation4 + $0x30] sm:$0xff]
        %v1301 = vld [vmem:[#allocation4 + $0x38] sm:$0xff]
        %v1302 = vld [vmem:[#allocation4 + $0x40] sm:$0xff]
        %v1303 = vld [vmem:[#allocation4 + $0x48] sm:$0xff]
        %v1304 = vld [vmem:[#allocation4 + $0x50] sm:$0xff]
        %v1305 = vld [vmem:[#allocation4 + $0x58] sm:$0xff]
        %v1306 = vld [vmem:[#allocation4 + $0x60] sm:$0xff]
        %v1307 = vld [vmem:[#allocation4 + $0x68] sm:$0xff]
        %v1308 = vld [vmem:[#allocation4 + $0x70] sm:$0xff]
        %v1309 = vld [vmem:[#allocation4 + $0x78] sm:$0xff]
        %1311 = vset.pattern.permute.xlu0 0
        %1312 = vperm.xlu0 %1311, %v869
        %v1313 = vpop.permute.xlu0 %1312
        %1316 = vset.pattern.permute.xlu0 0
        %1317 = vperm.xlu0 %1316, %v871
        %v1318 = vpop.permute.xlu0 %1317
        %1321 = vset.pattern.permute.xlu0 0
        %1322 = vperm.xlu0 %1321, %v873
        %v1323 = vpop.permute.xlu0 %1322
        %1326 = vset.pattern.permute.xlu0 0
        %1327 = vperm.xlu0 %1326, %v875
        %v1328 = vpop.permute.xlu0 %1327
        %1331 = vset.pattern.permute.xlu0 0
        %1332 = vperm.xlu0 %1331, %v877
        %v1333 = vpop.permute.xlu0 %1332
        %1336 = vset.pattern.permute.xlu0 0
        %1337 = vperm.xlu0 %1336, %v879
        %v1338 = vpop.permute.xlu0 %1337
        %1341 = vset.pattern.permute.xlu0 0
        %1342 = vperm.xlu0 %1341, %v881
        %v1343 = vpop.permute.xlu0 %1342
        %1346 = vset.pattern.permute.xlu0 0
        %1347 = vperm.xlu0 %1346, %v883
        %v1348 = vpop.permute.xlu0 %1347
        %1351 = vset.pattern.permute.xlu0 0
        %1352 = vperm.xlu0 %1351, %v885
        %v1353 = vpop.permute.xlu0 %1352
        %1356 = vset.pattern.permute.xlu0 0
        %1357 = vperm.xlu0 %1356, %v887
        %v1358 = vpop.permute.xlu0 %1357
        %1361 = vset.pattern.permute.xlu0 0
        %1362 = vperm.xlu0 %1361, %v889
        %v1363 = vpop.permute.xlu0 %1362
        %1366 = vset.pattern.permute.xlu0 0
        %1367 = vperm.xlu0 %1366, %v891
        %v1368 = vpop.permute.xlu0 %1367
        %1371 = vset.pattern.permute.xlu0 0
        %1372 = vperm.xlu0 %1371, %v893
        %v1373 = vpop.permute.xlu0 %1372
        %1376 = vset.pattern.permute.xlu0 0
        %1377 = vperm.xlu0 %1376, %v895
        %v1378 = vpop.permute.xlu0 %1377
        %1381 = vset.pattern.permute.xlu0 0
        %1382 = vperm.xlu0 %1381, %v897
        %v1383 = vpop.permute.xlu0 %1382
        %1386 = vset.pattern.permute.xlu0 0
        %1387 = vperm.xlu0 %1386, %v899
        %v1388 = vpop.permute.xlu0 %1387
        %v1390 = vmul.f32 %v1313, %v1294
        %v1391 = vmul.f32 %v1318, %v1295
        %v1392 = vmul.f32 %v1323, %v1296
        %v1393 = vmul.f32 %v1328, %v1297
        %v1394 = vmul.f32 %v1333, %v1298
        %v1395 = vmul.f32 %v1338, %v1299
        %v1396 = vmul.f32 %v1343, %v1300
        %v1397 = vmul.f32 %v1348, %v1301
        %v1398 = vmul.f32 %v1353, %v1302
        %v1399 = vmul.f32 %v1358, %v1303
        %v1400 = vmul.f32 %v1363, %v1304
        %v1401 = vmul.f32 %v1368, %v1305
        %v1402 = vmul.f32 %v1373, %v1306
        %v1403 = vmul.f32 %v1378, %v1307
        %v1404 = vmul.f32 %v1383, %v1308
        %v1405 = vmul.f32 %v1388, %v1309
        %v1406 = vadd.f32 %v1390, %v1232
        %v1407 = vadd.f32 %v1391, %v1235
        %v1408 = vadd.f32 %v1392, %v1240
        %v1409 = vadd.f32 %v1393, %v1243
        %v1410 = vadd.f32 %v1394, %v1248
        %v1411 = vadd.f32 %v1395, %v1251
        %v1412 = vadd.f32 %v1396, %v1256
        %v1413 = vadd.f32 %v1397, %v1259
        %v1414 = vadd.f32 %v1398, %v1264
        %v1415 = vadd.f32 %v1399, %v1267
        %v1416 = vadd.f32 %v1400, %v1272
        %v1417 = vadd.f32 %v1401, %v1275
        %v1418 = vadd.f32 %v1402, %v1280
        %v1419 = vadd.f32 %v1403, %v1283
        %v1420 = vadd.f32 %v1404, %v1288
        %v1421 = vadd.f32 %v1405, %v1291
        %vm1422 = vcmask 261120
        %1423 = vst.msk [vmem:[#allocation4] sm:$0xff] %vm1422, %v1406
        %1424 = vst.msk [vmem:[#allocation4 + $0x8] sm:$0xff] %vm1422, %v1407
        %1425 = vst.msk [vmem:[#allocation4 + $0x10] sm:$0xff] %vm1422, %v1408
        %1426 = vst.msk [vmem:[#allocation4 + $0x18] sm:$0xff] %vm1422, %v1409
        %1427 = vst.msk [vmem:[#allocation4 + $0x20] sm:$0xff] %vm1422, %v1410
        %1428 = vst.msk [vmem:[#allocation4 + $0x28] sm:$0xff] %vm1422, %v1411
        %1429 = vst.msk [vmem:[#allocation4 + $0x30] sm:$0xff] %vm1422, %v1412
        %1430 = vst.msk [vmem:[#allocation4 + $0x38] sm:$0xff] %vm1422, %v1413
        %1431 = vst.msk [vmem:[#allocation4 + $0x40] sm:$0xff] %vm1422, %v1414
        %1432 = vst.msk [vmem:[#allocation4 + $0x48] sm:$0xff] %vm1422, %v1415
        %1433 = vst.msk [vmem:[#allocation4 + $0x50] sm:$0xff] %vm1422, %v1416
        %1434 = vst.msk [vmem:[#allocation4 + $0x58] sm:$0xff] %vm1422, %v1417
        %1435 = vst.msk [vmem:[#allocation4 + $0x60] sm:$0xff] %vm1422, %v1418
        %1436 = vst.msk [vmem:[#allocation4 + $0x68] sm:$0xff] %vm1422, %v1419
        %1437 = vst.msk [vmem:[#allocation4 + $0x70] sm:$0xff] %vm1422, %v1420
        %1438 = vst.msk [vmem:[#allocation4 + $0x78] sm:$0xff] %vm1422, %v1421
        %1439 = vst.msk [vmem:[#allocation2] sm:$0xff] %vm1124, %v836
        %1440 = vst.msk [vmem:[#allocation2 + $0x8] sm:$0xff] %vm1124, %v837
        %1441 = vst.msk [vmem:[#allocation2 + $0x10] sm:$0xff] %vm1124, %v838
        %1442 = vst.msk [vmem:[#allocation2 + $0x18] sm:$0xff] %vm1124, %v839
        %1443 = vst.msk [vmem:[#allocation2 + $0x20] sm:$0xff] %vm1124, %v840
        %1444 = vst.msk [vmem:[#allocation2 + $0x28] sm:$0xff] %vm1124, %v841
        %1445 = vst.msk [vmem:[#allocation2 + $0x30] sm:$0xff] %vm1124, %v842
        %1446 = vst.msk [vmem:[#allocation2 + $0x38] sm:$0xff] %vm1124, %v843
        %1447 = vst.msk [vmem:[#allocation2 + $0x40] sm:$0xff] %vm1124, %v844
        %1448 = vst.msk [vmem:[#allocation2 + $0x48] sm:$0xff] %vm1124, %v845
        %1449 = vst.msk [vmem:[#allocation2 + $0x50] sm:$0xff] %vm1124, %v846
        %1450 = vst.msk [vmem:[#allocation2 + $0x58] sm:$0xff] %vm1124, %v847
        %1451 = vst.msk [vmem:[#allocation2 + $0x60] sm:$0xff] %vm1124, %v848
        %1452 = vst.msk [vmem:[#allocation2 + $0x68] sm:$0xff] %vm1124, %v849
        %1453 = vst.msk [vmem:[#allocation2 + $0x70] sm:$0xff] %vm1124, %v850
        %1454 = vst.msk [vmem:[#allocation2 + $0x78] sm:$0xff] %vm1124, %v851
        %v1455 = vld [vmem:[%s430 + $0x1] sm:$0x1]
        %v1456 = vld [vmem:[%s435] sm:$0xff]
        %v1457 = vld [vmem:[%s435 + $0x8] sm:$0xff]
        %v1458 = vld [vmem:[%s435 + $0x10] sm:$0xff]
        %v1459 = vld [vmem:[%s435 + $0x18] sm:$0xff]
        %v1460 = vld [vmem:[%s435 + $0x20] sm:$0xff]
        %v1461 = vld [vmem:[%s435 + $0x28] sm:$0xff]
        %v1462 = vld [vmem:[%s435 + $0x30] sm:$0xff]
        %v1463 = vld [vmem:[%s435 + $0x38] sm:$0xff]
        %v1464 = vld [vmem:[%s435 + $0x40] sm:$0xff]
        %v1465 = vld [vmem:[%s435 + $0x48] sm:$0xff]
        %v1466 = vld [vmem:[%s435 + $0x50] sm:$0xff]
        %v1467 = vld [vmem:[%s435 + $0x58] sm:$0xff]
        %v1468 = vld [vmem:[%s435 + $0x60] sm:$0xff]
        %v1469 = vld [vmem:[%s435 + $0x68] sm:$0xff]
        %v1470 = vld [vmem:[%s435 + $0x70] sm:$0xff]
        %v1471 = vld [vmem:[%s435 + $0x78] sm:$0xff]
        %v1472 = vlaneseq
        %v1473 = vshrl.u32 %v1472, 7
        %v1474 = vsub.s32 0, %v1473
        %v1475 = vrot.slane %v1455, %v1474
        %1477 = vset.pattern.permute.xlu0 1
        %1478 = vperm.xlu0 %1477, %v1456
        %v1479 = vpop.permute.xlu0 %1478
        %1482 = vset.pattern.permute.xlu0 1
        %1483 = vperm.xlu0 %1482, %v1457
        %v1484 = vpop.permute.xlu0 %1483
        %1487 = vset.pattern.permute.xlu0 1
        %1488 = vperm.xlu0 %1487, %v1458
        %v1489 = vpop.permute.xlu0 %1488
        %1492 = vset.pattern.permute.xlu0 1
        %1493 = vperm.xlu0 %1492, %v1459
        %v1494 = vpop.permute.xlu0 %1493
        %1497 = vset.pattern.permute.xlu0 1
        %1498 = vperm.xlu0 %1497, %v1460
        %v1499 = vpop.permute.xlu0 %1498
        %1502 = vset.pattern.permute.xlu0 1
        %1503 = vperm.xlu0 %1502, %v1461
        %v1504 = vpop.permute.xlu0 %1503
        %1507 = vset.pattern.permute.xlu0 1
        %1508 = vperm.xlu0 %1507, %v1462
        %v1509 = vpop.permute.xlu0 %1508
        %1512 = vset.pattern.permute.xlu0 1
        %1513 = vperm.xlu0 %1512, %v1463
        %v1514 = vpop.permute.xlu0 %1513
        %1517 = vset.pattern.permute.xlu0 1
        %1518 = vperm.xlu0 %1517, %v1464
        %v1519 = vpop.permute.xlu0 %1518
        %1522 = vset.pattern.permute.xlu0 1
        %1523 = vperm.xlu0 %1522, %v1465
        %v1524 = vpop.permute.xlu0 %1523
        %1527 = vset.pattern.permute.xlu0 1
        %1528 = vperm.xlu0 %1527, %v1466
        %v1529 = vpop.permute.xlu0 %1528
        %1532 = vset.pattern.permute.xlu0 1
        %1533 = vperm.xlu0 %1532, %v1467
        %v1534 = vpop.permute.xlu0 %1533
        %1537 = vset.pattern.permute.xlu0 1
        %1538 = vperm.xlu0 %1537, %v1468
        %v1539 = vpop.permute.xlu0 %1538
        %1542 = vset.pattern.permute.xlu0 1
        %1543 = vperm.xlu0 %1542, %v1469
        %v1544 = vpop.permute.xlu0 %1543
        %1547 = vset.pattern.permute.xlu0 1
        %1548 = vperm.xlu0 %1547, %v1470
        %v1549 = vpop.permute.xlu0 %1548
        %1552 = vset.pattern.permute.xlu0 1
        %1553 = vperm.xlu0 %1552, %v1471
        %v1554 = vpop.permute.xlu0 %1553
        %v1556 = vadd.f32 %v1475, %v1479
        %v1557 = vadd.f32 %v1475, %v1484
        %v1558 = vadd.f32 %v1475, %v1489
        %v1559 = vadd.f32 %v1475, %v1494
        %v1560 = vadd.f32 %v1475, %v1499
        %v1561 = vadd.f32 %v1475, %v1504
        %v1562 = vadd.f32 %v1475, %v1509
        %v1563 = vadd.f32 %v1475, %v1514
        %v1564 = vadd.f32 %v1475, %v1519
        %v1565 = vadd.f32 %v1475, %v1524
        %v1566 = vadd.f32 %v1475, %v1529
        %v1567 = vadd.f32 %v1475, %v1534
        %v1568 = vadd.f32 %v1475, %v1539
        %v1569 = vadd.f32 %v1475, %v1544
        %v1570 = vadd.f32 %v1475, %v1549
        %v1571 = vadd.f32 %v1475, %v1554
        %vm1572 = vcmp.gt.f32.partialorder %v1556, 0.0
        %vm1573 = vcmp.gt.f32.partialorder %v1557, 0.0
        %vm1574 = vcmp.gt.f32.partialorder %v1558, 0.0
        %vm1575 = vcmp.gt.f32.partialorder %v1559, 0.0
        %vm1576 = vcmp.gt.f32.partialorder %v1560, 0.0
        %vm1577 = vcmp.gt.f32.partialorder %v1561, 0.0
        %vm1578 = vcmp.gt.f32.partialorder %v1562, 0.0
        %vm1579 = vcmp.gt.f32.partialorder %v1563, 0.0
        %vm1580 = vcmp.gt.f32.partialorder %v1564, 0.0
        %vm1581 = vcmp.gt.f32.partialorder %v1565, 0.0
        %vm1582 = vcmp.gt.f32.partialorder %v1566, 0.0
        %vm1583 = vcmp.gt.f32.partialorder %v1567, 0.0
        %vm1584 = vcmp.gt.f32.partialorder %v1568, 0.0
        %vm1585 = vcmp.gt.f32.partialorder %v1569, 0.0
        %vm1586 = vcmp.gt.f32.partialorder %v1570, 0.0
        %vm1587 = vcmp.gt.f32.partialorder %v1571, 0.0
        %v1588 = vmul.f32 %v1556, 0.2
        %v1589 = vmul.f32 %v1557, 0.2
        %v1590 = vmul.f32 %v1558, 0.2
        %v1591 = vmul.f32 %v1559, 0.2
        %v1592 = vmul.f32 %v1560, 0.2
        %v1593 = vmul.f32 %v1561, 0.2
        %v1594 = vmul.f32 %v1562, 0.2
        %v1595 = vmul.f32 %v1563, 0.2
        %v1596 = vmul.f32 %v1564, 0.2
        %v1597 = vmul.f32 %v1565, 0.2
        %v1598 = vmul.f32 %v1566, 0.2
        %v1599 = vmul.f32 %v1567, 0.2
        %v1600 = vmul.f32 %v1568, 0.2
        %v1601 = vmul.f32 %v1569, 0.2
        %v1602 = vmul.f32 %v1570, 0.2
        %v1603 = vmul.f32 %v1571, 0.2
        %v1604 = vsel %vm1572, %v1556, %v1588
        %v1605 = vsel %vm1573, %v1557, %v1589
        %v1606 = vsel %vm1574, %v1558, %v1590
        %v1607 = vsel %vm1575, %v1559, %v1591
        %v1608 = vsel %vm1576, %v1560, %v1592
        %v1609 = vsel %vm1577, %v1561, %v1593
        %v1610 = vsel %vm1578, %v1562, %v1594
        %v1611 = vsel %vm1579, %v1563, %v1595
        %v1612 = vsel %vm1580, %v1564, %v1596
        %v1613 = vsel %vm1581, %v1565, %v1597
        %v1614 = vsel %vm1582, %v1566, %v1598
        %v1615 = vsel %vm1583, %v1567, %v1599
        %v1616 = vsel %vm1584, %v1568, %v1600
        %v1617 = vsel %vm1585, %v1569, %v1601
        %v1618 = vsel %vm1586, %v1570, %v1602
        %v1619 = vsel %vm1587, %v1571, %v1603
        %v1620 = vsel %vm756, %v1604, -1e+30
        %v1621 = vsel %vm757, %v1605, -1e+30
        %v1622 = vsel %vm758, %v1606, -1e+30
        %v1623 = vsel %vm759, %v1607, -1e+30
        %v1624 = vsel %vm760, %v1608, -1e+30
        %v1625 = vsel %vm761, %v1609, -1e+30
        %v1626 = vsel %vm762, %v1610, -1e+30
        %v1627 = vsel %vm763, %v1611, -1e+30
        %v1628 = vsel %vm764, %v1612, -1e+30
        %v1629 = vsel %vm765, %v1613, -1e+30
        %v1630 = vsel %vm766, %v1614, -1e+30
        %v1631 = vsel %vm767, %v1615, -1e+30
        %v1632 = vsel %vm768, %v1616, -1e+30
        %v1633 = vsel %vm769, %v1617, -1e+30
        %v1634 = vsel %vm770, %v1618, -1e+30
        %v1635 = vsel %vm771, %v1619, -1e+30
        %v1636 = vld [vmem:[#allocation2] sm:$0xff]
        %v1637 = vld [vmem:[#allocation2 + $0x8] sm:$0xff]
        %v1638 = vld [vmem:[#allocation2 + $0x10] sm:$0xff]
        %v1639 = vld [vmem:[#allocation2 + $0x18] sm:$0xff]
        %v1640 = vld [vmem:[#allocation2 + $0x20] sm:$0xff]
        %v1641 = vld [vmem:[#allocation2 + $0x28] sm:$0xff]
        %v1642 = vld [vmem:[#allocation2 + $0x30] sm:$0xff]
        %v1643 = vld [vmem:[#allocation2 + $0x38] sm:$0xff]
        %v1644 = vld [vmem:[#allocation2 + $0x40] sm:$0xff]
        %v1645 = vld [vmem:[#allocation2 + $0x48] sm:$0xff]
        %v1646 = vld [vmem:[#allocation2 + $0x50] sm:$0xff]
        %v1647 = vld [vmem:[#allocation2 + $0x58] sm:$0xff]
        %v1648 = vld [vmem:[#allocation2 + $0x60] sm:$0xff]
        %v1649 = vld [vmem:[#allocation2 + $0x68] sm:$0xff]
        %v1650 = vld [vmem:[#allocation2 + $0x70] sm:$0xff]
        %v1651 = vld [vmem:[#allocation2 + $0x78] sm:$0xff]
        %1652 = vmax.xlane.f32.xlu0 %v1620
        %v1653 = vpop.xlane.xlu0 %1652
        %1654 = vmax.xlane.f32.xlu0 %v1621
        %v1655 = vpop.xlane.xlu0 %1654
        %1656 = vmax.xlane.f32.xlu0 %v1622
        %v1657 = vpop.xlane.xlu0 %1656
        %1658 = vmax.xlane.f32.xlu0 %v1623
        %v1659 = vpop.xlane.xlu0 %1658
        %1660 = vmax.xlane.f32.xlu0 %v1624
        %v1661 = vpop.xlane.xlu0 %1660
        %1662 = vmax.xlane.f32.xlu0 %v1625
        %v1663 = vpop.xlane.xlu0 %1662
        %1664 = vmax.xlane.f32.xlu0 %v1626
        %v1665 = vpop.xlane.xlu0 %1664
        %1666 = vmax.xlane.f32.xlu0 %v1627
        %v1667 = vpop.xlane.xlu0 %1666
        %1668 = vmax.xlane.f32.xlu0 %v1628
        %v1669 = vpop.xlane.xlu0 %1668
        %1670 = vmax.xlane.f32.xlu0 %v1629
        %v1671 = vpop.xlane.xlu0 %1670
        %1672 = vmax.xlane.f32.xlu0 %v1630
        %v1673 = vpop.xlane.xlu0 %1672
        %1674 = vmax.xlane.f32.xlu0 %v1631
        %v1675 = vpop.xlane.xlu0 %1674
        %1676 = vmax.xlane.f32.xlu0 %v1632
        %v1677 = vpop.xlane.xlu0 %1676
        %1678 = vmax.xlane.f32.xlu0 %v1633
        %v1679 = vpop.xlane.xlu0 %1678
        %1680 = vmax.xlane.f32.xlu0 %v1634
        %v1681 = vpop.xlane.xlu0 %1680
        %1682 = vmax.xlane.f32.xlu0 %v1635
        %v1683 = vpop.xlane.xlu0 %1682
        %v1684 = vmax.f32 %v1636, %v1653
        %v1685 = vmax.f32 %v1637, %v1655
        %v1686 = vmax.f32 %v1638, %v1657
        %v1687 = vmax.f32 %v1639, %v1659
        %v1688 = vmax.f32 %v1640, %v1661
        %v1689 = vmax.f32 %v1641, %v1663
        %v1690 = vmax.f32 %v1642, %v1665
        %v1691 = vmax.f32 %v1643, %v1667
        %v1692 = vmax.f32 %v1644, %v1669
        %v1693 = vmax.f32 %v1645, %v1671
        %v1694 = vmax.f32 %v1646, %v1673
        %v1695 = vmax.f32 %v1647, %v1675
        %v1696 = vmax.f32 %v1648, %v1677
        %v1697 = vmax.f32 %v1649, %v1679
        %v1698 = vmax.f32 %v1650, %v1681
        %v1699 = vmax.f32 %v1651, %v1683
        %v1700 = vsub.f32 %v1636, %v1684
        %v1701 = vsub.f32 %v1637, %v1685
        %v1702 = vsub.f32 %v1638, %v1686
        %v1703 = vsub.f32 %v1639, %v1687
        %v1704 = vsub.f32 %v1640, %v1688
        %v1705 = vsub.f32 %v1641, %v1689
        %v1706 = vsub.f32 %v1642, %v1690
        %v1707 = vsub.f32 %v1643, %v1691
        %v1708 = vsub.f32 %v1644, %v1692
        %v1709 = vsub.f32 %v1645, %v1693
        %v1710 = vsub.f32 %v1646, %v1694
        %v1711 = vsub.f32 %v1647, %v1695
        %v1712 = vsub.f32 %v1648, %v1696
        %v1713 = vsub.f32 %v1649, %v1697
        %v1714 = vsub.f32 %v1650, %v1698
        %v1715 = vsub.f32 %v1651, %v1699
        %v1716 = vmul.f32 %v1700, 1.442695
        %v1717 = vpow.pop %v1716
        %v1718 = vmul.f32 %v1701, 1.442695
        %v1719 = vpow.pop %v1718
        %v1720 = vmul.f32 %v1702, 1.442695
        %v1721 = vpow.pop %v1720
        %v1722 = vmul.f32 %v1703, 1.442695
        %v1723 = vpow.pop %v1722
        %v1724 = vmul.f32 %v1704, 1.442695
        %v1725 = vpow.pop %v1724
        %v1726 = vmul.f32 %v1705, 1.442695
        %v1727 = vpow.pop %v1726
        %v1728 = vmul.f32 %v1706, 1.442695
        %v1729 = vpow.pop %v1728
        %v1730 = vmul.f32 %v1707, 1.442695
        %v1731 = vpow.pop %v1730
        %v1732 = vmul.f32 %v1708, 1.442695
        %v1733 = vpow.pop %v1732
        %v1734 = vmul.f32 %v1709, 1.442695
        %v1735 = vpow.pop %v1734
        %v1736 = vmul.f32 %v1710, 1.442695
        %v1737 = vpow.pop %v1736
        %v1738 = vmul.f32 %v1711, 1.442695
        %v1739 = vpow.pop %v1738
        %v1740 = vmul.f32 %v1712, 1.442695
        %v1741 = vpow.pop %v1740
        %v1742 = vmul.f32 %v1713, 1.442695
        %v1743 = vpow.pop %v1742
        %v1744 = vmul.f32 %v1714, 1.442695
        %v1745 = vpow.pop %v1744
        %v1746 = vmul.f32 %v1715, 1.442695
        %v1747 = vpow.pop %v1746
        %1749 = vset.pattern.permute.xlu0 1
        %1750 = vperm.xlu0 %1749, %v1684
        %v1751 = vpop.permute.xlu0 %1750
        %1754 = vset.pattern.permute.xlu0 1
        %1755 = vperm.xlu0 %1754, %v1685
        %v1756 = vpop.permute.xlu0 %1755
        %1759 = vset.pattern.permute.xlu0 1
        %1760 = vperm.xlu0 %1759, %v1686
        %v1761 = vpop.permute.xlu0 %1760
        %1764 = vset.pattern.permute.xlu0 1
        %1765 = vperm.xlu0 %1764, %v1687
        %v1766 = vpop.permute.xlu0 %1765
        %1769 = vset.pattern.permute.xlu0 1
        %1770 = vperm.xlu0 %1769, %v1688
        %v1771 = vpop.permute.xlu0 %1770
        %1774 = vset.pattern.permute.xlu0 1
        %1775 = vperm.xlu0 %1774, %v1689
        %v1776 = vpop.permute.xlu0 %1775
        %1779 = vset.pattern.permute.xlu0 1
        %1780 = vperm.xlu0 %1779, %v1690
        %v1781 = vpop.permute.xlu0 %1780
        %1784 = vset.pattern.permute.xlu0 1
        %1785 = vperm.xlu0 %1784, %v1691
        %v1786 = vpop.permute.xlu0 %1785
        %1789 = vset.pattern.permute.xlu0 1
        %1790 = vperm.xlu0 %1789, %v1692
        %v1791 = vpop.permute.xlu0 %1790
        %1794 = vset.pattern.permute.xlu0 1
        %1795 = vperm.xlu0 %1794, %v1693
        %v1796 = vpop.permute.xlu0 %1795
        %1799 = vset.pattern.permute.xlu0 1
        %1800 = vperm.xlu0 %1799, %v1694
        %v1801 = vpop.permute.xlu0 %1800
        %1804 = vset.pattern.permute.xlu0 1
        %1805 = vperm.xlu0 %1804, %v1695
        %v1806 = vpop.permute.xlu0 %1805
        %1809 = vset.pattern.permute.xlu0 1
        %1810 = vperm.xlu0 %1809, %v1696
        %v1811 = vpop.permute.xlu0 %1810
        %1814 = vset.pattern.permute.xlu0 1
        %1815 = vperm.xlu0 %1814, %v1697
        %v1816 = vpop.permute.xlu0 %1815
        %1819 = vset.pattern.permute.xlu0 1
        %1820 = vperm.xlu0 %1819, %v1698
        %v1821 = vpop.permute.xlu0 %1820
        %1824 = vset.pattern.permute.xlu0 1
        %1825 = vperm.xlu0 %1824, %v1699
        %v1826 = vpop.permute.xlu0 %1825
        %v1828 = vsub.f32 %v1620, %v1751
        %v1829 = vsub.f32 %v1621, %v1756
        %v1830 = vsub.f32 %v1622, %v1761
        %v1831 = vsub.f32 %v1623, %v1766
        %v1832 = vsub.f32 %v1624, %v1771
        %v1833 = vsub.f32 %v1625, %v1776
        %v1834 = vsub.f32 %v1626, %v1781
        %v1835 = vsub.f32 %v1627, %v1786
        %v1836 = vsub.f32 %v1628, %v1791
        %v1837 = vsub.f32 %v1629, %v1796
        %v1838 = vsub.f32 %v1630, %v1801
        %v1839 = vsub.f32 %v1631, %v1806
        %v1840 = vsub.f32 %v1632, %v1811
        %v1841 = vsub.f32 %v1633, %v1816
        %v1842 = vsub.f32 %v1634, %v1821
        %v1843 = vsub.f32 %v1635, %v1826
        %v1844 = vmul.f32 %v1828, 1.442695
        %v1845 = vpow.pop %v1844
        %v1846 = vmul.f32 %v1829, 1.442695
        %v1847 = vpow.pop %v1846
        %v1848 = vmul.f32 %v1830, 1.442695
        %v1849 = vpow.pop %v1848
        %v1850 = vmul.f32 %v1831, 1.442695
        %v1851 = vpow.pop %v1850
        %v1852 = vmul.f32 %v1832, 1.442695
        %v1853 = vpow.pop %v1852
        %v1854 = vmul.f32 %v1833, 1.442695
        %v1855 = vpow.pop %v1854
        %v1856 = vmul.f32 %v1834, 1.442695
        %v1857 = vpow.pop %v1856
        %v1858 = vmul.f32 %v1835, 1.442695
        %v1859 = vpow.pop %v1858
        %v1860 = vmul.f32 %v1836, 1.442695
        %v1861 = vpow.pop %v1860
        %v1862 = vmul.f32 %v1837, 1.442695
        %v1863 = vpow.pop %v1862
        %v1864 = vmul.f32 %v1838, 1.442695
        %v1865 = vpow.pop %v1864
        %v1866 = vmul.f32 %v1839, 1.442695
        %v1867 = vpow.pop %v1866
        %v1868 = vmul.f32 %v1840, 1.442695
        %v1869 = vpow.pop %v1868
        %v1870 = vmul.f32 %v1841, 1.442695
        %v1871 = vpow.pop %v1870
        %v1872 = vmul.f32 %v1842, 1.442695
        %v1873 = vpow.pop %v1872
        %v1874 = vmul.f32 %v1843, 1.442695
        %v1875 = vpow.pop %v1874
        %v1876 = vsel %vm756, %v1845, 0.0
        %v1877 = vsel %vm757, %v1847, 0.0
        %v1878 = vsel %vm758, %v1849, 0.0
        %v1879 = vsel %vm759, %v1851, 0.0
        %v1880 = vsel %vm760, %v1853, 0.0
        %v1881 = vsel %vm761, %v1855, 0.0
        %v1882 = vsel %vm762, %v1857, 0.0
        %v1883 = vsel %vm763, %v1859, 0.0
        %v1884 = vsel %vm764, %v1861, 0.0
        %v1885 = vsel %vm765, %v1863, 0.0
        %v1886 = vsel %vm766, %v1865, 0.0
        %v1887 = vsel %vm767, %v1867, 0.0
        %v1888 = vsel %vm768, %v1869, 0.0
        %v1889 = vsel %vm769, %v1871, 0.0
        %v1890 = vsel %vm770, %v1873, 0.0
        %v1891 = vsel %vm771, %v1875, 0.0
        %v1892 = vld [vmem:[#allocation3] sm:$0xff]
        %v1893 = vld [vmem:[#allocation3 + $0x8] sm:$0xff]
        %v1894 = vld [vmem:[#allocation3 + $0x10] sm:$0xff]
        %v1895 = vld [vmem:[#allocation3 + $0x18] sm:$0xff]
        %v1896 = vld [vmem:[#allocation3 + $0x20] sm:$0xff]
        %v1897 = vld [vmem:[#allocation3 + $0x28] sm:$0xff]
        %v1898 = vld [vmem:[#allocation3 + $0x30] sm:$0xff]
        %v1899 = vld [vmem:[#allocation3 + $0x38] sm:$0xff]
        %v1900 = vld [vmem:[#allocation3 + $0x40] sm:$0xff]
        %v1901 = vld [vmem:[#allocation3 + $0x48] sm:$0xff]
        %v1902 = vld [vmem:[#allocation3 + $0x50] sm:$0xff]
        %v1903 = vld [vmem:[#allocation3 + $0x58] sm:$0xff]
        %v1904 = vld [vmem:[#allocation3 + $0x60] sm:$0xff]
        %v1905 = vld [vmem:[#allocation3 + $0x68] sm:$0xff]
        %v1906 = vld [vmem:[#allocation3 + $0x70] sm:$0xff]
        %v1907 = vld [vmem:[#allocation3 + $0x78] sm:$0xff]
        %v1908 = vmul.f32 %v1717, %v1892
        %v1909 = vmul.f32 %v1719, %v1893
        %v1910 = vmul.f32 %v1721, %v1894
        %v1911 = vmul.f32 %v1723, %v1895
        %v1912 = vmul.f32 %v1725, %v1896
        %v1913 = vmul.f32 %v1727, %v1897
        %v1914 = vmul.f32 %v1729, %v1898
        %v1915 = vmul.f32 %v1731, %v1899
        %v1916 = vmul.f32 %v1733, %v1900
        %v1917 = vmul.f32 %v1735, %v1901
        %v1918 = vmul.f32 %v1737, %v1902
        %v1919 = vmul.f32 %v1739, %v1903
        %v1920 = vmul.f32 %v1741, %v1904
        %v1921 = vmul.f32 %v1743, %v1905
        %v1922 = vmul.f32 %v1745, %v1906
        %v1923 = vmul.f32 %v1747, %v1907
        %1924 = vadd.xlane.f32.xlu0 %v1876
        %v1925 = vpop.xlane.xlu0 %1924
        %1926 = vadd.xlane.f32.xlu0 %v1877
        %v1927 = vpop.xlane.xlu0 %1926
        %1928 = vadd.xlane.f32.xlu0 %v1878
        %v1929 = vpop.xlane.xlu0 %1928
        %1930 = vadd.xlane.f32.xlu0 %v1879
        %v1931 = vpop.xlane.xlu0 %1930
        %1932 = vadd.xlane.f32.xlu0 %v1880
        %v1933 = vpop.xlane.xlu0 %1932
        %1934 = vadd.xlane.f32.xlu0 %v1881
        %v1935 = vpop.xlane.xlu0 %1934
        %1936 = vadd.xlane.f32.xlu0 %v1882
        %v1937 = vpop.xlane.xlu0 %1936
        %1938 = vadd.xlane.f32.xlu0 %v1883
        %v1939 = vpop.xlane.xlu0 %1938
        %1940 = vadd.xlane.f32.xlu0 %v1884
        %v1941 = vpop.xlane.xlu0 %1940
        %1942 = vadd.xlane.f32.xlu0 %v1885
        %v1943 = vpop.xlane.xlu0 %1942
        %1944 = vadd.xlane.f32.xlu0 %v1886
        %v1945 = vpop.xlane.xlu0 %1944
        %1946 = vadd.xlane.f32.xlu0 %v1887
        %v1947 = vpop.xlane.xlu0 %1946
        %1948 = vadd.xlane.f32.xlu0 %v1888
        %v1949 = vpop.xlane.xlu0 %1948
        %1950 = vadd.xlane.f32.xlu0 %v1889
        %v1951 = vpop.xlane.xlu0 %1950
        %1952 = vadd.xlane.f32.xlu0 %v1890
        %v1953 = vpop.xlane.xlu0 %1952
        %1954 = vadd.xlane.f32.xlu0 %v1891
        %v1955 = vpop.xlane.xlu0 %1954
        %v1956 = vadd.f32 %v1908, %v1925
        %v1957 = vadd.f32 %v1909, %v1927
        %v1958 = vadd.f32 %v1910, %v1929
        %v1959 = vadd.f32 %v1911, %v1931
        %v1960 = vadd.f32 %v1912, %v1933
        %v1961 = vadd.f32 %v1913, %v1935
        %v1962 = vadd.f32 %v1914, %v1937
        %v1963 = vadd.f32 %v1915, %v1939
        %v1964 = vadd.f32 %v1916, %v1941
        %v1965 = vadd.f32 %v1917, %v1943
        %v1966 = vadd.f32 %v1918, %v1945
        %v1967 = vadd.f32 %v1919, %v1947
        %v1968 = vadd.f32 %v1920, %v1949
        %v1969 = vadd.f32 %v1921, %v1951
        %v1970 = vadd.f32 %v1922, %v1953
        %v1971 = vadd.f32 %v1923, %v1955
        %vm1972 = vcmask 15368
        %1973 = vst.msk [vmem:[#allocation3] sm:$0xff] %vm1972, %v1956
        %1974 = vst.msk [vmem:[#allocation3 + $0x8] sm:$0xff] %vm1972, %v1957
        %1975 = vst.msk [vmem:[#allocation3 + $0x10] sm:$0xff] %vm1972, %v1958
        %1976 = vst.msk [vmem:[#allocation3 + $0x18] sm:$0xff] %vm1972, %v1959
        %1977 = vst.msk [vmem:[#allocation3 + $0x20] sm:$0xff] %vm1972, %v1960
        %1978 = vst.msk [vmem:[#allocation3 + $0x28] sm:$0xff] %vm1972, %v1961
        %1979 = vst.msk [vmem:[#allocation3 + $0x30] sm:$0xff] %vm1972, %v1962
        %1980 = vst.msk [vmem:[#allocation3 + $0x38] sm:$0xff] %vm1972, %v1963
        %1981 = vst.msk [vmem:[#allocation3 + $0x40] sm:$0xff] %vm1972, %v1964
        %1982 = vst.msk [vmem:[#allocation3 + $0x48] sm:$0xff] %vm1972, %v1965
        %1983 = vst.msk [vmem:[#allocation3 + $0x50] sm:$0xff] %vm1972, %v1966
        %1984 = vst.msk [vmem:[#allocation3 + $0x58] sm:$0xff] %vm1972, %v1967
        %1985 = vst.msk [vmem:[#allocation3 + $0x60] sm:$0xff] %vm1972, %v1968
        %1986 = vst.msk [vmem:[#allocation3 + $0x68] sm:$0xff] %vm1972, %v1969
        %1987 = vst.msk [vmem:[#allocation3 + $0x70] sm:$0xff] %vm1972, %v1970
        %1988 = vst.msk [vmem:[#allocation3 + $0x78] sm:$0xff] %vm1972, %v1971
        %v1989 = vpack.c.bf16 %v1877, %v1876
        %v1990 = vpack.c.bf16 %v1879, %v1878
        %v1991 = vpack.c.bf16 %v1881, %v1880
        %v1992 = vpack.c.bf16 %v1883, %v1882
        %v1993 = vpack.c.bf16 %v1885, %v1884
        %v1994 = vpack.c.bf16 %v1887, %v1886
        %v1995 = vpack.c.bf16 %v1889, %v1888
        %v1996 = vpack.c.bf16 %v1891, %v1890
        %1997 = vrot.lane.b32.xlu0 %v1181, 96
        %v1998 = vpop.permute.xlu0 %1997
        %1999 = vrot.lane.b32.xlu0 %v1182, 96
        %v2000 = vpop.permute.xlu0 %1999
        %2001 = vrot.lane.b32.xlu0 %v1183, 96
        %v2002 = vpop.permute.xlu0 %2001
        %2003 = vrot.lane.b32.xlu0 %v1184, 96
        %v2004 = vpop.permute.xlu0 %2003
        %2005 = vrot.lane.b32.xlu0 %v1185, 96
        %v2006 = vpop.permute.xlu0 %2005
        %2007 = vrot.lane.b32.xlu0 %v1186, 96
        %v2008 = vpop.permute.xlu0 %2007
        %2009 = vrot.lane.b32.xlu0 %v1187, 96
        %v2010 = vpop.permute.xlu0 %2009
        %2011 = vrot.lane.b32.xlu0 %v1188, 96
        %v2012 = vpop.permute.xlu0 %2011
        %2021 = vmatprep.subr.bf16.mxu0 0
        %2022 = vmatpush1.bf16.msra.mxu0 %v1998
        %2023 = vmatprep.subr.bf16.mxu0 0
        %2024 = vmatpush1.bf16.msra.mxu0 %v2000
        %2025 = vmatprep.subr.bf16.mxu0 0
        %2026 = vmatpush1.bf16.msra.mxu0 %v2002
        %2027 = vmatprep.subr.bf16.mxu0 0
        %2028 = vmatpush1.bf16.msra.mxu0 %v2004
        %2029 = vmatprep.subr.bf16.mxu0 0
        %2030 = vmatpush1.bf16.msra.mxu0 %v2006
        %2031 = vmatprep.subr.bf16.mxu0 0
        %2032 = vmatpush1.bf16.msra.mxu0 %v2008
        %2033 = vmatprep.subr.bf16.mxu0 0
        %2034 = vmatpush1.bf16.msra.mxu0 %v2010
        %2035 = vmatprep.subr.bf16.mxu0 0
        %2036 = vmatpush1.bf16.msra.mxu0 %v2012
        %2037 = vmatprep.subr.bf16.mxu0 0
        %2038 = vmatpush1.bf16.msra.mxu0 0
        %2039 = vmatprep.subr.bf16.mxu0 0
        %2040 = vmatpush1.bf16.msra.mxu0 0
        %2041 = vmatprep.subr.bf16.mxu0 0
        %2042 = vmatpush1.bf16.msra.mxu0 0
        %2043 = vmatprep.subr.bf16.mxu0 0
        %2044 = vmatpush1.bf16.msra.mxu0 0
        %2045 = vmatprep.subr.bf16.mxu0 0
        %2046 = vmatpush1.bf16.msra.mxu0 0
        %2047 = vmatprep.subr.bf16.mxu0 0
        %2048 = vmatpush1.bf16.msra.mxu0 0
        %2049 = vmatprep.subr.bf16.mxu0 0
        %2050 = vmatpush1.bf16.msra.mxu0 0
        %2051 = vmatprep.subr.bf16.mxu0 0
        %2052 = vmatpush1.bf16.msra.mxu0 0
        %2053 = vmatprep.mubr.bf16.mxu0 0
        %2054 = vmatmul.mubr.bf16.gmra.mrb[0].mxu0 %v1989
        %v2055 = vpop.f32.mrb[0].mxu0
        %v2056 = vadd.f32 0.0, %v2055
        %v2057 = vpop.f32.mrb[0].mxu0
        %v2058 = vpop.f32.mrb[0].mxu0
        %v2059 = vadd.f32 0.0, %v2058
        %v2060 = vpop.f32.mrb[0].mxu0
        %2061 = vmatprep.mubr.bf16.mxu0 0
        %2062 = vmatmul.mubr.bf16.gmra.mrb[0].mxu0 %v1990
        %v2063 = vpop.f32.mrb[0].mxu0
        %v2064 = vadd.f32 0.0, %v2063
        %v2065 = vpop.f32.mrb[0].mxu0
        %v2066 = vpop.f32.mrb[0].mxu0
        %v2067 = vadd.f32 0.0, %v2066
        %v2068 = vpop.f32.mrb[0].mxu0
        %2069 = vmatprep.mubr.bf16.mxu0 0
        %2070 = vmatmul.mubr.bf16.gmra.mrb[0].mxu0 %v1991
        %v2071 = vpop.f32.mrb[0].mxu0
        %v2072 = vadd.f32 0.0, %v2071
        %v2073 = vpop.f32.mrb[0].mxu0
        %v2074 = vpop.f32.mrb[0].mxu0
        %v2075 = vadd.f32 0.0, %v2074
        %v2076 = vpop.f32.mrb[0].mxu0
        %2077 = vmatprep.mubr.bf16.mxu0 0
        %2078 = vmatmul.mubr.bf16.gmra.mrb[0].mxu0 %v1992
        %v2079 = vpop.f32.mrb[0].mxu0
        %v2080 = vadd.f32 0.0, %v2079
        %v2081 = vpop.f32.mrb[0].mxu0
        %v2082 = vpop.f32.mrb[0].mxu0
        %v2083 = vadd.f32 0.0, %v2082
        %v2084 = vpop.f32.mrb[0].mxu0
        %2085 = vmatprep.mubr.bf16.mxu0 0
        %2086 = vmatmul.mubr.bf16.gmra.mrb[0].mxu0 %v1993
        %v2087 = vpop.f32.mrb[0].mxu0
        %v2088 = vadd.f32 0.0, %v2087
        %v2089 = vpop.f32.mrb[0].mxu0
        %v2090 = vpop.f32.mrb[0].mxu0
        %v2091 = vadd.f32 0.0, %v2090
        %v2092 = vpop.f32.mrb[0].mxu0
        %2093 = vmatprep.mubr.bf16.mxu0 0
        %2094 = vmatmul.mubr.bf16.gmra.mrb[0].mxu0 %v1994
        %v2095 = vpop.f32.mrb[0].mxu0
        %v2096 = vadd.f32 0.0, %v2095
        %v2097 = vpop.f32.mrb[0].mxu0
        %v2098 = vpop.f32.mrb[0].mxu0
        %v2099 = vadd.f32 0.0, %v2098
        %v2100 = vpop.f32.mrb[0].mxu0
        %2101 = vmatprep.mubr.bf16.mxu0 0
        %2102 = vmatmul.mubr.bf16.gmra.mrb[0].mxu0 %v1995
        %v2103 = vpop.f32.mrb[0].mxu0
        %v2104 = vadd.f32 0.0, %v2103
        %v2105 = vpop.f32.mrb[0].mxu0
        %v2106 = vpop.f32.mrb[0].mxu0
        %v2107 = vadd.f32 0.0, %v2106
        %v2108 = vpop.f32.mrb[0].mxu0
        %2109 = vmatprep.mubr.bf16.mxu0 0
        %2110 = vmatmul.mubr.bf16.gmra.mrb[0].mxu0 %v1996
        %v2111 = vpop.f32.mrb[0].mxu0
        %v2112 = vadd.f32 0.0, %v2111
        %v2113 = vpop.f32.mrb[0].mxu0
        %v2114 = vpop.f32.mrb[0].mxu0
        %v2115 = vadd.f32 0.0, %v2114
        %v2116 = vpop.f32.mrb[0].mxu0
        %2117 = vdwg.mxu0
        %v2118 = vld [vmem:[#allocation4] sm:$0xff]
        %v2119 = vld [vmem:[#allocation4 + $0x8] sm:$0xff]
        %v2120 = vld [vmem:[#allocation4 + $0x10] sm:$0xff]
        %v2121 = vld [vmem:[#allocation4 + $0x18] sm:$0xff]
        %v2122 = vld [vmem:[#allocation4 + $0x20] sm:$0xff]
        %v2123 = vld [vmem:[#allocation4 + $0x28] sm:$0xff]
        %v2124 = vld [vmem:[#allocation4 + $0x30] sm:$0xff]
        %v2125 = vld [vmem:[#allocation4 + $0x38] sm:$0xff]
        %v2126 = vld [vmem:[#allocation4 + $0x40] sm:$0xff]
        %v2127 = vld [vmem:[#allocation4 + $0x48] sm:$0xff]
        %v2128 = vld [vmem:[#allocation4 + $0x50] sm:$0xff]
        %v2129 = vld [vmem:[#allocation4 + $0x58] sm:$0xff]
        %v2130 = vld [vmem:[#allocation4 + $0x60] sm:$0xff]
        %v2131 = vld [vmem:[#allocation4 + $0x68] sm:$0xff]
        %v2132 = vld [vmem:[#allocation4 + $0x70] sm:$0xff]
        %v2133 = vld [vmem:[#allocation4 + $0x78] sm:$0xff]
        %2135 = vset.pattern.permute.xlu0 1
        %2136 = vperm.xlu0 %2135, %v1717
        %v2137 = vpop.permute.xlu0 %2136
        %2140 = vset.pattern.permute.xlu0 1
        %2141 = vperm.xlu0 %2140, %v1719
        %v2142 = vpop.permute.xlu0 %2141
        %2145 = vset.pattern.permute.xlu0 1
        %2146 = vperm.xlu0 %2145, %v1721
        %v2147 = vpop.permute.xlu0 %2146
        %2150 = vset.pattern.permute.xlu0 1
        %2151 = vperm.xlu0 %2150, %v1723
        %v2152 = vpop.permute.xlu0 %2151
        %2155 = vset.pattern.permute.xlu0 1
        %2156 = vperm.xlu0 %2155, %v1725
        %v2157 = vpop.permute.xlu0 %2156
        %2160 = vset.pattern.permute.xlu0 1
        %2161 = vperm.xlu0 %2160, %v1727
        %v2162 = vpop.permute.xlu0 %2161
        %2165 = vset.pattern.permute.xlu0 1
        %2166 = vperm.xlu0 %2165, %v1729
        %v2167 = vpop.permute.xlu0 %2166
        %2170 = vset.pattern.permute.xlu0 1
        %2171 = vperm.xlu0 %2170, %v1731
        %v2172 = vpop.permute.xlu0 %2171
        %2175 = vset.pattern.permute.xlu0 1
        %2176 = vperm.xlu0 %2175, %v1733
        %v2177 = vpop.permute.xlu0 %2176
        %2180 = vset.pattern.permute.xlu0 1
        %2181 = vperm.xlu0 %2180, %v1735
        %v2182 = vpop.permute.xlu0 %2181
        %2185 = vset.pattern.permute.xlu0 1
        %2186 = vperm.xlu0 %2185, %v1737
        %v2187 = vpop.permute.xlu0 %2186
        %2190 = vset.pattern.permute.xlu0 1
        %2191 = vperm.xlu0 %2190, %v1739
        %v2192 = vpop.permute.xlu0 %2191
        %2195 = vset.pattern.permute.xlu0 1
        %2196 = vperm.xlu0 %2195, %v1741
        %v2197 = vpop.permute.xlu0 %2196
        %2200 = vset.pattern.permute.xlu0 1
        %2201 = vperm.xlu0 %2200, %v1743
        %v2202 = vpop.permute.xlu0 %2201
        %2205 = vset.pattern.permute.xlu0 1
        %2206 = vperm.xlu0 %2205, %v1745
        %v2207 = vpop.permute.xlu0 %2206
        %2210 = vset.pattern.permute.xlu0 1
        %2211 = vperm.xlu0 %2210, %v1747
        %v2212 = vpop.permute.xlu0 %2211
        %v2214 = vmul.f32 %v2137, %v2118
        %v2215 = vmul.f32 %v2142, %v2119
        %v2216 = vmul.f32 %v2147, %v2120
        %v2217 = vmul.f32 %v2152, %v2121
        %v2218 = vmul.f32 %v2157, %v2122
        %v2219 = vmul.f32 %v2162, %v2123
        %v2220 = vmul.f32 %v2167, %v2124
        %v2221 = vmul.f32 %v2172, %v2125
        %v2222 = vmul.f32 %v2177, %v2126
        %v2223 = vmul.f32 %v2182, %v2127
        %v2224 = vmul.f32 %v2187, %v2128
        %v2225 = vmul.f32 %v2192, %v2129
        %v2226 = vmul.f32 %v2197, %v2130
        %v2227 = vmul.f32 %v2202, %v2131
        %v2228 = vmul.f32 %v2207, %v2132
        %v2229 = vmul.f32 %v2212, %v2133
        %2246 = vrot.lane.b32.xlu0 %v2056, 32
        %v2247 = vpop.permute.xlu0 %2246
        %2248 = vrot.lane.b32.xlu0 %v2059, 32
        %v2249 = vpop.permute.xlu0 %2248
        %2250 = vrot.lane.b32.xlu0 %v2064, 32
        %v2251 = vpop.permute.xlu0 %2250
        %2252 = vrot.lane.b32.xlu0 %v2067, 32
        %v2253 = vpop.permute.xlu0 %2252
        %2254 = vrot.lane.b32.xlu0 %v2072, 32
        %v2255 = vpop.permute.xlu0 %2254
        %2256 = vrot.lane.b32.xlu0 %v2075, 32
        %v2257 = vpop.permute.xlu0 %2256
        %2258 = vrot.lane.b32.xlu0 %v2080, 32
        %v2259 = vpop.permute.xlu0 %2258
        %2260 = vrot.lane.b32.xlu0 %v2083, 32
        %v2261 = vpop.permute.xlu0 %2260
        %2262 = vrot.lane.b32.xlu0 %v2088, 32
        %v2263 = vpop.permute.xlu0 %2262
        %2264 = vrot.lane.b32.xlu0 %v2091, 32
        %v2265 = vpop.permute.xlu0 %2264
        %2266 = vrot.lane.b32.xlu0 %v2096, 32
        %v2267 = vpop.permute.xlu0 %2266
        %2268 = vrot.lane.b32.xlu0 %v2099, 32
        %v2269 = vpop.permute.xlu0 %2268
        %2270 = vrot.lane.b32.xlu0 %v2104, 32
        %v2271 = vpop.permute.xlu0 %2270
        %2272 = vrot.lane.b32.xlu0 %v2107, 32
        %v2273 = vpop.permute.xlu0 %2272
        %2274 = vrot.lane.b32.xlu0 %v2112, 32
        %v2275 = vpop.permute.xlu0 %2274
        %2276 = vrot.lane.b32.xlu0 %v2115, 32
        %v2277 = vpop.permute.xlu0 %2276
        %v2294 = vadd.f32 %v2214, %v2247
        %v2295 = vadd.f32 %v2215, %v2249
        %v2296 = vadd.f32 %v2216, %v2251
        %v2297 = vadd.f32 %v2217, %v2253
        %v2298 = vadd.f32 %v2218, %v2255
        %v2299 = vadd.f32 %v2219, %v2257
        %v2300 = vadd.f32 %v2220, %v2259
        %v2301 = vadd.f32 %v2221, %v2261
        %v2302 = vadd.f32 %v2222, %v2263
        %v2303 = vadd.f32 %v2223, %v2265
        %v2304 = vadd.f32 %v2224, %v2267
        %v2305 = vadd.f32 %v2225, %v2269
        %v2306 = vadd.f32 %v2226, %v2271
        %v2307 = vadd.f32 %v2227, %v2273
        %v2308 = vadd.f32 %v2228, %v2275
        %v2309 = vadd.f32 %v2229, %v2277
        %vm2310 = vcmask 523520
        %2311 = vst.msk [vmem:[#allocation4] sm:$0xff] %vm2310, %v2294
        %2312 = vst.msk [vmem:[#allocation4 + $0x8] sm:$0xff] %vm2310, %v2295
        %2313 = vst.msk [vmem:[#allocation4 + $0x10] sm:$0xff] %vm2310, %v2296
        %2314 = vst.msk [vmem:[#allocation4 + $0x18] sm:$0xff] %vm2310, %v2297
        %2315 = vst.msk [vmem:[#allocation4 + $0x20] sm:$0xff] %vm2310, %v2298
        %2316 = vst.msk [vmem:[#allocation4 + $0x28] sm:$0xff] %vm2310, %v2299
        %2317 = vst.msk [vmem:[#allocation4 + $0x30] sm:$0xff] %vm2310, %v2300
        %2318 = vst.msk [vmem:[#allocation4 + $0x38] sm:$0xff] %vm2310, %v2301
        %2319 = vst.msk [vmem:[#allocation4 + $0x40] sm:$0xff] %vm2310, %v2302
        %2320 = vst.msk [vmem:[#allocation4 + $0x48] sm:$0xff] %vm2310, %v2303
        %2321 = vst.msk [vmem:[#allocation4 + $0x50] sm:$0xff] %vm2310, %v2304
        %2322 = vst.msk [vmem:[#allocation4 + $0x58] sm:$0xff] %vm2310, %v2305
        %2323 = vst.msk [vmem:[#allocation4 + $0x60] sm:$0xff] %vm2310, %v2306
        %2324 = vst.msk [vmem:[#allocation4 + $0x68] sm:$0xff] %vm2310, %v2307
        %2325 = vst.msk [vmem:[#allocation4 + $0x70] sm:$0xff] %vm2310, %v2308
        %2326 = vst.msk [vmem:[#allocation4 + $0x78] sm:$0xff] %vm2310, %v2309
        %2327 = vst.msk [vmem:[#allocation2] sm:$0xff] %vm1972, %v1684
        %2328 = vst.msk [vmem:[#allocation2 + $0x8] sm:$0xff] %vm1972, %v1685
        %2329 = vst.msk [vmem:[#allocation2 + $0x10] sm:$0xff] %vm1972, %v1686
        %2330 = vst.msk [vmem:[#allocation2 + $0x18] sm:$0xff] %vm1972, %v1687
        %2331 = vst.msk [vmem:[#allocation2 + $0x20] sm:$0xff] %vm1972, %v1688
        %2332 = vst.msk [vmem:[#allocation2 + $0x28] sm:$0xff] %vm1972, %v1689
        %2333 = vst.msk [vmem:[#allocation2 + $0x30] sm:$0xff] %vm1972, %v1690
        %2334 = vst.msk [vmem:[#allocation2 + $0x38] sm:$0xff] %vm1972, %v1691
        %2335 = vst.msk [vmem:[#allocation2 + $0x40] sm:$0xff] %vm1972, %v1692
        %2336 = vst.msk [vmem:[#allocation2 + $0x48] sm:$0xff] %vm1972, %v1693
        %2337 = vst.msk [vmem:[#allocation2 + $0x50] sm:$0xff] %vm1972, %v1694
        %2338 = vst.msk [vmem:[#allocation2 + $0x58] sm:$0xff] %vm1972, %v1695
        %2339 = vst.msk [vmem:[#allocation2 + $0x60] sm:$0xff] %vm1972, %v1696
        %2340 = vst.msk [vmem:[#allocation2 + $0x68] sm:$0xff] %vm1972, %v1697
        %2341 = vst.msk [vmem:[#allocation2 + $0x70] sm:$0xff] %vm1972, %v1698
        %2342 = vst.msk [vmem:[#allocation2 + $0x78] sm:$0xff] %vm1972, %v1699
        %v2343 = vld [vmem:[%s430 + $0x2] sm:$0x1]
        %v2344 = vld [vmem:[%s435] sm:$0xff]
        %v2345 = vld [vmem:[%s435 + $0x8] sm:$0xff]
        %v2346 = vld [vmem:[%s435 + $0x10] sm:$0xff]
        %v2347 = vld [vmem:[%s435 + $0x18] sm:$0xff]
        %v2348 = vld [vmem:[%s435 + $0x20] sm:$0xff]
        %v2349 = vld [vmem:[%s435 + $0x28] sm:$0xff]
        %v2350 = vld [vmem:[%s435 + $0x30] sm:$0xff]
        %v2351 = vld [vmem:[%s435 + $0x38] sm:$0xff]
        %v2352 = vld [vmem:[%s435 + $0x40] sm:$0xff]
        %v2353 = vld [vmem:[%s435 + $0x48] sm:$0xff]
        %v2354 = vld [vmem:[%s435 + $0x50] sm:$0xff]
        %v2355 = vld [vmem:[%s435 + $0x58] sm:$0xff]
        %v2356 = vld [vmem:[%s435 + $0x60] sm:$0xff]
        %v2357 = vld [vmem:[%s435 + $0x68] sm:$0xff]
        %v2358 = vld [vmem:[%s435 + $0x70] sm:$0xff]
        %v2359 = vld [vmem:[%s435 + $0x78] sm:$0xff]
        %v2360 = vlaneseq
        %v2361 = vshrl.u32 %v2360, 7
        %v2362 = vsub.s32 0, %v2361
        %v2363 = vrot.slane %v2343, %v2362
        %2365 = vset.pattern.permute.xlu0 2
        %2366 = vperm.xlu0 %2365, %v2344
        %v2367 = vpop.permute.xlu0 %2366
        %2370 = vset.pattern.permute.xlu0 2
        %2371 = vperm.xlu0 %2370, %v2345
        %v2372 = vpop.permute.xlu0 %2371
        %2375 = vset.pattern.permute.xlu0 2
        %2376 = vperm.xlu0 %2375, %v2346
        %v2377 = vpop.permute.xlu0 %2376
        %2380 = vset.pattern.permute.xlu0 2
        %2381 = vperm.xlu0 %2380, %v2347
        %v2382 = vpop.permute.xlu0 %2381
        %2385 = vset.pattern.permute.xlu0 2
        %2386 = vperm.xlu0 %2385, %v2348
        %v2387 = vpop.permute.xlu0 %2386
        %2390 = vset.pattern.permute.xlu0 2
        %2391 = vperm.xlu0 %2390, %v2349
        %v2392 = vpop.permute.xlu0 %2391
        %2395 = vset.pattern.permute.xlu0 2
        %2396 = vperm.xlu0 %2395, %v2350
        %v2397 = vpop.permute.xlu0 %2396
        %2400 = vset.pattern.permute.xlu0 2
        %2401 = vperm.xlu0 %2400, %v2351
        %v2402 = vpop.permute.xlu0 %2401
        %2405 = vset.pattern.permute.xlu0 2
        %2406 = vperm.xlu0 %2405, %v2352
        %v2407 = vpop.permute.xlu0 %2406
        %2410 = vset.pattern.permute.xlu0 2
        %2411 = vperm.xlu0 %2410, %v2353
        %v2412 = vpop.permute.xlu0 %2411
        %2415 = vset.pattern.permute.xlu0 2
        %2416 = vperm.xlu0 %2415, %v2354
        %v2417 = vpop.permute.xlu0 %2416
        %2420 = vset.pattern.permute.xlu0 2
        %2421 = vperm.xlu0 %2420, %v2355
        %v2422 = vpop.permute.xlu0 %2421
        %2425 = vset.pattern.permute.xlu0 2
        %2426 = vperm.xlu0 %2425, %v2356
        %v2427 = vpop.permute.xlu0 %2426
        %2430 = vset.pattern.permute.xlu0 2
        %2431 = vperm.xlu0 %2430, %v2357
        %v2432 = vpop.permute.xlu0 %2431
        %2435 = vset.pattern.permute.xlu0 2
        %2436 = vperm.xlu0 %2435, %v2358
        %v2437 = vpop.permute.xlu0 %2436
        %2440 = vset.pattern.permute.xlu0 2
        %2441 = vperm.xlu0 %2440, %v2359
        %v2442 = vpop.permute.xlu0 %2441
        %v2444 = vadd.f32 %v2363, %v2367
        %v2445 = vadd.f32 %v2363, %v2372
        %v2446 = vadd.f32 %v2363, %v2377
        %v2447 = vadd.f32 %v2363, %v2382
        %v2448 = vadd.f32 %v2363, %v2387
        %v2449 = vadd.f32 %v2363, %v2392
        %v2450 = vadd.f32 %v2363, %v2397
        %v2451 = vadd.f32 %v2363, %v2402
        %v2452 = vadd.f32 %v2363, %v2407
        %v2453 = vadd.f32 %v2363, %v2412
        %v2454 = vadd.f32 %v2363, %v2417
        %v2455 = vadd.f32 %v2363, %v2422
        %v2456 = vadd.f32 %v2363, %v2427
        %v2457 = vadd.f32 %v2363, %v2432
        %v2458 = vadd.f32 %v2363, %v2437
        %v2459 = vadd.f32 %v2363, %v2442
        %vm2460 = vcmp.gt.f32.partialorder %v2444, 0.0
        %vm2461 = vcmp.gt.f32.partialorder %v2445, 0.0
        %vm2462 = vcmp.gt.f32.partialorder %v2446, 0.0
        %vm2463 = vcmp.gt.f32.partialorder %v2447, 0.0
        %vm2464 = vcmp.gt.f32.partialorder %v2448, 0.0
        %vm2465 = vcmp.gt.f32.partialorder %v2449, 0.0
        %vm2466 = vcmp.gt.f32.partialorder %v2450, 0.0
        %vm2467 = vcmp.gt.f32.partialorder %v2451, 0.0
        %vm2468 = vcmp.gt.f32.partialorder %v2452, 0.0
        %vm2469 = vcmp.gt.f32.partialorder %v2453, 0.0
        %vm2470 = vcmp.gt.f32.partialorder %v2454, 0.0
        %vm2471 = vcmp.gt.f32.partialorder %v2455, 0.0
        %vm2472 = vcmp.gt.f32.partialorder %v2456, 0.0
        %vm2473 = vcmp.gt.f32.partialorder %v2457, 0.0
        %vm2474 = vcmp.gt.f32.partialorder %v2458, 0.0
        %vm2475 = vcmp.gt.f32.partialorder %v2459, 0.0
        %v2476 = vmul.f32 %v2444, 0.2
        %v2477 = vmul.f32 %v2445, 0.2
        %v2478 = vmul.f32 %v2446, 0.2
        %v2479 = vmul.f32 %v2447, 0.2
        %v2480 = vmul.f32 %v2448, 0.2
        %v2481 = vmul.f32 %v2449, 0.2
        %v2482 = vmul.f32 %v2450, 0.2
        %v2483 = vmul.f32 %v2451, 0.2
        %v2484 = vmul.f32 %v2452, 0.2
        %v2485 = vmul.f32 %v2453, 0.2
        %v2486 = vmul.f32 %v2454, 0.2
        %v2487 = vmul.f32 %v2455, 0.2
        %v2488 = vmul.f32 %v2456, 0.2
        %v2489 = vmul.f32 %v2457, 0.2
        %v2490 = vmul.f32 %v2458, 0.2
        %v2491 = vmul.f32 %v2459, 0.2
        %v2492 = vsel %vm2460, %v2444, %v2476
        %v2493 = vsel %vm2461, %v2445, %v2477
        %v2494 = vsel %vm2462, %v2446, %v2478
        %v2495 = vsel %vm2463, %v2447, %v2479
        %v2496 = vsel %vm2464, %v2448, %v2480
        %v2497 = vsel %vm2465, %v2449, %v2481
        %v2498 = vsel %vm2466, %v2450, %v2482
        %v2499 = vsel %vm2467, %v2451, %v2483
        %v2500 = vsel %vm2468, %v2452, %v2484
        %v2501 = vsel %vm2469, %v2453, %v2485
        %v2502 = vsel %vm2470, %v2454, %v2486
        %v2503 = vsel %vm2471, %v2455, %v2487
        %v2504 = vsel %vm2472, %v2456, %v2488
        %v2505 = vsel %vm2473, %v2457, %v2489
        %v2506 = vsel %vm2474, %v2458, %v2490
        %v2507 = vsel %vm2475, %v2459, %v2491
        %v2508 = vsel %vm756, %v2492, -1e+30
        %v2509 = vsel %vm757, %v2493, -1e+30
        %v2510 = vsel %vm758, %v2494, -1e+30
        %v2511 = vsel %vm759, %v2495, -1e+30
        %v2512 = vsel %vm760, %v2496, -1e+30
        %v2513 = vsel %vm761, %v2497, -1e+30
        %v2514 = vsel %vm762, %v2498, -1e+30
        %v2515 = vsel %vm763, %v2499, -1e+30
        %v2516 = vsel %vm764, %v2500, -1e+30
        %v2517 = vsel %vm765, %v2501, -1e+30
        %v2518 = vsel %vm766, %v2502, -1e+30
        %v2519 = vsel %vm767, %v2503, -1e+30
        %v2520 = vsel %vm768, %v2504, -1e+30
        %v2521 = vsel %vm769, %v2505, -1e+30
        %v2522 = vsel %vm770, %v2506, -1e+30
        %v2523 = vsel %vm771, %v2507, -1e+30
        %v2524 = vld [vmem:[#allocation2] sm:$0xff]
        %v2525 = vld [vmem:[#allocation2 + $0x8] sm:$0xff]
        %v2526 = vld [vmem:[#allocation2 + $0x10] sm:$0xff]
        %v2527 = vld [vmem:[#allocation2 + $0x18] sm:$0xff]
        %v2528 = vld [vmem:[#allocation2 + $0x20] sm:$0xff]
        %v2529 = vld [vmem:[#allocation2 + $0x28] sm:$0xff]
        %v2530 = vld [vmem:[#allocation2 + $0x30] sm:$0xff]
        %v2531 = vld [vmem:[#allocation2 + $0x38] sm:$0xff]
        %v2532 = vld [vmem:[#allocation2 + $0x40] sm:$0xff]
        %v2533 = vld [vmem:[#allocation2 + $0x48] sm:$0xff]
        %v2534 = vld [vmem:[#allocation2 + $0x50] sm:$0xff]
        %v2535 = vld [vmem:[#allocation2 + $0x58] sm:$0xff]
        %v2536 = vld [vmem:[#allocation2 + $0x60] sm:$0xff]
        %v2537 = vld [vmem:[#allocation2 + $0x68] sm:$0xff]
        %v2538 = vld [vmem:[#allocation2 + $0x70] sm:$0xff]
        %v2539 = vld [vmem:[#allocation2 + $0x78] sm:$0xff]
        %2540 = vmax.xlane.f32.xlu0 %v2508
        %v2541 = vpop.xlane.xlu0 %2540
        %2542 = vmax.xlane.f32.xlu0 %v2509
        %v2543 = vpop.xlane.xlu0 %2542
        %2544 = vmax.xlane.f32.xlu0 %v2510
        %v2545 = vpop.xlane.xlu0 %2544
        %2546 = vmax.xlane.f32.xlu0 %v2511
        %v2547 = vpop.xlane.xlu0 %2546
        %2548 = vmax.xlane.f32.xlu0 %v2512
        %v2549 = vpop.xlane.xlu0 %2548
        %2550 = vmax.xlane.f32.xlu0 %v2513
        %v2551 = vpop.xlane.xlu0 %2550
        %2552 = vmax.xlane.f32.xlu0 %v2514
        %v2553 = vpop.xlane.xlu0 %2552
        %2554 = vmax.xlane.f32.xlu0 %v2515
        %v2555 = vpop.xlane.xlu0 %2554
        %2556 = vmax.xlane.f32.xlu0 %v2516
        %v2557 = vpop.xlane.xlu0 %2556
        %2558 = vmax.xlane.f32.xlu0 %v2517
        %v2559 = vpop.xlane.xlu0 %2558
        %2560 = vmax.xlane.f32.xlu0 %v2518
        %v2561 = vpop.xlane.xlu0 %2560
        %2562 = vmax.xlane.f32.xlu0 %v2519
        %v2563 = vpop.xlane.xlu0 %2562
        %2564 = vmax.xlane.f32.xlu0 %v2520
        %v2565 = vpop.xlane.xlu0 %2564
        %2566 = vmax.xlane.f32.xlu0 %v2521
        %v2567 = vpop.xlane.xlu0 %2566
        %2568 = vmax.xlane.f32.xlu0 %v2522
        %v2569 = vpop.xlane.xlu0 %2568
        %2570 = vmax.xlane.f32.xlu0 %v2523
        %v2571 = vpop.xlane.xlu0 %2570
        %v2572 = vmax.f32 %v2524, %v2541
        %v2573 = vmax.f32 %v2525, %v2543
        %v2574 = vmax.f32 %v2526, %v2545
        %v2575 = vmax.f32 %v2527, %v2547
        %v2576 = vmax.f32 %v2528, %v2549
        %v2577 = vmax.f32 %v2529, %v2551
        %v2578 = vmax.f32 %v2530, %v2553
        %v2579 = vmax.f32 %v2531, %v2555
        %v2580 = vmax.f32 %v2532, %v2557
        %v2581 = vmax.f32 %v2533, %v2559
        %v2582 = vmax.f32 %v2534, %v2561
        %v2583 = vmax.f32 %v2535, %v2563
        %v2584 = vmax.f32 %v2536, %v2565
        %v2585 = vmax.f32 %v2537, %v2567
        %v2586 = vmax.f32 %v2538, %v2569
        %v2587 = vmax.f32 %v2539, %v2571
        %v2588 = vsub.f32 %v2524, %v2572
        %v2589 = vsub.f32 %v2525, %v2573
        %v2590 = vsub.f32 %v2526, %v2574
        %v2591 = vsub.f32 %v2527, %v2575
        %v2592 = vsub.f32 %v2528, %v2576
        %v2593 = vsub.f32 %v2529, %v2577
        %v2594 = vsub.f32 %v2530, %v2578
        %v2595 = vsub.f32 %v2531, %v2579
        %v2596 = vsub.f32 %v2532, %v2580
        %v2597 = vsub.f32 %v2533, %v2581
        %v2598 = vsub.f32 %v2534, %v2582
        %v2599 = vsub.f32 %v2535, %v2583
        %v2600 = vsub.f32 %v2536, %v2584
        %v2601 = vsub.f32 %v2537, %v2585
        %v2602 = vsub.f32 %v2538, %v2586
        %v2603 = vsub.f32 %v2539, %v2587
        %v2604 = vmul.f32 %v2588, 1.442695
        %v2605 = vpow.pop %v2604
        %v2606 = vmul.f32 %v2589, 1.442695
        %v2607 = vpow.pop %v2606
        %v2608 = vmul.f32 %v2590, 1.442695
        %v2609 = vpow.pop %v2608
        %v2610 = vmul.f32 %v2591, 1.442695
        %v2611 = vpow.pop %v2610
        %v2612 = vmul.f32 %v2592, 1.442695
        %v2613 = vpow.pop %v2612
        %v2614 = vmul.f32 %v2593, 1.442695
        %v2615 = vpow.pop %v2614
        %v2616 = vmul.f32 %v2594, 1.442695
        %v2617 = vpow.pop %v2616
        %v2618 = vmul.f32 %v2595, 1.442695
        %v2619 = vpow.pop %v2618
        %v2620 = vmul.f32 %v2596, 1.442695
        %v2621 = vpow.pop %v2620
        %v2622 = vmul.f32 %v2597, 1.442695
        %v2623 = vpow.pop %v2622
        %v2624 = vmul.f32 %v2598, 1.442695
        %v2625 = vpow.pop %v2624
        %v2626 = vmul.f32 %v2599, 1.442695
        %v2627 = vpow.pop %v2626
        %v2628 = vmul.f32 %v2600, 1.442695
        %v2629 = vpow.pop %v2628
        %v2630 = vmul.f32 %v2601, 1.442695
        %v2631 = vpow.pop %v2630
        %v2632 = vmul.f32 %v2602, 1.442695
        %v2633 = vpow.pop %v2632
        %v2634 = vmul.f32 %v2603, 1.442695
        %v2635 = vpow.pop %v2634
        %2637 = vset.pattern.permute.xlu0 2
        %2638 = vperm.xlu0 %2637, %v2572
        %v2639 = vpop.permute.xlu0 %2638
        %2642 = vset.pattern.permute.xlu0 2
        %2643 = vperm.xlu0 %2642, %v2573
        %v2644 = vpop.permute.xlu0 %2643
        %2647 = vset.pattern.permute.xlu0 2
        %2648 = vperm.xlu0 %2647, %v2574
        %v2649 = vpop.permute.xlu0 %2648
        %2652 = vset.pattern.permute.xlu0 2
        %2653 = vperm.xlu0 %2652, %v2575
        %v2654 = vpop.permute.xlu0 %2653
        %2657 = vset.pattern.permute.xlu0 2
        %2658 = vperm.xlu0 %2657, %v2576
        %v2659 = vpop.permute.xlu0 %2658
        %2662 = vset.pattern.permute.xlu0 2
        %2663 = vperm.xlu0 %2662, %v2577
        %v2664 = vpop.permute.xlu0 %2663
        %2667 = vset.pattern.permute.xlu0 2
        %2668 = vperm.xlu0 %2667, %v2578
        %v2669 = vpop.permute.xlu0 %2668
        %2672 = vset.pattern.permute.xlu0 2
        %2673 = vperm.xlu0 %2672, %v2579
        %v2674 = vpop.permute.xlu0 %2673
        %2677 = vset.pattern.permute.xlu0 2
        %2678 = vperm.xlu0 %2677, %v2580
        %v2679 = vpop.permute.xlu0 %2678
        %2682 = vset.pattern.permute.xlu0 2
        %2683 = vperm.xlu0 %2682, %v2581
        %v2684 = vpop.permute.xlu0 %2683
        %2687 = vset.pattern.permute.xlu0 2
        %2688 = vperm.xlu0 %2687, %v2582
        %v2689 = vpop.permute.xlu0 %2688
        %2692 = vset.pattern.permute.xlu0 2
        %2693 = vperm.xlu0 %2692, %v2583
        %v2694 = vpop.permute.xlu0 %2693
        %2697 = vset.pattern.permute.xlu0 2
        %2698 = vperm.xlu0 %2697, %v2584
        %v2699 = vpop.permute.xlu0 %2698
        %2702 = vset.pattern.permute.xlu0 2
        %2703 = vperm.xlu0 %2702, %v2585
        %v2704 = vpop.permute.xlu0 %2703
        %2707 = vset.pattern.permute.xlu0 2
        %2708 = vperm.xlu0 %2707, %v2586
        %v2709 = vpop.permute.xlu0 %2708
        %2712 = vset.pattern.permute.xlu0 2
        %2713 = vperm.xlu0 %2712, %v2587
        %v2714 = vpop.permute.xlu0 %2713
        %v2716 = vsub.f32 %v2508, %v2639
        %v2717 = vsub.f32 %v2509, %v2644
        %v2718 = vsub.f32 %v2510, %v2649
        %v2719 = vsub.f32 %v2511, %v2654
        %v2720 = vsub.f32 %v2512, %v2659
        %v2721 = vsub.f32 %v2513, %v2664
        %v2722 = vsub.f32 %v2514, %v2669
        %v2723 = vsub.f32 %v2515, %v2674
        %v2724 = vsub.f32 %v2516, %v2679
        %v2725 = vsub.f32 %v2517, %v2684
        %v2726 = vsub.f32 %v2518, %v2689
        %v2727 = vsub.f32 %v2519, %v2694
        %v2728 = vsub.f32 %v2520, %v2699
        %v2729 = vsub.f32 %v2521, %v2704
        %v2730 = vsub.f32 %v2522, %v2709
        %v2731 = vsub.f32 %v2523, %v2714
        %v2732 = vmul.f32 %v2716, 1.442695
        %v2733 = vpow.pop %v2732
        %v2734 = vmul.f32 %v2717, 1.442695
        %v2735 = vpow.pop %v2734
        %v2736 = vmul.f32 %v2718, 1.442695
        %v2737 = vpow.pop %v2736
        %v2738 = vmul.f32 %v2719, 1.442695
        %v2739 = vpow.pop %v2738
        %v2740 = vmul.f32 %v2720, 1.442695
        %v2741 = vpow.pop %v2740
        %v2742 = vmul.f32 %v2721, 1.442695
        %v2743 = vpow.pop %v2742
        %v2744 = vmul.f32 %v2722, 1.442695
        %v2745 = vpow.pop %v2744
        %v2746 = vmul.f32 %v2723, 1.442695
        %v2747 = vpow.pop %v2746
        %v2748 = vmul.f32 %v2724, 1.442695
        %v2749 = vpow.pop %v2748
        %v2750 = vmul.f32 %v2725, 1.442695
        %v2751 = vpow.pop %v2750
        %v2752 = vmul.f32 %v2726, 1.442695
        %v2753 = vpow.pop %v2752
        %v2754 = vmul.f32 %v2727, 1.442695
        %v2755 = vpow.pop %v2754
        %v2756 = vmul.f32 %v2728, 1.442695
        %v2757 = vpow.pop %v2756
        %v2758 = vmul.f32 %v2729, 1.442695
        %v2759 = vpow.pop %v2758
        %v2760 = vmul.f32 %v2730, 1.442695
        %v2761 = vpow.pop %v2760
        %v2762 = vmul.f32 %v2731, 1.442695
        %v2763 = vpow.pop %v2762
        %v2764 = vsel %vm756, %v2733, 0.0
        %v2765 = vsel %vm757, %v2735, 0.0
        %v2766 = vsel %vm758, %v2737, 0.0
        %v2767 = vsel %vm759, %v2739, 0.0
        %v2768 = vsel %vm760, %v2741, 0.0
        %v2769 = vsel %vm761, %v2743, 0.0
        %v2770 = vsel %vm762, %v2745, 0.0
        %v2771 = vsel %vm763, %v2747, 0.0
        %v2772 = vsel %vm764, %v2749, 0.0
        %v2773 = vsel %vm765, %v2751, 0.0
        %v2774 = vsel %vm766, %v2753, 0.0
        %v2775 = vsel %vm767, %v2755, 0.0
        %v2776 = vsel %vm768, %v2757, 0.0
        %v2777 = vsel %vm769, %v2759, 0.0
        %v2778 = vsel %vm770, %v2761, 0.0
        %v2779 = vsel %vm771, %v2763, 0.0
        %v2780 = vld [vmem:[#allocation3] sm:$0xff]
        %v2781 = vld [vmem:[#allocation3 + $0x8] sm:$0xff]
        %v2782 = vld [vmem:[#allocation3 + $0x10] sm:$0xff]
        %v2783 = vld [vmem:[#allocation3 + $0x18] sm:$0xff]
        %v2784 = vld [vmem:[#allocation3 + $0x20] sm:$0xff]
        %v2785 = vld [vmem:[#allocation3 + $0x28] sm:$0xff]
        %v2786 = vld [vmem:[#allocation3 + $0x30] sm:$0xff]
        %v2787 = vld [vmem:[#allocation3 + $0x38] sm:$0xff]
        %v2788 = vld [vmem:[#allocation3 + $0x40] sm:$0xff]
        %v2789 = vld [vmem:[#allocation3 + $0x48] sm:$0xff]
        %v2790 = vld [vmem:[#allocation3 + $0x50] sm:$0xff]
        %v2791 = vld [vmem:[#allocation3 + $0x58] sm:$0xff]
        %v2792 = vld [vmem:[#allocation3 + $0x60] sm:$0xff]
        %v2793 = vld [vmem:[#allocation3 + $0x68] sm:$0xff]
        %v2794 = vld [vmem:[#allocation3 + $0x70] sm:$0xff]
        %v2795 = vld [vmem:[#allocation3 + $0x78] sm:$0xff]
        %v2796 = vmul.f32 %v2605, %v2780
        %v2797 = vmul.f32 %v2607, %v2781
        %v2798 = vmul.f32 %v2609, %v2782
        %v2799 = vmul.f32 %v2611, %v2783
        %v2800 = vmul.f32 %v2613, %v2784
        %v2801 = vmul.f32 %v2615, %v2785
        %v2802 = vmul.f32 %v2617, %v2786
        %v2803 = vmul.f32 %v2619, %v2787
        %v2804 = vmul.f32 %v2621, %v2788
        %v2805 = vmul.f32 %v2623, %v2789
        %v2806 = vmul.f32 %v2625, %v2790
        %v2807 = vmul.f32 %v2627, %v2791
        %v2808 = vmul.f32 %v2629, %v2792
        %v2809 = vmul.f32 %v2631, %v2793
        %v2810 = vmul.f32 %v2633, %v2794
        %v2811 = vmul.f32 %v2635, %v2795
        %2812 = vadd.xlane.f32.xlu0 %v2764
        %v2813 = vpop.xlane.xlu0 %2812
        %2814 = vadd.xlane.f32.xlu0 %v2765
        %v2815 = vpop.xlane.xlu0 %2814
        %2816 = vadd.xlane.f32.xlu0 %v2766
        %v2817 = vpop.xlane.xlu0 %2816
        %2818 = vadd.xlane.f32.xlu0 %v2767
        %v2819 = vpop.xlane.xlu0 %2818
        %2820 = vadd.xlane.f32.xlu0 %v2768
        %v2821 = vpop.xlane.xlu0 %2820
        %2822 = vadd.xlane.f32.xlu0 %v2769
        %v2823 = vpop.xlane.xlu0 %2822
        %2824 = vadd.xlane.f32.xlu0 %v2770
        %v2825 = vpop.xlane.xlu0 %2824
        %2826 = vadd.xlane.f32.xlu0 %v2771
        %v2827 = vpop.xlane.xlu0 %2826
        %2828 = vadd.xlane.f32.xlu0 %v2772
        %v2829 = vpop.xlane.xlu0 %2828
        %2830 = vadd.xlane.f32.xlu0 %v2773
        %v2831 = vpop.xlane.xlu0 %2830
        %2832 = vadd.xlane.f32.xlu0 %v2774
        %v2833 = vpop.xlane.xlu0 %2832
        %2834 = vadd.xlane.f32.xlu0 %v2775
        %v2835 = vpop.xlane.xlu0 %2834
        %2836 = vadd.xlane.f32.xlu0 %v2776
        %v2837 = vpop.xlane.xlu0 %2836
        %2838 = vadd.xlane.f32.xlu0 %v2777
        %v2839 = vpop.xlane.xlu0 %2838
        %2840 = vadd.xlane.f32.xlu0 %v2778
        %v2841 = vpop.xlane.xlu0 %2840
        %2842 = vadd.xlane.f32.xlu0 %v2779
        %v2843 = vpop.xlane.xlu0 %2842
        %v2844 = vadd.f32 %v2796, %v2813
        %v2845 = vadd.f32 %v2797, %v2815
        %v2846 = vadd.f32 %v2798, %v2817
        %v2847 = vadd.f32 %v2799, %v2819
        %v2848 = vadd.f32 %v2800, %v2821
        %v2849 = vadd.f32 %v2801, %v2823
        %v2850 = vadd.f32 %v2802, %v2825
        %v2851 = vadd.f32 %v2803, %v2827
        %v2852 = vadd.f32 %v2804, %v2829
        %v2853 = vadd.f32 %v2805, %v2831
        %v2854 = vadd.f32 %v2806, %v2833
        %v2855 = vadd.f32 %v2807, %v2835
        %v2856 = vadd.f32 %v2808, %v2837
        %v2857 = vadd.f32 %v2809, %v2839
        %v2858 = vadd.f32 %v2810, %v2841
        %v2859 = vadd.f32 %v2811, %v2843
        %vm2860 = vcmask 23568
        %2861 = vst.msk [vmem:[#allocation3] sm:$0xff] %vm2860, %v2844
        %2862 = vst.msk [vmem:[#allocation3 + $0x8] sm:$0xff] %vm2860, %v2845
        %2863 = vst.msk [vmem:[#allocation3 + $0x10] sm:$0xff] %vm2860, %v2846
        %2864 = vst.msk [vmem:[#allocation3 + $0x18] sm:$0xff] %vm2860, %v2847
        %2865 = vst.msk [vmem:[#allocation3 + $0x20] sm:$0xff] %vm2860, %v2848
        %2866 = vst.msk [vmem:[#allocation3 + $0x28] sm:$0xff] %vm2860, %v2849
        %2867 = vst.msk [vmem:[#allocation3 + $0x30] sm:$0xff] %vm2860, %v2850
        %2868 = vst.msk [vmem:[#allocation3 + $0x38] sm:$0xff] %vm2860, %v2851
        %2869 = vst.msk [vmem:[#allocation3 + $0x40] sm:$0xff] %vm2860, %v2852
        %2870 = vst.msk [vmem:[#allocation3 + $0x48] sm:$0xff] %vm2860, %v2853
        %2871 = vst.msk [vmem:[#allocation3 + $0x50] sm:$0xff] %vm2860, %v2854
        %2872 = vst.msk [vmem:[#allocation3 + $0x58] sm:$0xff] %vm2860, %v2855
        %2873 = vst.msk [vmem:[#allocation3 + $0x60] sm:$0xff] %vm2860, %v2856
        %2874 = vst.msk [vmem:[#allocation3 + $0x68] sm:$0xff] %vm2860, %v2857
        %2875 = vst.msk [vmem:[#allocation3 + $0x70] sm:$0xff] %vm2860, %v2858
        %2876 = vst.msk [vmem:[#allocation3 + $0x78] sm:$0xff] %vm2860, %v2859
        %v2877 = vpack.c.bf16 %v2765, %v2764
        %v2878 = vpack.c.bf16 %v2767, %v2766
        %v2879 = vpack.c.bf16 %v2769, %v2768
        %v2880 = vpack.c.bf16 %v2771, %v2770
        %v2881 = vpack.c.bf16 %v2773, %v2772
        %v2882 = vpack.c.bf16 %v2775, %v2774
        %v2883 = vpack.c.bf16 %v2777, %v2776
        %v2884 = vpack.c.bf16 %v2779, %v2778
        %2885 = vrot.lane.b32.xlu0 %v1181, 64
        %v2886 = vpop.permute.xlu0 %2885
        %2887 = vrot.lane.b32.xlu0 %v1182, 64
        %v2888 = vpop.permute.xlu0 %2887
        %2889 = vrot.lane.b32.xlu0 %v1183, 64
        %v2890 = vpop.permute.xlu0 %2889
        %2891 = vrot.lane.b32.xlu0 %v1184, 64
        %v2892 = vpop.permute.xlu0 %2891
        %2893 = vrot.lane.b32.xlu0 %v1185, 64
        %v2894 = vpop.permute.xlu0 %2893
        %2895 = vrot.lane.b32.xlu0 %v1186, 64
        %v2896 = vpop.permute.xlu0 %2895
        %2897 = vrot.lane.b32.xlu0 %v1187, 64
        %v2898 = vpop.permute.xlu0 %2897
        %2899 = vrot.lane.b32.xlu0 %v1188, 64
        %v2900 = vpop.permute.xlu0 %2899
        %2909 = vmatprep.subr.bf16.mxu0 0
        %2910 = vmatpush1.bf16.msra.mxu0 %v2886
        %2911 = vmatprep.subr.bf16.mxu0 0
        %2912 = vmatpush1.bf16.msra.mxu0 %v2888
        %2913 = vmatprep.subr.bf16.mxu0 0
        %2914 = vmatpush1.bf16.msra.mxu0 %v2890
        %2915 = vmatprep.subr.bf16.mxu0 0
        %2916 = vmatpush1.bf16.msra.mxu0 %v2892
        %2917 = vmatprep.subr.bf16.mxu0 0
        %2918 = vmatpush1.bf16.msra.mxu0 %v2894
        %2919 = vmatprep.subr.bf16.mxu0 0
        %2920 = vmatpush1.bf16.msra.mxu0 %v2896
        %2921 = vmatprep.subr.bf16.mxu0 0
        %2922 = vmatpush1.bf16.msra.mxu0 %v2898
        %2923 = vmatprep.subr.bf16.mxu0 0
        %2924 = vmatpush1.bf16.msra.mxu0 %v2900
        %2925 = vmatprep.subr.bf16.mxu0 0
        %2926 = vmatpush1.bf16.msra.mxu0 0
        %2927 = vmatprep.subr.bf16.mxu0 0
        %2928 = vmatpush1.bf16.msra.mxu0 0
        %2929 = vmatprep.subr.bf16.mxu0 0
        %2930 = vmatpush1.bf16.msra.mxu0 0
        %2931 = vmatprep.subr.bf16.mxu0 0
        %2932 = vmatpush1.bf16.msra.mxu0 0
        %2933 = vmatprep.subr.bf16.mxu0 0
        %2934 = vmatpush1.bf16.msra.mxu0 0
        %2935 = vmatprep.subr.bf16.mxu0 0
        %2936 = vmatpush1.bf16.msra.mxu0 0
        %2937 = vmatprep.subr.bf16.mxu0 0
        %2938 = vmatpush1.bf16.msra.mxu0 0
        %2939 = vmatprep.subr.bf16.mxu0 0
        %2940 = vmatpush1.bf16.msra.mxu0 0
        %2941 = vmatprep.mubr.bf16.mxu0 0
        %2942 = vmatmul.mubr.bf16.gmra.mrb[0].mxu0 %v2877
        %v2943 = vpop.f32.mrb[0].mxu0
        %v2944 = vadd.f32 0.0, %v2943
        %v2945 = vpop.f32.mrb[0].mxu0
        %v2946 = vpop.f32.mrb[0].mxu0
        %v2947 = vadd.f32 0.0, %v2946
        %v2948 = vpop.f32.mrb[0].mxu0
        %2949 = vmatprep.mubr.bf16.mxu0 0
        %2950 = vmatmul.mubr.bf16.gmra.mrb[0].mxu0 %v2878
        %v2951 = vpop.f32.mrb[0].mxu0
        %v2952 = vadd.f32 0.0, %v2951
        %v2953 = vpop.f32.mrb[0].mxu0
        %v2954 = vpop.f32.mrb[0].mxu0
        %v2955 = vadd.f32 0.0, %v2954
        %v2956 = vpop.f32.mrb[0].mxu0
        %2957 = vmatprep.mubr.bf16.mxu0 0
        %2958 = vmatmul.mubr.bf16.gmra.mrb[0].mxu0 %v2879
        %v2959 = vpop.f32.mrb[0].mxu0
        %v2960 = vadd.f32 0.0, %v2959
        %v2961 = vpop.f32.mrb[0].mxu0
        %v2962 = vpop.f32.mrb[0].mxu0
        %v2963 = vadd.f32 0.0, %v2962
        %v2964 = vpop.f32.mrb[0].mxu0
        %2965 = vmatprep.mubr.bf16.mxu0 0
        %2966 = vmatmul.mubr.bf16.gmra.mrb[0].mxu0 %v2880
        %v2967 = vpop.f32.mrb[0].mxu0
        %v2968 = vadd.f32 0.0, %v2967
        %v2969 = vpop.f32.mrb[0].mxu0
        %v2970 = vpop.f32.mrb[0].mxu0
        %v2971 = vadd.f32 0.0, %v2970
        %v2972 = vpop.f32.mrb[0].mxu0
        %2973 = vmatprep.mubr.bf16.mxu0 0
        %2974 = vmatmul.mubr.bf16.gmra.mrb[0].mxu0 %v2881
        %v2975 = vpop.f32.mrb[0].mxu0
        %v2976 = vadd.f32 0.0, %v2975
        %v2977 = vpop.f32.mrb[0].mxu0
        %v2978 = vpop.f32.mrb[0].mxu0
        %v2979 = vadd.f32 0.0, %v2978
        %v2980 = vpop.f32.mrb[0].mxu0
        %2981 = vmatprep.mubr.bf16.mxu0 0
        %2982 = vmatmul.mubr.bf16.gmra.mrb[0].mxu0 %v2882
        %v2983 = vpop.f32.mrb[0].mxu0
        %v2984 = vadd.f32 0.0, %v2983
        %v2985 = vpop.f32.mrb[0].mxu0
        %v2986 = vpop.f32.mrb[0].mxu0
        %v2987 = vadd.f32 0.0, %v2986
        %v2988 = vpop.f32.mrb[0].mxu0
        %2989 = vmatprep.mubr.bf16.mxu0 0
        %2990 = vmatmul.mubr.bf16.gmra.mrb[0].mxu0 %v2883
        %v2991 = vpop.f32.mrb[0].mxu0
        %v2992 = vadd.f32 0.0, %v2991
        %v2993 = vpop.f32.mrb[0].mxu0
        %v2994 = vpop.f32.mrb[0].mxu0
        %v2995 = vadd.f32 0.0, %v2994
        %v2996 = vpop.f32.mrb[0].mxu0
        %2997 = vmatprep.mubr.bf16.mxu0 0
        %2998 = vmatmul.mubr.bf16.gmra.mrb[0].mxu0 %v2884
        %v2999 = vpop.f32.mrb[0].mxu0
        %v3000 = vadd.f32 0.0, %v2999
        %v3001 = vpop.f32.mrb[0].mxu0
        %v3002 = vpop.f32.mrb[0].mxu0
        %v3003 = vadd.f32 0.0, %v3002
        %v3004 = vpop.f32.mrb[0].mxu0
        %3005 = vdwg.mxu0
        %v3006 = vld [vmem:[#allocation4] sm:$0xff]
        %v3007 = vld [vmem:[#allocation4 + $0x8] sm:$0xff]
        %v3008 = vld [vmem:[#allocation4 + $0x10] sm:$0xff]
        %v3009 = vld [vmem:[#allocation4 + $0x18] sm:$0xff]
        %v3010 = vld [vmem:[#allocation4 + $0x20] sm:$0xff]
        %v3011 = vld [vmem:[#allocation4 + $0x28] sm:$0xff]
        %v3012 = vld [vmem:[#allocation4 + $0x30] sm:$0xff]
        %v3013 = vld [vmem:[#allocation4 + $0x38] sm:$0xff]
        %v3014 = vld [vmem:[#allocation4 + $0x40] sm:$0xff]
        %v3015 = vld [vmem:[#allocation4 + $0x48] sm:$0xff]
        %v3016 = vld [vmem:[#allocation4 + $0x50] sm:$0xff]
        %v3017 = vld [vmem:[#allocation4 + $0x58] sm:$0xff]
        %v3018 = vld [vmem:[#allocation4 + $0x60] sm:$0xff]
        %v3019 = vld [vmem:[#allocation4 + $0x68] sm:$0xff]
        %v3020 = vld [vmem:[#allocation4 + $0x70] sm:$0xff]
        %v3021 = vld [vmem:[#allocation4 + $0x78] sm:$0xff]
        %3023 = vset.pattern.permute.xlu0 2
        %3024 = vperm.xlu0 %3023, %v2605
        %v3025 = vpop.permute.xlu0 %3024
        %3028 = vset.pattern.permute.xlu0 2
        %3029 = vperm.xlu0 %3028, %v2607
        %v3030 = vpop.permute.xlu0 %3029
        %3033 = vset.pattern.permute.xlu0 2
        %3034 = vperm.xlu0 %3033, %v2609
        %v3035 = vpop.permute.xlu0 %3034
        %3038 = vset.pattern.permute.xlu0 2
        %3039 = vperm.xlu0 %3038, %v2611
        %v3040 = vpop.permute.xlu0 %3039
        %3043 = vset.pattern.permute.xlu0 2
        %3044 = vperm.xlu0 %3043, %v2613
        %v3045 = vpop.permute.xlu0 %3044
        %3048 = vset.pattern.permute.xlu0 2
        %3049 = vperm.xlu0 %3048, %v2615
        %v3050 = vpop.permute.xlu0 %3049
        %3053 = vset.pattern.permute.xlu0 2
        %3054 = vperm.xlu0 %3053, %v2617
        %v3055 = vpop.permute.xlu0 %3054
        %3058 = vset.pattern.permute.xlu0 2
        %3059 = vperm.xlu0 %3058, %v2619
        %v3060 = vpop.permute.xlu0 %3059
        %3063 = vset.pattern.permute.xlu0 2
        %3064 = vperm.xlu0 %3063, %v2621
        %v3065 = vpop.permute.xlu0 %3064
        %3068 = vset.pattern.permute.xlu0 2
        %3069 = vperm.xlu0 %3068, %v2623
        %v3070 = vpop.permute.xlu0 %3069
        %3073 = vset.pattern.permute.xlu0 2
        %3074 = vperm.xlu0 %3073, %v2625
        %v3075 = vpop.permute.xlu0 %3074
        %3078 = vset.pattern.permute.xlu0 2
        %3079 = vperm.xlu0 %3078, %v2627
        %v3080 = vpop.permute.xlu0 %3079
        %3083 = vset.pattern.permute.xlu0 2
        %3084 = vperm.xlu0 %3083, %v2629
        %v3085 = vpop.permute.xlu0 %3084
        %3088 = vset.pattern.permute.xlu0 2
        %3089 = vperm.xlu0 %3088, %v2631
        %v3090 = vpop.permute.xlu0 %3089
        %3093 = vset.pattern.permute.xlu0 2
        %3094 = vperm.xlu0 %3093, %v2633
        %v3095 = vpop.permute.xlu0 %3094
        %3098 = vset.pattern.permute.xlu0 2
        %3099 = vperm.xlu0 %3098, %v2635
        %v3100 = vpop.permute.xlu0 %3099
        %v3102 = vmul.f32 %v3025, %v3006
        %v3103 = vmul.f32 %v3030, %v3007
        %v3104 = vmul.f32 %v3035, %v3008
        %v3105 = vmul.f32 %v3040, %v3009
        %v3106 = vmul.f32 %v3045, %v3010
        %v3107 = vmul.f32 %v3050, %v3011
        %v3108 = vmul.f32 %v3055, %v3012
        %v3109 = vmul.f32 %v3060, %v3013
        %v3110 = vmul.f32 %v3065, %v3014
        %v3111 = vmul.f32 %v3070, %v3015
        %v3112 = vmul.f32 %v3075, %v3016
        %v3113 = vmul.f32 %v3080, %v3017
        %v3114 = vmul.f32 %v3085, %v3018
        %v3115 = vmul.f32 %v3090, %v3019
        %v3116 = vmul.f32 %v3095, %v3020
        %v3117 = vmul.f32 %v3100, %v3021
        %3134 = vrot.lane.b32.xlu0 %v2944, 64
        %v3135 = vpop.permute.xlu0 %3134
        %3136 = vrot.lane.b32.xlu0 %v2947, 64
        %v3137 = vpop.permute.xlu0 %3136
        %3138 = vrot.lane.b32.xlu0 %v2952, 64
        %v3139 = vpop.permute.xlu0 %3138
        %3140 = vrot.lane.b32.xlu0 %v2955, 64
        %v3141 = vpop.permute.xlu0 %3140
        %3142 = vrot.lane.b32.xlu0 %v2960, 64
        %v3143 = vpop.permute.xlu0 %3142
        %3144 = vrot.lane.b32.xlu0 %v2963, 64
        %v3145 = vpop.permute.xlu0 %3144
        %3146 = vrot.lane.b32.xlu0 %v2968, 64
        %v3147 = vpop.permute.xlu0 %3146
        %3148 = vrot.lane.b32.xlu0 %v2971, 64
        %v3149 = vpop.permute.xlu0 %3148
        %3150 = vrot.lane.b32.xlu0 %v2976, 64
        %v3151 = vpop.permute.xlu0 %3150
        %3152 = vrot.lane.b32.xlu0 %v2979, 64
        %v3153 = vpop.permute.xlu0 %3152
        %3154 = vrot.lane.b32.xlu0 %v2984, 64
        %v3155 = vpop.permute.xlu0 %3154
        %3156 = vrot.lane.b32.xlu0 %v2987, 64
        %v3157 = vpop.permute.xlu0 %3156
        %3158 = vrot.lane.b32.xlu0 %v2992, 64
        %v3159 = vpop.permute.xlu0 %3158
        %3160 = vrot.lane.b32.xlu0 %v2995, 64
        %v3161 = vpop.permute.xlu0 %3160
        %3162 = vrot.lane.b32.xlu0 %v3000, 64
        %v3163 = vpop.permute.xlu0 %3162
        %3164 = vrot.lane.b32.xlu0 %v3003, 64
        %v3165 = vpop.permute.xlu0 %3164
        %v3182 = vadd.f32 %v3102, %v3135
        %v3183 = vadd.f32 %v3103, %v3137
        %v3184 = vadd.f32 %v3104, %v3139
        %v3185 = vadd.f32 %v3105, %v3141
        %v3186 = vadd.f32 %v3106, %v3143
        %v3187 = vadd.f32 %v3107, %v3145
        %v3188 = vadd.f32 %v3108, %v3147
        %v3189 = vadd.f32 %v3109, %v3149
        %v3190 = vadd.f32 %v3110, %v3151
        %v3191 = vadd.f32 %v3111, %v3153
        %v3192 = vadd.f32 %v3112, %v3155
        %v3193 = vadd.f32 %v3113, %v3157
        %v3194 = vadd.f32 %v3114, %v3159
        %v3195 = vadd.f32 %v3115, %v3161
        %v3196 = vadd.f32 %v3116, %v3163
        %v3197 = vadd.f32 %v3117, %v3165
        %vm3198 = vcmask 785920
        %3199 = vst.msk [vmem:[#allocation4] sm:$0xff] %vm3198, %v3182
        %3200 = vst.msk [vmem:[#allocation4 + $0x8] sm:$0xff] %vm3198, %v3183
        %3201 = vst.msk [vmem:[#allocation4 + $0x10] sm:$0xff] %vm3198, %v3184
        %3202 = vst.msk [vmem:[#allocation4 + $0x18] sm:$0xff] %vm3198, %v3185
        %3203 = vst.msk [vmem:[#allocation4 + $0x20] sm:$0xff] %vm3198, %v3186
        %3204 = vst.msk [vmem:[#allocation4 + $0x28] sm:$0xff] %vm3198, %v3187
        %3205 = vst.msk [vmem:[#allocation4 + $0x30] sm:$0xff] %vm3198, %v3188
        %3206 = vst.msk [vmem:[#allocation4 + $0x38] sm:$0xff] %vm3198, %v3189
        %3207 = vst.msk [vmem:[#allocation4 + $0x40] sm:$0xff] %vm3198, %v3190
        %3208 = vst.msk [vmem:[#allocation4 + $0x48] sm:$0xff] %vm3198, %v3191
        %3209 = vst.msk [vmem:[#allocation4 + $0x50] sm:$0xff] %vm3198, %v3192
        %3210 = vst.msk [vmem:[#allocation4 + $0x58] sm:$0xff] %vm3198, %v3193
        %3211 = vst.msk [vmem:[#allocation4 + $0x60] sm:$0xff] %vm3198, %v3194
        %3212 = vst.msk [vmem:[#allocation4 + $0x68] sm:$0xff] %vm3198, %v3195
        %3213 = vst.msk [vmem:[#allocation4 + $0x70] sm:$0xff] %vm3198, %v3196
        %3214 = vst.msk [vmem:[#allocation4 + $0x78] sm:$0xff] %vm3198, %v3197
        %3215 = vst.msk [vmem:[#allocation2] sm:$0xff] %vm2860, %v2572
        %3216 = vst.msk [vmem:[#allocation2 + $0x8] sm:$0xff] %vm2860, %v2573
        %3217 = vst.msk [vmem:[#allocation2 + $0x10] sm:$0xff] %vm2860, %v2574
        %3218 = vst.msk [vmem:[#allocation2 + $0x18] sm:$0xff] %vm2860, %v2575
        %3219 = vst.msk [vmem:[#allocation2 + $0x20] sm:$0xff] %vm2860, %v2576
        %3220 = vst.msk [vmem:[#allocation2 + $0x28] sm:$0xff] %vm2860, %v2577
        %3221 = vst.msk [vmem:[#allocation2 + $0x30] sm:$0xff] %vm2860, %v2578
        %3222 = vst.msk [vmem:[#allocation2 + $0x38] sm:$0xff] %vm2860, %v2579
        %3223 = vst.msk [vmem:[#allocation2 + $0x40] sm:$0xff] %vm2860, %v2580
        %3224 = vst.msk [vmem:[#allocation2 + $0x48] sm:$0xff] %vm2860, %v2581
        %3225 = vst.msk [vmem:[#allocation2 + $0x50] sm:$0xff] %vm2860, %v2582
        %3226 = vst.msk [vmem:[#allocation2 + $0x58] sm:$0xff] %vm2860, %v2583
        %3227 = vst.msk [vmem:[#allocation2 + $0x60] sm:$0xff] %vm2860, %v2584
        %3228 = vst.msk [vmem:[#allocation2 + $0x68] sm:$0xff] %vm2860, %v2585
        %3229 = vst.msk [vmem:[#allocation2 + $0x70] sm:$0xff] %vm2860, %v2586
        %3230 = vst.msk [vmem:[#allocation2 + $0x78] sm:$0xff] %vm2860, %v2587
        %v3231 = vld [vmem:[%s430 + $0x3] sm:$0x1]
        %v3232 = vld [vmem:[%s435] sm:$0xff]
        %v3233 = vld [vmem:[%s435 + $0x8] sm:$0xff]
        %v3234 = vld [vmem:[%s435 + $0x10] sm:$0xff]
        %v3235 = vld [vmem:[%s435 + $0x18] sm:$0xff]
        %v3236 = vld [vmem:[%s435 + $0x20] sm:$0xff]
        %v3237 = vld [vmem:[%s435 + $0x28] sm:$0xff]
        %v3238 = vld [vmem:[%s435 + $0x30] sm:$0xff]
        %v3239 = vld [vmem:[%s435 + $0x38] sm:$0xff]
        %v3240 = vld [vmem:[%s435 + $0x40] sm:$0xff]
        %v3241 = vld [vmem:[%s435 + $0x48] sm:$0xff]
        %v3242 = vld [vmem:[%s435 + $0x50] sm:$0xff]
        %v3243 = vld [vmem:[%s435 + $0x58] sm:$0xff]
        %v3244 = vld [vmem:[%s435 + $0x60] sm:$0xff]
        %v3245 = vld [vmem:[%s435 + $0x68] sm:$0xff]
        %v3246 = vld [vmem:[%s435 + $0x70] sm:$0xff]
        %v3247 = vld [vmem:[%s435 + $0x78] sm:$0xff]
        %v3248 = vlaneseq
        %v3249 = vshrl.u32 %v3248, 7
        %v3250 = vsub.s32 0, %v3249
        %v3251 = vrot.slane %v3231, %v3250
        %3253 = vset.pattern.permute.xlu0 3
        %3254 = vperm.xlu0 %3253, %v3232
        %v3255 = vpop.permute.xlu0 %3254
        %3258 = vset.pattern.permute.xlu0 3
        %3259 = vperm.xlu0 %3258, %v3233
        %v3260 = vpop.permute.xlu0 %3259
        %3263 = vset.pattern.permute.xlu0 3
        %3264 = vperm.xlu0 %3263, %v3234
        %v3265 = vpop.permute.xlu0 %3264
        %3268 = vset.pattern.permute.xlu0 3
        %3269 = vperm.xlu0 %3268, %v3235
        %v3270 = vpop.permute.xlu0 %3269
        %3273 = vset.pattern.permute.xlu0 3
        %3274 = vperm.xlu0 %3273, %v3236
        %v3275 = vpop.permute.xlu0 %3274
        %3278 = vset.pattern.permute.xlu0 3
        %3279 = vperm.xlu0 %3278, %v3237
        %v3280 = vpop.permute.xlu0 %3279
        %3283 = vset.pattern.permute.xlu0 3
        %3284 = vperm.xlu0 %3283, %v3238
        %v3285 = vpop.permute.xlu0 %3284
        %3288 = vset.pattern.permute.xlu0 3
        %3289 = vperm.xlu0 %3288, %v3239
        %v3290 = vpop.permute.xlu0 %3289
        %3293 = vset.pattern.permute.xlu0 3
        %3294 = vperm.xlu0 %3293, %v3240
        %v3295 = vpop.permute.xlu0 %3294
        %3298 = vset.pattern.permute.xlu0 3
        %3299 = vperm.xlu0 %3298, %v3241
        %v3300 = vpop.permute.xlu0 %3299
        %3303 = vset.pattern.permute.xlu0 3
        %3304 = vperm.xlu0 %3303, %v3242
        %v3305 = vpop.permute.xlu0 %3304
        %3308 = vset.pattern.permute.xlu0 3
        %3309 = vperm.xlu0 %3308, %v3243
        %v3310 = vpop.permute.xlu0 %3309
        %3313 = vset.pattern.permute.xlu0 3
        %3314 = vperm.xlu0 %3313, %v3244
        %v3315 = vpop.permute.xlu0 %3314
        %3318 = vset.pattern.permute.xlu0 3
        %3319 = vperm.xlu0 %3318, %v3245
        %v3320 = vpop.permute.xlu0 %3319
        %3323 = vset.pattern.permute.xlu0 3
        %3324 = vperm.xlu0 %3323, %v3246
        %v3325 = vpop.permute.xlu0 %3324
        %3328 = vset.pattern.permute.xlu0 3
        %3329 = vperm.xlu0 %3328, %v3247
        %v3330 = vpop.permute.xlu0 %3329
        %v3332 = vadd.f32 %v3251, %v3255
        %v3333 = vadd.f32 %v3251, %v3260
        %v3334 = vadd.f32 %v3251, %v3265
        %v3335 = vadd.f32 %v3251, %v3270
        %v3336 = vadd.f32 %v3251, %v3275
        %v3337 = vadd.f32 %v3251, %v3280
        %v3338 = vadd.f32 %v3251, %v3285
        %v3339 = vadd.f32 %v3251, %v3290
        %v3340 = vadd.f32 %v3251, %v3295
        %v3341 = vadd.f32 %v3251, %v3300
        %v3342 = vadd.f32 %v3251, %v3305
        %v3343 = vadd.f32 %v3251, %v3310
        %v3344 = vadd.f32 %v3251, %v3315
        %v3345 = vadd.f32 %v3251, %v3320
        %v3346 = vadd.f32 %v3251, %v3325
        %v3347 = vadd.f32 %v3251, %v3330
        %vm3348 = vcmp.gt.f32.partialorder %v3332, 0.0
        %vm3349 = vcmp.gt.f32.partialorder %v3333, 0.0
        %vm3350 = vcmp.gt.f32.partialorder %v3334, 0.0
        %vm3351 = vcmp.gt.f32.partialorder %v3335, 0.0
        %vm3352 = vcmp.gt.f32.partialorder %v3336, 0.0
        %vm3353 = vcmp.gt.f32.partialorder %v3337, 0.0
        %vm3354 = vcmp.gt.f32.partialorder %v3338, 0.0
        %vm3355 = vcmp.gt.f32.partialorder %v3339, 0.0
        %vm3356 = vcmp.gt.f32.partialorder %v3340, 0.0
        %vm3357 = vcmp.gt.f32.partialorder %v3341, 0.0
        %vm3358 = vcmp.gt.f32.partialorder %v3342, 0.0
        %vm3359 = vcmp.gt.f32.partialorder %v3343, 0.0
        %vm3360 = vcmp.gt.f32.partialorder %v3344, 0.0
        %vm3361 = vcmp.gt.f32.partialorder %v3345, 0.0
        %vm3362 = vcmp.gt.f32.partialorder %v3346, 0.0
        %vm3363 = vcmp.gt.f32.partialorder %v3347, 0.0
        %v3364 = vmul.f32 %v3332, 0.2
        %v3365 = vmul.f32 %v3333, 0.2
        %v3366 = vmul.f32 %v3334, 0.2
        %v3367 = vmul.f32 %v3335, 0.2
        %v3368 = vmul.f32 %v3336, 0.2
        %v3369 = vmul.f32 %v3337, 0.2
        %v3370 = vmul.f32 %v3338, 0.2
        %v3371 = vmul.f32 %v3339, 0.2
        %v3372 = vmul.f32 %v3340, 0.2
        %v3373 = vmul.f32 %v3341, 0.2
        %v3374 = vmul.f32 %v3342, 0.2
        %v3375 = vmul.f32 %v3343, 0.2
        %v3376 = vmul.f32 %v3344, 0.2
        %v3377 = vmul.f32 %v3345, 0.2
        %v3378 = vmul.f32 %v3346, 0.2
        %v3379 = vmul.f32 %v3347, 0.2
        %v3380 = vsel %vm3348, %v3332, %v3364
        %v3381 = vsel %vm3349, %v3333, %v3365
        %v3382 = vsel %vm3350, %v3334, %v3366
        %v3383 = vsel %vm3351, %v3335, %v3367
        %v3384 = vsel %vm3352, %v3336, %v3368
        %v3385 = vsel %vm3353, %v3337, %v3369
        %v3386 = vsel %vm3354, %v3338, %v3370
        %v3387 = vsel %vm3355, %v3339, %v3371
        %v3388 = vsel %vm3356, %v3340, %v3372
        %v3389 = vsel %vm3357, %v3341, %v3373
        %v3390 = vsel %vm3358, %v3342, %v3374
        %v3391 = vsel %vm3359, %v3343, %v3375
        %v3392 = vsel %vm3360, %v3344, %v3376
        %v3393 = vsel %vm3361, %v3345, %v3377
        %v3394 = vsel %vm3362, %v3346, %v3378
        %v3395 = vsel %vm3363, %v3347, %v3379
        %v3396 = vsel %vm756, %v3380, -1e+30
        %v3397 = vsel %vm757, %v3381, -1e+30
        %v3398 = vsel %vm758, %v3382, -1e+30
        %v3399 = vsel %vm759, %v3383, -1e+30
        %v3400 = vsel %vm760, %v3384, -1e+30
        %v3401 = vsel %vm761, %v3385, -1e+30
        %v3402 = vsel %vm762, %v3386, -1e+30
        %v3403 = vsel %vm763, %v3387, -1e+30
        %v3404 = vsel %vm764, %v3388, -1e+30
        %v3405 = vsel %vm765, %v3389, -1e+30
        %v3406 = vsel %vm766, %v3390, -1e+30
        %v3407 = vsel %vm767, %v3391, -1e+30
        %v3408 = vsel %vm768, %v3392, -1e+30
        %v3409 = vsel %vm769, %v3393, -1e+30
        %v3410 = vsel %vm770, %v3394, -1e+30
        %v3411 = vsel %vm771, %v3395, -1e+30
        %v3412 = vld [vmem:[#allocation2] sm:$0xff]
        %v3413 = vld [vmem:[#allocation2 + $0x8] sm:$0xff]
        %v3414 = vld [vmem:[#allocation2 + $0x10] sm:$0xff]
        %v3415 = vld [vmem:[#allocation2 + $0x18] sm:$0xff]
        %v3416 = vld [vmem:[#allocation2 + $0x20] sm:$0xff]
        %v3417 = vld [vmem:[#allocation2 + $0x28] sm:$0xff]
        %v3418 = vld [vmem:[#allocation2 + $0x30] sm:$0xff]
        %v3419 = vld [vmem:[#allocation2 + $0x38] sm:$0xff]
        %v3420 = vld [vmem:[#allocation2 + $0x40] sm:$0xff]
        %v3421 = vld [vmem:[#allocation2 + $0x48] sm:$0xff]
        %v3422 = vld [vmem:[#allocation2 + $0x50] sm:$0xff]
        %v3423 = vld [vmem:[#allocation2 + $0x58] sm:$0xff]
        %v3424 = vld [vmem:[#allocation2 + $0x60] sm:$0xff]
        %v3425 = vld [vmem:[#allocation2 + $0x68] sm:$0xff]
        %v3426 = vld [vmem:[#allocation2 + $0x70] sm:$0xff]
        %v3427 = vld [vmem:[#allocation2 + $0x78] sm:$0xff]
        %3428 = vmax.xlane.f32.xlu0 %v3396
        %v3429 = vpop.xlane.xlu0 %3428
        %3430 = vmax.xlane.f32.xlu0 %v3397
        %v3431 = vpop.xlane.xlu0 %3430
        %3432 = vmax.xlane.f32.xlu0 %v3398
        %v3433 = vpop.xlane.xlu0 %3432
        %3434 = vmax.xlane.f32.xlu0 %v3399
        %v3435 = vpop.xlane.xlu0 %3434
        %3436 = vmax.xlane.f32.xlu0 %v3400
        %v3437 = vpop.xlane.xlu0 %3436
        %3438 = vmax.xlane.f32.xlu0 %v3401
        %v3439 = vpop.xlane.xlu0 %3438
        %3440 = vmax.xlane.f32.xlu0 %v3402
        %v3441 = vpop.xlane.xlu0 %3440
        %3442 = vmax.xlane.f32.xlu0 %v3403
        %v3443 = vpop.xlane.xlu0 %3442
        %3444 = vmax.xlane.f32.xlu0 %v3404
        %v3445 = vpop.xlane.xlu0 %3444
        %3446 = vmax.xlane.f32.xlu0 %v3405
        %v3447 = vpop.xlane.xlu0 %3446
        %3448 = vmax.xlane.f32.xlu0 %v3406
        %v3449 = vpop.xlane.xlu0 %3448
        %3450 = vmax.xlane.f32.xlu0 %v3407
        %v3451 = vpop.xlane.xlu0 %3450
        %3452 = vmax.xlane.f32.xlu0 %v3408
        %v3453 = vpop.xlane.xlu0 %3452
        %3454 = vmax.xlane.f32.xlu0 %v3409
        %v3455 = vpop.xlane.xlu0 %3454
        %3456 = vmax.xlane.f32.xlu0 %v3410
        %v3457 = vpop.xlane.xlu0 %3456
        %3458 = vmax.xlane.f32.xlu0 %v3411
        %v3459 = vpop.xlane.xlu0 %3458
        %v3460 = vmax.f32 %v3412, %v3429
        %v3461 = vmax.f32 %v3413, %v3431
        %v3462 = vmax.f32 %v3414, %v3433
        %v3463 = vmax.f32 %v3415, %v3435
        %v3464 = vmax.f32 %v3416, %v3437
        %v3465 = vmax.f32 %v3417, %v3439
        %v3466 = vmax.f32 %v3418, %v3441
        %v3467 = vmax.f32 %v3419, %v3443
        %v3468 = vmax.f32 %v3420, %v3445
        %v3469 = vmax.f32 %v3421, %v3447
        %v3470 = vmax.f32 %v3422, %v3449
        %v3471 = vmax.f32 %v3423, %v3451
        %v3472 = vmax.f32 %v3424, %v3453
        %v3473 = vmax.f32 %v3425, %v3455
        %v3474 = vmax.f32 %v3426, %v3457
        %v3475 = vmax.f32 %v3427, %v3459
        %v3476 = vsub.f32 %v3412, %v3460
        %v3477 = vsub.f32 %v3413, %v3461
        %v3478 = vsub.f32 %v3414, %v3462
        %v3479 = vsub.f32 %v3415, %v3463
        %v3480 = vsub.f32 %v3416, %v3464
        %v3481 = vsub.f32 %v3417, %v3465
        %v3482 = vsub.f32 %v3418, %v3466
        %v3483 = vsub.f32 %v3419, %v3467
        %v3484 = vsub.f32 %v3420, %v3468
        %v3485 = vsub.f32 %v3421, %v3469
        %v3486 = vsub.f32 %v3422, %v3470
        %v3487 = vsub.f32 %v3423, %v3471
        %v3488 = vsub.f32 %v3424, %v3472
        %v3489 = vsub.f32 %v3425, %v3473
        %v3490 = vsub.f32 %v3426, %v3474
        %v3491 = vsub.f32 %v3427, %v3475
        %v3492 = vmul.f32 %v3476, 1.442695
        %v3493 = vpow.pop %v3492
        %v3494 = vmul.f32 %v3477, 1.442695
        %v3495 = vpow.pop %v3494
        %v3496 = vmul.f32 %v3478, 1.442695
        %v3497 = vpow.pop %v3496
        %v3498 = vmul.f32 %v3479, 1.442695
        %v3499 = vpow.pop %v3498
        %v3500 = vmul.f32 %v3480, 1.442695
        %v3501 = vpow.pop %v3500
        %v3502 = vmul.f32 %v3481, 1.442695
        %v3503 = vpow.pop %v3502
        %v3504 = vmul.f32 %v3482, 1.442695
        %v3505 = vpow.pop %v3504
        %v3506 = vmul.f32 %v3483, 1.442695
        %v3507 = vpow.pop %v3506
        %v3508 = vmul.f32 %v3484, 1.442695
        %v3509 = vpow.pop %v3508
        %v3510 = vmul.f32 %v3485, 1.442695
        %v3511 = vpow.pop %v3510
        %v3512 = vmul.f32 %v3486, 1.442695
        %v3513 = vpow.pop %v3512
        %v3514 = vmul.f32 %v3487, 1.442695
        %v3515 = vpow.pop %v3514
        %v3516 = vmul.f32 %v3488, 1.442695
        %v3517 = vpow.pop %v3516
        %v3518 = vmul.f32 %v3489, 1.442695
        %v3519 = vpow.pop %v3518
        %v3520 = vmul.f32 %v3490, 1.442695
        %v3521 = vpow.pop %v3520
        %v3522 = vmul.f32 %v3491, 1.442695
        %v3523 = vpow.pop %v3522
        %3525 = vset.pattern.permute.xlu0 3
        %3526 = vperm.xlu0 %3525, %v3460
        %v3527 = vpop.permute.xlu0 %3526
        %3530 = vset.pattern.permute.xlu0 3
        %3531 = vperm.xlu0 %3530, %v3461
        %v3532 = vpop.permute.xlu0 %3531
        %3535 = vset.pattern.permute.xlu0 3
        %3536 = vperm.xlu0 %3535, %v3462
        %v3537 = vpop.permute.xlu0 %3536
        %3540 = vset.pattern.permute.xlu0 3
        %3541 = vperm.xlu0 %3540, %v3463
        %v3542 = vpop.permute.xlu0 %3541
        %3545 = vset.pattern.permute.xlu0 3
        %3546 = vperm.xlu0 %3545, %v3464
        %v3547 = vpop.permute.xlu0 %3546
        %3550 = vset.pattern.permute.xlu0 3
        %3551 = vperm.xlu0 %3550, %v3465
        %v3552 = vpop.permute.xlu0 %3551
        %3555 = vset.pattern.permute.xlu0 3
        %3556 = vperm.xlu0 %3555, %v3466
        %v3557 = vpop.permute.xlu0 %3556
        %3560 = vset.pattern.permute.xlu0 3
        %3561 = vperm.xlu0 %3560, %v3467
        %v3562 = vpop.permute.xlu0 %3561
        %3565 = vset.pattern.permute.xlu0 3
        %3566 = vperm.xlu0 %3565, %v3468
        %v3567 = vpop.permute.xlu0 %3566
        %3570 = vset.pattern.permute.xlu0 3
        %3571 = vperm.xlu0 %3570, %v3469
        %v3572 = vpop.permute.xlu0 %3571
        %3575 = vset.pattern.permute.xlu0 3
        %3576 = vperm.xlu0 %3575, %v3470
        %v3577 = vpop.permute.xlu0 %3576
        %3580 = vset.pattern.permute.xlu0 3
        %3581 = vperm.xlu0 %3580, %v3471
        %v3582 = vpop.permute.xlu0 %3581
        %3585 = vset.pattern.permute.xlu0 3
        %3586 = vperm.xlu0 %3585, %v3472
        %v3587 = vpop.permute.xlu0 %3586
        %3590 = vset.pattern.permute.xlu0 3
        %3591 = vperm.xlu0 %3590, %v3473
        %v3592 = vpop.permute.xlu0 %3591
        %3595 = vset.pattern.permute.xlu0 3
        %3596 = vperm.xlu0 %3595, %v3474
        %v3597 = vpop.permute.xlu0 %3596
        %3600 = vset.pattern.permute.xlu0 3
        %3601 = vperm.xlu0 %3600, %v3475
        %v3602 = vpop.permute.xlu0 %3601
        %v3604 = vsub.f32 %v3396, %v3527
        %v3605 = vsub.f32 %v3397, %v3532
        %v3606 = vsub.f32 %v3398, %v3537
        %v3607 = vsub.f32 %v3399, %v3542
        %v3608 = vsub.f32 %v3400, %v3547
        %v3609 = vsub.f32 %v3401, %v3552
        %v3610 = vsub.f32 %v3402, %v3557
        %v3611 = vsub.f32 %v3403, %v3562
        %v3612 = vsub.f32 %v3404, %v3567
        %v3613 = vsub.f32 %v3405, %v3572
        %v3614 = vsub.f32 %v3406, %v3577
        %v3615 = vsub.f32 %v3407, %v3582
        %v3616 = vsub.f32 %v3408, %v3587
        %v3617 = vsub.f32 %v3409, %v3592
        %v3618 = vsub.f32 %v3410, %v3597
        %v3619 = vsub.f32 %v3411, %v3602
        %v3620 = vmul.f32 %v3604, 1.442695
        %v3621 = vpow.pop %v3620
        %v3622 = vmul.f32 %v3605, 1.442695
        %v3623 = vpow.pop %v3622
        %v3624 = vmul.f32 %v3606, 1.442695
        %v3625 = vpow.pop %v3624
        %v3626 = vmul.f32 %v3607, 1.442695
        %v3627 = vpow.pop %v3626
        %v3628 = vmul.f32 %v3608, 1.442695
        %v3629 = vpow.pop %v3628
        %v3630 = vmul.f32 %v3609, 1.442695
        %v3631 = vpow.pop %v3630
        %v3632 = vmul.f32 %v3610, 1.442695
        %v3633 = vpow.pop %v3632
        %v3634 = vmul.f32 %v3611, 1.442695
        %v3635 = vpow.pop %v3634
        %v3636 = vmul.f32 %v3612, 1.442695
        %v3637 = vpow.pop %v3636
        %v3638 = vmul.f32 %v3613, 1.442695
        %v3639 = vpow.pop %v3638
        %v3640 = vmul.f32 %v3614, 1.442695
        %v3641 = vpow.pop %v3640
        %v3642 = vmul.f32 %v3615, 1.442695
        %v3643 = vpow.pop %v3642
        %v3644 = vmul.f32 %v3616, 1.442695
        %v3645 = vpow.pop %v3644
        %v3646 = vmul.f32 %v3617, 1.442695
        %v3647 = vpow.pop %v3646
        %v3648 = vmul.f32 %v3618, 1.442695
        %v3649 = vpow.pop %v3648
        %v3650 = vmul.f32 %v3619, 1.442695
        %v3651 = vpow.pop %v3650
        %v3652 = vsel %vm756, %v3621, 0.0
        %v3653 = vsel %vm757, %v3623, 0.0
        %v3654 = vsel %vm758, %v3625, 0.0
        %v3655 = vsel %vm759, %v3627, 0.0
        %v3656 = vsel %vm760, %v3629, 0.0
        %v3657 = vsel %vm761, %v3631, 0.0
        %v3658 = vsel %vm762, %v3633, 0.0
        %v3659 = vsel %vm763, %v3635, 0.0
        %v3660 = vsel %vm764, %v3637, 0.0
        %v3661 = vsel %vm765, %v3639, 0.0
        %v3662 = vsel %vm766, %v3641, 0.0
        %v3663 = vsel %vm767, %v3643, 0.0
        %v3664 = vsel %vm768, %v3645, 0.0
        %v3665 = vsel %vm769, %v3647, 0.0
        %v3666 = vsel %vm770, %v3649, 0.0
        %v3667 = vsel %vm771, %v3651, 0.0
        %v3668 = vld [vmem:[#allocation3] sm:$0xff]
        %v3669 = vld [vmem:[#allocation3 + $0x8] sm:$0xff]
        %v3670 = vld [vmem:[#allocation3 + $0x10] sm:$0xff]
        %v3671 = vld [vmem:[#allocation3 + $0x18] sm:$0xff]
        %v3672 = vld [vmem:[#allocation3 + $0x20] sm:$0xff]
        %v3673 = vld [vmem:[#allocation3 + $0x28] sm:$0xff]
        %v3674 = vld [vmem:[#allocation3 + $0x30] sm:$0xff]
        %v3675 = vld [vmem:[#allocation3 + $0x38] sm:$0xff]
        %v3676 = vld [vmem:[#allocation3 + $0x40] sm:$0xff]
        %v3677 = vld [vmem:[#allocation3 + $0x48] sm:$0xff]
        %v3678 = vld [vmem:[#allocation3 + $0x50] sm:$0xff]
        %v3679 = vld [vmem:[#allocation3 + $0x58] sm:$0xff]
        %v3680 = vld [vmem:[#allocation3 + $0x60] sm:$0xff]
        %v3681 = vld [vmem:[#allocation3 + $0x68] sm:$0xff]
        %v3682 = vld [vmem:[#allocation3 + $0x70] sm:$0xff]
        %v3683 = vld [vmem:[#allocation3 + $0x78] sm:$0xff]
        %v3684 = vmul.f32 %v3493, %v3668
        %v3685 = vmul.f32 %v3495, %v3669
        %v3686 = vmul.f32 %v3497, %v3670
        %v3687 = vmul.f32 %v3499, %v3671
        %v3688 = vmul.f32 %v3501, %v3672
        %v3689 = vmul.f32 %v3503, %v3673
        %v3690 = vmul.f32 %v3505, %v3674
        %v3691 = vmul.f32 %v3507, %v3675
        %v3692 = vmul.f32 %v3509, %v3676
        %v3693 = vmul.f32 %v3511, %v3677
        %v3694 = vmul.f32 %v3513, %v3678
        %v3695 = vmul.f32 %v3515, %v3679
        %v3696 = vmul.f32 %v3517, %v3680
        %v3697 = vmul.f32 %v3519, %v3681
        %v3698 = vmul.f32 %v3521, %v3682
        %v3699 = vmul.f32 %v3523, %v3683
        %3700 = vadd.xlane.f32.xlu0 %v3652
        %v3701 = vpop.xlane.xlu0 %3700
        %3702 = vadd.xlane.f32.xlu0 %v3653
        %v3703 = vpop.xlane.xlu0 %3702
        %3704 = vadd.xlane.f32.xlu0 %v3654
        %v3705 = vpop.xlane.xlu0 %3704
        %3706 = vadd.xlane.f32.xlu0 %v3655
        %v3707 = vpop.xlane.xlu0 %3706
        %3708 = vadd.xlane.f32.xlu0 %v3656
        %v3709 = vpop.xlane.xlu0 %3708
        %3710 = vadd.xlane.f32.xlu0 %v3657
        %v3711 = vpop.xlane.xlu0 %3710
        %3712 = vadd.xlane.f32.xlu0 %v3658
        %v3713 = vpop.xlane.xlu0 %3712
        %3714 = vadd.xlane.f32.xlu0 %v3659
        %v3715 = vpop.xlane.xlu0 %3714
        %3716 = vadd.xlane.f32.xlu0 %v3660
        %v3717 = vpop.xlane.xlu0 %3716
        %3718 = vadd.xlane.f32.xlu0 %v3661
        %v3719 = vpop.xlane.xlu0 %3718
        %3720 = vadd.xlane.f32.xlu0 %v3662
        %v3721 = vpop.xlane.xlu0 %3720
        %3722 = vadd.xlane.f32.xlu0 %v3663
        %v3723 = vpop.xlane.xlu0 %3722
        %3724 = vadd.xlane.f32.xlu0 %v3664
        %v3725 = vpop.xlane.xlu0 %3724
        %3726 = vadd.xlane.f32.xlu0 %v3665
        %v3727 = vpop.xlane.xlu0 %3726
        %3728 = vadd.xlane.f32.xlu0 %v3666
        %v3729 = vpop.xlane.xlu0 %3728
        %3730 = vadd.xlane.f32.xlu0 %v3667
        %v3731 = vpop.xlane.xlu0 %3730
        %v3732 = vadd.f32 %v3684, %v3701
        %v3733 = vadd.f32 %v3685, %v3703
        %v3734 = vadd.f32 %v3686, %v3705
        %v3735 = vadd.f32 %v3687, %v3707
        %v3736 = vadd.f32 %v3688, %v3709
        %v3737 = vadd.f32 %v3689, %v3711
        %v3738 = vadd.f32 %v3690, %v3713
        %v3739 = vadd.f32 %v3691, %v3715
        %v3740 = vadd.f32 %v3692, %v3717
        %v3741 = vadd.f32 %v3693, %v3719
        %v3742 = vadd.f32 %v3694, %v3721
        %v3743 = vadd.f32 %v3695, %v3723
        %v3744 = vadd.f32 %v3696, %v3725
        %v3745 = vadd.f32 %v3697, %v3727
        %v3746 = vadd.f32 %v3698, %v3729
        %v3747 = vadd.f32 %v3699, %v3731
        %vm3748 = vcmask 31768
        %3749 = vst.msk [vmem:[#allocation3] sm:$0xff] %vm3748, %v3732
        %3750 = vst.msk [vmem:[#allocation3 + $0x8] sm:$0xff] %vm3748, %v3733
        %3751 = vst.msk [vmem:[#allocation3 + $0x10] sm:$0xff] %vm3748, %v3734
        %3752 = vst.msk [vmem:[#allocation3 + $0x18] sm:$0xff] %vm3748, %v3735
        %3753 = vst.msk [vmem:[#allocation3 + $0x20] sm:$0xff] %vm3748, %v3736
        %3754 = vst.msk [vmem:[#allocation3 + $0x28] sm:$0xff] %vm3748, %v3737
        %3755 = vst.msk [vmem:[#allocation3 + $0x30] sm:$0xff] %vm3748, %v3738
        %3756 = vst.msk [vmem:[#allocation3 + $0x38] sm:$0xff] %vm3748, %v3739
        %3757 = vst.msk [vmem:[#allocation3 + $0x40] sm:$0xff] %vm3748, %v3740
        %3758 = vst.msk [vmem:[#allocation3 + $0x48] sm:$0xff] %vm3748, %v3741
        %3759 = vst.msk [vmem:[#allocation3 + $0x50] sm:$0xff] %vm3748, %v3742
        %3760 = vst.msk [vmem:[#allocation3 + $0x58] sm:$0xff] %vm3748, %v3743
        %3761 = vst.msk [vmem:[#allocation3 + $0x60] sm:$0xff] %vm3748, %v3744
        %3762 = vst.msk [vmem:[#allocation3 + $0x68] sm:$0xff] %vm3748, %v3745
        %3763 = vst.msk [vmem:[#allocation3 + $0x70] sm:$0xff] %vm3748, %v3746
        %3764 = vst.msk [vmem:[#allocation3 + $0x78] sm:$0xff] %vm3748, %v3747
        %v3765 = vpack.c.bf16 %v3653, %v3652
        %v3766 = vpack.c.bf16 %v3655, %v3654
        %v3767 = vpack.c.bf16 %v3657, %v3656
        %v3768 = vpack.c.bf16 %v3659, %v3658
        %v3769 = vpack.c.bf16 %v3661, %v3660
        %v3770 = vpack.c.bf16 %v3663, %v3662
        %v3771 = vpack.c.bf16 %v3665, %v3664
        %v3772 = vpack.c.bf16 %v3667, %v3666
        %3773 = vrot.lane.b32.xlu0 %v1181, 32
        %v3774 = vpop.permute.xlu0 %3773
        %3775 = vrot.lane.b32.xlu0 %v1182, 32
        %v3776 = vpop.permute.xlu0 %3775
        %3777 = vrot.lane.b32.xlu0 %v1183, 32
        %v3778 = vpop.permute.xlu0 %3777
        %3779 = vrot.lane.b32.xlu0 %v1184, 32
        %v3780 = vpop.permute.xlu0 %3779
        %3781 = vrot.lane.b32.xlu0 %v1185, 32
        %v3782 = vpop.permute.xlu0 %3781
        %3783 = vrot.lane.b32.xlu0 %v1186, 32
        %v3784 = vpop.permute.xlu0 %3783
        %3785 = vrot.lane.b32.xlu0 %v1187, 32
        %v3786 = vpop.permute.xlu0 %3785
        %3787 = vrot.lane.b32.xlu0 %v1188, 32
        %v3788 = vpop.permute.xlu0 %3787
        %3797 = vmatprep.subr.bf16.mxu0 0
        %3798 = vmatpush1.bf16.msra.mxu0 %v3774
        %3799 = vmatprep.subr.bf16.mxu0 0
        %3800 = vmatpush1.bf16.msra.mxu0 %v3776
        %3801 = vmatprep.subr.bf16.mxu0 0
        %3802 = vmatpush1.bf16.msra.mxu0 %v3778
        %3803 = vmatprep.subr.bf16.mxu0 0
        %3804 = vmatpush1.bf16.msra.mxu0 %v3780
        %3805 = vmatprep.subr.bf16.mxu0 0
        %3806 = vmatpush1.bf16.msra.mxu0 %v3782
        %3807 = vmatprep.subr.bf16.mxu0 0
        %3808 = vmatpush1.bf16.msra.mxu0 %v3784
        %3809 = vmatprep.subr.bf16.mxu0 0
        %3810 = vmatpush1.bf16.msra.mxu0 %v3786
        %3811 = vmatprep.subr.bf16.mxu0 0
        %3812 = vmatpush1.bf16.msra.mxu0 %v3788
        %3813 = vmatprep.subr.bf16.mxu0 0
        %3814 = vmatpush1.bf16.msra.mxu0 0
        %3815 = vmatprep.subr.bf16.mxu0 0
        %3816 = vmatpush1.bf16.msra.mxu0 0
        %3817 = vmatprep.subr.bf16.mxu0 0
        %3818 = vmatpush1.bf16.msra.mxu0 0
        %3819 = vmatprep.subr.bf16.mxu0 0
        %3820 = vmatpush1.bf16.msra.mxu0 0
        %3821 = vmatprep.subr.bf16.mxu0 0
        %3822 = vmatpush1.bf16.msra.mxu0 0
        %3823 = vmatprep.subr.bf16.mxu0 0
        %3824 = vmatpush1.bf16.msra.mxu0 0
        %3825 = vmatprep.subr.bf16.mxu0 0
        %3826 = vmatpush1.bf16.msra.mxu0 0
        %3827 = vmatprep.subr.bf16.mxu0 0
        %3828 = vmatpush1.bf16.msra.mxu0 0
        %3829 = vmatprep.mubr.bf16.mxu0 0
        %3830 = vmatmul.mubr.bf16.gmra.mrb[0].mxu0 %v3765
        %v3831 = vpop.f32.mrb[0].mxu0
        %v3832 = vadd.f32 0.0, %v3831
        %v3833 = vpop.f32.mrb[0].mxu0
        %v3834 = vpop.f32.mrb[0].mxu0
        %v3835 = vadd.f32 0.0, %v3834
        %v3836 = vpop.f32.mrb[0].mxu0
        %3837 = vmatprep.mubr.bf16.mxu0 0
        %3838 = vmatmul.mubr.bf16.gmra.mrb[0].mxu0 %v3766
        %v3839 = vpop.f32.mrb[0].mxu0
        %v3840 = vadd.f32 0.0, %v3839
        %v3841 = vpop.f32.mrb[0].mxu0
        %v3842 = vpop.f32.mrb[0].mxu0
        %v3843 = vadd.f32 0.0, %v3842
        %v3844 = vpop.f32.mrb[0].mxu0
        %3845 = vmatprep.mubr.bf16.mxu0 0
        %3846 = vmatmul.mubr.bf16.gmra.mrb[0].mxu0 %v3767
        %v3847 = vpop.f32.mrb[0].mxu0
        %v3848 = vadd.f32 0.0, %v3847
        %v3849 = vpop.f32.mrb[0].mxu0
        %v3850 = vpop.f32.mrb[0].mxu0
        %v3851 = vadd.f32 0.0, %v3850
        %v3852 = vpop.f32.mrb[0].mxu0
        %3853 = vmatprep.mubr.bf16.mxu0 0
        %3854 = vmatmul.mubr.bf16.gmra.mrb[0].mxu0 %v3768
        %v3855 = vpop.f32.mrb[0].mxu0
        %v3856 = vadd.f32 0.0, %v3855
        %v3857 = vpop.f32.mrb[0].mxu0
        %v3858 = vpop.f32.mrb[0].mxu0
        %v3859 = vadd.f32 0.0, %v3858
        %v3860 = vpop.f32.mrb[0].mxu0
        %3861 = vmatprep.mubr.bf16.mxu0 0
        %3862 = vmatmul.mubr.bf16.gmra.mrb[0].mxu0 %v3769
        %v3863 = vpop.f32.mrb[0].mxu0
        %v3864 = vadd.f32 0.0, %v3863
        %v3865 = vpop.f32.mrb[0].mxu0
        %v3866 = vpop.f32.mrb[0].mxu0
        %v3867 = vadd.f32 0.0, %v3866
        %v3868 = vpop.f32.mrb[0].mxu0
        %3869 = vmatprep.mubr.bf16.mxu0 0
        %3870 = vmatmul.mubr.bf16.gmra.mrb[0].mxu0 %v3770
        %v3871 = vpop.f32.mrb[0].mxu0
        %v3872 = vadd.f32 0.0, %v3871
        %v3873 = vpop.f32.mrb[0].mxu0
        %v3874 = vpop.f32.mrb[0].mxu0
        %v3875 = vadd.f32 0.0, %v3874
        %v3876 = vpop.f32.mrb[0].mxu0
        %3877 = vmatprep.mubr.bf16.mxu0 0
        %3878 = vmatmul.mubr.bf16.gmra.mrb[0].mxu0 %v3771
        %v3879 = vpop.f32.mrb[0].mxu0
        %v3880 = vadd.f32 0.0, %v3879
        %v3881 = vpop.f32.mrb[0].mxu0
        %v3882 = vpop.f32.mrb[0].mxu0
        %v3883 = vadd.f32 0.0, %v3882
        %v3884 = vpop.f32.mrb[0].mxu0
        %3885 = vmatprep.mubr.bf16.mxu0 0
        %3886 = vmatmul.mubr.bf16.gmra.mrb[0].mxu0 %v3772
        %v3887 = vpop.f32.mrb[0].mxu0
        %v3888 = vadd.f32 0.0, %v3887
        %v3889 = vpop.f32.mrb[0].mxu0
        %v3890 = vpop.f32.mrb[0].mxu0
        %v3891 = vadd.f32 0.0, %v3890
        %v3892 = vpop.f32.mrb[0].mxu0
        %3893 = vdwg.mxu0
        %v3894 = vld [vmem:[#allocation4] sm:$0xff]
        %v3895 = vld [vmem:[#allocation4 + $0x8] sm:$0xff]
        %v3896 = vld [vmem:[#allocation4 + $0x10] sm:$0xff]
        %v3897 = vld [vmem:[#allocation4 + $0x18] sm:$0xff]
        %v3898 = vld [vmem:[#allocation4 + $0x20] sm:$0xff]
        %v3899 = vld [vmem:[#allocation4 + $0x28] sm:$0xff]
        %v3900 = vld [vmem:[#allocation4 + $0x30] sm:$0xff]
        %v3901 = vld [vmem:[#allocation4 + $0x38] sm:$0xff]
        %v3902 = vld [vmem:[#allocation4 + $0x40] sm:$0xff]
        %v3903 = vld [vmem:[#allocation4 + $0x48] sm:$0xff]
        %v3904 = vld [vmem:[#allocation4 + $0x50] sm:$0xff]
        %v3905 = vld [vmem:[#allocation4 + $0x58] sm:$0xff]
        %v3906 = vld [vmem:[#allocation4 + $0x60] sm:$0xff]
        %v3907 = vld [vmem:[#allocation4 + $0x68] sm:$0xff]
        %v3908 = vld [vmem:[#allocation4 + $0x70] sm:$0xff]
        %v3909 = vld [vmem:[#allocation4 + $0x78] sm:$0xff]
        %3911 = vset.pattern.permute.xlu0 3
        %3912 = vperm.xlu0 %3911, %v3493
        %v3913 = vpop.permute.xlu0 %3912
        %3916 = vset.pattern.permute.xlu0 3
        %3917 = vperm.xlu0 %3916, %v3495
        %v3918 = vpop.permute.xlu0 %3917
        %3921 = vset.pattern.permute.xlu0 3
        %3922 = vperm.xlu0 %3921, %v3497
        %v3923 = vpop.permute.xlu0 %3922
        %3926 = vset.pattern.permute.xlu0 3
        %3927 = vperm.xlu0 %3926, %v3499
        %v3928 = vpop.permute.xlu0 %3927
        %3931 = vset.pattern.permute.xlu0 3
        %3932 = vperm.xlu0 %3931, %v3501
        %v3933 = vpop.permute.xlu0 %3932
        %3936 = vset.pattern.permute.xlu0 3
        %3937 = vperm.xlu0 %3936, %v3503
        %v3938 = vpop.permute.xlu0 %3937
        %3941 = vset.pattern.permute.xlu0 3
        %3942 = vperm.xlu0 %3941, %v3505
        %v3943 = vpop.permute.xlu0 %3942
        %3946 = vset.pattern.permute.xlu0 3
        %3947 = vperm.xlu0 %3946, %v3507
        %v3948 = vpop.permute.xlu0 %3947
        %3951 = vset.pattern.permute.xlu0 3
        %3952 = vperm.xlu0 %3951, %v3509
        %v3953 = vpop.permute.xlu0 %3952
        %3956 = vset.pattern.permute.xlu0 3
        %3957 = vperm.xlu0 %3956, %v3511
        %v3958 = vpop.permute.xlu0 %3957
        %3961 = vset.pattern.permute.xlu0 3
        %3962 = vperm.xlu0 %3961, %v3513
        %v3963 = vpop.permute.xlu0 %3962
        %3966 = vset.pattern.permute.xlu0 3
        %3967 = vperm.xlu0 %3966, %v3515
        %v3968 = vpop.permute.xlu0 %3967
        %3971 = vset.pattern.permute.xlu0 3
        %3972 = vperm.xlu0 %3971, %v3517
        %v3973 = vpop.permute.xlu0 %3972
        %3976 = vset.pattern.permute.xlu0 3
        %3977 = vperm.xlu0 %3976, %v3519
        %v3978 = vpop.permute.xlu0 %3977
        %3981 = vset.pattern.permute.xlu0 3
        %3982 = vperm.xlu0 %3981, %v3521
        %v3983 = vpop.permute.xlu0 %3982
        %3986 = vset.pattern.permute.xlu0 3
        %3987 = vperm.xlu0 %3986, %v3523
        %v3988 = vpop.permute.xlu0 %3987
        %v3990 = vmul.f32 %v3913, %v3894
        %v3991 = vmul.f32 %v3918, %v3895
        %v3992 = vmul.f32 %v3923, %v3896
        %v3993 = vmul.f32 %v3928, %v3897
        %v3994 = vmul.f32 %v3933, %v3898
        %v3995 = vmul.f32 %v3938, %v3899
        %v3996 = vmul.f32 %v3943, %v3900
        %v3997 = vmul.f32 %v3948, %v3901
        %v3998 = vmul.f32 %v3953, %v3902
        %v3999 = vmul.f32 %v3958, %v3903
        %v4000 = vmul.f32 %v3963, %v3904
        %v4001 = vmul.f32 %v3968, %v3905
        %v4002 = vmul.f32 %v3973, %v3906
        %v4003 = vmul.f32 %v3978, %v3907
        %v4004 = vmul.f32 %v3983, %v3908
        %v4005 = vmul.f32 %v3988, %v3909
        %4022 = vrot.lane.b32.xlu0 %v3832, 96
        %v4023 = vpop.permute.xlu0 %4022
        %4024 = vrot.lane.b32.xlu0 %v3835, 96
        %v4025 = vpop.permute.xlu0 %4024
        %4026 = vrot.lane.b32.xlu0 %v3840, 96
        %v4027 = vpop.permute.xlu0 %4026
        %4028 = vrot.lane.b32.xlu0 %v3843, 96
        %v4029 = vpop.permute.xlu0 %4028
        %4030 = vrot.lane.b32.xlu0 %v3848, 96
        %v4031 = vpop.permute.xlu0 %4030
        %4032 = vrot.lane.b32.xlu0 %v3851, 96
        %v4033 = vpop.permute.xlu0 %4032
        %4034 = vrot.lane.b32.xlu0 %v3856, 96
        %v4035 = vpop.permute.xlu0 %4034
        %4036 = vrot.lane.b32.xlu0 %v3859, 96
        %v4037 = vpop.permute.xlu0 %4036
        %4038 = vrot.lane.b32.xlu0 %v3864, 96
        %v4039 = vpop.permute.xlu0 %4038
        %4040 = vrot.lane.b32.xlu0 %v3867, 96
        %v4041 = vpop.permute.xlu0 %4040
        %4042 = vrot.lane.b32.xlu0 %v3872, 96
        %v4043 = vpop.permute.xlu0 %4042
        %4044 = vrot.lane.b32.xlu0 %v3875, 96
        %v4045 = vpop.permute.xlu0 %4044
        %4046 = vrot.lane.b32.xlu0 %v3880, 96
        %v4047 = vpop.permute.xlu0 %4046
        %4048 = vrot.lane.b32.xlu0 %v3883, 96
        %v4049 = vpop.permute.xlu0 %4048
        %4050 = vrot.lane.b32.xlu0 %v3888, 96
        %v4051 = vpop.permute.xlu0 %4050
        %4052 = vrot.lane.b32.xlu0 %v3891, 96
        %v4053 = vpop.permute.xlu0 %4052
        %v4070 = vadd.f32 %v3990, %v4023
        %v4071 = vadd.f32 %v3991, %v4025
        %v4072 = vadd.f32 %v3992, %v4027
        %v4073 = vadd.f32 %v3993, %v4029
        %v4074 = vadd.f32 %v3994, %v4031
        %v4075 = vadd.f32 %v3995, %v4033
        %v4076 = vadd.f32 %v3996, %v4035
        %v4077 = vadd.f32 %v3997, %v4037
        %v4078 = vadd.f32 %v3998, %v4039
        %v4079 = vadd.f32 %v3999, %v4041
        %v4080 = vadd.f32 %v4000, %v4043
        %v4081 = vadd.f32 %v4001, %v4045
        %v4082 = vadd.f32 %v4002, %v4047
        %v4083 = vadd.f32 %v4003, %v4049
        %v4084 = vadd.f32 %v4004, %v4051
        %v4085 = vadd.f32 %v4005, %v4053
        %vm4086 = vcmask 1048320
        %4087 = vst.msk [vmem:[#allocation4] sm:$0xff] %vm4086, %v4070
        %4088 = vst.msk [vmem:[#allocation4 + $0x8] sm:$0xff] %vm4086, %v4071
        %4089 = vst.msk [vmem:[#allocation4 + $0x10] sm:$0xff] %vm4086, %v4072
        %4090 = vst.msk [vmem:[#allocation4 + $0x18] sm:$0xff] %vm4086, %v4073
        %4091 = vst.msk [vmem:[#allocation4 + $0x20] sm:$0xff] %vm4086, %v4074
        %4092 = vst.msk [vmem:[#allocation4 + $0x28] sm:$0xff] %vm4086, %v4075
        %4093 = vst.msk [vmem:[#allocation4 + $0x30] sm:$0xff] %vm4086, %v4076
        %4094 = vst.msk [vmem:[#allocation4 + $0x38] sm:$0xff] %vm4086, %v4077
        %4095 = vst.msk [vmem:[#allocation4 + $0x40] sm:$0xff] %vm4086, %v4078
        %4096 = vst.msk [vmem:[#allocation4 + $0x48] sm:$0xff] %vm4086, %v4079
        %4097 = vst.msk [vmem:[#allocation4 + $0x50] sm:$0xff] %vm4086, %v4080
        %4098 = vst.msk [vmem:[#allocation4 + $0x58] sm:$0xff] %vm4086, %v4081
        %4099 = vst.msk [vmem:[#allocation4 + $0x60] sm:$0xff] %vm4086, %v4082
        %4100 = vst.msk [vmem:[#allocation4 + $0x68] sm:$0xff] %vm4086, %v4083
        %4101 = vst.msk [vmem:[#allocation4 + $0x70] sm:$0xff] %vm4086, %v4084
        %4102 = vst.msk [vmem:[#allocation4 + $0x78] sm:$0xff] %vm4086, %v4085
        %4103 = vst.msk [vmem:[#allocation2] sm:$0xff] %vm3748, %v3460
        %4104 = vst.msk [vmem:[#allocation2 + $0x8] sm:$0xff] %vm3748, %v3461
        %4105 = vst.msk [vmem:[#allocation2 + $0x10] sm:$0xff] %vm3748, %v3462
        %4106 = vst.msk [vmem:[#allocation2 + $0x18] sm:$0xff] %vm3748, %v3463
        %4107 = vst.msk [vmem:[#allocation2 + $0x20] sm:$0xff] %vm3748, %v3464
        %4108 = vst.msk [vmem:[#allocation2 + $0x28] sm:$0xff] %vm3748, %v3465
        %4109 = vst.msk [vmem:[#allocation2 + $0x30] sm:$0xff] %vm3748, %v3466
        %4110 = vst.msk [vmem:[#allocation2 + $0x38] sm:$0xff] %vm3748, %v3467
        %4111 = vst.msk [vmem:[#allocation2 + $0x40] sm:$0xff] %vm3748, %v3468
        %4112 = vst.msk [vmem:[#allocation2 + $0x48] sm:$0xff] %vm3748, %v3469
        %4113 = vst.msk [vmem:[#allocation2 + $0x50] sm:$0xff] %vm3748, %v3470
        %4114 = vst.msk [vmem:[#allocation2 + $0x58] sm:$0xff] %vm3748, %v3471
        %4115 = vst.msk [vmem:[#allocation2 + $0x60] sm:$0xff] %vm3748, %v3472
        %4116 = vst.msk [vmem:[#allocation2 + $0x68] sm:$0xff] %vm3748, %v3473
        %4117 = vst.msk [vmem:[#allocation2 + $0x70] sm:$0xff] %vm3748, %v3474
        %4118 = vst.msk [vmem:[#allocation2 + $0x78] sm:$0xff] %vm3748, %v3475
        %p4119 = scmp.eq.s32.totalorder %s22, 1
        // Predicated region
        $region90: #{gat_model_forward.5} parent=80 // pred_check
          %p4120 = pneg %p4119
        $region91: #{gat_model_forward.5} parent=80 // pred_check_branch
          %4122 = sbr.rel (%p4120) target = $region93
        $region92: #{gat_model_forward.5} parent=80 // pred_region
          %v4123 = vld [vmem:[#allocation3] sm:$0xff]
          %v4124 = vld [vmem:[#allocation3 + $0x8] sm:$0xff]
          %v4125 = vld [vmem:[#allocation3 + $0x10] sm:$0xff]
          %v4126 = vld [vmem:[#allocation3 + $0x18] sm:$0xff]
          %v4127 = vld [vmem:[#allocation3 + $0x20] sm:$0xff]
          %v4128 = vld [vmem:[#allocation3 + $0x28] sm:$0xff]
          %v4129 = vld [vmem:[#allocation3 + $0x30] sm:$0xff]
          %v4130 = vld [vmem:[#allocation3 + $0x38] sm:$0xff]
          %v4131 = vld [vmem:[#allocation3 + $0x40] sm:$0xff]
          %v4132 = vld [vmem:[#allocation3 + $0x48] sm:$0xff]
          %v4133 = vld [vmem:[#allocation3 + $0x50] sm:$0xff]
          %v4134 = vld [vmem:[#allocation3 + $0x58] sm:$0xff]
          %v4135 = vld [vmem:[#allocation3 + $0x60] sm:$0xff]
          %v4136 = vld [vmem:[#allocation3 + $0x68] sm:$0xff]
          %v4137 = vld [vmem:[#allocation3 + $0x70] sm:$0xff]
          %v4138 = vld [vmem:[#allocation3 + $0x78] sm:$0xff]
          %v4139 = vmax.f32 %v4123, 1e-20
          %v4140 = vmax.f32 %v4124, 1e-20
          %v4141 = vmax.f32 %v4125, 1e-20
          %v4142 = vmax.f32 %v4126, 1e-20
          %v4143 = vmax.f32 %v4127, 1e-20
          %v4144 = vmax.f32 %v4128, 1e-20
          %v4145 = vmax.f32 %v4129, 1e-20
          %v4146 = vmax.f32 %v4130, 1e-20
          %v4147 = vmax.f32 %v4131, 1e-20
          %v4148 = vmax.f32 %v4132, 1e-20
          %v4149 = vmax.f32 %v4133, 1e-20
          %v4150 = vmax.f32 %v4134, 1e-20
          %v4151 = vmax.f32 %v4135, 1e-20
          %v4152 = vmax.f32 %v4136, 1e-20
          %v4153 = vmax.f32 %v4137, 1e-20
          %v4154 = vmax.f32 %v4138, 1e-20
          %v4155 = vrcp.pop %v4139
          %v4156 = vrcp.pop %v4140
          %v4157 = vrcp.pop %v4141
          %v4158 = vrcp.pop %v4142
          %v4159 = vrcp.pop %v4143
          %v4160 = vrcp.pop %v4144
          %v4161 = vrcp.pop %v4145
          %v4162 = vrcp.pop %v4146
          %v4163 = vrcp.pop %v4147
          %v4164 = vrcp.pop %v4148
          %v4165 = vrcp.pop %v4149
          %v4166 = vrcp.pop %v4150
          %v4167 = vrcp.pop %v4151
          %v4168 = vrcp.pop %v4152
          %v4169 = vrcp.pop %v4153
          %v4170 = vrcp.pop %v4154
          %v4171 = vld [vmem:[#allocation4] sm:$0xff]
          %v4172 = vld [vmem:[#allocation4 + $0x8] sm:$0xff]
          %v4173 = vld [vmem:[#allocation4 + $0x10] sm:$0xff]
          %v4174 = vld [vmem:[#allocation4 + $0x18] sm:$0xff]
          %v4175 = vld [vmem:[#allocation4 + $0x20] sm:$0xff]
          %v4176 = vld [vmem:[#allocation4 + $0x28] sm:$0xff]
          %v4177 = vld [vmem:[#allocation4 + $0x30] sm:$0xff]
          %v4178 = vld [vmem:[#allocation4 + $0x38] sm:$0xff]
          %v4179 = vld [vmem:[#allocation4 + $0x40] sm:$0xff]
          %v4180 = vld [vmem:[#allocation4 + $0x48] sm:$0xff]
          %v4181 = vld [vmem:[#allocation4 + $0x50] sm:$0xff]
          %v4182 = vld [vmem:[#allocation4 + $0x58] sm:$0xff]
          %v4183 = vld [vmem:[#allocation4 + $0x60] sm:$0xff]
          %v4184 = vld [vmem:[#allocation4 + $0x68] sm:$0xff]
          %v4185 = vld [vmem:[#allocation4 + $0x70] sm:$0xff]
          %v4186 = vld [vmem:[#allocation4 + $0x78] sm:$0xff]
          %4188 = vset.pattern.permute.xlu0 0
          %4189 = vperm.xlu0 %4188, %v4155
          %v4190 = vpop.permute.xlu0 %4189
          %4193 = vset.pattern.permute.xlu0 0
          %4194 = vperm.xlu0 %4193, %v4156
          %v4195 = vpop.permute.xlu0 %4194
          %4198 = vset.pattern.permute.xlu0 0
          %4199 = vperm.xlu0 %4198, %v4157
          %v4200 = vpop.permute.xlu0 %4199
          %4203 = vset.pattern.permute.xlu0 0
          %4204 = vperm.xlu0 %4203, %v4158
          %v4205 = vpop.permute.xlu0 %4204
          %4208 = vset.pattern.permute.xlu0 0
          %4209 = vperm.xlu0 %4208, %v4159
          %v4210 = vpop.permute.xlu0 %4209
          %4213 = vset.pattern.permute.xlu0 0
          %4214 = vperm.xlu0 %4213, %v4160
          %v4215 = vpop.permute.xlu0 %4214
          %4218 = vset.pattern.permute.xlu0 0
          %4219 = vperm.xlu0 %4218, %v4161
          %v4220 = vpop.permute.xlu0 %4219
          %4223 = vset.pattern.permute.xlu0 0
          %4224 = vperm.xlu0 %4223, %v4162
          %v4225 = vpop.permute.xlu0 %4224
          %4228 = vset.pattern.permute.xlu0 0
          %4229 = vperm.xlu0 %4228, %v4163
          %v4230 = vpop.permute.xlu0 %4229
          %4233 = vset.pattern.permute.xlu0 0
          %4234 = vperm.xlu0 %4233, %v4164
          %v4235 = vpop.permute.xlu0 %4234
          %4238 = vset.pattern.permute.xlu0 0
          %4239 = vperm.xlu0 %4238, %v4165
          %v4240 = vpop.permute.xlu0 %4239
          %4243 = vset.pattern.permute.xlu0 0
          %4244 = vperm.xlu0 %4243, %v4166
          %v4245 = vpop.permute.xlu0 %4244
          %4248 = vset.pattern.permute.xlu0 0
          %4249 = vperm.xlu0 %4248, %v4167
          %v4250 = vpop.permute.xlu0 %4249
          %4253 = vset.pattern.permute.xlu0 0
          %4254 = vperm.xlu0 %4253, %v4168
          %v4255 = vpop.permute.xlu0 %4254
          %4258 = vset.pattern.permute.xlu0 0
          %4259 = vperm.xlu0 %4258, %v4169
          %v4260 = vpop.permute.xlu0 %4259
          %4263 = vset.pattern.permute.xlu0 0
          %4264 = vperm.xlu0 %4263, %v4170
          %v4265 = vpop.permute.xlu0 %4264
          %v4267 = vmul.f32 %v4171, %v4190
          %v4268 = vmul.f32 %v4172, %v4195
          %v4269 = vmul.f32 %v4173, %v4200
          %v4270 = vmul.f32 %v4174, %v4205
          %v4271 = vmul.f32 %v4175, %v4210
          %v4272 = vmul.f32 %v4176, %v4215
          %v4273 = vmul.f32 %v4177, %v4220
          %v4274 = vmul.f32 %v4178, %v4225
          %v4275 = vmul.f32 %v4179, %v4230
          %v4276 = vmul.f32 %v4180, %v4235
          %v4277 = vmul.f32 %v4181, %v4240
          %v4278 = vmul.f32 %v4182, %v4245
          %v4279 = vmul.f32 %v4183, %v4250
          %v4280 = vmul.f32 %v4184, %v4255
          %v4281 = vmul.f32 %v4185, %v4260
          %v4282 = vmul.f32 %v4186, %v4265
          %4283 = vset.pattern.permute.xlu0 1
          %4284 = vperm.xlu0 %4283, %v4155
          %v4285 = vpop.permute.xlu0 %4284
          %4287 = vset.pattern.permute.xlu0 1
          %4288 = vperm.xlu0 %4287, %v4156
          %v4289 = vpop.permute.xlu0 %4288
          %4291 = vset.pattern.permute.xlu0 1
          %4292 = vperm.xlu0 %4291, %v4157
          %v4293 = vpop.permute.xlu0 %4292
          %4295 = vset.pattern.permute.xlu0 1
          %4296 = vperm.xlu0 %4295, %v4158
          %v4297 = vpop.permute.xlu0 %4296
          %4299 = vset.pattern.permute.xlu0 1
          %4300 = vperm.xlu0 %4299, %v4159
          %v4301 = vpop.permute.xlu0 %4300
          %4303 = vset.pattern.permute.xlu0 1
          %4304 = vperm.xlu0 %4303, %v4160
          %v4305 = vpop.permute.xlu0 %4304
          %4307 = vset.pattern.permute.xlu0 1
          %4308 = vperm.xlu0 %4307, %v4161
          %v4309 = vpop.permute.xlu0 %4308
          %4311 = vset.pattern.permute.xlu0 1
          %4312 = vperm.xlu0 %4311, %v4162
          %v4313 = vpop.permute.xlu0 %4312
          %4315 = vset.pattern.permute.xlu0 1
          %4316 = vperm.xlu0 %4315, %v4163
          %v4317 = vpop.permute.xlu0 %4316
          %4319 = vset.pattern.permute.xlu0 1
          %4320 = vperm.xlu0 %4319, %v4164
          %v4321 = vpop.permute.xlu0 %4320
          %4323 = vset.pattern.permute.xlu0 1
          %4324 = vperm.xlu0 %4323, %v4165
          %v4325 = vpop.permute.xlu0 %4324
          %4327 = vset.pattern.permute.xlu0 1
          %4328 = vperm.xlu0 %4327, %v4166
          %v4329 = vpop.permute.xlu0 %4328
          %4331 = vset.pattern.permute.xlu0 1
          %4332 = vperm.xlu0 %4331, %v4167
          %v4333 = vpop.permute.xlu0 %4332
          %4335 = vset.pattern.permute.xlu0 1
          %4336 = vperm.xlu0 %4335, %v4168
          %v4337 = vpop.permute.xlu0 %4336
          %4339 = vset.pattern.permute.xlu0 1
          %4340 = vperm.xlu0 %4339, %v4169
          %v4341 = vpop.permute.xlu0 %4340
          %4343 = vset.pattern.permute.xlu0 1
          %4344 = vperm.xlu0 %4343, %v4170
          %v4345 = vpop.permute.xlu0 %4344
          %v4347 = vmul.f32 %v4171, %v4285
          %v4348 = vmul.f32 %v4172, %v4289
          %v4349 = vmul.f32 %v4173, %v4293
          %v4350 = vmul.f32 %v4174, %v4297
          %v4351 = vmul.f32 %v4175, %v4301
          %v4352 = vmul.f32 %v4176, %v4305
          %v4353 = vmul.f32 %v4177, %v4309
          %v4354 = vmul.f32 %v4178, %v4313
          %v4355 = vmul.f32 %v4179, %v4317
          %v4356 = vmul.f32 %v4180, %v4321
          %v4357 = vmul.f32 %v4181, %v4325
          %v4358 = vmul.f32 %v4182, %v4329
          %v4359 = vmul.f32 %v4183, %v4333
          %v4360 = vmul.f32 %v4184, %v4337
          %v4361 = vmul.f32 %v4185, %v4341
          %v4362 = vmul.f32 %v4186, %v4345
          %4363 = vset.pattern.permute.xlu0 2
          %4364 = vperm.xlu0 %4363, %v4155
          %v4365 = vpop.permute.xlu0 %4364
          %4367 = vset.pattern.permute.xlu0 2
          %4368 = vperm.xlu0 %4367, %v4156
          %v4369 = vpop.permute.xlu0 %4368
          %4371 = vset.pattern.permute.xlu0 2
          %4372 = vperm.xlu0 %4371, %v4157
          %v4373 = vpop.permute.xlu0 %4372
          %4375 = vset.pattern.permute.xlu0 2
          %4376 = vperm.xlu0 %4375, %v4158
          %v4377 = vpop.permute.xlu0 %4376
          %4379 = vset.pattern.permute.xlu0 2
          %4380 = vperm.xlu0 %4379, %v4159
          %v4381 = vpop.permute.xlu0 %4380
          %4383 = vset.pattern.permute.xlu0 2
          %4384 = vperm.xlu0 %4383, %v4160
          %v4385 = vpop.permute.xlu0 %4384
          %4387 = vset.pattern.permute.xlu0 2
          %4388 = vperm.xlu0 %4387, %v4161
          %v4389 = vpop.permute.xlu0 %4388
          %4391 = vset.pattern.permute.xlu0 2
          %4392 = vperm.xlu0 %4391, %v4162
          %v4393 = vpop.permute.xlu0 %4392
          %4395 = vset.pattern.permute.xlu0 2
          %4396 = vperm.xlu0 %4395, %v4163
          %v4397 = vpop.permute.xlu0 %4396
          %4399 = vset.pattern.permute.xlu0 2
          %4400 = vperm.xlu0 %4399, %v4164
          %v4401 = vpop.permute.xlu0 %4400
          %4403 = vset.pattern.permute.xlu0 2
          %4404 = vperm.xlu0 %4403, %v4165
          %v4405 = vpop.permute.xlu0 %4404
          %4407 = vset.pattern.permute.xlu0 2
          %4408 = vperm.xlu0 %4407, %v4166
          %v4409 = vpop.permute.xlu0 %4408
          %4411 = vset.pattern.permute.xlu0 2
          %4412 = vperm.xlu0 %4411, %v4167
          %v4413 = vpop.permute.xlu0 %4412
          %4415 = vset.pattern.permute.xlu0 2
          %4416 = vperm.xlu0 %4415, %v4168
          %v4417 = vpop.permute.xlu0 %4416
          %4419 = vset.pattern.permute.xlu0 2
          %4420 = vperm.xlu0 %4419, %v4169
          %v4421 = vpop.permute.xlu0 %4420
          %4423 = vset.pattern.permute.xlu0 2
          %4424 = vperm.xlu0 %4423, %v4170
          %v4425 = vpop.permute.xlu0 %4424
          %v4427 = vmul.f32 %v4171, %v4365
          %v4428 = vmul.f32 %v4172, %v4369
          %v4429 = vmul.f32 %v4173, %v4373
          %v4430 = vmul.f32 %v4174, %v4377
          %v4431 = vmul.f32 %v4175, %v4381
          %v4432 = vmul.f32 %v4176, %v4385
          %v4433 = vmul.f32 %v4177, %v4389
          %v4434 = vmul.f32 %v4178, %v4393
          %v4435 = vmul.f32 %v4179, %v4397
          %v4436 = vmul.f32 %v4180, %v4401
          %v4437 = vmul.f32 %v4181, %v4405
          %v4438 = vmul.f32 %v4182, %v4409
          %v4439 = vmul.f32 %v4183, %v4413
          %v4440 = vmul.f32 %v4184, %v4417
          %v4441 = vmul.f32 %v4185, %v4421
          %v4442 = vmul.f32 %v4186, %v4425
          %4443 = vset.pattern.permute.xlu0 3
          %4444 = vperm.xlu0 %4443, %v4155
          %v4445 = vpop.permute.xlu0 %4444
          %4447 = vset.pattern.permute.xlu0 3
          %4448 = vperm.xlu0 %4447, %v4156
          %v4449 = vpop.permute.xlu0 %4448
          %4451 = vset.pattern.permute.xlu0 3
          %4452 = vperm.xlu0 %4451, %v4157
          %v4453 = vpop.permute.xlu0 %4452
          %4455 = vset.pattern.permute.xlu0 3
          %4456 = vperm.xlu0 %4455, %v4158
          %v4457 = vpop.permute.xlu0 %4456
          %4459 = vset.pattern.permute.xlu0 3
          %4460 = vperm.xlu0 %4459, %v4159
          %v4461 = vpop.permute.xlu0 %4460
          %4463 = vset.pattern.permute.xlu0 3
          %4464 = vperm.xlu0 %4463, %v4160
          %v4465 = vpop.permute.xlu0 %4464
          %4467 = vset.pattern.permute.xlu0 3
          %4468 = vperm.xlu0 %4467, %v4161
          %v4469 = vpop.permute.xlu0 %4468
          %4471 = vset.pattern.permute.xlu0 3
          %4472 = vperm.xlu0 %4471, %v4162
          %v4473 = vpop.permute.xlu0 %4472
          %4475 = vset.pattern.permute.xlu0 3
          %4476 = vperm.xlu0 %4475, %v4163
          %v4477 = vpop.permute.xlu0 %4476
          %4479 = vset.pattern.permute.xlu0 3
          %4480 = vperm.xlu0 %4479, %v4164
          %v4481 = vpop.permute.xlu0 %4480
          %4483 = vset.pattern.permute.xlu0 3
          %4484 = vperm.xlu0 %4483, %v4165
          %v4485 = vpop.permute.xlu0 %4484
          %4487 = vset.pattern.permute.xlu0 3
          %4488 = vperm.xlu0 %4487, %v4166
          %v4489 = vpop.permute.xlu0 %4488
          %4491 = vset.pattern.permute.xlu0 3
          %4492 = vperm.xlu0 %4491, %v4167
          %v4493 = vpop.permute.xlu0 %4492
          %4495 = vset.pattern.permute.xlu0 3
          %4496 = vperm.xlu0 %4495, %v4168
          %v4497 = vpop.permute.xlu0 %4496
          %4499 = vset.pattern.permute.xlu0 3
          %4500 = vperm.xlu0 %4499, %v4169
          %v4501 = vpop.permute.xlu0 %4500
          %4503 = vset.pattern.permute.xlu0 3
          %4504 = vperm.xlu0 %4503, %v4170
          %v4505 = vpop.permute.xlu0 %4504
          %v4507 = vmul.f32 %v4171, %v4445
          %v4508 = vmul.f32 %v4172, %v4449
          %v4509 = vmul.f32 %v4173, %v4453
          %v4510 = vmul.f32 %v4174, %v4457
          %v4511 = vmul.f32 %v4175, %v4461
          %v4512 = vmul.f32 %v4176, %v4465
          %v4513 = vmul.f32 %v4177, %v4469
          %v4514 = vmul.f32 %v4178, %v4473
          %v4515 = vmul.f32 %v4179, %v4477
          %v4516 = vmul.f32 %v4180, %v4481
          %v4517 = vmul.f32 %v4181, %v4485
          %v4518 = vmul.f32 %v4182, %v4489
          %v4519 = vmul.f32 %v4183, %v4493
          %v4520 = vmul.f32 %v4184, %v4497
          %v4521 = vmul.f32 %v4185, %v4501
          %v4522 = vmul.f32 %v4186, %v4505
          %v4523 = vsel %vm1422, %v4267, %v4347
          %v4524 = vsel %vm1422, %v4268, %v4348
          %v4525 = vsel %vm1422, %v4269, %v4349
          %v4526 = vsel %vm1422, %v4270, %v4350
          %v4527 = vsel %vm1422, %v4271, %v4351
          %v4528 = vsel %vm1422, %v4272, %v4352
          %v4529 = vsel %vm1422, %v4273, %v4353
          %v4530 = vsel %vm1422, %v4274, %v4354
          %v4531 = vsel %vm1422, %v4275, %v4355
          %v4532 = vsel %vm1422, %v4276, %v4356
          %v4533 = vsel %vm1422, %v4277, %v4357
          %v4534 = vsel %vm1422, %v4278, %v4358
          %v4535 = vsel %vm1422, %v4279, %v4359
          %v4536 = vsel %vm1422, %v4280, %v4360
          %v4537 = vsel %vm1422, %v4281, %v4361
          %v4538 = vsel %vm1422, %v4282, %v4362
          %vm4539 = vcmask 523264
          %v4540 = vsel %vm4539, %v4523, %v4427
          %v4541 = vsel %vm4539, %v4524, %v4428
          %v4542 = vsel %vm4539, %v4525, %v4429
          %v4543 = vsel %vm4539, %v4526, %v4430
          %v4544 = vsel %vm4539, %v4527, %v4431
          %v4545 = vsel %vm4539, %v4528, %v4432
          %v4546 = vsel %vm4539, %v4529, %v4433
          %v4547 = vsel %vm4539, %v4530, %v4434
          %v4548 = vsel %vm4539, %v4531, %v4435
          %v4549 = vsel %vm4539, %v4532, %v4436
          %v4550 = vsel %vm4539, %v4533, %v4437
          %v4551 = vsel %vm4539, %v4534, %v4438
          %v4552 = vsel %vm4539, %v4535, %v4439
          %v4553 = vsel %vm4539, %v4536, %v4440
          %v4554 = vsel %vm4539, %v4537, %v4441
          %v4555 = vsel %vm4539, %v4538, %v4442
          %vm4556 = vcmask 785408
          %v4557 = vsel %vm4556, %v4540, %v4507
          %v4558 = vsel %vm4556, %v4541, %v4508
          %v4559 = vsel %vm4556, %v4542, %v4509
          %v4560 = vsel %vm4556, %v4543, %v4510
          %v4561 = vsel %vm4556, %v4544, %v4511
          %v4562 = vsel %vm4556, %v4545, %v4512
          %v4563 = vsel %vm4556, %v4546, %v4513
          %v4564 = vsel %vm4556, %v4547, %v4514
          %v4565 = vsel %vm4556, %v4548, %v4515
          %v4566 = vsel %vm4556, %v4549, %v4516
          %v4567 = vsel %vm4556, %v4550, %v4517
          %v4568 = vsel %vm4556, %v4551, %v4518
          %v4569 = vsel %vm4556, %v4552, %v4519
          %v4570 = vsel %vm4556, %v4553, %v4520
          %v4571 = vsel %vm4556, %v4554, %v4521
          %v4572 = vsel %vm4556, %v4555, %v4522
          %v4573 = vld [vmem:[%s447] sm:$0xff]
          %v4574 = vld [vmem:[%s447 + $0x8] sm:$0xff]
          %v4575 = vld [vmem:[%s447 + $0x10] sm:$0xff]
          %v4576 = vld [vmem:[%s447 + $0x18] sm:$0xff]
          %v4577 = vld [vmem:[%s447 + $0x20] sm:$0xff]
          %v4578 = vld [vmem:[%s447 + $0x28] sm:$0xff]
          %v4579 = vld [vmem:[%s447 + $0x30] sm:$0xff]
          %v4580 = vld [vmem:[%s447 + $0x38] sm:$0xff]
          %v4581 = vld [vmem:[%s447 + $0x40] sm:$0xff]
          %v4582 = vld [vmem:[%s447 + $0x48] sm:$0xff]
          %v4583 = vld [vmem:[%s447 + $0x50] sm:$0xff]
          %v4584 = vld [vmem:[%s447 + $0x58] sm:$0xff]
          %v4585 = vld [vmem:[%s447 + $0x60] sm:$0xff]
          %v4586 = vld [vmem:[%s447 + $0x68] sm:$0xff]
          %v4587 = vld [vmem:[%s447 + $0x70] sm:$0xff]
          %v4588 = vld [vmem:[%s447 + $0x78] sm:$0xff]
          %v4589 = vadd.f32 %v4557, %v4573
          %v4590 = vadd.f32 %v4558, %v4574
          %v4591 = vadd.f32 %v4559, %v4575
          %v4592 = vadd.f32 %v4560, %v4576
          %v4593 = vadd.f32 %v4561, %v4577
          %v4594 = vadd.f32 %v4562, %v4578
          %v4595 = vadd.f32 %v4563, %v4579
          %v4596 = vadd.f32 %v4564, %v4580
          %v4597 = vadd.f32 %v4565, %v4581
          %v4598 = vadd.f32 %v4566, %v4582
          %v4599 = vadd.f32 %v4567, %v4583
          %v4600 = vadd.f32 %v4568, %v4584
          %v4601 = vadd.f32 %v4569, %v4585
          %v4602 = vadd.f32 %v4570, %v4586
          %v4603 = vadd.f32 %v4571, %v4587
          %v4604 = vadd.f32 %v4572, %v4588
          %v4605 = vld [vmem:[%s5] sm:$0x1]
          %v4607 = vlaneseq
          %v4608 = vshrl.u32 %v4607, 7
          %v4609 = vsub.s32 0, %v4608
          %v4610 = vrot.slane %v4605, %v4609
          %v4612 = vadd.f32 %v4589, %v4610
          %v4613 = vadd.f32 %v4590, %v4610
          %v4614 = vadd.f32 %v4591, %v4610
          %v4615 = vadd.f32 %v4592, %v4610
          %v4616 = vadd.f32 %v4593, %v4610
          %v4617 = vadd.f32 %v4594, %v4610
          %v4618 = vadd.f32 %v4595, %v4610
          %v4619 = vadd.f32 %v4596, %v4610
          %v4620 = vadd.f32 %v4597, %v4610
          %v4621 = vadd.f32 %v4598, %v4610
          %v4622 = vadd.f32 %v4599, %v4610
          %v4623 = vadd.f32 %v4600, %v4610
          %v4624 = vadd.f32 %v4601, %v4610
          %v4625 = vadd.f32 %v4602, %v4610
          %v4626 = vadd.f32 %v4603, %v4610
          %v4627 = vadd.f32 %v4604, %v4610
          %4628 = vst [vmem:[%s453] sm:$0xff] %v4612
          %4629 = vst [vmem:[%s453 + $0x8] sm:$0xff] %v4613
          %4630 = vst [vmem:[%s453 + $0x10] sm:$0xff] %v4614
          %4631 = vst [vmem:[%s453 + $0x18] sm:$0xff] %v4615
          %4632 = vst [vmem:[%s453 + $0x20] sm:$0xff] %v4616
          %4633 = vst [vmem:[%s453 + $0x28] sm:$0xff] %v4617
          %4634 = vst [vmem:[%s453 + $0x30] sm:$0xff] %v4618
          %4635 = vst [vmem:[%s453 + $0x38] sm:$0xff] %v4619
          %4636 = vst [vmem:[%s453 + $0x40] sm:$0xff] %v4620
          %4637 = vst [vmem:[%s453 + $0x48] sm:$0xff] %v4621
          %4638 = vst [vmem:[%s453 + $0x50] sm:$0xff] %v4622
          %4639 = vst [vmem:[%s453 + $0x58] sm:$0xff] %v4623
          %4640 = vst [vmem:[%s453 + $0x60] sm:$0xff] %v4624
          %4641 = vst [vmem:[%s453 + $0x68] sm:$0xff] %v4625
          %4642 = vst [vmem:[%s453 + $0x70] sm:$0xff] %v4626
          %4643 = vst [vmem:[%s453 + $0x78] sm:$0xff] %v4627
        $region93: #{gat_model_forward.5} parent=80 // pred_fallthru
          _
        %s4644 = smul.u32 16, %s21
        %p4645 = scmp.lt.s32.totalorder %s4644, 31
        %s4646 = scalar_select %p4645, %s4644, 31
        %s4647 = smul.addr %s4646, 8
        %s4648 = scalar_lea.vmem %s6, %s4647
        // Predicated region
        $region94: #{gat_model_forward.5} parent=80 // pred_check
          %p4649 = pneg %p200
        $region95: #{gat_model_forward.5} parent=80 // pred_check_branch
          %4651 = sbr.rel (%p4649) target = $region97
        $region96: #{gat_model_forward.5} parent=80 // pred_region
          %s4652 = smul.u32 16, %s21
        $region97: #{gat_model_forward.5} parent=80 // pred_fallthru
          _
      $region81: #{gat_model_forward.5} parent=5 // pred_fallthru
        _
      %p4653 = scmp.le.s32.totalorder 2, %s12
      // Predicated region
      $region98: #{gat_model_forward.5} parent=5 // pred_check
        %p4654 = pneg %p4653
      $region99: #{gat_model_forward.5} parent=5 // pred_check_branch
        %4656 = sbr.rel (%p4654) target = $region101
      $region100: #{gat_model_forward.5} parent=5 // pred_region
        %s4657 = ssub.s32 %s12, 2
        // Predicated region
        $region102: #{gat_model_forward.5} parent=100 // pred_check
          %p4658 = pneg %p206
        $region103: #{gat_model_forward.5} parent=100 // pred_check_branch
          %4660 = sbr.rel (%p4658) target = $region105
        $region104: #{gat_model_forward.5} parent=100 // pred_region
          %s4661 = smul.u32 16, %s23
          %p4662 = scmp.lt.s32.totalorder %s4661, 31
          %s4663 = scalar_select %p4662, %s4661, 31
          %s4664 = smul.addr %s4663, 8
          %s4665 = scalar_lea.vmem %s6, %s4664
        $region105: #{gat_model_forward.5} parent=100 // pred_fallthru
          _
      $region101: #{gat_model_forward.5} parent=5 // pred_fallthru
        _
    $region6: #{gat_model_forward.5} parent=1 // loop_footer
      %s16 = sadd.s32 1, %s12
    $region7: #{gat_model_forward.5} parent=1 // loop_footer_branch
      %11 = sbr.rel target = $region3
    $region8: #{gat_model_forward.5} parent=1 // loop_exit
      _

</llo_original>
